<compile_context>
chip_gen: v7x
topology: tpu7x:2x2x1
jax: 0.10.0
libtpu: 0.0.40
codegen_flags: <defaults>
</compile_context>

<pallas_src>
import math

import jax
import jax.numpy as jnp
from jax.experimental import pallas as pl
from jax.experimental.pallas import tpu as pltpu


# --------------------------------------------------------------------------
# Fused MLP kernel:  y = (((x @ w1 + s1) @ w2 + s2) ... ), optional sigmoid.
# Bias + eval-mode BatchNorm are pre-folded into (w, s).
# --------------------------------------------------------------------------
def _mlp_kernel(n_layers: int, apply_sigmoid: bool):
    def kernel(*refs):
        x_ref = refs[0]
        o_ref = refs[1 + 2 * n_layers]
        y = x_ref[...]
        for l in range(n_layers):
            w_ref = refs[1 + 2 * l]
            s_ref = refs[2 + 2 * l]
            y = jnp.dot(y, w_ref[...], preferred_element_type=jnp.float32) + s_ref[...]
        if apply_sigmoid:
            y = jax.nn.sigmoid(y)
        o_ref[...] = y
    return kernel


def fused_mlp(x, layers, apply_sigmoid=False):
    """x: [M, K0]; layers: list of (w [Ki, Ki+1], shift [Ki+1]). One pallas_call."""
    M = x.shape[0]
    in_specs = [pl.BlockSpec(x.shape, lambda i: (0, 0))]
    args = [x]
    for (w, s) in layers:
        in_specs.append(pl.BlockSpec(w.shape, lambda i: (0, 0)))
        in_specs.append(pl.BlockSpec((1, w.shape[1]), lambda i: (0, 0)))
        args.extend([w, s.reshape(1, -1)])
    n_out = layers[-1][0].shape[1]
    return pl.pallas_call(
        _mlp_kernel(len(layers), apply_sigmoid),
        out_shape=jax.ShapeDtypeStruct((M, n_out), jnp.float32),
        grid=(1,),
        in_specs=in_specs,
        out_specs=pl.BlockSpec((M, n_out), lambda i: (0, 0)),
    )(*args)


# --------------------------------------------------------------------------
# Fused multi-layer LSTM kernel (PyTorch gate order i,f,g,o; b_ih+b_hh folded).
# Input is time-major-flattened [T*BT, E]; only the final hidden state of the
# last layer is emitted ([BT, H]); inter-layer sequence stays in VMEM scratch.
# --------------------------------------------------------------------------
def _lstm_stack_kernel(n_layers: int, T: int, BT: int, H: int):
    def kernel(x_ref, *refs):
        o_ref = refs[3 * n_layers]
        g_sc = refs[3 * n_layers + 1]      # [T*BT, 4H]: hoisted input projections
        seq_sc = refs[3 * n_layers + 2]    # [T*BT, H]:  previous layer's output seq
        last_h = None
        for l in range(n_layers):
            wih_ref = refs[3 * l]
            whh_ref = refs[3 * l + 1]
            b_ref = refs[3 * l + 2]
            inp = x_ref[...] if l == 0 else seq_sc[...]
            # Hoisted input projection: one big MXU pass for all T timesteps.
            g_sc[...] = (jnp.dot(inp, wih_ref[...],
                                 preferred_element_type=jnp.float32) + b_ref[...])
            h = jnp.zeros((BT, H), jnp.float32)
            c = jnp.zeros((BT, H), jnp.float32)
            for t in range(T):  # static unroll: only h @ Whh on the serial path
                gates = (g_sc[t * BT:(t + 1) * BT, :]
                         + jnp.dot(h, whh_ref[...],
                                   preferred_element_type=jnp.float32))
                i_g = jax.nn.sigmoid(gates[:, 0 * H:1 * H])
                f_g = jax.nn.sigmoid(gates[:, 1 * H:2 * H])
                g_g = jnp.tanh(gates[:, 2 * H:3 * H])
                o_g = jax.nn.sigmoid(gates[:, 3 * H:4 * H])
                c = f_g * c + i_g * g_g
                h = o_g * jnp.tanh(c)
                if l < n_layers - 1:
                    seq_sc[t * BT:(t + 1) * BT, :] = h
            last_h = h
        o_ref[...] = last_h
    return kernel


def lstm_stack(x_2d, T, lstm_params):
    """x_2d: [T*BT, E] (time-major rows); returns last hidden state [BT, H]."""
    TB, _ = x_2d.shape
    BT = TB // T
    H = lstm_params[0][1].shape[0]
    n_layers = len(lstm_params)
    in_specs = [pl.BlockSpec(x_2d.shape, lambda i: (0, 0))]
    args = [x_2d]
    for (wih, whh, b) in lstm_params:
        in_specs.append(pl.BlockSpec(wih.shape, lambda i: (0, 0)))
        in_specs.append(pl.BlockSpec(whh.shape, lambda i: (0, 0)))
        in_specs.append(pl.BlockSpec((1, 4 * H), lambda i: (0, 0)))
        args.extend([wih, whh, b.reshape(1, 4 * H)])
    return pl.pallas_call(
        _lstm_stack_kernel(n_layers, T, BT, H),
        out_shape=jax.ShapeDtypeStruct((BT, H), jnp.float32),
        grid=(1,),
        in_specs=in_specs,
        out_specs=pl.BlockSpec((BT, H), lambda i: (0, 0)),
        scratch_shapes=[pltpu.VMEM((TB, 4 * H), jnp.float32),   # hoisted gate projections
                        pltpu.VMEM((TB, H), jnp.float32)],      # inter-layer sequence
    )(*args)


# --------------------------------------------------------------------------
# Multi-head self attention (nn.MultiheadAttention, eval).  1/sqrt(head_dim)
# is pre-folded into wq/bq.  Heads are combined by splitting Wo row-wise
# (concat(heads) @ Wo == sum_h head_h @ Wo[h]) -- no concatenates.
# --------------------------------------------------------------------------
def _mha_kernel(batch: int, seq: int, num_heads: int, head_dim: int):
    D = num_heads * head_dim

    def kernel(x_ref, wq_ref, wk_ref, wv_ref, bq_ref, bk_ref, bv_ref,
               wo_ref, bo_ref, o_ref):
        x = x_ref[...]                                                      # [B*S, D]
        q = jnp.dot(x, wq_ref[...], preferred_element_type=jnp.float32) + bq_ref[...]
        k = jnp.dot(x, wk_ref[...], preferred_element_type=jnp.float32) + bk_ref[...]
        v = jnp.dot(x, wv_ref[...], preferred_element_type=jnp.float32) + bv_ref[...]
        for b in range(batch):                       # B, S, heads tiny -> static unroll
            rows = slice(b * seq, (b + 1) * seq)
            acc = jnp.zeros((seq, D), jnp.float32)
            for h in range(num_heads):
                cols = slice(h * head_dim, (h + 1) * head_dim)
                qh = q[rows, cols]                                          # [S, hd]
                kh = k[rows, cols]
                vh = v[rows, cols]
                s = jax.lax.dot_general(qh, kh, (((1,), (1,)), ((), ())),
                                        preferred_element_type=jnp.float32)  # [S, S]
                s = s - jnp.max(s, axis=-1, keepdims=True)
                p = jnp.exp(s)
                p = p * pl.reciprocal(jnp.sum(p, axis=-1, keepdims=True), approx=True)
                ctx = jnp.dot(p, vh, preferred_element_type=jnp.float32)    # [S, hd]
                acc = acc + jnp.dot(ctx, wo_ref[cols, :],
                                    preferred_element_type=jnp.float32)     # [S, D]
            o_ref[rows, :] = acc + bo_ref[...]
    return kernel


def multihead_attention(x_flat, a, batch, seq, num_heads):
    BS, D = x_flat.shape
    head_dim = D // num_heads
    vecspec = pl.BlockSpec((1, D), lambda i: (0, 0))
    matspec = pl.BlockSpec((D, D), lambda i: (0, 0))
    return pl.pallas_call(
        _mha_kernel(batch, seq, num_heads, head_dim),
        out_shape=jax.ShapeDtypeStruct((BS, D), jnp.float32),
        grid=(1,),
        in_specs=[pl.BlockSpec((BS, D), lambda i: (0, 0)),
                  matspec, matspec, matspec,
                  vecspec, vecspec, vecspec,
                  matspec, vecspec],
        out_specs=pl.BlockSpec((BS, D), lambda i: (0, 0)),
    )(x_flat, a["wq"], a["wk"], a["wv"],
      a["bq"].reshape(1, D), a["bk"].reshape(1, D), a["bv"].reshape(1, D),
      a["wo"], a["bo"].reshape(1, D))


# --------------------------------------------------------------------------
# Deterministic parameter construction (shapes per YelpModelv1.__init__),
# with bias/BN/attention-scale folding done here (eval mode => pure affine).
# --------------------------------------------------------------------------
def _normal(key, shape, scl=0.1):
    return scl * jax.random.normal(key, shape, dtype=jnp.float32)


def make_params(key, vocab, emb_dim, int_dim, int_layers_param, lstm_hidden,
                num_lstm_layers, text_layers_param, attn_dim, concat_layers_param,
                text_dim, num_heads):
    keys = iter(jax.random.split(key, 256))
    p = {}
    p["embedding"] = _normal(next(keys), (vocab, emb_dim), 1.0)

    def mlp_with_bn(dims):
        layers = []
        for d_in, d_out in zip(dims[:-1], dims[1:]):
            w = _normal(next(keys), (d_in, d_out))
            b = _normal(next(keys), (d_out,))
            gamma = 1.0 + _normal(next(keys), (d_out,))
            beta = _normal(next(keys), (d_out,))
            rmean = _normal(next(keys), (d_out,))
            rvar = 0.5 + jnp.abs(_normal(next(keys), (d_out,)))
            eps = 1e-5
            scale = gamma / jnp.sqrt(rvar + eps)
            # (x@w + b)*scale + (beta - rmean*scale) == x @ (w*scale) + shift'
            w_f = w * scale[None, :]
            s_f = b * scale + beta - rmean * scale
            layers.append((w_f, s_f))
        return layers

    p["int_layers"] = mlp_with_bn([int_dim, *int_layers_param, attn_dim])
    p["text_layers"] = mlp_with_bn([lstm_hidden, *text_layers_param, attn_dim])

    lstm = []
    for layer in range(num_lstm_layers):
        d_in = emb_dim if layer == 0 else lstm_hidden
        wih = _normal(next(keys), (d_in, 4 * lstm_hidden))
        whh = _normal(next(keys), (lstm_hidden, 4 * lstm_hidden))
        bias = _normal(next(keys), (4 * lstm_hidden,))      # b_ih + b_hh folded together
        lstm.append((wih, whh, bias))
    p["lstm"] = lstm

    D = attn_dim
    inv = 1.0 / math.sqrt(D // num_heads)                   # fold 1/sqrt(head_dim) into Q
    p["attn"] = dict(
        wq=_normal(next(keys), (D, D)) * inv, wk=_normal(next(keys), (D, D)),
        wv=_normal(next(keys), (D, D)),
        bq=_normal(next(keys), (D,)) * inv, bk=_normal(next(keys), (D,)),
        bv=_normal(next(keys), (D,)),
        wo=_normal(next(keys), (D, D)), bo=_normal(next(keys), (D,)))

    cat = []
    dims = [D * (1 + text_dim), *concat_layers_param, 1]
    for d_in, d_out in zip(dims[:-1], dims[1:]):
        cat.append((_normal(next(keys), (d_in, d_out)), _normal(next(keys), (d_out,))))
    p["concat_layers"] = cat
    return p


# --------------------------------------------------------------------------
# Forward pass (mirrors YelpModelv1.forward), 4 pallas_calls total.
# --------------------------------------------------------------------------
def yelp_forward(params, int_array, class_array, text_ids, num_heads=2):
    del class_array  # unused by the reference forward pass

    emb = params["embedding"][text_ids]           # [B, text_dim, T, E] (gather = JAX glue)
    B, text_dim, T, E = emb.shape

    # ---- int branch: fused Linear+BN x3 ----
    x_int = fused_mlp(int_array, params["int_layers"])         # [B, attn_dim]

    # ---- text branches (shared LSTM/MLP weights -> batch all branches) ----
    # time-major rows ordered (t, b, i): row index = t*(B*text_dim) + b*text_dim + i
    x_tm = jnp.transpose(emb, (2, 0, 1, 3)).reshape(T * B * text_dim, E)
    h_last = lstm_stack(x_tm, T, params["lstm"])               # [B*text_dim, H]
    x_text = fused_mlp(h_last, params["text_layers"])          # [B*text_dim, attn_dim]
    D = x_text.shape[1]
    x_text = x_text.reshape(B, text_dim, D)

    # ---- stack + self attention ----
    x_concat = jnp.concatenate([x_int[:, None, :], x_text], axis=1)   # [B, S, D]
    S = 1 + text_dim
    x_att = multihead_attention(x_concat.reshape(B * S, D), params["attn"],
                                batch=B, seq=S, num_heads=num_heads)  # [B*S, D]
    x = x_att.reshape(B, S * D)

    # ---- concat head: fused Linear x3 + Sigmoid ----
    x = fused_mlp(x, params["concat_layers"], apply_sigmoid=True)     # [B, 1]
    return x


# --------------------------------------------------------------------------
if __name__ == "__main__":
    # Small deterministic config consistent with YelpModelv1 defaults
    B, int_dim, text_dim, T = 2, 4, 2, 8
    vocab, emb_dim = 50, 64
    lstm_hidden, num_lstm_layers = 128, 2   # default is 200; 128 chosen (lane-aligned gate slices)
    attn_dim, attn_heads = 128, 2
    int_layers_param, text_layers_param, concat_layers_param = (128, 256), (128, 32), (128, 32)

    params = make_params(jax.random.PRNGKey(42), vocab, emb_dim, int_dim,
                         int_layers_param, lstm_hidden, num_lstm_layers,
                         text_layers_param, attn_dim, concat_layers_param,
                         text_dim, attn_heads)

    key = jax.random.PRNGKey(0)
    k1, k2, k3 = jax.random.split(key, 3)
    int_array = jax.random.normal(k1, (B, int_dim), dtype=jnp.float32)
    class_array = jax.random.normal(k2, (B, 3), dtype=jnp.float32)       # unused by forward
    text_embedding_array = jax.random.randint(k3, (B, text_dim, T), 0, vocab)

    fwd = jax.jit(lambda p, a, c, t: yelp_forward(p, a, c, t, num_heads=attn_heads))
    out = fwd(params, int_array, class_array, text_embedding_array)
    out = jax.block_until_ready(out)
    assert out.shape == (B, 1), out.shape
    assert bool(jnp.all(jnp.isfinite(out)))
    print("KERNEL_OK")
</pallas_src>

<mosaic_0001>
module attributes {stable_mosaic.version = 11 : i64} {
  func.func @kernel(%arg0: i32, %arg1: memref<2x4xf32, #tpu.memory_space<vmem>>, %arg2: memref<4x128xf32, #tpu.memory_space<vmem>>, %arg3: memref<1x128xf32, #tpu.memory_space<vmem>>, %arg4: memref<128x256xf32, #tpu.memory_space<vmem>>, %arg5: memref<1x256xf32, #tpu.memory_space<vmem>>, %arg6: memref<256x128xf32, #tpu.memory_space<vmem>>, %arg7: memref<1x128xf32, #tpu.memory_space<vmem>>, %arg8: memref<2x128xf32, #tpu.memory_space<vmem>>) attributes {dimension_semantics = [#tpu.dimension_semantics<arbitrary>], iteration_bounds = array<i64: 1>, scalar_prefetch = 0 : i64, scratch_operands = 0 : i64, tpu.core_type = #tpu.core_type<tc>, window_params = [{pipeline_mode = #tpu.pipeline_mode<synchronous>, transform_indices = @transform_0, window_bounds = array<i64: 2, 4>}, {pipeline_mode = #tpu.pipeline_mode<synchronous>, transform_indices = @transform_1, window_bounds = array<i64: 4, 128>}, {pipeline_mode = #tpu.pipeline_mode<synchronous>, transform_indices = @transform_2, window_bounds = array<i64: 1, 128>}, {pipeline_mode = #tpu.pipeline_mode<synchronous>, transform_indices = @transform_3, window_bounds = array<i64: 128, 256>}, {pipeline_mode = #tpu.pipeline_mode<synchronous>, transform_indices = @transform_4, window_bounds = array<i64: 1, 256>}, {pipeline_mode = #tpu.pipeline_mode<synchronous>, transform_indices = @transform_5, window_bounds = array<i64: 256, 128>}, {pipeline_mode = #tpu.pipeline_mode<synchronous>, transform_indices = @transform_6, window_bounds = array<i64: 1, 128>}, {pipeline_mode = #tpu.pipeline_mode<synchronous>, transform_indices = @transform_7, window_bounds = array<i64: 2, 128>}]} {
    %c0 = arith.constant 0 : index
    %c0_0 = arith.constant 0 : index
    %0 = vector.load %arg1[%c0, %c0_0] : memref<2x4xf32, #tpu.memory_space<vmem>>, vector<2x4xf32>
    %c0_1 = arith.constant 0 : index
    %c0_2 = arith.constant 0 : index
    %1 = vector.load %arg2[%c0_1, %c0_2] : memref<4x128xf32, #tpu.memory_space<vmem>>, vector<4x128xf32>
    %cst = arith.constant dense<0.000000e+00> : vector<2x128xf32>
    %2 = tpu.matmul %0, %1, %cst {dimension_numbers = #tpu.dot_dimension_numbers<[1], [0], [0], [1], [0, 0, 1, 1], [], []>} : vector<2x4xf32>, vector<4x128xf32>, vector<2x128xf32> -> vector<2x128xf32>
    %c0_3 = arith.constant 0 : index
    %c0_4 = arith.constant 0 : index
    %3 = vector.load %arg3[%c0_3, %c0_4] : memref<1x128xf32, #tpu.memory_space<vmem>>, vector<1x128xf32>
    %4 = vector.broadcast %3 : vector<1x128xf32> to vector<2x128xf32>
    %5 = arith.addf %2, %4 : vector<2x128xf32>
    %c0_5 = arith.constant 0 : index
    %c0_6 = arith.constant 0 : index
    %6 = vector.load %arg4[%c0_5, %c0_6] : memref<128x256xf32, #tpu.memory_space<vmem>>, vector<128x256xf32>
    %cst_7 = arith.constant dense<0.000000e+00> : vector<2x256xf32>
    %7 = tpu.matmul %5, %6, %cst_7 {dimension_numbers = #tpu.dot_dimension_numbers<[1], [0], [0], [1], [0, 0, 1, 1], [], []>} : vector<2x128xf32>, vector<128x256xf32>, vector<2x256xf32> -> vector<2x256xf32>
    %c0_8 = arith.constant 0 : index
    %c0_9 = arith.constant 0 : index
    %8 = vector.load %arg5[%c0_8, %c0_9] : memref<1x256xf32, #tpu.memory_space<vmem>>, vector<1x256xf32>
    %9 = vector.broadcast %8 : vector<1x256xf32> to vector<2x256xf32>
    %10 = arith.addf %7, %9 : vector<2x256xf32>
    %c0_10 = arith.constant 0 : index
    %c0_11 = arith.constant 0 : index
    %11 = vector.load %arg6[%c0_10, %c0_11] : memref<256x128xf32, #tpu.memory_space<vmem>>, vector<256x128xf32>
    %cst_12 = arith.constant dense<0.000000e+00> : vector<2x128xf32>
    %12 = tpu.matmul %10, %11, %cst_12 {dimension_numbers = #tpu.dot_dimension_numbers<[1], [0], [0], [1], [0, 0, 1, 1], [], []>} : vector<2x256xf32>, vector<256x128xf32>, vector<2x128xf32> -> vector<2x128xf32>
    %c0_13 = arith.constant 0 : index
    %c0_14 = arith.constant 0 : index
    %13 = vector.load %arg7[%c0_13, %c0_14] : memref<1x128xf32, #tpu.memory_space<vmem>>, vector<1x128xf32>
    %14 = vector.broadcast %13 : vector<1x128xf32> to vector<2x128xf32>
    %15 = arith.addf %12, %14 : vector<2x128xf32>
    %c0_15 = arith.constant 0 : index
    %c0_16 = arith.constant 0 : index
    %16 = vector.load %arg8[%c0_15, %c0_16] : memref<2x128xf32, #tpu.memory_space<vmem>>, vector<2x128xf32>
    tpu.vector_store %arg8[%c0_15, %c0_16], %15 {strides = array<i32>} : memref<2x128xf32, #tpu.memory_space<vmem>>, vector<2x128xf32>,
    return
  }
  func.func @transform_0(%arg0: i32) -> (i32, i32) {
    %c0_i32 = arith.constant 0 : i32
    %c0_i32_0 = arith.constant 0 : i32
    %c0_i32_1 = arith.constant 0 : i32
    return %c0_i32, %c0_i32_0 : i32, i32
  }
  func.func @transform_1(%arg0: i32) -> (i32, i32) {
    %c0_i32 = arith.constant 0 : i32
    %c0_i32_0 = arith.constant 0 : i32
    %c0_i32_1 = arith.constant 0 : i32
    return %c0_i32, %c0_i32_0 : i32, i32
  }
  func.func @transform_2(%arg0: i32) -> (i32, i32) {
    %c0_i32 = arith.constant 0 : i32
    %c0_i32_0 = arith.constant 0 : i32
    %c0_i32_1 = arith.constant 0 : i32
    return %c0_i32, %c0_i32_0 : i32, i32
  }
  func.func @transform_3(%arg0: i32) -> (i32, i32) {
    %c0_i32 = arith.constant 0 : i32
    %c0_i32_0 = arith.constant 0 : i32
    %c0_i32_1 = arith.constant 0 : i32
    return %c0_i32, %c0_i32_0 : i32, i32
  }
  func.func @transform_4(%arg0: i32) -> (i32, i32) {
    %c0_i32 = arith.constant 0 : i32
    %c0_i32_0 = arith.constant 0 : i32
    %c0_i32_1 = arith.constant 0 : i32
    return %c0_i32, %c0_i32_0 : i32, i32
  }
  func.func @transform_5(%arg0: i32) -> (i32, i32) {
    %c0_i32 = arith.constant 0 : i32
    %c0_i32_0 = arith.constant 0 : i32
    %c0_i32_1 = arith.constant 0 : i32
    return %c0_i32, %c0_i32_0 : i32, i32
  }
  func.func @transform_6(%arg0: i32) -> (i32, i32) {
    %c0_i32 = arith.constant 0 : i32
    %c0_i32_0 = arith.constant 0 : i32
    %c0_i32_1 = arith.constant 0 : i32
    return %c0_i32, %c0_i32_0 : i32, i32
  }
  func.func @transform_7(%arg0: i32) -> (i32, i32) {
    %c0_i32 = arith.constant 0 : i32
    %c0_i32_0 = arith.constant 0 : i32
    %c0_i32_1 = arith.constant 0 : i32
    return %c0_i32, %c0_i32_0 : i32, i32
  }
}

module attributes {stable_mosaic.version = 11 : i64} {
  func.func @kernel(%arg0: i32, %arg1: memref<4x128xf32, #tpu.memory_space<vmem>>, %arg2: memref<128x128xf32, #tpu.memory_space<vmem>>, %arg3: memref<1x128xf32, #tpu.memory_space<vmem>>, %arg4: memref<128x32xf32, #tpu.memory_space<vmem>>, %arg5: memref<1x32xf32, #tpu.memory_space<vmem>>, %arg6: memref<32x128xf32, #tpu.memory_space<vmem>>, %arg7: memref<1x128xf32, #tpu.memory_space<vmem>>, %arg8: memref<4x128xf32, #tpu.memory_space<vmem>>) attributes {dimension_semantics = [#tpu.dimension_semantics<arbitrary>], iteration_bounds = array<i64: 1>, scalar_prefetch = 0 : i64, scratch_operands = 0 : i64, tpu.core_type = #tpu.core_type<tc>, window_params = [{pipeline_mode = #tpu.pipeline_mode<synchronous>, transform_indices = @transform_0, window_bounds = array<i64: 4, 128>}, {pipeline_mode = #tpu.pipeline_mode<synchronous>, transform_indices = @transform_1, window_bounds = array<i64: 128, 128>}, {pipeline_mode = #tpu.pipeline_mode<synchronous>, transform_indices = @transform_2, window_bounds = array<i64: 1, 128>}, {pipeline_mode = #tpu.pipeline_mode<synchronous>, transform_indices = @transform_3, window_bounds = array<i64: 128, 32>}, {pipeline_mode = #tpu.pipeline_mode<synchronous>, transform_indices = @transform_4, window_bounds = array<i64: 1, 32>}, {pipeline_mode = #tpu.pipeline_mode<synchronous>, transform_indices = @transform_5, window_bounds = array<i64: 32, 128>}, {pipeline_mode = #tpu.pipeline_mode<synchronous>, transform_indices = @transform_6, window_bounds = array<i64: 1, 128>}, {pipeline_mode = #tpu.pipeline_mode<synchronous>, transform_indices = @transform_7, window_bounds = array<i64: 4, 128>}]} {
    %c0 = arith.constant 0 : index
    %c0_0 = arith.constant 0 : index
    %0 = vector.load %arg1[%c0, %c0_0] : memref<4x128xf32, #tpu.memory_space<vmem>>, vector<4x128xf32>
    %c0_1 = arith.constant 0 : index
    %c0_2 = arith.constant 0 : index
    %1 = vector.load %arg2[%c0_1, %c0_2] : memref<128x128xf32, #tpu.memory_space<vmem>>, vector<128x128xf32>
    %cst = arith.constant dense<0.000000e+00> : vector<4x128xf32>
    %2 = tpu.matmul %0, %1, %cst {dimension_numbers = #tpu.dot_dimension_numbers<[1], [0], [0], [1], [0, 0, 1, 1], [], []>} : vector<4x128xf32>, vector<128x128xf32>, vector<4x128xf32> -> vector<4x128xf32>
    %c0_3 = arith.constant 0 : index
    %c0_4 = arith.constant 0 : index
    %3 = vector.load %arg3[%c0_3, %c0_4] : memref<1x128xf32, #tpu.memory_space<vmem>>, vector<1x128xf32>
    %4 = vector.broadcast %3 : vector<1x128xf32> to vector<4x128xf32>
    %5 = arith.addf %2, %4 : vector<4x128xf32>
    %c0_5 = arith.constant 0 : index
    %c0_6 = arith.constant 0 : index
    %6 = vector.load %arg4[%c0_5, %c0_6] : memref<128x32xf32, #tpu.memory_space<vmem>>, vector<128x32xf32>
    %cst_7 = arith.constant dense<0.000000e+00> : vector<4x32xf32>
    %7 = tpu.matmul %5, %6, %cst_7 {dimension_numbers = #tpu.dot_dimension_numbers<[1], [0], [0], [1], [0, 0, 1, 1], [], []>} : vector<4x128xf32>, vector<128x32xf32>, vector<4x32xf32> -> vector<4x32xf32>
    %c0_8 = arith.constant 0 : index
    %c0_9 = arith.constant 0 : index
    %8 = vector.load %arg5[%c0_8, %c0_9] : memref<1x32xf32, #tpu.memory_space<vmem>>, vector<1x32xf32>
    %9 = vector.broadcast %8 : vector<1x32xf32> to vector<4x32xf32>
    %10 = arith.addf %7, %9 : vector<4x32xf32>
    %c0_10 = arith.constant 0 : index
    %c0_11 = arith.constant 0 : index
    %11 = vector.load %arg6[%c0_10, %c0_11] : memref<32x128xf32, #tpu.memory_space<vmem>>, vector<32x128xf32>
    %cst_12 = arith.constant dense<0.000000e+00> : vector<4x128xf32>
    %12 = tpu.matmul %10, %11, %cst_12 {dimension_numbers = #tpu.dot_dimension_numbers<[1], [0], [0], [1], [0, 0, 1, 1], [], []>} : vector<4x32xf32>, vector<32x128xf32>, vector<4x128xf32> -> vector<4x128xf32>
    %c0_13 = arith.constant 0 : index
    %c0_14 = arith.constant 0 : index
    %13 = vector.load %arg7[%c0_13, %c0_14] : memref<1x128xf32, #tpu.memory_space<vmem>>, vector<1x128xf32>
    %14 = vector.broadcast %13 : vector<1x128xf32> to vector<4x128xf32>
    %15 = arith.addf %12, %14 : vector<4x128xf32>
    %c0_15 = arith.constant 0 : index
    %c0_16 = arith.constant 0 : index
    %16 = vector.load %arg8[%c0_15, %c0_16] : memref<4x128xf32, #tpu.memory_space<vmem>>, vector<4x128xf32>
    tpu.vector_store %arg8[%c0_15, %c0_16], %15 {strides = array<i32>} : memref<4x128xf32, #tpu.memory_space<vmem>>, vector<4x128xf32>,
    return
  }
  func.func @transform_0(%arg0: i32) -> (i32, i32) {
    %c0_i32 = arith.constant 0 : i32
    %c0_i32_0 = arith.constant 0 : i32
    %c0_i32_1 = arith.constant 0 : i32
    return %c0_i32, %c0_i32_0 : i32, i32
  }
  func.func @transform_1(%arg0: i32) -> (i32, i32) {
    %c0_i32 = arith.constant 0 : i32
    %c0_i32_0 = arith.constant 0 : i32
    %c0_i32_1 = arith.constant 0 : i32
    return %c0_i32, %c0_i32_0 : i32, i32
  }
  func.func @transform_2(%arg0: i32) -> (i32, i32) {
    %c0_i32 = arith.constant 0 : i32
    %c0_i32_0 = arith.constant 0 : i32
    %c0_i32_1 = arith.constant 0 : i32
    return %c0_i32, %c0_i32_0 : i32, i32
  }
  func.func @transform_3(%arg0: i32) -> (i32, i32) {
    %c0_i32 = arith.constant 0 : i32
    %c0_i32_0 = arith.constant 0 : i32
    %c0_i32_1 = arith.constant 0 : i32
    return %c0_i32, %c0_i32_0 : i32, i32
  }
  func.func @transform_4(%arg0: i32) -> (i32, i32) {
    %c0_i32 = arith.constant 0 : i32
    %c0_i32_0 = arith.constant 0 : i32
    %c0_i32_1 = arith.constant 0 : i32
    return %c0_i32, %c0_i32_0 : i32, i32
  }
  func.func @transform_5(%arg0: i32) -> (i32, i32) {
    %c0_i32 = arith.constant 0 : i32
    %c0_i32_0 = arith.constant 0 : i32
    %c0_i32_1 = arith.constant 0 : i32
    return %c0_i32, %c0_i32_0 : i32, i32
  }
  func.func @transform_6(%arg0: i32) -> (i32, i32) {
    %c0_i32 = arith.constant 0 : i32
    %c0_i32_0 = arith.constant 0 : i32
    %c0_i32_1 = arith.constant 0 : i32
    return %c0_i32, %c0_i32_0 : i32, i32
  }
  func.func @transform_7(%arg0: i32) -> (i32, i32) {
    %c0_i32 = arith.constant 0 : i32
    %c0_i32_0 = arith.constant 0 : i32
    %c0_i32_1 = arith.constant 0 : i32
    return %c0_i32, %c0_i32_0 : i32, i32
  }
}

module attributes {stable_mosaic.version = 11 : i64} {
  func.func @kernel(%arg0: i32, %arg1: memref<6x128xf32, #tpu.memory_space<vmem>>, %arg2: memref<128x128xf32, #tpu.memory_space<vmem>>, %arg3: memref<128x128xf32, #tpu.memory_space<vmem>>, %arg4: memref<128x128xf32, #tpu.memory_space<vmem>>, %arg5: memref<1x128xf32, #tpu.memory_space<vmem>>, %arg6: memref<1x128xf32, #tpu.memory_space<vmem>>, %arg7: memref<1x128xf32, #tpu.memory_space<vmem>>, %arg8: memref<128x128xf32, #tpu.memory_space<vmem>>, %arg9: memref<1x128xf32, #tpu.memory_space<vmem>>, %arg10: memref<6x128xf32, #tpu.memory_space<vmem>>) attributes {dimension_semantics = [#tpu.dimension_semantics<arbitrary>], iteration_bounds = array<i64: 1>, scalar_prefetch = 0 : i64, scratch_operands = 0 : i64, tpu.core_type = #tpu.core_type<tc>, window_params = [{pipeline_mode = #tpu.pipeline_mode<synchronous>, transform_indices = @transform_0, window_bounds = array<i64: 6, 128>}, {pipeline_mode = #tpu.pipeline_mode<synchronous>, transform_indices = @transform_1, window_bounds = array<i64: 128, 128>}, {pipeline_mode = #tpu.pipeline_mode<synchronous>, transform_indices = @transform_2, window_bounds = array<i64: 128, 128>}, {pipeline_mode = #tpu.pipeline_mode<synchronous>, transform_indices = @transform_3, window_bounds = array<i64: 128, 128>}, {pipeline_mode = #tpu.pipeline_mode<synchronous>, transform_indices = @transform_4, window_bounds = array<i64: 1, 128>}, {pipeline_mode = #tpu.pipeline_mode<synchronous>, transform_indices = @transform_5, window_bounds = array<i64: 1, 128>}, {pipeline_mode = #tpu.pipeline_mode<synchronous>, transform_indices = @transform_6, window_bounds = array<i64: 1, 128>}, {pipeline_mode = #tpu.pipeline_mode<synchronous>, transform_indices = @transform_7, window_bounds = array<i64: 128, 128>}, {pipeline_mode = #tpu.pipeline_mode<synchronous>, transform_indices = @transform_8, window_bounds = array<i64: 1, 128>}, {pipeline_mode = #tpu.pipeline_mode<synchronous>, transform_indices = @transform_9, window_bounds = array<i64: 6, 128>}]} {
    %c0 = arith.constant 0 : index
    %c0_0 = arith.constant 0 : index
    %0 = vector.load %arg1[%c0, %c0_0] : memref<6x128xf32, #tpu.memory_space<vmem>>, vector<6x128xf32>
    %c0_1 = arith.constant 0 : index
    %c0_2 = arith.constant 0 : index
    %1 = vector.load %arg2[%c0_1, %c0_2] : memref<128x128xf32, #tpu.memory_space<vmem>>, vector<128x128xf32>
    %cst = arith.constant dense<0.000000e+00> : vector<6x128xf32>
    %2 = tpu.matmul %0, %1, %cst {dimension_numbers = #tpu.dot_dimension_numbers<[1], [0], [0], [1], [0, 0, 1, 1], [], []>} : vector<6x128xf32>, vector<128x128xf32>, vector<6x128xf32> -> vector<6x128xf32>
    %c0_3 = arith.constant 0 : index
    %c0_4 = arith.constant 0 : index
    %3 = vector.load %arg5[%c0_3, %c0_4] : memref<1x128xf32, #tpu.memory_space<vmem>>, vector<1x128xf32>
    %4 = vector.broadcast %3 : vector<1x128xf32> to vector<6x128xf32>
    %5 = arith.addf %2, %4 : vector<6x128xf32>
    %c0_5 = arith.constant 0 : index
    %c0_6 = arith.constant 0 : index
    %6 = vector.load %arg3[%c0_5, %c0_6] : memref<128x128xf32, #tpu.memory_space<vmem>>, vector<128x128xf32>
    %cst_7 = arith.constant dense<0.000000e+00> : vector<6x128xf32>
    %7 = tpu.matmul %0, %6, %cst_7 {dimension_numbers = #tpu.dot_dimension_numbers<[1], [0], [0], [1], [0, 0, 1, 1], [], []>} : vector<6x128xf32>, vector<128x128xf32>, vector<6x128xf32> -> vector<6x128xf32>
    %c0_8 = arith.constant 0 : index
    %c0_9 = arith.constant 0 : index
    %8 = vector.load %arg6[%c0_8, %c0_9] : memref<1x128xf32, #tpu.memory_space<vmem>>, vector<1x128xf32>
    %9 = vector.broadcast %8 : vector<1x128xf32> to vector<6x128xf32>
    %10 = arith.addf %7, %9 : vector<6x128xf32>
    %c0_10 = arith.constant 0 : index
    %c0_11 = arith.constant 0 : index
    %11 = vector.load %arg4[%c0_10, %c0_11] : memref<128x128xf32, #tpu.memory_space<vmem>>, vector<128x128xf32>
    %cst_12 = arith.constant dense<0.000000e+00> : vector<6x128xf32>
    %12 = tpu.matmul %0, %11, %cst_12 {dimension_numbers = #tpu.dot_dimension_numbers<[1], [0], [0], [1], [0, 0, 1, 1], [], []>} : vector<6x128xf32>, vector<128x128xf32>, vector<6x128xf32> -> vector<6x128xf32>
    %c0_13 = arith.constant 0 : index
    %c0_14 = arith.constant 0 : index
    %13 = vector.load %arg7[%c0_13, %c0_14] : memref<1x128xf32, #tpu.memory_space<vmem>>, vector<1x128xf32>
    %14 = vector.broadcast %13 : vector<1x128xf32> to vector<6x128xf32>
    %15 = arith.addf %12, %14 : vector<6x128xf32>
    %cst_15 = arith.constant 0.000000e+00 : f32
    %16 = vector.broadcast %cst_15 : f32 to vector<3x128xf32>
    %17 = vector.extract_strided_slice %5 {offsets = [0, 0], sizes = [3, 64], strides = [1, 1]} : vector<6x128xf32> to vector<3x64xf32>
    %18 = vector.extract_strided_slice %10 {offsets = [0, 0], sizes = [3, 64], strides = [1, 1]} : vector<6x128xf32> to vector<3x64xf32>
    %19 = vector.extract_strided_slice %15 {offsets = [0, 0], sizes = [3, 64], strides = [1, 1]} : vector<6x128xf32> to vector<3x64xf32>
    %cst_16 = arith.constant dense<0.000000e+00> : vector<3x3xf32>
    %20 = tpu.matmul %17, %18, %cst_16 {dimension_numbers = #tpu.dot_dimension_numbers<[1], [1], [0], [0], [0, 0, 1, 0], [], []>} : vector<3x64xf32>, vector<3x64xf32>, vector<3x3xf32> -> vector<3x3xf32>
    %cst_17 = arith.constant dense<0xFF800000> : vector<3xf32>
    %21 = vector.multi_reduction <maximumf>, %20, %cst_17 [1] : vector<3x3xf32> to vector<3xf32>
    %22 = vector.shape_cast %21 : vector<3xf32> to vector<3x1xf32>
    %23 = vector.broadcast %22 : vector<3x1xf32> to vector<3x3xf32>
    %24 = arith.subf %20, %23 : vector<3x3xf32>
    %25 = math.exp %24 : vector<3x3xf32>
    %cst_18 = arith.constant dense<0.000000e+00> : vector<3xf32>
    %26 = vector.multi_reduction <add>, %25, %cst_18 [1] : vector<3x3xf32> to vector<3xf32>
    %27 = vector.shape_cast %26 : vector<3xf32> to vector<3x1xf32>
    %28 = tpu.reciprocal %27 {approx = true} : vector<3x1xf32> -> vector<3x1xf32>
    %29 = vector.broadcast %28 : vector<3x1xf32> to vector<3x3xf32>
    %30 = arith.mulf %25, %29 : vector<3x3xf32>
    %cst_19 = arith.constant dense<0.000000e+00> : vector<3x64xf32>
    %31 = tpu.matmul %30, %19, %cst_19 {dimension_numbers = #tpu.dot_dimension_numbers<[1], [0], [0], [1], [0, 0, 1, 1], [], []>} : vector<3x3xf32>, vector<3x64xf32>, vector<3x64xf32> -> vector<3x64xf32>
    %c0_20 = arith.constant 0 : index
    %c0_21 = arith.constant 0 : index
    %32 = vector.load %arg8[%c0_20, %c0_21] : memref<128x128xf32, #tpu.memory_space<vmem>>, vector<64x128xf32>
    %cst_22 = arith.constant dense<0.000000e+00> : vector<3x128xf32>
    %33 = tpu.matmul %31, %32, %cst_22 {dimension_numbers = #tpu.dot_dimension_numbers<[1], [0], [0], [1], [0, 0, 1, 1], [], []>} : vector<3x64xf32>, vector<64x128xf32>, vector<3x128xf32> -> vector<3x128xf32>
    %34 = arith.addf %16, %33 : vector<3x128xf32>
    %35 = vector.extract_strided_slice %5 {offsets = [0, 64], sizes = [3, 64], strides = [1, 1]} : vector<6x128xf32> to vector<3x64xf32>
    %36 = vector.extract_strided_slice %10 {offsets = [0, 64], sizes = [3, 64], strides = [1, 1]} : vector<6x128xf32> to vector<3x64xf32>
    %37 = vector.extract_strided_slice %15 {offsets = [0, 64], sizes = [3, 64], strides = [1, 1]} : vector<6x128xf32> to vector<3x64xf32>
    %cst_23 = arith.constant dense<0.000000e+00> : vector<3x3xf32>
    %38 = tpu.matmul %35, %36, %cst_23 {dimension_numbers = #tpu.dot_dimension_numbers<[1], [1], [0], [0], [0, 0, 1, 0], [], []>} : vector<3x64xf32>, vector<3x64xf32>, vector<3x3xf32> -> vector<3x3xf32>
    %cst_24 = arith.constant dense<0xFF800000> : vector<3xf32>
    %39 = vector.multi_reduction <maximumf>, %38, %cst_24 [1] : vector<3x3xf32> to vector<3xf32>
    %40 = vector.shape_cast %39 : vector<3xf32> to vector<3x1xf32>
    %41 = vector.broadcast %40 : vector<3x1xf32> to vector<3x3xf32>
    %42 = arith.subf %38, %41 : vector<3x3xf32>
    %43 = math.exp %42 : vector<3x3xf32>
    %cst_25 = arith.constant dense<0.000000e+00> : vector<3xf32>
    %44 = vector.multi_reduction <add>, %43, %cst_25 [1] : vector<3x3xf32> to vector<3xf32>
    %45 = vector.shape_cast %44 : vector<3xf32> to vector<3x1xf32>
    %46 = tpu.reciprocal %45 {approx = true} : vector<3x1xf32> -> vector<3x1xf32>
    %47 = vector.broadcast %46 : vector<3x1xf32> to vector<3x3xf32>
    %48 = arith.mulf %43, %47 : vector<3x3xf32>
    %cst_26 = arith.constant dense<0.000000e+00> : vector<3x64xf32>
    %49 = tpu.matmul %48, %37, %cst_26 {dimension_numbers = #tpu.dot_dimension_numbers<[1], [0], [0], [1], [0, 0, 1, 1], [], []>} : vector<3x3xf32>, vector<3x64xf32>, vector<3x64xf32> -> vector<3x64xf32>
    %c64 = arith.constant 64 : index
    %c0_27 = arith.constant 0 : index
    %50 = vector.load %arg8[%c64, %c0_27] : memref<128x128xf32, #tpu.memory_space<vmem>>, vector<64x128xf32>
    %cst_28 = arith.constant dense<0.000000e+00> : vector<3x128xf32>
    %51 = tpu.matmul %49, %50, %cst_28 {dimension_numbers = #tpu.dot_dimension_numbers<[1], [0], [0], [1], [0, 0, 1, 1], [], []>} : vector<3x64xf32>, vector<64x128xf32>, vector<3x128xf32> -> vector<3x128xf32>
    %52 = arith.addf %34, %51 : vector<3x128xf32>
    %c0_29 = arith.constant 0 : index
    %c0_30 = arith.constant 0 : index
    %53 = vector.load %arg9[%c0_29, %c0_30] : memref<1x128xf32, #tpu.memory_space<vmem>>, vector<1x128xf32>
    %54 = vector.broadcast %53 : vector<1x128xf32> to vector<3x128xf32>
    %55 = arith.addf %52, %54 : vector<3x128xf32>
    %c0_31 = arith.constant 0 : index
    %c0_32 = arith.constant 0 : index
    %56 = vector.load %arg10[%c0_31, %c0_32] : memref<6x128xf32, #tpu.memory_space<vmem>>, vector<3x128xf32>
    tpu.vector_store %arg10[%c0_31, %c0_32], %55 {strides = array<i32>} : memref<6x128xf32, #tpu.memory_space<vmem>>, vector<3x128xf32>,
    %cst_33 = arith.constant 0.000000e+00 : f32
    %57 = vector.broadcast %cst_33 : f32 to vector<3x128xf32>
    %58 = vector.extract_strided_slice %5 {offsets = [3, 0], sizes = [3, 64], strides = [1, 1]} : vector<6x128xf32> to vector<3x64xf32>
    %59 = vector.extract_strided_slice %10 {offsets = [3, 0], sizes = [3, 64], strides = [1, 1]} : vector<6x128xf32> to vector<3x64xf32>
    %60 = vector.extract_strided_slice %15 {offsets = [3, 0], sizes = [3, 64], strides = [1, 1]} : vector<6x128xf32> to vector<3x64xf32>
    %cst_34 = arith.constant dense<0.000000e+00> : vector<3x3xf32>
    %61 = tpu.matmul %58, %59, %cst_34 {dimension_numbers = #tpu.dot_dimension_numbers<[1], [1], [0], [0], [0, 0, 1, 0], [], []>} : vector<3x64xf32>, vector<3x64xf32>, vector<3x3xf32> -> vector<3x3xf32>
    %cst_35 = arith.constant dense<0xFF800000> : vector<3xf32>
    %62 = vector.multi_reduction <maximumf>, %61, %cst_35 [1] : vector<3x3xf32> to vector<3xf32>
    %63 = vector.shape_cast %62 : vector<3xf32> to vector<3x1xf32>
    %64 = vector.broadcast %63 : vector<3x1xf32> to vector<3x3xf32>
    %65 = arith.subf %61, %64 : vector<3x3xf32>
    %66 = math.exp %65 : vector<3x3xf32>
    %cst_36 = arith.constant dense<0.000000e+00> : vector<3xf32>
    %67 = vector.multi_reduction <add>, %66, %cst_36 [1] : vector<3x3xf32> to vector<3xf32>
    %68 = vector.shape_cast %67 : vector<3xf32> to vector<3x1xf32>
    %69 = tpu.reciprocal %68 {approx = true} : vector<3x1xf32> -> vector<3x1xf32>
    %70 = vector.broadcast %69 : vector<3x1xf32> to vector<3x3xf32>
    %71 = arith.mulf %66, %70 : vector<3x3xf32>
    %cst_37 = arith.constant dense<0.000000e+00> : vector<3x64xf32>
    %72 = tpu.matmul %71, %60, %cst_37 {dimension_numbers = #tpu.dot_dimension_numbers<[1], [0], [0], [1], [0, 0, 1, 1], [], []>} : vector<3x3xf32>, vector<3x64xf32>, vector<3x64xf32> -> vector<3x64xf32>
    %c0_38 = arith.constant 0 : index
    %c0_39 = arith.constant 0 : index
    %73 = vector.load %arg8[%c0_38, %c0_39] : memref<128x128xf32, #tpu.memory_space<vmem>>, vector<64x128xf32>
    %cst_40 = arith.constant dense<0.000000e+00> : vector<3x128xf32>
    %74 = tpu.matmul %72, %73, %cst_40 {dimension_numbers = #tpu.dot_dimension_numbers<[1], [0], [0], [1], [0, 0, 1, 1], [], []>} : vector<3x64xf32>, vector<64x128xf32>, vector<3x128xf32> -> vector<3x128xf32>
    %75 = arith.addf %57, %74 : vector<3x128xf32>
    %76 = vector.extract_strided_slice %5 {offsets = [3, 64], sizes = [3, 64], strides = [1, 1]} : vector<6x128xf32> to vector<3x64xf32>
    %77 = vector.extract_strided_slice %10 {offsets = [3, 64], sizes = [3, 64], strides = [1, 1]} : vector<6x128xf32> to vector<3x64xf32>
    %78 = vector.extract_strided_slice %15 {offsets = [3, 64], sizes = [3, 64], strides = [1, 1]} : vector<6x128xf32> to vector<3x64xf32>
    %cst_41 = arith.constant dense<0.000000e+00> : vector<3x3xf32>
    %79 = tpu.matmul %76, %77, %cst_41 {dimension_numbers = #tpu.dot_dimension_numbers<[1], [1], [0], [0], [0, 0, 1, 0], [], []>} : vector<3x64xf32>, vector<3x64xf32>, vector<3x3xf32> -> vector<3x3xf32>
    %cst_42 = arith.constant dense<0xFF800000> : vector<3xf32>
    %80 = vector.multi_reduction <maximumf>, %79, %cst_42 [1] : vector<3x3xf32> to vector<3xf32>
    %81 = vector.shape_cast %80 : vector<3xf32> to vector<3x1xf32>
    %82 = vector.broadcast %81 : vector<3x1xf32> to vector<3x3xf32>
    %83 = arith.subf %79, %82 : vector<3x3xf32>
    %84 = math.exp %83 : vector<3x3xf32>
    %cst_43 = arith.constant dense<0.000000e+00> : vector<3xf32>
    %85 = vector.multi_reduction <add>, %84, %cst_43 [1] : vector<3x3xf32> to vector<3xf32>
    %86 = vector.shape_cast %85 : vector<3xf32> to vector<3x1xf32>
    %87 = tpu.reciprocal %86 {approx = true} : vector<3x1xf32> -> vector<3x1xf32>
    %88 = vector.broadcast %87 : vector<3x1xf32> to vector<3x3xf32>
    %89 = arith.mulf %84, %88 : vector<3x3xf32>
    %cst_44 = arith.constant dense<0.000000e+00> : vector<3x64xf32>
    %90 = tpu.matmul %89, %78, %cst_44 {dimension_numbers = #tpu.dot_dimension_numbers<[1], [0], [0], [1], [0, 0, 1, 1], [], []>} : vector<3x3xf32>, vector<3x64xf32>, vector<3x64xf32> -> vector<3x64xf32>
    %c64_45 = arith.constant 64 : index
    %c0_46 = arith.constant 0 : index
    %91 = vector.load %arg8[%c64_45, %c0_46] : memref<128x128xf32, #tpu.memory_space<vmem>>, vector<64x128xf32>
    %cst_47 = arith.constant dense<0.000000e+00> : vector<3x128xf32>
    %92 = tpu.matmul %90, %91, %cst_47 {dimension_numbers = #tpu.dot_dimension_numbers<[1], [0], [0], [1], [0, 0, 1, 1], [], []>} : vector<3x64xf32>, vector<64x128xf32>, vector<3x128xf32> -> vector<3x128xf32>
    %93 = arith.addf %75, %92 : vector<3x128xf32>
    %c0_48 = arith.constant 0 : index
    %c0_49 = arith.constant 0 : index
    %94 = vector.load %arg9[%c0_48, %c0_49] : memref<1x128xf32, #tpu.memory_space<vmem>>, vector<1x128xf32>
    %95 = vector.broadcast %94 : vector<1x128xf32> to vector<3x128xf32>
    %96 = arith.addf %93, %95 : vector<3x128xf32>
    %c3 = arith.constant 3 : index
    %c0_50 = arith.constant 0 : index
    %97 = vector.load %arg10[%c3, %c0_50] : memref<6x128xf32, #tpu.memory_space<vmem>>, vector<3x128xf32>
    tpu.vector_store %arg10[%c3, %c0_50], %96 {strides = array<i32>} : memref<6x128xf32, #tpu.memory_space<vmem>>, vector<3x128xf32>,
    return
  }
  func.func @transform_0(%arg0: i32) -> (i32, i32) {
    %c0_i32 = arith.constant 0 : i32
    %c0_i32_0 = arith.constant 0 : i32
    %c0_i32_1 = arith.constant 0 : i32
    return %c0_i32, %c0_i32_0 : i32, i32
  }
  func.func @transform_1(%arg0: i32) -> (i32, i32) {
    %c0_i32 = arith.constant 0 : i32
    %c0_i32_0 = arith.constant 0 : i32
    %c0_i32_1 = arith.constant 0 : i32
    return %c0_i32, %c0_i32_0 : i32, i32
  }
  func.func @transform_2(%arg0: i32) -> (i32, i32) {
    %c0_i32 = arith.constant 0 : i32
    %c0_i32_0 = arith.constant 0 : i32
    %c0_i32_1 = arith.constant 0 : i32
    return %c0_i32, %c0_i32_0 : i32, i32
  }
  func.func @transform_3(%arg0: i32) -> (i32, i32) {
    %c0_i32 = arith.constant 0 : i32
    %c0_i32_0 = arith.constant 0 : i32
    %c0_i32_1 = arith.constant 0 : i32
    return %c0_i32, %c0_i32_0 : i32, i32
  }
  func.func @transform_4(%arg0: i32) -> (i32, i32) {
    %c0_i32 = arith.constant 0 : i32
    %c0_i32_0 = arith.constant 0 : i32
    %c0_i32_1 = arith.constant 0 : i32
    return %c0_i32, %c0_i32_0 : i32, i32
  }
  func.func @transform_5(%arg0: i32) -> (i32, i32) {
    %c0_i32 = arith.constant 0 : i32
    %c0_i32_0 = arith.constant 0 : i32
    %c0_i32_1 = arith.constant 0 : i32
    return %c0_i32, %c0_i32_0 : i32, i32
  }
  func.func @transform_6(%arg0: i32) -> (i32, i32) {
    %c0_i32 = arith.constant 0 : i32
    %c0_i32_0 = arith.constant 0 : i32
    %c0_i32_1 = arith.constant 0 : i32
    return %c0_i32, %c0_i32_0 : i32, i32
  }
  func.func @transform_7(%arg0: i32) -> (i32, i32) {
    %c0_i32 = arith.constant 0 : i32
    %c0_i32_0 = arith.constant 0 : i32
    %c0_i32_1 = arith.constant 0 : i32
    return %c0_i32, %c0_i32_0 : i32, i32
  }
  func.func @transform_8(%arg0: i32) -> (i32, i32) {
    %c0_i32 = arith.constant 0 : i32
    %c0_i32_0 = arith.constant 0 : i32
    %c0_i32_1 = arith.constant 0 : i32
    return %c0_i32, %c0_i32_0 : i32, i32
  }
  func.func @transform_9(%arg0: i32) -> (i32, i32) {
    %c0_i32 = arith.constant 0 : i32
    %c0_i32_0 = arith.constant 0 : i32
    %c0_i32_1 = arith.constant 0 : i32
    return %c0_i32, %c0_i32_0 : i32, i32
  }
}

module attributes {stable_mosaic.version = 11 : i64} {
  func.func @kernel(%arg0: i32, %arg1: memref<32x64xf32, #tpu.memory_space<vmem>>, %arg2: memref<64x512xf32, #tpu.memory_space<vmem>>, %arg3: memref<128x512xf32, #tpu.memory_space<vmem>>, %arg4: memref<1x512xf32, #tpu.memory_space<vmem>>, %arg5: memref<128x512xf32, #tpu.memory_space<vmem>>, %arg6: memref<128x512xf32, #tpu.memory_space<vmem>>, %arg7: memref<1x512xf32, #tpu.memory_space<vmem>>, %arg8: memref<4x128xf32, #tpu.memory_space<vmem>>, %arg9: memref<32x512xf32, #tpu.memory_space<vmem>>, %arg10: memref<32x128xf32, #tpu.memory_space<vmem>>) attributes {dimension_semantics = [#tpu.dimension_semantics<arbitrary>], iteration_bounds = array<i64: 1>, scalar_prefetch = 0 : i64, scratch_operands = 2 : i64, tpu.core_type = #tpu.core_type<tc>, window_params = [{pipeline_mode = #tpu.pipeline_mode<synchronous>, transform_indices = @transform_0, window_bounds = array<i64: 32, 64>}, {pipeline_mode = #tpu.pipeline_mode<synchronous>, transform_indices = @transform_1, window_bounds = array<i64: 64, 512>}, {pipeline_mode = #tpu.pipeline_mode<synchronous>, transform_indices = @transform_2, window_bounds = array<i64: 128, 512>}, {pipeline_mode = #tpu.pipeline_mode<synchronous>, transform_indices = @transform_3, window_bounds = array<i64: 1, 512>}, {pipeline_mode = #tpu.pipeline_mode<synchronous>, transform_indices = @transform_4, window_bounds = array<i64: 128, 512>}, {pipeline_mode = #tpu.pipeline_mode<synchronous>, transform_indices = @transform_5, window_bounds = array<i64: 128, 512>}, {pipeline_mode = #tpu.pipeline_mode<synchronous>, transform_indices = @transform_6, window_bounds = array<i64: 1, 512>}, {pipeline_mode = #tpu.pipeline_mode<synchronous>, transform_indices = @transform_7, window_bounds = array<i64: 4, 128>}]} {
    %c0 = arith.constant 0 : index
    %c0_0 = arith.constant 0 : index
    %0 = vector.load %arg1[%c0, %c0_0] : memref<32x64xf32, #tpu.memory_space<vmem>>, vector<32x64xf32>
    %c0_1 = arith.constant 0 : index
    %c0_2 = arith.constant 0 : index
    %1 = vector.load %arg2[%c0_1, %c0_2] : memref<64x512xf32, #tpu.memory_space<vmem>>, vector<64x512xf32>
    %cst = arith.constant dense<0.000000e+00> : vector<32x512xf32>
    %2 = tpu.matmul %0, %1, %cst {dimension_numbers = #tpu.dot_dimension_numbers<[1], [0], [0], [1], [0, 0, 1, 1], [], []>} : vector<32x64xf32>, vector<64x512xf32>, vector<32x512xf32> -> vector<32x512xf32>
    %c0_3 = arith.constant 0 : index
    %c0_4 = arith.constant 0 : index
    %3 = vector.load %arg4[%c0_3, %c0_4] : memref<1x512xf32, #tpu.memory_space<vmem>>, vector<1x512xf32>
    %4 = vector.broadcast %3 : vector<1x512xf32> to vector<32x512xf32>
    %5 = arith.addf %2, %4 : vector<32x512xf32>
    %c0_5 = arith.constant 0 : index
    %c0_6 = arith.constant 0 : index
    %6 = vector.load %arg9[%c0_5, %c0_6] : memref<32x512xf32, #tpu.memory_space<vmem>>, vector<32x512xf32>
    tpu.vector_store %arg9[%c0_5, %c0_6], %5 {strides = array<i32>} : memref<32x512xf32, #tpu.memory_space<vmem>>, vector<32x512xf32>,
    %cst_7 = arith.constant 0.000000e+00 : f32
    %7 = vector.broadcast %cst_7 : f32 to vector<4x128xf32>
    %cst_8 = arith.constant 0.000000e+00 : f32
    %8 = vector.broadcast %cst_8 : f32 to vector<4x128xf32>
    %c0_9 = arith.constant 0 : index
    %c0_10 = arith.constant 0 : index
    %9 = vector.load %arg9[%c0_9, %c0_10] : memref<32x512xf32, #tpu.memory_space<vmem>>, vector<4x512xf32>
    %c0_11 = arith.constant 0 : index
    %c0_12 = arith.constant 0 : index
    %10 = vector.load %arg3[%c0_11, %c0_12] : memref<128x512xf32, #tpu.memory_space<vmem>>, vector<128x512xf32>
    %cst_13 = arith.constant dense<0.000000e+00> : vector<4x512xf32>
    %11 = tpu.matmul %7, %10, %cst_13 {dimension_numbers = #tpu.dot_dimension_numbers<[1], [0], [0], [1], [0, 0, 1, 1], [], []>} : vector<4x128xf32>, vector<128x512xf32>, vector<4x512xf32> -> vector<4x512xf32>
    %12 = arith.addf %9, %11 : vector<4x512xf32>
    %13 = vector.extract_strided_slice %12 {offsets = [0, 0], sizes = [4, 128], strides = [1, 1]} : vector<4x512xf32> to vector<4x128xf32>
    %14 = arith.negf %13 : vector<4x128xf32>
    %15 = math.exp %14 : vector<4x128xf32>
    %cst_14 = arith.constant 1.000000e+00 : f32
    %16 = vector.broadcast %cst_14 : f32 to vector<4x128xf32>
    %17 = arith.addf %16, %15 : vector<4x128xf32>
    %18 = arith.divf %16, %17 : vector<4x128xf32>
    %19 = vector.extract_strided_slice %12 {offsets = [0, 128], sizes = [4, 128], strides = [1, 1]} : vector<4x512xf32> to vector<4x128xf32>
    %20 = arith.negf %19 : vector<4x128xf32>
    %21 = math.exp %20 : vector<4x128xf32>
    %cst_15 = arith.constant 1.000000e+00 : f32
    %22 = vector.broadcast %cst_15 : f32 to vector<4x128xf32>
    %23 = arith.addf %22, %21 : vector<4x128xf32>
    %24 = arith.divf %22, %23 : vector<4x128xf32>
    %25 = vector.extract_strided_slice %12 {offsets = [0, 256], sizes = [4, 128], strides = [1, 1]} : vector<4x512xf32> to vector<4x128xf32>
    %26 = math.tanh %25 : vector<4x128xf32>
    %27 = vector.extract_strided_slice %12 {offsets = [0, 384], sizes = [4, 128], strides = [1, 1]} : vector<4x512xf32> to vector<4x128xf32>
    %28 = arith.negf %27 : vector<4x128xf32>
    %29 = math.exp %28 : vector<4x128xf32>
    %cst_16 = arith.constant 1.000000e+00 : f32
    %30 = vector.broadcast %cst_16 : f32 to vector<4x128xf32>
    %31 = arith.addf %30, %29 : vector<4x128xf32>
    %32 = arith.divf %30, %31 : vector<4x128xf32>
    %33 = arith.mulf %24, %8 : vector<4x128xf32>
    %34 = arith.mulf %18, %26 : vector<4x128xf32>
    %35 = arith.addf %33, %34 : vector<4x128xf32>
    %36 = math.tanh %35 : vector<4x128xf32>
    %37 = arith.mulf %32, %36 : vector<4x128xf32>
    %c0_17 = arith.constant 0 : index
    %c0_18 = arith.constant 0 : index
    %38 = vector.load %arg10[%c0_17, %c0_18] : memref<32x128xf32, #tpu.memory_space<vmem>>, vector<4x128xf32>
    tpu.vector_store %arg10[%c0_17, %c0_18], %37 {strides = array<i32>} : memref<32x128xf32, #tpu.memory_space<vmem>>, vector<4x128xf32>,
    %c4 = arith.constant 4 : index
    %c0_19 = arith.constant 0 : index
    %39 = vector.load %arg9[%c4, %c0_19] : memref<32x512xf32, #tpu.memory_space<vmem>>, vector<4x512xf32>
    %c0_20 = arith.constant 0 : index
    %c0_21 = arith.constant 0 : index
    %40 = vector.load %arg3[%c0_20, %c0_21] : memref<128x512xf32, #tpu.memory_space<vmem>>, vector<128x512xf32>
    %cst_22 = arith.constant dense<0.000000e+00> : vector<4x512xf32>
    %41 = tpu.matmul %37, %40, %cst_22 {dimension_numbers = #tpu.dot_dimension_numbers<[1], [0], [0], [1], [0, 0, 1, 1], [], []>} : vector<4x128xf32>, vector<128x512xf32>, vector<4x512xf32> -> vector<4x512xf32>
    %42 = arith.addf %39, %41 : vector<4x512xf32>
    %43 = vector.extract_strided_slice %42 {offsets = [0, 0], sizes = [4, 128], strides = [1, 1]} : vector<4x512xf32> to vector<4x128xf32>
    %44 = arith.negf %43 : vector<4x128xf32>
    %45 = math.exp %44 : vector<4x128xf32>
    %cst_23 = arith.constant 1.000000e+00 : f32
    %46 = vector.broadcast %cst_23 : f32 to vector<4x128xf32>
    %47 = arith.addf %46, %45 : vector<4x128xf32>
    %48 = arith.divf %46, %47 : vector<4x128xf32>
    %49 = vector.extract_strided_slice %42 {offsets = [0, 128], sizes = [4, 128], strides = [1, 1]} : vector<4x512xf32> to vector<4x128xf32>
    %50 = arith.negf %49 : vector<4x128xf32>
    %51 = math.exp %50 : vector<4x128xf32>
    %cst_24 = arith.constant 1.000000e+00 : f32
    %52 = vector.broadcast %cst_24 : f32 to vector<4x128xf32>
    %53 = arith.addf %52, %51 : vector<4x128xf32>
    %54 = arith.divf %52, %53 : vector<4x128xf32>
    %55 = vector.extract_strided_slice %42 {offsets = [0, 256], sizes = [4, 128], strides = [1, 1]} : vector<4x512xf32> to vector<4x128xf32>
    %56 = math.tanh %55 : vector<4x128xf32>
    %57 = vector.extract_strided_slice %42 {offsets = [0, 384], sizes = [4, 128], strides = [1, 1]} : vector<4x512xf32> to vector<4x128xf32>
    %58 = arith.negf %57 : vector<4x128xf32>
    %59 = math.exp %58 : vector<4x128xf32>
    %cst_25 = arith.constant 1.000000e+00 : f32
    %60 = vector.broadcast %cst_25 : f32 to vector<4x128xf32>
    %61 = arith.addf %60, %59 : vector<4x128xf32>
    %62 = arith.divf %60, %61 : vector<4x128xf32>
    %63 = arith.mulf %54, %35 : vector<4x128xf32>
    %64 = arith.mulf %48, %56 : vector<4x128xf32>
    %65 = arith.addf %63, %64 : vector<4x128xf32>
    %66 = math.tanh %65 : vector<4x128xf32>
    %67 = arith.mulf %62, %66 : vector<4x128xf32>
    %c4_26 = arith.constant 4 : index
    %c0_27 = arith.constant 0 : index
    %68 = vector.load %arg10[%c4_26, %c0_27] : memref<32x128xf32, #tpu.memory_space<vmem>>, vector<4x128xf32>
    tpu.vector_store %arg10[%c4_26, %c0_27], %67 {strides = array<i32>} : memref<32x128xf32, #tpu.memory_space<vmem>>, vector<4x128xf32>,
    %c8 = arith.constant 8 : index
    %c0_28 = arith.constant 0 : index
    %69 = vector.load %arg9[%c8, %c0_28] : memref<32x512xf32, #tpu.memory_space<vmem>>, vector<4x512xf32>
    %c0_29 = arith.constant 0 : index
    %c0_30 = arith.constant 0 : index
    %70 = vector.load %arg3[%c0_29, %c0_30] : memref<128x512xf32, #tpu.memory_space<vmem>>, vector<128x512xf32>
    %cst_31 = arith.constant dense<0.000000e+00> : vector<4x512xf32>
    %71 = tpu.matmul %67, %70, %cst_31 {dimension_numbers = #tpu.dot_dimension_numbers<[1], [0], [0], [1], [0, 0, 1, 1], [], []>} : vector<4x128xf32>, vector<128x512xf32>, vector<4x512xf32> -> vector<4x512xf32>
    %72 = arith.addf %69, %71 : vector<4x512xf32>
    %73 = vector.extract_strided_slice %72 {offsets = [0, 0], sizes = [4, 128], strides = [1, 1]} : vector<4x512xf32> to vector<4x128xf32>
    %74 = arith.negf %73 : vector<4x128xf32>
    %75 = math.exp %74 : vector<4x128xf32>
    %cst_32 = arith.constant 1.000000e+00 : f32
    %76 = vector.broadcast %cst_32 : f32 to vector<4x128xf32>
    %77 = arith.addf %76, %75 : vector<4x128xf32>
    %78 = arith.divf %76, %77 : vector<4x128xf32>
    %79 = vector.extract_strided_slice %72 {offsets = [0, 128], sizes = [4, 128], strides = [1, 1]} : vector<4x512xf32> to vector<4x128xf32>
    %80 = arith.negf %79 : vector<4x128xf32>
    %81 = math.exp %80 : vector<4x128xf32>
    %cst_33 = arith.constant 1.000000e+00 : f32
    %82 = vector.broadcast %cst_33 : f32 to vector<4x128xf32>
    %83 = arith.addf %82, %81 : vector<4x128xf32>
    %84 = arith.divf %82, %83 : vector<4x128xf32>
    %85 = vector.extract_strided_slice %72 {offsets = [0, 256], sizes = [4, 128], strides = [1, 1]} : vector<4x512xf32> to vector<4x128xf32>
    %86 = math.tanh %85 : vector<4x128xf32>
    %87 = vector.extract_strided_slice %72 {offsets = [0, 384], sizes = [4, 128], strides = [1, 1]} : vector<4x512xf32> to vector<4x128xf32>
    %88 = arith.negf %87 : vector<4x128xf32>
    %89 = math.exp %88 : vector<4x128xf32>
    %cst_34 = arith.constant 1.000000e+00 : f32
    %90 = vector.broadcast %cst_34 : f32 to vector<4x128xf32>
    %91 = arith.addf %90, %89 : vector<4x128xf32>
    %92 = arith.divf %90, %91 : vector<4x128xf32>
    %93 = arith.mulf %84, %65 : vector<4x128xf32>
    %94 = arith.mulf %78, %86 : vector<4x128xf32>
    %95 = arith.addf %93, %94 : vector<4x128xf32>
    %96 = math.tanh %95 : vector<4x128xf32>
    %97 = arith.mulf %92, %96 : vector<4x128xf32>
    %c8_35 = arith.constant 8 : index
    %c0_36 = arith.constant 0 : index
    %98 = vector.load %arg10[%c8_35, %c0_36] : memref<32x128xf32, #tpu.memory_space<vmem>>, vector<4x128xf32>
    tpu.vector_store %arg10[%c8_35, %c0_36], %97 {strides = array<i32>} : memref<32x128xf32, #tpu.memory_space<vmem>>, vector<4x128xf32>,
    %c12 = arith.constant 12 : index
    %c0_37 = arith.constant 0 : index
    %99 = vector.load %arg9[%c12, %c0_37] : memref<32x512xf32, #tpu.memory_space<vmem>>, vector<4x512xf32>
    %c0_38 = arith.constant 0 : index
    %c0_39 = arith.constant 0 : index
    %100 = vector.load %arg3[%c0_38, %c0_39] : memref<128x512xf32, #tpu.memory_space<vmem>>, vector<128x512xf32>
    %cst_40 = arith.constant dense<0.000000e+00> : vector<4x512xf32>
    %101 = tpu.matmul %97, %100, %cst_40 {dimension_numbers = #tpu.dot_dimension_numbers<[1], [0], [0], [1], [0, 0, 1, 1], [], []>} : vector<4x128xf32>, vector<128x512xf32>, vector<4x512xf32> -> vector<4x512xf32>
    %102 = arith.addf %99, %101 : vector<4x512xf32>
    %103 = vector.extract_strided_slice %102 {offsets = [0, 0], sizes = [4, 128], strides = [1, 1]} : vector<4x512xf32> to vector<4x128xf32>
    %104 = arith.negf %103 : vector<4x128xf32>
    %105 = math.exp %104 : vector<4x128xf32>
    %cst_41 = arith.constant 1.000000e+00 : f32
    %106 = vector.broadcast %cst_41 : f32 to vector<4x128xf32>
    %107 = arith.addf %106, %105 : vector<4x128xf32>
    %108 = arith.divf %106, %107 : vector<4x128xf32>
    %109 = vector.extract_strided_slice %102 {offsets = [0, 128], sizes = [4, 128], strides = [1, 1]} : vector<4x512xf32> to vector<4x128xf32>
    %110 = arith.negf %109 : vector<4x128xf32>
    %111 = math.exp %110 : vector<4x128xf32>
    %cst_42 = arith.constant 1.000000e+00 : f32
    %112 = vector.broadcast %cst_42 : f32 to vector<4x128xf32>
    %113 = arith.addf %112, %111 : vector<4x128xf32>
    %114 = arith.divf %112, %113 : vector<4x128xf32>
    %115 = vector.extract_strided_slice %102 {offsets = [0, 256], sizes = [4, 128], strides = [1, 1]} : vector<4x512xf32> to vector<4x128xf32>
    %116 = math.tanh %115 : vector<4x128xf32>
    %117 = vector.extract_strided_slice %102 {offsets = [0, 384], sizes = [4, 128], strides = [1, 1]} : vector<4x512xf32> to vector<4x128xf32>
    %118 = arith.negf %117 : vector<4x128xf32>
    %119 = math.exp %118 : vector<4x128xf32>
    %cst_43 = arith.constant 1.000000e+00 : f32
    %120 = vector.broadcast %cst_43 : f32 to vector<4x128xf32>
    %121 = arith.addf %120, %119 : vector<4x128xf32>
    %122 = arith.divf %120, %121 : vector<4x128xf32>
    %123 = arith.mulf %114, %95 : vector<4x128xf32>
    %124 = arith.mulf %108, %116 : vector<4x128xf32>
    %125 = arith.addf %123, %124 : vector<4x128xf32>
    %126 = math.tanh %125 : vector<4x128xf32>
    %127 = arith.mulf %122, %126 : vector<4x128xf32>
    %c12_44 = arith.constant 12 : index
    %c0_45 = arith.constant 0 : index
    %128 = vector.load %arg10[%c12_44, %c0_45] : memref<32x128xf32, #tpu.memory_space<vmem>>, vector<4x128xf32>
    tpu.vector_store %arg10[%c12_44, %c0_45], %127 {strides = array<i32>} : memref<32x128xf32, #tpu.memory_space<vmem>>, vector<4x128xf32>,
    %c16 = arith.constant 16 : index
    %c0_46 = arith.constant 0 : index
    %129 = vector.load %arg9[%c16, %c0_46] : memref<32x512xf32, #tpu.memory_space<vmem>>, vector<4x512xf32>
    %c0_47 = arith.constant 0 : index
    %c0_48 = arith.constant 0 : index
    %130 = vector.load %arg3[%c0_47, %c0_48] : memref<128x512xf32, #tpu.memory_space<vmem>>, vector<128x512xf32>
    %cst_49 = arith.constant dense<0.000000e+00> : vector<4x512xf32>
    %131 = tpu.matmul %127, %130, %cst_49 {dimension_numbers = #tpu.dot_dimension_numbers<[1], [0], [0], [1], [0, 0, 1, 1], [], []>} : vector<4x128xf32>, vector<128x512xf32>, vector<4x512xf32> -> vector<4x512xf32>
    %132 = arith.addf %129, %131 : vector<4x512xf32>
    %133 = vector.extract_strided_slice %132 {offsets = [0, 0], sizes = [4, 128], strides = [1, 1]} : vector<4x512xf32> to vector<4x128xf32>
    %134 = arith.negf %133 : vector<4x128xf32>
    %135 = math.exp %134 : vector<4x128xf32>
    %cst_50 = arith.constant 1.000000e+00 : f32
    %136 = vector.broadcast %cst_50 : f32 to vector<4x128xf32>
    %137 = arith.addf %136, %135 : vector<4x128xf32>
    %138 = arith.divf %136, %137 : vector<4x128xf32>
    %139 = vector.extract_strided_slice %132 {offsets = [0, 128], sizes = [4, 128], strides = [1, 1]} : vector<4x512xf32> to vector<4x128xf32>
    %140 = arith.negf %139 : vector<4x128xf32>
    %141 = math.exp %140 : vector<4x128xf32>
    %cst_51 = arith.constant 1.000000e+00 : f32
    %142 = vector.broadcast %cst_51 : f32 to vector<4x128xf32>
    %143 = arith.addf %142, %141 : vector<4x128xf32>
    %144 = arith.divf %142, %143 : vector<4x128xf32>
    %145 = vector.extract_strided_slice %132 {offsets = [0, 256], sizes = [4, 128], strides = [1, 1]} : vector<4x512xf32> to vector<4x128xf32>
    %146 = math.tanh %145 : vector<4x128xf32>
    %147 = vector.extract_strided_slice %132 {offsets = [0, 384], sizes = [4, 128], strides = [1, 1]} : vector<4x512xf32> to vector<4x128xf32>
    %148 = arith.negf %147 : vector<4x128xf32>
    %149 = math.exp %148 : vector<4x128xf32>
    %cst_52 = arith.constant 1.000000e+00 : f32
    %150 = vector.broadcast %cst_52 : f32 to vector<4x128xf32>
    %151 = arith.addf %150, %149 : vector<4x128xf32>
    %152 = arith.divf %150, %151 : vector<4x128xf32>
    %153 = arith.mulf %144, %125 : vector<4x128xf32>
    %154 = arith.mulf %138, %146 : vector<4x128xf32>
    %155 = arith.addf %153, %154 : vector<4x128xf32>
    %156 = math.tanh %155 : vector<4x128xf32>
    %157 = arith.mulf %152, %156 : vector<4x128xf32>
    %c16_53 = arith.constant 16 : index
    %c0_54 = arith.constant 0 : index
    %158 = vector.load %arg10[%c16_53, %c0_54] : memref<32x128xf32, #tpu.memory_space<vmem>>, vector<4x128xf32>
    tpu.vector_store %arg10[%c16_53, %c0_54], %157 {strides = array<i32>} : memref<32x128xf32, #tpu.memory_space<vmem>>, vector<4x128xf32>,
    %c20 = arith.constant 20 : index
    %c0_55 = arith.constant 0 : index
    %159 = vector.load %arg9[%c20, %c0_55] : memref<32x512xf32, #tpu.memory_space<vmem>>, vector<4x512xf32>
    %c0_56 = arith.constant 0 : index
    %c0_57 = arith.constant 0 : index
    %160 = vector.load %arg3[%c0_56, %c0_57] : memref<128x512xf32, #tpu.memory_space<vmem>>, vector<128x512xf32>
    %cst_58 = arith.constant dense<0.000000e+00> : vector<4x512xf32>
    %161 = tpu.matmul %157, %160, %cst_58 {dimension_numbers = #tpu.dot_dimension_numbers<[1], [0], [0], [1], [0, 0, 1, 1], [], []>} : vector<4x128xf32>, vector<128x512xf32>, vector<4x512xf32> -> vector<4x512xf32>
    %162 = arith.addf %159, %161 : vector<4x512xf32>
    %163 = vector.extract_strided_slice %162 {offsets = [0, 0], sizes = [4, 128], strides = [1, 1]} : vector<4x512xf32> to vector<4x128xf32>
    %164 = arith.negf %163 : vector<4x128xf32>
    %165 = math.exp %164 : vector<4x128xf32>
    %cst_59 = arith.constant 1.000000e+00 : f32
    %166 = vector.broadcast %cst_59 : f32 to vector<4x128xf32>
    %167 = arith.addf %166, %165 : vector<4x128xf32>
    %168 = arith.divf %166, %167 : vector<4x128xf32>
    %169 = vector.extract_strided_slice %162 {offsets = [0, 128], sizes = [4, 128], strides = [1, 1]} : vector<4x512xf32> to vector<4x128xf32>
    %170 = arith.negf %169 : vector<4x128xf32>
    %171 = math.exp %170 : vector<4x128xf32>
    %cst_60 = arith.constant 1.000000e+00 : f32
    %172 = vector.broadcast %cst_60 : f32 to vector<4x128xf32>
    %173 = arith.addf %172, %171 : vector<4x128xf32>
    %174 = arith.divf %172, %173 : vector<4x128xf32>
    %175 = vector.extract_strided_slice %162 {offsets = [0, 256], sizes = [4, 128], strides = [1, 1]} : vector<4x512xf32> to vector<4x128xf32>
    %176 = math.tanh %175 : vector<4x128xf32>
    %177 = vector.extract_strided_slice %162 {offsets = [0, 384], sizes = [4, 128], strides = [1, 1]} : vector<4x512xf32> to vector<4x128xf32>
    %178 = arith.negf %177 : vector<4x128xf32>
    %179 = math.exp %178 : vector<4x128xf32>
    %cst_61 = arith.constant 1.000000e+00 : f32
    %180 = vector.broadcast %cst_61 : f32 to vector<4x128xf32>
    %181 = arith.addf %180, %179 : vector<4x128xf32>
    %182 = arith.divf %180, %181 : vector<4x128xf32>
    %183 = arith.mulf %174, %155 : vector<4x128xf32>
    %184 = arith.mulf %168, %176 : vector<4x128xf32>
    %185 = arith.addf %183, %184 : vector<4x128xf32>
    %186 = math.tanh %185 : vector<4x128xf32>
    %187 = arith.mulf %182, %186 : vector<4x128xf32>
    %c20_62 = arith.constant 20 : index
    %c0_63 = arith.constant 0 : index
    %188 = vector.load %arg10[%c20_62, %c0_63] : memref<32x128xf32, #tpu.memory_space<vmem>>, vector<4x128xf32>
    tpu.vector_store %arg10[%c20_62, %c0_63], %187 {strides = array<i32>} : memref<32x128xf32, #tpu.memory_space<vmem>>, vector<4x128xf32>,
    %c24 = arith.constant 24 : index
    %c0_64 = arith.constant 0 : index
    %189 = vector.load %arg9[%c24, %c0_64] : memref<32x512xf32, #tpu.memory_space<vmem>>, vector<4x512xf32>
    %c0_65 = arith.constant 0 : index
    %c0_66 = arith.constant 0 : index
    %190 = vector.load %arg3[%c0_65, %c0_66] : memref<128x512xf32, #tpu.memory_space<vmem>>, vector<128x512xf32>
    %cst_67 = arith.constant dense<0.000000e+00> : vector<4x512xf32>
    %191 = tpu.matmul %187, %190, %cst_67 {dimension_numbers = #tpu.dot_dimension_numbers<[1], [0], [0], [1], [0, 0, 1, 1], [], []>} : vector<4x128xf32>, vector<128x512xf32>, vector<4x512xf32> -> vector<4x512xf32>
    %192 = arith.addf %189, %191 : vector<4x512xf32>
    %193 = vector.extract_strided_slice %192 {offsets = [0, 0], sizes = [4, 128], strides = [1, 1]} : vector<4x512xf32> to vector<4x128xf32>
    %194 = arith.negf %193 : vector<4x128xf32>
    %195 = math.exp %194 : vector<4x128xf32>
    %cst_68 = arith.constant 1.000000e+00 : f32
    %196 = vector.broadcast %cst_68 : f32 to vector<4x128xf32>
    %197 = arith.addf %196, %195 : vector<4x128xf32>
    %198 = arith.divf %196, %197 : vector<4x128xf32>
    %199 = vector.extract_strided_slice %192 {offsets = [0, 128], sizes = [4, 128], strides = [1, 1]} : vector<4x512xf32> to vector<4x128xf32>
    %200 = arith.negf %199 : vector<4x128xf32>
    %201 = math.exp %200 : vector<4x128xf32>
    %cst_69 = arith.constant 1.000000e+00 : f32
    %202 = vector.broadcast %cst_69 : f32 to vector<4x128xf32>
    %203 = arith.addf %202, %201 : vector<4x128xf32>
    %204 = arith.divf %202, %203 : vector<4x128xf32>
    %205 = vector.extract_strided_slice %192 {offsets = [0, 256], sizes = [4, 128], strides = [1, 1]} : vector<4x512xf32> to vector<4x128xf32>
    %206 = math.tanh %205 : vector<4x128xf32>
    %207 = vector.extract_strided_slice %192 {offsets = [0, 384], sizes = [4, 128], strides = [1, 1]} : vector<4x512xf32> to vector<4x128xf32>
    %208 = arith.negf %207 : vector<4x128xf32>
    %209 = math.exp %208 : vector<4x128xf32>
    %cst_70 = arith.constant 1.000000e+00 : f32
    %210 = vector.broadcast %cst_70 : f32 to vector<4x128xf32>
    %211 = arith.addf %210, %209 : vector<4x128xf32>
    %212 = arith.divf %210, %211 : vector<4x128xf32>
    %213 = arith.mulf %204, %185 : vector<4x128xf32>
    %214 = arith.mulf %198, %206 : vector<4x128xf32>
    %215 = arith.addf %213, %214 : vector<4x128xf32>
    %216 = math.tanh %215 : vector<4x128xf32>
    %217 = arith.mulf %212, %216 : vector<4x128xf32>
    %c24_71 = arith.constant 24 : index
    %c0_72 = arith.constant 0 : index
    %218 = vector.load %arg10[%c24_71, %c0_72] : memref<32x128xf32, #tpu.memory_space<vmem>>, vector<4x128xf32>
    tpu.vector_store %arg10[%c24_71, %c0_72], %217 {strides = array<i32>} : memref<32x128xf32, #tpu.memory_space<vmem>>, vector<4x128xf32>,
    %c28 = arith.constant 28 : index
    %c0_73 = arith.constant 0 : index
    %219 = vector.load %arg9[%c28, %c0_73] : memref<32x512xf32, #tpu.memory_space<vmem>>, vector<4x512xf32>
    %c0_74 = arith.constant 0 : index
    %c0_75 = arith.constant 0 : index
    %220 = vector.load %arg3[%c0_74, %c0_75] : memref<128x512xf32, #tpu.memory_space<vmem>>, vector<128x512xf32>
    %cst_76 = arith.constant dense<0.000000e+00> : vector<4x512xf32>
    %221 = tpu.matmul %217, %220, %cst_76 {dimension_numbers = #tpu.dot_dimension_numbers<[1], [0], [0], [1], [0, 0, 1, 1], [], []>} : vector<4x128xf32>, vector<128x512xf32>, vector<4x512xf32> -> vector<4x512xf32>
    %222 = arith.addf %219, %221 : vector<4x512xf32>
    %223 = vector.extract_strided_slice %222 {offsets = [0, 0], sizes = [4, 128], strides = [1, 1]} : vector<4x512xf32> to vector<4x128xf32>
    %224 = arith.negf %223 : vector<4x128xf32>
    %225 = math.exp %224 : vector<4x128xf32>
    %cst_77 = arith.constant 1.000000e+00 : f32
    %226 = vector.broadcast %cst_77 : f32 to vector<4x128xf32>
    %227 = arith.addf %226, %225 : vector<4x128xf32>
    %228 = arith.divf %226, %227 : vector<4x128xf32>
    %229 = vector.extract_strided_slice %222 {offsets = [0, 128], sizes = [4, 128], strides = [1, 1]} : vector<4x512xf32> to vector<4x128xf32>
    %230 = arith.negf %229 : vector<4x128xf32>
    %231 = math.exp %230 : vector<4x128xf32>
    %cst_78 = arith.constant 1.000000e+00 : f32
    %232 = vector.broadcast %cst_78 : f32 to vector<4x128xf32>
    %233 = arith.addf %232, %231 : vector<4x128xf32>
    %234 = arith.divf %232, %233 : vector<4x128xf32>
    %235 = vector.extract_strided_slice %222 {offsets = [0, 256], sizes = [4, 128], strides = [1, 1]} : vector<4x512xf32> to vector<4x128xf32>
    %236 = math.tanh %235 : vector<4x128xf32>
    %237 = vector.extract_strided_slice %222 {offsets = [0, 384], sizes = [4, 128], strides = [1, 1]} : vector<4x512xf32> to vector<4x128xf32>
    %238 = arith.negf %237 : vector<4x128xf32>
    %239 = math.exp %238 : vector<4x128xf32>
    %cst_79 = arith.constant 1.000000e+00 : f32
    %240 = vector.broadcast %cst_79 : f32 to vector<4x128xf32>
    %241 = arith.addf %240, %239 : vector<4x128xf32>
    %242 = arith.divf %240, %241 : vector<4x128xf32>
    %243 = arith.mulf %234, %215 : vector<4x128xf32>
    %244 = arith.mulf %228, %236 : vector<4x128xf32>
    %245 = arith.addf %243, %244 : vector<4x128xf32>
    %246 = math.tanh %245 : vector<4x128xf32>
    %247 = arith.mulf %242, %246 : vector<4x128xf32>
    %c28_80 = arith.constant 28 : index
    %c0_81 = arith.constant 0 : index
    %248 = vector.load %arg10[%c28_80, %c0_81] : memref<32x128xf32, #tpu.memory_space<vmem>>, vector<4x128xf32>
    tpu.vector_store %arg10[%c28_80, %c0_81], %247 {strides = array<i32>} : memref<32x128xf32, #tpu.memory_space<vmem>>, vector<4x128xf32>,
    %c0_82 = arith.constant 0 : index
    %c0_83 = arith.constant 0 : index
    %249 = vector.load %arg10[%c0_82, %c0_83] : memref<32x128xf32, #tpu.memory_space<vmem>>, vector<32x128xf32>
    %c0_84 = arith.constant 0 : index
    %c0_85 = arith.constant 0 : index
    %250 = vector.load %arg5[%c0_84, %c0_85] : memref<128x512xf32, #tpu.memory_space<vmem>>, vector<128x512xf32>
    %cst_86 = arith.constant dense<0.000000e+00> : vector<32x512xf32>
    %251 = tpu.matmul %249, %250, %cst_86 {dimension_numbers = #tpu.dot_dimension_numbers<[1], [0], [0], [1], [0, 0, 1, 1], [], []>} : vector<32x128xf32>, vector<128x512xf32>, vector<32x512xf32> -> vector<32x512xf32>
    %c0_87 = arith.constant 0 : index
    %c0_88 = arith.constant 0 : index
    %252 = vector.load %arg7[%c0_87, %c0_88] : memref<1x512xf32, #tpu.memory_space<vmem>>, vector<1x512xf32>
    %253 = vector.broadcast %252 : vector<1x512xf32> to vector<32x512xf32>
    %254 = arith.addf %251, %253 : vector<32x512xf32>
    %c0_89 = arith.constant 0 : index
    %c0_90 = arith.constant 0 : index
    %255 = vector.load %arg9[%c0_89, %c0_90] : memref<32x512xf32, #tpu.memory_space<vmem>>, vector<32x512xf32>
    tpu.vector_store %arg9[%c0_89, %c0_90], %254 {strides = array<i32>} : memref<32x512xf32, #tpu.memory_space<vmem>>, vector<32x512xf32>,
    %cst_91 = arith.constant 0.000000e+00 : f32
    %256 = vector.broadcast %cst_91 : f32 to vector<4x128xf32>
    %cst_92 = arith.constant 0.000000e+00 : f32
    %257 = vector.broadcast %cst_92 : f32 to vector<4x128xf32>
    %c0_93 = arith.constant 0 : index
    %c0_94 = arith.constant 0 : index
    %258 = vector.load %arg9[%c0_93, %c0_94] : memref<32x512xf32, #tpu.memory_space<vmem>>, vector<4x512xf32>
    %c0_95 = arith.constant 0 : index
    %c0_96 = arith.constant 0 : index
    %259 = vector.load %arg6[%c0_95, %c0_96] : memref<128x512xf32, #tpu.memory_space<vmem>>, vector<128x512xf32>
    %cst_97 = arith.constant dense<0.000000e+00> : vector<4x512xf32>
    %260 = tpu.matmul %256, %259, %cst_97 {dimension_numbers = #tpu.dot_dimension_numbers<[1], [0], [0], [1], [0, 0, 1, 1], [], []>} : vector<4x128xf32>, vector<128x512xf32>, vector<4x512xf32> -> vector<4x512xf32>
    %261 = arith.addf %258, %260 : vector<4x512xf32>
    %262 = vector.extract_strided_slice %261 {offsets = [0, 0], sizes = [4, 128], strides = [1, 1]} : vector<4x512xf32> to vector<4x128xf32>
    %263 = arith.negf %262 : vector<4x128xf32>
    %264 = math.exp %263 : vector<4x128xf32>
    %cst_98 = arith.constant 1.000000e+00 : f32
    %265 = vector.broadcast %cst_98 : f32 to vector<4x128xf32>
    %266 = arith.addf %265, %264 : vector<4x128xf32>
    %267 = arith.divf %265, %266 : vector<4x128xf32>
    %268 = vector.extract_strided_slice %261 {offsets = [0, 128], sizes = [4, 128], strides = [1, 1]} : vector<4x512xf32> to vector<4x128xf32>
    %269 = arith.negf %268 : vector<4x128xf32>
    %270 = math.exp %269 : vector<4x128xf32>
    %cst_99 = arith.constant 1.000000e+00 : f32
    %271 = vector.broadcast %cst_99 : f32 to vector<4x128xf32>
    %272 = arith.addf %271, %270 : vector<4x128xf32>
    %273 = arith.divf %271, %272 : vector<4x128xf32>
    %274 = vector.extract_strided_slice %261 {offsets = [0, 256], sizes = [4, 128], strides = [1, 1]} : vector<4x512xf32> to vector<4x128xf32>
    %275 = math.tanh %274 : vector<4x128xf32>
    %276 = vector.extract_strided_slice %261 {offsets = [0, 384], sizes = [4, 128], strides = [1, 1]} : vector<4x512xf32> to vector<4x128xf32>
    %277 = arith.negf %276 : vector<4x128xf32>
    %278 = math.exp %277 : vector<4x128xf32>
    %cst_100 = arith.constant 1.000000e+00 : f32
    %279 = vector.broadcast %cst_100 : f32 to vector<4x128xf32>
    %280 = arith.addf %279, %278 : vector<4x128xf32>
    %281 = arith.divf %279, %280 : vector<4x128xf32>
    %282 = arith.mulf %273, %257 : vector<4x128xf32>
    %283 = arith.mulf %267, %275 : vector<4x128xf32>
    %284 = arith.addf %282, %283 : vector<4x128xf32>
    %285 = math.tanh %284 : vector<4x128xf32>
    %286 = arith.mulf %281, %285 : vector<4x128xf32>
    %c4_101 = arith.constant 4 : index
    %c0_102 = arith.constant 0 : index
    %287 = vector.load %arg9[%c4_101, %c0_102] : memref<32x512xf32, #tpu.memory_space<vmem>>, vector<4x512xf32>
    %c0_103 = arith.constant 0 : index
    %c0_104 = arith.constant 0 : index
    %288 = vector.load %arg6[%c0_103, %c0_104] : memref<128x512xf32, #tpu.memory_space<vmem>>, vector<128x512xf32>
    %cst_105 = arith.constant dense<0.000000e+00> : vector<4x512xf32>
    %289 = tpu.matmul %286, %288, %cst_105 {dimension_numbers = #tpu.dot_dimension_numbers<[1], [0], [0], [1], [0, 0, 1, 1], [], []>} : vector<4x128xf32>, vector<128x512xf32>, vector<4x512xf32> -> vector<4x512xf32>
    %290 = arith.addf %287, %289 : vector<4x512xf32>
    %291 = vector.extract_strided_slice %290 {offsets = [0, 0], sizes = [4, 128], strides = [1, 1]} : vector<4x512xf32> to vector<4x128xf32>
    %292 = arith.negf %291 : vector<4x128xf32>
    %293 = math.exp %292 : vector<4x128xf32>
    %cst_106 = arith.constant 1.000000e+00 : f32
    %294 = vector.broadcast %cst_106 : f32 to vector<4x128xf32>
    %295 = arith.addf %294, %293 : vector<4x128xf32>
    %296 = arith.divf %294, %295 : vector<4x128xf32>
    %297 = vector.extract_strided_slice %290 {offsets = [0, 128], sizes = [4, 128], strides = [1, 1]} : vector<4x512xf32> to vector<4x128xf32>
    %298 = arith.negf %297 : vector<4x128xf32>
    %299 = math.exp %298 : vector<4x128xf32>
    %cst_107 = arith.constant 1.000000e+00 : f32
    %300 = vector.broadcast %cst_107 : f32 to vector<4x128xf32>
    %301 = arith.addf %300, %299 : vector<4x128xf32>
    %302 = arith.divf %300, %301 : vector<4x128xf32>
    %303 = vector.extract_strided_slice %290 {offsets = [0, 256], sizes = [4, 128], strides = [1, 1]} : vector<4x512xf32> to vector<4x128xf32>
    %304 = math.tanh %303 : vector<4x128xf32>
    %305 = vector.extract_strided_slice %290 {offsets = [0, 384], sizes = [4, 128], strides = [1, 1]} : vector<4x512xf32> to vector<4x128xf32>
    %306 = arith.negf %305 : vector<4x128xf32>
    %307 = math.exp %306 : vector<4x128xf32>
    %cst_108 = arith.constant 1.000000e+00 : f32
    %308 = vector.broadcast %cst_108 : f32 to vector<4x128xf32>
    %309 = arith.addf %308, %307 : vector<4x128xf32>
    %310 = arith.divf %308, %309 : vector<4x128xf32>
    %311 = arith.mulf %302, %284 : vector<4x128xf32>
    %312 = arith.mulf %296, %304 : vector<4x128xf32>
    %313 = arith.addf %311, %312 : vector<4x128xf32>
    %314 = math.tanh %313 : vector<4x128xf32>
    %315 = arith.mulf %310, %314 : vector<4x128xf32>
    %c8_109 = arith.constant 8 : index
    %c0_110 = arith.constant 0 : index
    %316 = vector.load %arg9[%c8_109, %c0_110] : memref<32x512xf32, #tpu.memory_space<vmem>>, vector<4x512xf32>
    %c0_111 = arith.constant 0 : index
    %c0_112 = arith.constant 0 : index
    %317 = vector.load %arg6[%c0_111, %c0_112] : memref<128x512xf32, #tpu.memory_space<vmem>>, vector<128x512xf32>
    %cst_113 = arith.constant dense<0.000000e+00> : vector<4x512xf32>
    %318 = tpu.matmul %315, %317, %cst_113 {dimension_numbers = #tpu.dot_dimension_numbers<[1], [0], [0], [1], [0, 0, 1, 1], [], []>} : vector<4x128xf32>, vector<128x512xf32>, vector<4x512xf32> -> vector<4x512xf32>
    %319 = arith.addf %316, %318 : vector<4x512xf32>
    %320 = vector.extract_strided_slice %319 {offsets = [0, 0], sizes = [4, 128], strides = [1, 1]} : vector<4x512xf32> to vector<4x128xf32>
    %321 = arith.negf %320 : vector<4x128xf32>
    %322 = math.exp %321 : vector<4x128xf32>
    %cst_114 = arith.constant 1.000000e+00 : f32
    %323 = vector.broadcast %cst_114 : f32 to vector<4x128xf32>
    %324 = arith.addf %323, %322 : vector<4x128xf32>
    %325 = arith.divf %323, %324 : vector<4x128xf32>
    %326 = vector.extract_strided_slice %319 {offsets = [0, 128], sizes = [4, 128], strides = [1, 1]} : vector<4x512xf32> to vector<4x128xf32>
    %327 = arith.negf %326 : vector<4x128xf32>
    %328 = math.exp %327 : vector<4x128xf32>
    %cst_115 = arith.constant 1.000000e+00 : f32
    %329 = vector.broadcast %cst_115 : f32 to vector<4x128xf32>
    %330 = arith.addf %329, %328 : vector<4x128xf32>
    %331 = arith.divf %329, %330 : vector<4x128xf32>
    %332 = vector.extract_strided_slice %319 {offsets = [0, 256], sizes = [4, 128], strides = [1, 1]} : vector<4x512xf32> to vector<4x128xf32>
    %333 = math.tanh %332 : vector<4x128xf32>
    %334 = vector.extract_strided_slice %319 {offsets = [0, 384], sizes = [4, 128], strides = [1, 1]} : vector<4x512xf32> to vector<4x128xf32>
    %335 = arith.negf %334 : vector<4x128xf32>
    %336 = math.exp %335 : vector<4x128xf32>
    %cst_116 = arith.constant 1.000000e+00 : f32
    %337 = vector.broadcast %cst_116 : f32 to vector<4x128xf32>
    %338 = arith.addf %337, %336 : vector<4x128xf32>
    %339 = arith.divf %337, %338 : vector<4x128xf32>
    %340 = arith.mulf %331, %313 : vector<4x128xf32>
    %341 = arith.mulf %325, %333 : vector<4x128xf32>
    %342 = arith.addf %340, %341 : vector<4x128xf32>
    %343 = math.tanh %342 : vector<4x128xf32>
    %344 = arith.mulf %339, %343 : vector<4x128xf32>
    %c12_117 = arith.constant 12 : index
    %c0_118 = arith.constant 0 : index
    %345 = vector.load %arg9[%c12_117, %c0_118] : memref<32x512xf32, #tpu.memory_space<vmem>>, vector<4x512xf32>
    %c0_119 = arith.constant 0 : index
    %c0_120 = arith.constant 0 : index
    %346 = vector.load %arg6[%c0_119, %c0_120] : memref<128x512xf32, #tpu.memory_space<vmem>>, vector<128x512xf32>
    %cst_121 = arith.constant dense<0.000000e+00> : vector<4x512xf32>
    %347 = tpu.matmul %344, %346, %cst_121 {dimension_numbers = #tpu.dot_dimension_numbers<[1], [0], [0], [1], [0, 0, 1, 1], [], []>} : vector<4x128xf32>, vector<128x512xf32>, vector<4x512xf32> -> vector<4x512xf32>
    %348 = arith.addf %345, %347 : vector<4x512xf32>
    %349 = vector.extract_strided_slice %348 {offsets = [0, 0], sizes = [4, 128], strides = [1, 1]} : vector<4x512xf32> to vector<4x128xf32>
    %350 = arith.negf %349 : vector<4x128xf32>
    %351 = math.exp %350 : vector<4x128xf32>
    %cst_122 = arith.constant 1.000000e+00 : f32
    %352 = vector.broadcast %cst_122 : f32 to vector<4x128xf32>
    %353 = arith.addf %352, %351 : vector<4x128xf32>
    %354 = arith.divf %352, %353 : vector<4x128xf32>
    %355 = vector.extract_strided_slice %348 {offsets = [0, 128], sizes = [4, 128], strides = [1, 1]} : vector<4x512xf32> to vector<4x128xf32>
    %356 = arith.negf %355 : vector<4x128xf32>
    %357 = math.exp %356 : vector<4x128xf32>
    %cst_123 = arith.constant 1.000000e+00 : f32
    %358 = vector.broadcast %cst_123 : f32 to vector<4x128xf32>
    %359 = arith.addf %358, %357 : vector<4x128xf32>
    %360 = arith.divf %358, %359 : vector<4x128xf32>
    %361 = vector.extract_strided_slice %348 {offsets = [0, 256], sizes = [4, 128], strides = [1, 1]} : vector<4x512xf32> to vector<4x128xf32>
    %362 = math.tanh %361 : vector<4x128xf32>
    %363 = vector.extract_strided_slice %348 {offsets = [0, 384], sizes = [4, 128], strides = [1, 1]} : vector<4x512xf32> to vector<4x128xf32>
    %364 = arith.negf %363 : vector<4x128xf32>
    %365 = math.exp %364 : vector<4x128xf32>
    %cst_124 = arith.constant 1.000000e+00 : f32
    %366 = vector.broadcast %cst_124 : f32 to vector<4x128xf32>
    %367 = arith.addf %366, %365 : vector<4x128xf32>
    %368 = arith.divf %366, %367 : vector<4x128xf32>
    %369 = arith.mulf %360, %342 : vector<4x128xf32>
    %370 = arith.mulf %354, %362 : vector<4x128xf32>
    %371 = arith.addf %369, %370 : vector<4x128xf32>
    %372 = math.tanh %371 : vector<4x128xf32>
    %373 = arith.mulf %368, %372 : vector<4x128xf32>
    %c16_125 = arith.constant 16 : index
    %c0_126 = arith.constant 0 : index
    %374 = vector.load %arg9[%c16_125, %c0_126] : memref<32x512xf32, #tpu.memory_space<vmem>>, vector<4x512xf32>
    %c0_127 = arith.constant 0 : index
    %c0_128 = arith.constant 0 : index
    %375 = vector.load %arg6[%c0_127, %c0_128] : memref<128x512xf32, #tpu.memory_space<vmem>>, vector<128x512xf32>
    %cst_129 = arith.constant dense<0.000000e+00> : vector<4x512xf32>
    %376 = tpu.matmul %373, %375, %cst_129 {dimension_numbers = #tpu.dot_dimension_numbers<[1], [0], [0], [1], [0, 0, 1, 1], [], []>} : vector<4x128xf32>, vector<128x512xf32>, vector<4x512xf32> -> vector<4x512xf32>
    %377 = arith.addf %374, %376 : vector<4x512xf32>
    %378 = vector.extract_strided_slice %377 {offsets = [0, 0], sizes = [4, 128], strides = [1, 1]} : vector<4x512xf32> to vector<4x128xf32>
    %379 = arith.negf %378 : vector<4x128xf32>
    %380 = math.exp %379 : vector<4x128xf32>
    %cst_130 = arith.constant 1.000000e+00 : f32
    %381 = vector.broadcast %cst_130 : f32 to vector<4x128xf32>
    %382 = arith.addf %381, %380 : vector<4x128xf32>
    %383 = arith.divf %381, %382 : vector<4x128xf32>
    %384 = vector.extract_strided_slice %377 {offsets = [0, 128], sizes = [4, 128], strides = [1, 1]} : vector<4x512xf32> to vector<4x128xf32>
    %385 = arith.negf %384 : vector<4x128xf32>
    %386 = math.exp %385 : vector<4x128xf32>
    %cst_131 = arith.constant 1.000000e+00 : f32
    %387 = vector.broadcast %cst_131 : f32 to vector<4x128xf32>
    %388 = arith.addf %387, %386 : vector<4x128xf32>
    %389 = arith.divf %387, %388 : vector<4x128xf32>
    %390 = vector.extract_strided_slice %377 {offsets = [0, 256], sizes = [4, 128], strides = [1, 1]} : vector<4x512xf32> to vector<4x128xf32>
    %391 = math.tanh %390 : vector<4x128xf32>
    %392 = vector.extract_strided_slice %377 {offsets = [0, 384], sizes = [4, 128], strides = [1, 1]} : vector<4x512xf32> to vector<4x128xf32>
    %393 = arith.negf %392 : vector<4x128xf32>
    %394 = math.exp %393 : vector<4x128xf32>
    %cst_132 = arith.constant 1.000000e+00 : f32
    %395 = vector.broadcast %cst_132 : f32 to vector<4x128xf32>
    %396 = arith.addf %395, %394 : vector<4x128xf32>
    %397 = arith.divf %395, %396 : vector<4x128xf32>
    %398 = arith.mulf %389, %371 : vector<4x128xf32>
    %399 = arith.mulf %383, %391 : vector<4x128xf32>
    %400 = arith.addf %398, %399 : vector<4x128xf32>
    %401 = math.tanh %400 : vector<4x128xf32>
    %402 = arith.mulf %397, %401 : vector<4x128xf32>
    %c20_133 = arith.constant 20 : index
    %c0_134 = arith.constant 0 : index
    %403 = vector.load %arg9[%c20_133, %c0_134] : memref<32x512xf32, #tpu.memory_space<vmem>>, vector<4x512xf32>
    %c0_135 = arith.constant 0 : index
    %c0_136 = arith.constant 0 : index
    %404 = vector.load %arg6[%c0_135, %c0_136] : memref<128x512xf32, #tpu.memory_space<vmem>>, vector<128x512xf32>
    %cst_137 = arith.constant dense<0.000000e+00> : vector<4x512xf32>
    %405 = tpu.matmul %402, %404, %cst_137 {dimension_numbers = #tpu.dot_dimension_numbers<[1], [0], [0], [1], [0, 0, 1, 1], [], []>} : vector<4x128xf32>, vector<128x512xf32>, vector<4x512xf32> -> vector<4x512xf32>
    %406 = arith.addf %403, %405 : vector<4x512xf32>
    %407 = vector.extract_strided_slice %406 {offsets = [0, 0], sizes = [4, 128], strides = [1, 1]} : vector<4x512xf32> to vector<4x128xf32>
    %408 = arith.negf %407 : vector<4x128xf32>
    %409 = math.exp %408 : vector<4x128xf32>
    %cst_138 = arith.constant 1.000000e+00 : f32
    %410 = vector.broadcast %cst_138 : f32 to vector<4x128xf32>
    %411 = arith.addf %410, %409 : vector<4x128xf32>
    %412 = arith.divf %410, %411 : vector<4x128xf32>
    %413 = vector.extract_strided_slice %406 {offsets = [0, 128], sizes = [4, 128], strides = [1, 1]} : vector<4x512xf32> to vector<4x128xf32>
    %414 = arith.negf %413 : vector<4x128xf32>
    %415 = math.exp %414 : vector<4x128xf32>
    %cst_139 = arith.constant 1.000000e+00 : f32
    %416 = vector.broadcast %cst_139 : f32 to vector<4x128xf32>
    %417 = arith.addf %416, %415 : vector<4x128xf32>
    %418 = arith.divf %416, %417 : vector<4x128xf32>
    %419 = vector.extract_strided_slice %406 {offsets = [0, 256], sizes = [4, 128], strides = [1, 1]} : vector<4x512xf32> to vector<4x128xf32>
    %420 = math.tanh %419 : vector<4x128xf32>
    %421 = vector.extract_strided_slice %406 {offsets = [0, 384], sizes = [4, 128], strides = [1, 1]} : vector<4x512xf32> to vector<4x128xf32>
    %422 = arith.negf %421 : vector<4x128xf32>
    %423 = math.exp %422 : vector<4x128xf32>
    %cst_140 = arith.constant 1.000000e+00 : f32
    %424 = vector.broadcast %cst_140 : f32 to vector<4x128xf32>
    %425 = arith.addf %424, %423 : vector<4x128xf32>
    %426 = arith.divf %424, %425 : vector<4x128xf32>
    %427 = arith.mulf %418, %400 : vector<4x128xf32>
    %428 = arith.mulf %412, %420 : vector<4x128xf32>
    %429 = arith.addf %427, %428 : vector<4x128xf32>
    %430 = math.tanh %429 : vector<4x128xf32>
    %431 = arith.mulf %426, %430 : vector<4x128xf32>
    %c24_141 = arith.constant 24 : index
    %c0_142 = arith.constant 0 : index
    %432 = vector.load %arg9[%c24_141, %c0_142] : memref<32x512xf32, #tpu.memory_space<vmem>>, vector<4x512xf32>
    %c0_143 = arith.constant 0 : index
    %c0_144 = arith.constant 0 : index
    %433 = vector.load %arg6[%c0_143, %c0_144] : memref<128x512xf32, #tpu.memory_space<vmem>>, vector<128x512xf32>
    %cst_145 = arith.constant dense<0.000000e+00> : vector<4x512xf32>
    %434 = tpu.matmul %431, %433, %cst_145 {dimension_numbers = #tpu.dot_dimension_numbers<[1], [0], [0], [1], [0, 0, 1, 1], [], []>} : vector<4x128xf32>, vector<128x512xf32>, vector<4x512xf32> -> vector<4x512xf32>
    %435 = arith.addf %432, %434 : vector<4x512xf32>
    %436 = vector.extract_strided_slice %435 {offsets = [0, 0], sizes = [4, 128], strides = [1, 1]} : vector<4x512xf32> to vector<4x128xf32>
    %437 = arith.negf %436 : vector<4x128xf32>
    %438 = math.exp %437 : vector<4x128xf32>
    %cst_146 = arith.constant 1.000000e+00 : f32
    %439 = vector.broadcast %cst_146 : f32 to vector<4x128xf32>
    %440 = arith.addf %439, %438 : vector<4x128xf32>
    %441 = arith.divf %439, %440 : vector<4x128xf32>
    %442 = vector.extract_strided_slice %435 {offsets = [0, 128], sizes = [4, 128], strides = [1, 1]} : vector<4x512xf32> to vector<4x128xf32>
    %443 = arith.negf %442 : vector<4x128xf32>
    %444 = math.exp %443 : vector<4x128xf32>
    %cst_147 = arith.constant 1.000000e+00 : f32
    %445 = vector.broadcast %cst_147 : f32 to vector<4x128xf32>
    %446 = arith.addf %445, %444 : vector<4x128xf32>
    %447 = arith.divf %445, %446 : vector<4x128xf32>
    %448 = vector.extract_strided_slice %435 {offsets = [0, 256], sizes = [4, 128], strides = [1, 1]} : vector<4x512xf32> to vector<4x128xf32>
    %449 = math.tanh %448 : vector<4x128xf32>
    %450 = vector.extract_strided_slice %435 {offsets = [0, 384], sizes = [4, 128], strides = [1, 1]} : vector<4x512xf32> to vector<4x128xf32>
    %451 = arith.negf %450 : vector<4x128xf32>
    %452 = math.exp %451 : vector<4x128xf32>
    %cst_148 = arith.constant 1.000000e+00 : f32
    %453 = vector.broadcast %cst_148 : f32 to vector<4x128xf32>
    %454 = arith.addf %453, %452 : vector<4x128xf32>
    %455 = arith.divf %453, %454 : vector<4x128xf32>
    %456 = arith.mulf %447, %429 : vector<4x128xf32>
    %457 = arith.mulf %441, %449 : vector<4x128xf32>
    %458 = arith.addf %456, %457 : vector<4x128xf32>
    %459 = math.tanh %458 : vector<4x128xf32>
    %460 = arith.mulf %455, %459 : vector<4x128xf32>
    %c28_149 = arith.constant 28 : index
    %c0_150 = arith.constant 0 : index
    %461 = vector.load %arg9[%c28_149, %c0_150] : memref<32x512xf32, #tpu.memory_space<vmem>>, vector<4x512xf32>
    %c0_151 = arith.constant 0 : index
    %c0_152 = arith.constant 0 : index
    %462 = vector.load %arg6[%c0_151, %c0_152] : memref<128x512xf32, #tpu.memory_space<vmem>>, vector<128x512xf32>
    %cst_153 = arith.constant dense<0.000000e+00> : vector<4x512xf32>
    %463 = tpu.matmul %460, %462, %cst_153 {dimension_numbers = #tpu.dot_dimension_numbers<[1], [0], [0], [1], [0, 0, 1, 1], [], []>} : vector<4x128xf32>, vector<128x512xf32>, vector<4x512xf32> -> vector<4x512xf32>
    %464 = arith.addf %461, %463 : vector<4x512xf32>
    %465 = vector.extract_strided_slice %464 {offsets = [0, 0], sizes = [4, 128], strides = [1, 1]} : vector<4x512xf32> to vector<4x128xf32>
    %466 = arith.negf %465 : vector<4x128xf32>
    %467 = math.exp %466 : vector<4x128xf32>
    %cst_154 = arith.constant 1.000000e+00 : f32
    %468 = vector.broadcast %cst_154 : f32 to vector<4x128xf32>
    %469 = arith.addf %468, %467 : vector<4x128xf32>
    %470 = arith.divf %468, %469 : vector<4x128xf32>
    %471 = vector.extract_strided_slice %464 {offsets = [0, 128], sizes = [4, 128], strides = [1, 1]} : vector<4x512xf32> to vector<4x128xf32>
    %472 = arith.negf %471 : vector<4x128xf32>
    %473 = math.exp %472 : vector<4x128xf32>
    %cst_155 = arith.constant 1.000000e+00 : f32
    %474 = vector.broadcast %cst_155 : f32 to vector<4x128xf32>
    %475 = arith.addf %474, %473 : vector<4x128xf32>
    %476 = arith.divf %474, %475 : vector<4x128xf32>
    %477 = vector.extract_strided_slice %464 {offsets = [0, 256], sizes = [4, 128], strides = [1, 1]} : vector<4x512xf32> to vector<4x128xf32>
    %478 = math.tanh %477 : vector<4x128xf32>
    %479 = vector.extract_strided_slice %464 {offsets = [0, 384], sizes = [4, 128], strides = [1, 1]} : vector<4x512xf32> to vector<4x128xf32>
    %480 = arith.negf %479 : vector<4x128xf32>
    %481 = math.exp %480 : vector<4x128xf32>
    %cst_156 = arith.constant 1.000000e+00 : f32
    %482 = vector.broadcast %cst_156 : f32 to vector<4x128xf32>
    %483 = arith.addf %482, %481 : vector<4x128xf32>
    %484 = arith.divf %482, %483 : vector<4x128xf32>
    %485 = arith.mulf %476, %458 : vector<4x128xf32>
    %486 = arith.mulf %470, %478 : vector<4x128xf32>
    %487 = arith.addf %485, %486 : vector<4x128xf32>
    %488 = math.tanh %487 : vector<4x128xf32>
    %489 = arith.mulf %484, %488 : vector<4x128xf32>
    %c0_157 = arith.constant 0 : index
    %c0_158 = arith.constant 0 : index
    %490 = vector.load %arg8[%c0_157, %c0_158] : memref<4x128xf32, #tpu.memory_space<vmem>>, vector<4x128xf32>
    tpu.vector_store %arg8[%c0_157, %c0_158], %489 {strides = array<i32>} : memref<4x128xf32, #tpu.memory_space<vmem>>, vector<4x128xf32>,
    return
  }
  func.func @transform_0(%arg0: i32) -> (i32, i32) {
    %c0_i32 = arith.constant 0 : i32
    %c0_i32_0 = arith.constant 0 : i32
    %c0_i32_1 = arith.constant 0 : i32
    return %c0_i32, %c0_i32_0 : i32, i32
  }
  func.func @transform_1(%arg0: i32) -> (i32, i32) {
    %c0_i32 = arith.constant 0 : i32
    %c0_i32_0 = arith.constant 0 : i32
    %c0_i32_1 = arith.constant 0 : i32
    return %c0_i32, %c0_i32_0 : i32, i32
  }
  func.func @transform_2(%arg0: i32) -> (i32, i32) {
    %c0_i32 = arith.constant 0 : i32
    %c0_i32_0 = arith.constant 0 : i32
    %c0_i32_1 = arith.constant 0 : i32
    return %c0_i32, %c0_i32_0 : i32, i32
  }
  func.func @transform_3(%arg0: i32) -> (i32, i32) {
    %c0_i32 = arith.constant 0 : i32
    %c0_i32_0 = arith.constant 0 : i32
    %c0_i32_1 = arith.constant 0 : i32
    return %c0_i32, %c0_i32_0 : i32, i32
  }
  func.func @transform_4(%arg0: i32) -> (i32, i32) {
    %c0_i32 = arith.constant 0 : i32
    %c0_i32_0 = arith.constant 0 : i32
    %c0_i32_1 = arith.constant 0 : i32
    return %c0_i32, %c0_i32_0 : i32, i32
  }
  func.func @transform_5(%arg0: i32) -> (i32, i32) {
    %c0_i32 = arith.constant 0 : i32
    %c0_i32_0 = arith.constant 0 : i32
    %c0_i32_1 = arith.constant 0 : i32
    return %c0_i32, %c0_i32_0 : i32, i32
  }
  func.func @transform_6(%arg0: i32) -> (i32, i32) {
    %c0_i32 = arith.constant 0 : i32
    %c0_i32_0 = arith.constant 0 : i32
    %c0_i32_1 = arith.constant 0 : i32
    return %c0_i32, %c0_i32_0 : i32, i32
  }
  func.func @transform_7(%arg0: i32) -> (i32, i32) {
    %c0_i32 = arith.constant 0 : i32
    %c0_i32_0 = arith.constant 0 : i32
    %c0_i32_1 = arith.constant 0 : i32
    return %c0_i32, %c0_i32_0 : i32, i32
  }
}

module attributes {stable_mosaic.version = 11 : i64} {
  func.func @kernel(%arg0: i32, %arg1: memref<2x384xf32, #tpu.memory_space<vmem>>, %arg2: memref<384x128xf32, #tpu.memory_space<vmem>>, %arg3: memref<1x128xf32, #tpu.memory_space<vmem>>, %arg4: memref<128x32xf32, #tpu.memory_space<vmem>>, %arg5: memref<1x32xf32, #tpu.memory_space<vmem>>, %arg6: memref<32x1xf32, #tpu.memory_space<vmem>>, %arg7: memref<1x1xf32, #tpu.memory_space<vmem>>, %arg8: memref<2x1xf32, #tpu.memory_space<vmem>>) attributes {dimension_semantics = [#tpu.dimension_semantics<arbitrary>], iteration_bounds = array<i64: 1>, scalar_prefetch = 0 : i64, scratch_operands = 0 : i64, tpu.core_type = #tpu.core_type<tc>, window_params = [{pipeline_mode = #tpu.pipeline_mode<synchronous>, transform_indices = @transform_0, window_bounds = array<i64: 2, 384>}, {pipeline_mode = #tpu.pipeline_mode<synchronous>, transform_indices = @transform_1, window_bounds = array<i64: 384, 128>}, {pipeline_mode = #tpu.pipeline_mode<synchronous>, transform_indices = @transform_2, window_bounds = array<i64: 1, 128>}, {pipeline_mode = #tpu.pipeline_mode<synchronous>, transform_indices = @transform_3, window_bounds = array<i64: 128, 32>}, {pipeline_mode = #tpu.pipeline_mode<synchronous>, transform_indices = @transform_4, window_bounds = array<i64: 1, 32>}, {pipeline_mode = #tpu.pipeline_mode<synchronous>, transform_indices = @transform_5, window_bounds = array<i64: 32, 1>}, {pipeline_mode = #tpu.pipeline_mode<synchronous>, transform_indices = @transform_6, window_bounds = array<i64: 1, 1>}, {pipeline_mode = #tpu.pipeline_mode<synchronous>, transform_indices = @transform_7, window_bounds = array<i64: 2, 1>}]} {
    %c0 = arith.constant 0 : index
    %c0_0 = arith.constant 0 : index
    %0 = vector.load %arg1[%c0, %c0_0] : memref<2x384xf32, #tpu.memory_space<vmem>>, vector<2x384xf32>
    %c0_1 = arith.constant 0 : index
    %c0_2 = arith.constant 0 : index
    %1 = vector.load %arg2[%c0_1, %c0_2] : memref<384x128xf32, #tpu.memory_space<vmem>>, vector<384x128xf32>
    %cst = arith.constant dense<0.000000e+00> : vector<2x128xf32>
    %2 = tpu.matmul %0, %1, %cst {dimension_numbers = #tpu.dot_dimension_numbers<[1], [0], [0], [1], [0, 0, 1, 1], [], []>} : vector<2x384xf32>, vector<384x128xf32>, vector<2x128xf32> -> vector<2x128xf32>
    %c0_3 = arith.constant 0 : index
    %c0_4 = arith.constant 0 : index
    %3 = vector.load %arg3[%c0_3, %c0_4] : memref<1x128xf32, #tpu.memory_space<vmem>>, vector<1x128xf32>
    %4 = vector.broadcast %3 : vector<1x128xf32> to vector<2x128xf32>
    %5 = arith.addf %2, %4 : vector<2x128xf32>
    %c0_5 = arith.constant 0 : index
    %c0_6 = arith.constant 0 : index
    %6 = vector.load %arg4[%c0_5, %c0_6] : memref<128x32xf32, #tpu.memory_space<vmem>>, vector<128x32xf32>
    %cst_7 = arith.constant dense<0.000000e+00> : vector<2x32xf32>
    %7 = tpu.matmul %5, %6, %cst_7 {dimension_numbers = #tpu.dot_dimension_numbers<[1], [0], [0], [1], [0, 0, 1, 1], [], []>} : vector<2x128xf32>, vector<128x32xf32>, vector<2x32xf32> -> vector<2x32xf32>
    %c0_8 = arith.constant 0 : index
    %c0_9 = arith.constant 0 : index
    %8 = vector.load %arg5[%c0_8, %c0_9] : memref<1x32xf32, #tpu.memory_space<vmem>>, vector<1x32xf32>
    %9 = vector.broadcast %8 : vector<1x32xf32> to vector<2x32xf32>
    %10 = arith.addf %7, %9 : vector<2x32xf32>
    %c0_10 = arith.constant 0 : index
    %c0_11 = arith.constant 0 : index
    %11 = vector.load %arg6[%c0_10, %c0_11] : memref<32x1xf32, #tpu.memory_space<vmem>>, vector<32x1xf32>
    %cst_12 = arith.constant dense<0.000000e+00> : vector<2x1xf32>
    %12 = tpu.matmul %10, %11, %cst_12 {dimension_numbers = #tpu.dot_dimension_numbers<[1], [0], [0], [1], [0, 0, 1, 1], [], []>} : vector<2x32xf32>, vector<32x1xf32>, vector<2x1xf32> -> vector<2x1xf32>
    %c0_13 = arith.constant 0 : index
    %c0_14 = arith.constant 0 : index
    %13 = vector.load %arg7[%c0_13, %c0_14] : memref<1x1xf32, #tpu.memory_space<vmem>>, vector<1x1xf32>
    %14 = vector.broadcast %13 : vector<1x1xf32> to vector<2x1xf32>
    %15 = arith.addf %12, %14 : vector<2x1xf32>
    %16 = arith.negf %15 : vector<2x1xf32>
    %17 = math.exp %16 : vector<2x1xf32>
    %cst_15 = arith.constant 1.000000e+00 : f32
    %18 = vector.broadcast %cst_15 : f32 to vector<2x1xf32>
    %19 = arith.addf %18, %17 : vector<2x1xf32>
    %20 = arith.divf %18, %19 : vector<2x1xf32>
    %c0_16 = arith.constant 0 : index
    %c0_17 = arith.constant 0 : index
    %21 = vector.load %arg8[%c0_16, %c0_17] : memref<2x1xf32, #tpu.memory_space<vmem>>, vector<2x1xf32>
    tpu.vector_store %arg8[%c0_16, %c0_17], %20 {strides = array<i32>} : memref<2x1xf32, #tpu.memory_space<vmem>>, vector<2x1xf32>,
    return
  }
  func.func @transform_0(%arg0: i32) -> (i32, i32) {
    %c0_i32 = arith.constant 0 : i32
    %c0_i32_0 = arith.constant 0 : i32
    %c0_i32_1 = arith.constant 0 : i32
    return %c0_i32, %c0_i32_0 : i32, i32
  }
  func.func @transform_1(%arg0: i32) -> (i32, i32) {
    %c0_i32 = arith.constant 0 : i32
    %c0_i32_0 = arith.constant 0 : i32
    %c0_i32_1 = arith.constant 0 : i32
    return %c0_i32, %c0_i32_0 : i32, i32
  }
  func.func @transform_2(%arg0: i32) -> (i32, i32) {
    %c0_i32 = arith.constant 0 : i32
    %c0_i32_0 = arith.constant 0 : i32
    %c0_i32_1 = arith.constant 0 : i32
    return %c0_i32, %c0_i32_0 : i32, i32
  }
  func.func @transform_3(%arg0: i32) -> (i32, i32) {
    %c0_i32 = arith.constant 0 : i32
    %c0_i32_0 = arith.constant 0 : i32
    %c0_i32_1 = arith.constant 0 : i32
    return %c0_i32, %c0_i32_0 : i32, i32
  }
  func.func @transform_4(%arg0: i32) -> (i32, i32) {
    %c0_i32 = arith.constant 0 : i32
    %c0_i32_0 = arith.constant 0 : i32
    %c0_i32_1 = arith.constant 0 : i32
    return %c0_i32, %c0_i32_0 : i32, i32
  }
  func.func @transform_5(%arg0: i32) -> (i32, i32) {
    %c0_i32 = arith.constant 0 : i32
    %c0_i32_0 = arith.constant 0 : i32
    %c0_i32_1 = arith.constant 0 : i32
    return %c0_i32, %c0_i32_0 : i32, i32
  }
  func.func @transform_6(%arg0: i32) -> (i32, i32) {
    %c0_i32 = arith.constant 0 : i32
    %c0_i32_0 = arith.constant 0 : i32
    %c0_i32_1 = arith.constant 0 : i32
    return %c0_i32, %c0_i32_0 : i32, i32
  }
  func.func @transform_7(%arg0: i32) -> (i32, i32) {
    %c0_i32 = arith.constant 0 : i32
    %c0_i32_0 = arith.constant 0 : i32
    %c0_i32_1 = arith.constant 0 : i32
    return %c0_i32, %c0_i32_0 : i32, i32
  }
}

</mosaic_0001>

<llo_original>
// kernel: _lambda_.5
$region0: #{_lambda_.5}
  #allocation0 [shape = 'u32[]', space=smem, size = 0x4, offset = 0x4, fixed_abs, tag = 'smem constant byte address 0x4 - core index']
  #allocation1 [shape = 'u32[144,128]{1,0:T(1,128)}', space=vmem, size = 0x12000, scoped, tag = 'internal scratch']
  %s0 = inlined_call_operand.vmem [shape: f32[2,4], index: 0, kind: input, shape index: {}]
  %s1 = inlined_call_operand.vmem [shape: f32[4,128], index: 1, kind: input, shape index: {}]
  %s2 = inlined_call_operand.vmem [shape: f32[1,128], index: 2, kind: input, shape index: {}]
  %s3 = inlined_call_operand.vmem [shape: f32[128,256], index: 3, kind: input, shape index: {}]
  %s4 = inlined_call_operand.vmem [shape: f32[1,256], index: 4, kind: input, shape index: {}]
  %s5 = inlined_call_operand.vmem [shape: f32[256,128], index: 5, kind: input, shape index: {}]
  %s6 = inlined_call_operand.vmem [shape: f32[1,128], index: 6, kind: input, shape index: {}]
  %s7 = inlined_call_operand.vmem [shape: f32[2,128], index: 7, kind: output, shape index: {}]
  %s8 = sld [smem:[#allocation0]]
  $region38: #{_lambda_.5} parent=0
    _
  %s10 = ssub.s32 1, %s8
  %s11 = scalar_select 0, %s10, %s8
  // Predicated region
  $region2: #{_lambda_.5} parent=0 // pred_check
    _
  $region3: #{_lambda_.5} parent=0 // pred_check_branch
    %13 = sbr.rel (0) target = $region5
  $region4: #{_lambda_.5} parent=0 // pred_region
    _
  $region5: #{_lambda_.5} parent=0 // pred_fallthru
    _
  // Predicated region
  $region6: #{_lambda_.5} parent=0 // pred_check
    _
  $region7: #{_lambda_.5} parent=0 // pred_check_branch
    %15 = sbr.rel (0) target = $region9
  $region8: #{_lambda_.5} parent=0 // pred_region
    _
  $region9: #{_lambda_.5} parent=0 // pred_fallthru
    _
  // Predicated region
  $region10: #{_lambda_.5} parent=0 // pred_check
    _
  $region11: #{_lambda_.5} parent=0 // pred_check_branch
    %17 = sbr.rel (0) target = $region13
  $region12: #{_lambda_.5} parent=0 // pred_region
    _
  $region13: #{_lambda_.5} parent=0 // pred_fallthru
    _
  // Predicated region
  $region14: #{_lambda_.5} parent=0 // pred_check
    _
  $region15: #{_lambda_.5} parent=0 // pred_check_branch
    %19 = sbr.rel (0) target = $region17
  $region16: #{_lambda_.5} parent=0 // pred_region
    _
  $region17: #{_lambda_.5} parent=0 // pred_fallthru
    _
  // Predicated region
  $region18: #{_lambda_.5} parent=0 // pred_check
    _
  $region19: #{_lambda_.5} parent=0 // pred_check_branch
    %21 = sbr.rel (0) target = $region21
  $region20: #{_lambda_.5} parent=0 // pred_region
    _
  $region21: #{_lambda_.5} parent=0 // pred_fallthru
    _
  // Predicated region
  $region22: #{_lambda_.5} parent=0 // pred_check
    _
  $region23: #{_lambda_.5} parent=0 // pred_check_branch
    %23 = sbr.rel (0) target = $region25
  $region24: #{_lambda_.5} parent=0 // pred_region
    _
  $region25: #{_lambda_.5} parent=0 // pred_fallthru
    _
  // Predicated region
  $region26: #{_lambda_.5} parent=0 // pred_check
    _
  $region27: #{_lambda_.5} parent=0 // pred_check_branch
    %25 = sbr.rel (0) target = $region29
  $region28: #{_lambda_.5} parent=0 // pred_region
    _
  $region29: #{_lambda_.5} parent=0 // pred_fallthru
    _
  %v26 = vld [vmem:[%s0] sm:$0x3]
  %v27 = vld [vmem:[%s1] sm:$0xf]
  %v28 = vld [vmem:[%s2] sm:$0x1]
  %v30 = vlaneseq
  %v31 = vshrl.u32 %v30, 7
  %v32 = vsub.s32 0, %v31
  %v33 = vrot.slane %v28, %v32
  %vm35 = vcmask 31744
  %v37 = vsel %vm35, %v26, 0
  %vm39 = vcmask 1043456
  %v41 = vsel %vm39, %v27, 0
  %43 = vmatprep.subr.mxu0 0.0
  %44 = vmatpush1.msra.mxu0 %v41
  %45 = vmatprep.subr.mxu0 0.0
  %46 = vmatpush1.msra.mxu0 0.0
  %47 = vmatprep.subr.mxu0 0.0
  %48 = vmatpush1.msra.mxu0 0.0
  %49 = vmatprep.subr.mxu0 0.0
  %50 = vmatpush1.msra.mxu0 0.0
  %51 = vmatprep.subr.mxu0 0.0
  %52 = vmatpush1.msra.mxu0 0.0
  %53 = vmatprep.subr.mxu0 0.0
  %54 = vmatpush1.msra.mxu0 0.0
  %55 = vmatprep.subr.mxu0 0.0
  %56 = vmatpush1.msra.mxu0 0.0
  %57 = vmatprep.subr.mxu0 0.0
  %58 = vmatpush1.msra.mxu0 0.0
  %59 = vmatprep.subr.mxu0 0.0
  %60 = vmatpush1.msra.mxu0 0.0
  %61 = vmatprep.subr.mxu0 0.0
  %62 = vmatpush1.msra.mxu0 0.0
  %63 = vmatprep.subr.mxu0 0.0
  %64 = vmatpush1.msra.mxu0 0.0
  %65 = vmatprep.subr.mxu0 0.0
  %66 = vmatpush1.msra.mxu0 0.0
  %67 = vmatprep.subr.mxu0 0.0
  %68 = vmatpush1.msra.mxu0 0.0
  %69 = vmatprep.subr.mxu0 0.0
  %70 = vmatpush1.msra.mxu0 0.0
  %71 = vmatprep.subr.mxu0 0.0
  %72 = vmatpush1.msra.mxu0 0.0
  %73 = vmatprep.subr.mxu0 0.0
  %74 = vmatpush1.msra.mxu0 0.0
  %75 = vmatprep.subr.mxu0 0.0
  %76 = vmatpush1.msra.mxu0 0.0
  %77 = vmatprep.subr.mxu0 0.0
  %78 = vmatpush1.msra.mxu0 0.0
  %79 = vmatprep.subr.mxu0 0.0
  %80 = vmatpush1.msra.mxu0 0.0
  %81 = vmatprep.subr.mxu0 0.0
  %82 = vmatpush1.msra.mxu0 0.0
  %83 = vmatprep.subr.mxu0 0.0
  %84 = vmatpush1.msra.mxu0 0.0
  %85 = vmatprep.subr.mxu0 0.0
  %86 = vmatpush1.msra.mxu0 0.0
  %87 = vmatprep.subr.mxu0 0.0
  %88 = vmatpush1.msra.mxu0 0.0
  %89 = vmatprep.subr.mxu0 0.0
  %90 = vmatpush1.msra.mxu0 0.0
  %91 = vmatprep.subr.mxu0 0.0
  %92 = vmatpush1.msra.mxu0 0.0
  %93 = vmatprep.subr.mxu0 0.0
  %94 = vmatpush1.msra.mxu0 0.0
  %95 = vmatprep.subr.mxu0 0.0
  %96 = vmatpush1.msra.mxu0 0.0
  %97 = vmatprep.subr.mxu0 0.0
  %98 = vmatpush1.msra.mxu0 0.0
  %99 = vmatprep.subr.mxu0 0.0
  %100 = vmatpush1.msra.mxu0 0.0
  %101 = vmatprep.subr.mxu0 0.0
  %102 = vmatpush1.msra.mxu0 0.0
  %103 = vmatprep.subr.mxu0 0.0
  %104 = vmatpush1.msra.mxu0 0.0
  %105 = vmatprep.subr.mxu0 0.0
  %106 = vmatpush1.msra.mxu0 0.0
  %107 = vmatprep.mubr.f32.mxu0 0.0
  %108 = vmatmul.mubr.f32.gmra.mrb[0].mxu0 %v37
  %v109 = vpop.f32.mrb[0].mxu0
  %v110 = vadd.f32 %v33, %v109
  %v111 = vpop.f32.mrb[0].mxu0
  %112 = vdwg.mxu0
  %v113 = vld [vmem:[%s3] sm:$0xff]
  %v114 = vld [vmem:[%s3 + $0x8] sm:$0xff]
  %v115 = vld [vmem:[%s3 + $0x10] sm:$0xff]
  %v116 = vld [vmem:[%s3 + $0x18] sm:$0xff]
  %v117 = vld [vmem:[%s3 + $0x20] sm:$0xff]
  %v118 = vld [vmem:[%s3 + $0x28] sm:$0xff]
  %v119 = vld [vmem:[%s3 + $0x30] sm:$0xff]
  %v120 = vld [vmem:[%s3 + $0x38] sm:$0xff]
  %v121 = vld [vmem:[%s3 + $0x40] sm:$0xff]
  %v122 = vld [vmem:[%s3 + $0x48] sm:$0xff]
  %v123 = vld [vmem:[%s3 + $0x50] sm:$0xff]
  %v124 = vld [vmem:[%s3 + $0x58] sm:$0xff]
  %v125 = vld [vmem:[%s3 + $0x60] sm:$0xff]
  %v126 = vld [vmem:[%s3 + $0x68] sm:$0xff]
  %v127 = vld [vmem:[%s3 + $0x70] sm:$0xff]
  %v128 = vld [vmem:[%s3 + $0x78] sm:$0xff]
  %v129 = vld [vmem:[%s3 + $0x80] sm:$0xff]
  %v130 = vld [vmem:[%s3 + $0x88] sm:$0xff]
  %v131 = vld [vmem:[%s3 + $0x90] sm:$0xff]
  %v132 = vld [vmem:[%s3 + $0x98] sm:$0xff]
  %v133 = vld [vmem:[%s3 + $0xa0] sm:$0xff]
  %v134 = vld [vmem:[%s3 + $0xa8] sm:$0xff]
  %v135 = vld [vmem:[%s3 + $0xb0] sm:$0xff]
  %v136 = vld [vmem:[%s3 + $0xb8] sm:$0xff]
  %v137 = vld [vmem:[%s3 + $0xc0] sm:$0xff]
  %v138 = vld [vmem:[%s3 + $0xc8] sm:$0xff]
  %v139 = vld [vmem:[%s3 + $0xd0] sm:$0xff]
  %v140 = vld [vmem:[%s3 + $0xd8] sm:$0xff]
  %v141 = vld [vmem:[%s3 + $0xe0] sm:$0xff]
  %v142 = vld [vmem:[%s3 + $0xe8] sm:$0xff]
  %v143 = vld [vmem:[%s3 + $0xf0] sm:$0xff]
  %v144 = vld [vmem:[%s3 + $0xf8] sm:$0xff]
  %v145 = vld [vmem:[%s4] sm:$0x3]
  %v147 = vlaneseq
  %v148 = vshrl.u32 %v147, 7
  %v149 = vsub.s32 0, %v148
  %v150 = vrot.slane %v145, %v149
  %v151 = vlaneseq
  %v152 = vshrl.u32 %v151, 7
  %v153 = vsub.s32 1, %v152
  %v154 = vrot.slane %v145, %v153
  %157 = vmatprep.subr.mxu0 %v114
  %158 = vmatpush1.msra.mxu0 %v113
  %159 = vmatprep.subr.mxu0 %v116
  %160 = vmatpush1.msra.mxu0 %v115
  %161 = vmatprep.subr.mxu0 %v118
  %162 = vmatpush1.msra.mxu0 %v117
  %163 = vmatprep.subr.mxu0 %v120
  %164 = vmatpush1.msra.mxu0 %v119
  %165 = vmatprep.subr.mxu0 %v122
  %166 = vmatpush1.msra.mxu0 %v121
  %167 = vmatprep.subr.mxu0 %v124
  %168 = vmatpush1.msra.mxu0 %v123
  %169 = vmatprep.subr.mxu0 %v126
  %170 = vmatpush1.msra.mxu0 %v125
  %171 = vmatprep.subr.mxu0 %v128
  %172 = vmatpush1.msra.mxu0 %v127
  %173 = vmatprep.subr.mxu0 %v130
  %174 = vmatpush1.msra.mxu0 %v129
  %175 = vmatprep.subr.mxu0 %v132
  %176 = vmatpush1.msra.mxu0 %v131
  %177 = vmatprep.subr.mxu0 %v134
  %178 = vmatpush1.msra.mxu0 %v133
  %179 = vmatprep.subr.mxu0 %v136
  %180 = vmatpush1.msra.mxu0 %v135
  %181 = vmatprep.subr.mxu0 %v138
  %182 = vmatpush1.msra.mxu0 %v137
  %183 = vmatprep.subr.mxu0 %v140
  %184 = vmatpush1.msra.mxu0 %v139
  %185 = vmatprep.subr.mxu0 %v142
  %186 = vmatpush1.msra.mxu0 %v141
  %187 = vmatprep.subr.mxu0 %v144
  %188 = vmatpush1.msra.mxu0 %v143
  %189 = vmatprep.subr.mxu0 0.0
  %190 = vmatpush1.msra.mxu0 0.0
  %191 = vmatprep.subr.mxu0 0.0
  %192 = vmatpush1.msra.mxu0 0.0
  %193 = vmatprep.subr.mxu0 0.0
  %194 = vmatpush1.msra.mxu0 0.0
  %195 = vmatprep.subr.mxu0 0.0
  %196 = vmatpush1.msra.mxu0 0.0
  %197 = vmatprep.subr.mxu0 0.0
  %198 = vmatpush1.msra.mxu0 0.0
  %199 = vmatprep.subr.mxu0 0.0
  %200 = vmatpush1.msra.mxu0 0.0
  %201 = vmatprep.subr.mxu0 0.0
  %202 = vmatpush1.msra.mxu0 0.0
  %203 = vmatprep.subr.mxu0 0.0
  %204 = vmatpush1.msra.mxu0 0.0
  %205 = vmatprep.subr.mxu0 0.0
  %206 = vmatpush1.msra.mxu0 0.0
  %207 = vmatprep.subr.mxu0 0.0
  %208 = vmatpush1.msra.mxu0 0.0
  %209 = vmatprep.subr.mxu0 0.0
  %210 = vmatpush1.msra.mxu0 0.0
  %211 = vmatprep.subr.mxu0 0.0
  %212 = vmatpush1.msra.mxu0 0.0
  %213 = vmatprep.subr.mxu0 0.0
  %214 = vmatpush1.msra.mxu0 0.0
  %215 = vmatprep.subr.mxu0 0.0
  %216 = vmatpush1.msra.mxu0 0.0
  %217 = vmatprep.subr.mxu0 0.0
  %218 = vmatpush1.msra.mxu0 0.0
  %219 = vmatprep.subr.mxu0 0.0
  %220 = vmatpush1.msra.mxu0 0.0
  %221 = vmatprep.mubr.f32.mxu0 0.0
  %222 = vmatmul.mubr.f32.gmra.mrb[0].mxu0 %v110
  %v223 = vpop.f32.mrb[0].mxu0
  %v224 = vadd.f32 %v150, %v223
  %v225 = vpop.f32.mrb[0].mxu0
  %v226 = vadd.f32 %v154, %v225
  %227 = vdwg.mxu0
  %v228 = vld [vmem:[%s5] sm:$0xff]
  %v229 = vld [vmem:[%s5 + $0x8] sm:$0xff]
  %v230 = vld [vmem:[%s5 + $0x10] sm:$0xff]
  %v231 = vld [vmem:[%s5 + $0x18] sm:$0xff]
  %v232 = vld [vmem:[%s5 + $0x20] sm:$0xff]
  %v233 = vld [vmem:[%s5 + $0x28] sm:$0xff]
  %v234 = vld [vmem:[%s5 + $0x30] sm:$0xff]
  %v235 = vld [vmem:[%s5 + $0x38] sm:$0xff]
  %v236 = vld [vmem:[%s5 + $0x40] sm:$0xff]
  %v237 = vld [vmem:[%s5 + $0x48] sm:$0xff]
  %v238 = vld [vmem:[%s5 + $0x50] sm:$0xff]
  %v239 = vld [vmem:[%s5 + $0x58] sm:$0xff]
  %v240 = vld [vmem:[%s5 + $0x60] sm:$0xff]
  %v241 = vld [vmem:[%s5 + $0x68] sm:$0xff]
  %v242 = vld [vmem:[%s5 + $0x70] sm:$0xff]
  %v243 = vld [vmem:[%s5 + $0x78] sm:$0xff]
  %v244 = vld [vmem:[%s5 + $0x80] sm:$0xff]
  %v245 = vld [vmem:[%s5 + $0x88] sm:$0xff]
  %v246 = vld [vmem:[%s5 + $0x90] sm:$0xff]
  %v247 = vld [vmem:[%s5 + $0x98] sm:$0xff]
  %v248 = vld [vmem:[%s5 + $0xa0] sm:$0xff]
  %v249 = vld [vmem:[%s5 + $0xa8] sm:$0xff]
  %v250 = vld [vmem:[%s5 + $0xb0] sm:$0xff]
  %v251 = vld [vmem:[%s5 + $0xb8] sm:$0xff]
  %v252 = vld [vmem:[%s5 + $0xc0] sm:$0xff]
  %v253 = vld [vmem:[%s5 + $0xc8] sm:$0xff]
  %v254 = vld [vmem:[%s5 + $0xd0] sm:$0xff]
  %v255 = vld [vmem:[%s5 + $0xd8] sm:$0xff]
  %v256 = vld [vmem:[%s5 + $0xe0] sm:$0xff]
  %v257 = vld [vmem:[%s5 + $0xe8] sm:$0xff]
  %v258 = vld [vmem:[%s5 + $0xf0] sm:$0xff]
  %v259 = vld [vmem:[%s5 + $0xf8] sm:$0xff]
  %v260 = vld [vmem:[%s6] sm:$0x1]
  %v262 = vlaneseq
  %v263 = vshrl.u32 %v262, 7
  %v264 = vsub.s32 0, %v263
  %v265 = vrot.slane %v260, %v264
  %267 = vmatprep.subr.mxu0 0.0
  %268 = vmatpush1.msra.mxu0 %v228
  %269 = vmatprep.subr.mxu0 0.0
  %270 = vmatpush1.msra.mxu0 %v229
  %271 = vmatprep.subr.mxu0 0.0
  %272 = vmatpush1.msra.mxu0 %v230
  %273 = vmatprep.subr.mxu0 0.0
  %274 = vmatpush1.msra.mxu0 %v231
  %275 = vmatprep.subr.mxu0 0.0
  %276 = vmatpush1.msra.mxu0 %v232
  %277 = vmatprep.subr.mxu0 0.0
  %278 = vmatpush1.msra.mxu0 %v233
  %279 = vmatprep.subr.mxu0 0.0
  %280 = vmatpush1.msra.mxu0 %v234
  %281 = vmatprep.subr.mxu0 0.0
  %282 = vmatpush1.msra.mxu0 %v235
  %283 = vmatprep.subr.mxu0 0.0
  %284 = vmatpush1.msra.mxu0 %v236
  %285 = vmatprep.subr.mxu0 0.0
  %286 = vmatpush1.msra.mxu0 %v237
  %287 = vmatprep.subr.mxu0 0.0
  %288 = vmatpush1.msra.mxu0 %v238
  %289 = vmatprep.subr.mxu0 0.0
  %290 = vmatpush1.msra.mxu0 %v239
  %291 = vmatprep.subr.mxu0 0.0
  %292 = vmatpush1.msra.mxu0 %v240
  %293 = vmatprep.subr.mxu0 0.0
  %294 = vmatpush1.msra.mxu0 %v241
  %295 = vmatprep.subr.mxu0 0.0
  %296 = vmatpush1.msra.mxu0 %v242
  %297 = vmatprep.subr.mxu0 0.0
  %298 = vmatpush1.msra.mxu0 %v243
  %299 = vmatprep.subr.mxu0 0.0
  %300 = vmatpush1.msra.mxu0 %v244
  %301 = vmatprep.subr.mxu0 0.0
  %302 = vmatpush1.msra.mxu0 %v245
  %303 = vmatprep.subr.mxu0 0.0
  %304 = vmatpush1.msra.mxu0 %v246
  %305 = vmatprep.subr.mxu0 0.0
  %306 = vmatpush1.msra.mxu0 %v247
  %307 = vmatprep.subr.mxu0 0.0
  %308 = vmatpush1.msra.mxu0 %v248
  %309 = vmatprep.subr.mxu0 0.0
  %310 = vmatpush1.msra.mxu0 %v249
  %311 = vmatprep.subr.mxu0 0.0
  %312 = vmatpush1.msra.mxu0 %v250
  %313 = vmatprep.subr.mxu0 0.0
  %314 = vmatpush1.msra.mxu0 %v251
  %315 = vmatprep.subr.mxu0 0.0
  %316 = vmatpush1.msra.mxu0 %v252
  %317 = vmatprep.subr.mxu0 0.0
  %318 = vmatpush1.msra.mxu0 %v253
  %319 = vmatprep.subr.mxu0 0.0
  %320 = vmatpush1.msra.mxu0 %v254
  %321 = vmatprep.subr.mxu0 0.0
  %322 = vmatpush1.msra.mxu0 %v255
  %323 = vmatprep.subr.mxu0 0.0
  %324 = vmatpush1.msra.mxu0 %v256
  %325 = vmatprep.subr.mxu0 0.0
  %326 = vmatpush1.msra.mxu0 %v257
  %327 = vmatprep.subr.mxu0 0.0
  %328 = vmatpush1.msra.mxu0 %v258
  %329 = vmatprep.subr.mxu0 0.0
  %330 = vmatpush1.msra.mxu0 %v259
  %331 = vmatprep.mubr.f32.mxu0 %v226
  %332 = vmatmul.mubr.f32.gmra.mrb[0].mxu0 %v224
  %v333 = vpop.f32.mrb[0].mxu0
  %v334 = vadd.f32 %v265, %v333
  %v335 = vpop.f32.mrb[0].mxu0
  %336 = vdwg.mxu0
  %337 = vst [vmem:[%s7] sm:$0x3] %v334
  // Predicated region
  $region30: #{_lambda_.5} parent=0 // pred_check
    _
  $region31: #{_lambda_.5} parent=0 // pred_check_branch
    %339 = sbr.rel (0) target = $region33
  $region32: #{_lambda_.5} parent=0 // pred_region
    _
  $region33: #{_lambda_.5} parent=0 // pred_fallthru
    _
  // Predicated region
  $region34: #{_lambda_.5} parent=0 // pred_check
    _
  $region35: #{_lambda_.5} parent=0 // pred_check_branch
    %341 = sbr.rel (0) target = $region37
  $region36: #{_lambda_.5} parent=0 // pred_region
    _
  $region37: #{_lambda_.5} parent=0 // pred_fallthru
    _

// kernel: _lambda_.7
$region0: #{_lambda_.7}
  #allocation0 [shape = 'u32[]', space=smem, size = 0x4, offset = 0x4, fixed_abs, tag = 'smem constant byte address 0x4 - core index']
  #allocation1 [shape = 'u32[144,128]{1,0:T(1,128)}', space=vmem, size = 0x12000, scoped, tag = 'internal scratch']
  %s0 = inlined_call_operand.vmem [shape: f32[4,128], index: 0, kind: input, shape index: {}]
  %s1 = inlined_call_operand.vmem [shape: f32[128,128], index: 1, kind: input, shape index: {}]
  %s2 = inlined_call_operand.vmem [shape: f32[1,128], index: 2, kind: input, shape index: {}]
  %s3 = inlined_call_operand.vmem [shape: f32[128,32], index: 3, kind: input, shape index: {}]
  %s4 = inlined_call_operand.vmem [shape: f32[1,32], index: 4, kind: input, shape index: {}]
  %s5 = inlined_call_operand.vmem [shape: f32[32,128], index: 5, kind: input, shape index: {}]
  %s6 = inlined_call_operand.vmem [shape: f32[1,128], index: 6, kind: input, shape index: {}]
  %s7 = inlined_call_operand.vmem [shape: f32[4,128], index: 7, kind: output, shape index: {}]
  %s8 = sld [smem:[#allocation0]]
  $region38: #{_lambda_.7} parent=0
    _
  %s10 = ssub.s32 1, %s8
  %s11 = scalar_select 0, %s10, %s8
  // Predicated region
  $region2: #{_lambda_.7} parent=0 // pred_check
    _
  $region3: #{_lambda_.7} parent=0 // pred_check_branch
    %13 = sbr.rel (0) target = $region5
  $region4: #{_lambda_.7} parent=0 // pred_region
    _
  $region5: #{_lambda_.7} parent=0 // pred_fallthru
    _
  // Predicated region
  $region6: #{_lambda_.7} parent=0 // pred_check
    _
  $region7: #{_lambda_.7} parent=0 // pred_check_branch
    %15 = sbr.rel (0) target = $region9
  $region8: #{_lambda_.7} parent=0 // pred_region
    _
  $region9: #{_lambda_.7} parent=0 // pred_fallthru
    _
  // Predicated region
  $region10: #{_lambda_.7} parent=0 // pred_check
    _
  $region11: #{_lambda_.7} parent=0 // pred_check_branch
    %17 = sbr.rel (0) target = $region13
  $region12: #{_lambda_.7} parent=0 // pred_region
    _
  $region13: #{_lambda_.7} parent=0 // pred_fallthru
    _
  // Predicated region
  $region14: #{_lambda_.7} parent=0 // pred_check
    _
  $region15: #{_lambda_.7} parent=0 // pred_check_branch
    %19 = sbr.rel (0) target = $region17
  $region16: #{_lambda_.7} parent=0 // pred_region
    _
  $region17: #{_lambda_.7} parent=0 // pred_fallthru
    _
  // Predicated region
  $region18: #{_lambda_.7} parent=0 // pred_check
    _
  $region19: #{_lambda_.7} parent=0 // pred_check_branch
    %21 = sbr.rel (0) target = $region21
  $region20: #{_lambda_.7} parent=0 // pred_region
    _
  $region21: #{_lambda_.7} parent=0 // pred_fallthru
    _
  // Predicated region
  $region22: #{_lambda_.7} parent=0 // pred_check
    _
  $region23: #{_lambda_.7} parent=0 // pred_check_branch
    %23 = sbr.rel (0) target = $region25
  $region24: #{_lambda_.7} parent=0 // pred_region
    _
  $region25: #{_lambda_.7} parent=0 // pred_fallthru
    _
  // Predicated region
  $region26: #{_lambda_.7} parent=0 // pred_check
    _
  $region27: #{_lambda_.7} parent=0 // pred_check_branch
    %25 = sbr.rel (0) target = $region29
  $region28: #{_lambda_.7} parent=0 // pred_region
    _
  $region29: #{_lambda_.7} parent=0 // pred_fallthru
    _
  %v26 = vld [vmem:[%s0] sm:$0xf]
  %v27 = vld [vmem:[%s1] sm:$0xff]
  %v28 = vld [vmem:[%s1 + $0x8] sm:$0xff]
  %v29 = vld [vmem:[%s1 + $0x10] sm:$0xff]
  %v30 = vld [vmem:[%s1 + $0x18] sm:$0xff]
  %v31 = vld [vmem:[%s1 + $0x20] sm:$0xff]
  %v32 = vld [vmem:[%s1 + $0x28] sm:$0xff]
  %v33 = vld [vmem:[%s1 + $0x30] sm:$0xff]
  %v34 = vld [vmem:[%s1 + $0x38] sm:$0xff]
  %v35 = vld [vmem:[%s1 + $0x40] sm:$0xff]
  %v36 = vld [vmem:[%s1 + $0x48] sm:$0xff]
  %v37 = vld [vmem:[%s1 + $0x50] sm:$0xff]
  %v38 = vld [vmem:[%s1 + $0x58] sm:$0xff]
  %v39 = vld [vmem:[%s1 + $0x60] sm:$0xff]
  %v40 = vld [vmem:[%s1 + $0x68] sm:$0xff]
  %v41 = vld [vmem:[%s1 + $0x70] sm:$0xff]
  %v42 = vld [vmem:[%s1 + $0x78] sm:$0xff]
  %v43 = vld [vmem:[%s2] sm:$0x1]
  %v45 = vlaneseq
  %v46 = vshrl.u32 %v45, 7
  %v47 = vsub.s32 0, %v46
  %v48 = vrot.slane %v43, %v47
  %50 = vmatprep.subr.mxu0 0.0
  %51 = vmatpush1.msra.mxu0 %v27
  %52 = vmatprep.subr.mxu0 0.0
  %53 = vmatpush1.msra.mxu0 %v28
  %54 = vmatprep.subr.mxu0 0.0
  %55 = vmatpush1.msra.mxu0 %v29
  %56 = vmatprep.subr.mxu0 0.0
  %57 = vmatpush1.msra.mxu0 %v30
  %58 = vmatprep.subr.mxu0 0.0
  %59 = vmatpush1.msra.mxu0 %v31
  %60 = vmatprep.subr.mxu0 0.0
  %61 = vmatpush1.msra.mxu0 %v32
  %62 = vmatprep.subr.mxu0 0.0
  %63 = vmatpush1.msra.mxu0 %v33
  %64 = vmatprep.subr.mxu0 0.0
  %65 = vmatpush1.msra.mxu0 %v34
  %66 = vmatprep.subr.mxu0 0.0
  %67 = vmatpush1.msra.mxu0 %v35
  %68 = vmatprep.subr.mxu0 0.0
  %69 = vmatpush1.msra.mxu0 %v36
  %70 = vmatprep.subr.mxu0 0.0
  %71 = vmatpush1.msra.mxu0 %v37
  %72 = vmatprep.subr.mxu0 0.0
  %73 = vmatpush1.msra.mxu0 %v38
  %74 = vmatprep.subr.mxu0 0.0
  %75 = vmatpush1.msra.mxu0 %v39
  %76 = vmatprep.subr.mxu0 0.0
  %77 = vmatpush1.msra.mxu0 %v40
  %78 = vmatprep.subr.mxu0 0.0
  %79 = vmatpush1.msra.mxu0 %v41
  %80 = vmatprep.subr.mxu0 0.0
  %81 = vmatpush1.msra.mxu0 %v42
  %82 = vmatprep.subr.mxu0 0.0
  %83 = vmatpush1.msra.mxu0 0.0
  %84 = vmatprep.subr.mxu0 0.0
  %85 = vmatpush1.msra.mxu0 0.0
  %86 = vmatprep.subr.mxu0 0.0
  %87 = vmatpush1.msra.mxu0 0.0
  %88 = vmatprep.subr.mxu0 0.0
  %89 = vmatpush1.msra.mxu0 0.0
  %90 = vmatprep.subr.mxu0 0.0
  %91 = vmatpush1.msra.mxu0 0.0
  %92 = vmatprep.subr.mxu0 0.0
  %93 = vmatpush1.msra.mxu0 0.0
  %94 = vmatprep.subr.mxu0 0.0
  %95 = vmatpush1.msra.mxu0 0.0
  %96 = vmatprep.subr.mxu0 0.0
  %97 = vmatpush1.msra.mxu0 0.0
  %98 = vmatprep.subr.mxu0 0.0
  %99 = vmatpush1.msra.mxu0 0.0
  %100 = vmatprep.subr.mxu0 0.0
  %101 = vmatpush1.msra.mxu0 0.0
  %102 = vmatprep.subr.mxu0 0.0
  %103 = vmatpush1.msra.mxu0 0.0
  %104 = vmatprep.subr.mxu0 0.0
  %105 = vmatpush1.msra.mxu0 0.0
  %106 = vmatprep.subr.mxu0 0.0
  %107 = vmatpush1.msra.mxu0 0.0
  %108 = vmatprep.subr.mxu0 0.0
  %109 = vmatpush1.msra.mxu0 0.0
  %110 = vmatprep.subr.mxu0 0.0
  %111 = vmatpush1.msra.mxu0 0.0
  %112 = vmatprep.subr.mxu0 0.0
  %113 = vmatpush1.msra.mxu0 0.0
  %114 = vmatprep.mubr.f32.mxu0 0.0
  %115 = vmatmul.mubr.f32.gmra.mrb[0].mxu0 %v26
  %v116 = vpop.f32.mrb[0].mxu0
  %v117 = vadd.f32 %v48, %v116
  %v118 = vpop.f32.mrb[0].mxu0
  %119 = vdwg.mxu0
  %v120 = vld [vmem:[%s3] sm:$0xff]
  %v121 = vld [vmem:[%s3 + $0x8] sm:$0xff]
  %v122 = vld [vmem:[%s3 + $0x10] sm:$0xff]
  %v123 = vld [vmem:[%s3 + $0x18] sm:$0xff]
  %v124 = vld [vmem:[%s3 + $0x20] sm:$0xff]
  %v125 = vld [vmem:[%s3 + $0x28] sm:$0xff]
  %v126 = vld [vmem:[%s3 + $0x30] sm:$0xff]
  %v127 = vld [vmem:[%s3 + $0x38] sm:$0xff]
  %v128 = vld [vmem:[%s3 + $0x40] sm:$0xff]
  %v129 = vld [vmem:[%s3 + $0x48] sm:$0xff]
  %v130 = vld [vmem:[%s3 + $0x50] sm:$0xff]
  %v131 = vld [vmem:[%s3 + $0x58] sm:$0xff]
  %v132 = vld [vmem:[%s3 + $0x60] sm:$0xff]
  %v133 = vld [vmem:[%s3 + $0x68] sm:$0xff]
  %v134 = vld [vmem:[%s3 + $0x70] sm:$0xff]
  %v135 = vld [vmem:[%s3 + $0x78] sm:$0xff]
  %v136 = vld [vmem:[%s4] sm:$0x1]
  %v138 = vlaneseq
  %v139 = vshrl.u32 %v138, 7
  %v140 = vsub.s32 0, %v139
  %v141 = vrot.slane %v136, %v140
  %143 = vmatprep.subr.mxu0 0.0
  %144 = vmatpush1.msra.mxu0 %v120
  %145 = vmatprep.subr.mxu0 0.0
  %146 = vmatpush1.msra.mxu0 %v121
  %147 = vmatprep.subr.mxu0 0.0
  %148 = vmatpush1.msra.mxu0 %v122
  %149 = vmatprep.subr.mxu0 0.0
  %150 = vmatpush1.msra.mxu0 %v123
  %151 = vmatprep.subr.mxu0 0.0
  %152 = vmatpush1.msra.mxu0 %v124
  %153 = vmatprep.subr.mxu0 0.0
  %154 = vmatpush1.msra.mxu0 %v125
  %155 = vmatprep.subr.mxu0 0.0
  %156 = vmatpush1.msra.mxu0 %v126
  %157 = vmatprep.subr.mxu0 0.0
  %158 = vmatpush1.msra.mxu0 %v127
  %159 = vmatprep.subr.mxu0 0.0
  %160 = vmatpush1.msra.mxu0 %v128
  %161 = vmatprep.subr.mxu0 0.0
  %162 = vmatpush1.msra.mxu0 %v129
  %163 = vmatprep.subr.mxu0 0.0
  %164 = vmatpush1.msra.mxu0 %v130
  %165 = vmatprep.subr.mxu0 0.0
  %166 = vmatpush1.msra.mxu0 %v131
  %167 = vmatprep.subr.mxu0 0.0
  %168 = vmatpush1.msra.mxu0 %v132
  %169 = vmatprep.subr.mxu0 0.0
  %170 = vmatpush1.msra.mxu0 %v133
  %171 = vmatprep.subr.mxu0 0.0
  %172 = vmatpush1.msra.mxu0 %v134
  %173 = vmatprep.subr.mxu0 0.0
  %174 = vmatpush1.msra.mxu0 %v135
  %175 = vmatprep.subr.mxu0 0.0
  %176 = vmatpush1.msra.mxu0 0.0
  %177 = vmatprep.subr.mxu0 0.0
  %178 = vmatpush1.msra.mxu0 0.0
  %179 = vmatprep.subr.mxu0 0.0
  %180 = vmatpush1.msra.mxu0 0.0
  %181 = vmatprep.subr.mxu0 0.0
  %182 = vmatpush1.msra.mxu0 0.0
  %183 = vmatprep.subr.mxu0 0.0
  %184 = vmatpush1.msra.mxu0 0.0
  %185 = vmatprep.subr.mxu0 0.0
  %186 = vmatpush1.msra.mxu0 0.0
  %187 = vmatprep.subr.mxu0 0.0
  %188 = vmatpush1.msra.mxu0 0.0
  %189 = vmatprep.subr.mxu0 0.0
  %190 = vmatpush1.msra.mxu0 0.0
  %191 = vmatprep.subr.mxu0 0.0
  %192 = vmatpush1.msra.mxu0 0.0
  %193 = vmatprep.subr.mxu0 0.0
  %194 = vmatpush1.msra.mxu0 0.0
  %195 = vmatprep.subr.mxu0 0.0
  %196 = vmatpush1.msra.mxu0 0.0
  %197 = vmatprep.subr.mxu0 0.0
  %198 = vmatpush1.msra.mxu0 0.0
  %199 = vmatprep.subr.mxu0 0.0
  %200 = vmatpush1.msra.mxu0 0.0
  %201 = vmatprep.subr.mxu0 0.0
  %202 = vmatpush1.msra.mxu0 0.0
  %203 = vmatprep.subr.mxu0 0.0
  %204 = vmatpush1.msra.mxu0 0.0
  %205 = vmatprep.subr.mxu0 0.0
  %206 = vmatpush1.msra.mxu0 0.0
  %207 = vmatprep.mubr.f32.mxu0 0.0
  %208 = vmatmul.mubr.f32.gmra.mrb[0].mxu0 %v117
  %v209 = vpop.f32.mrb[0].mxu0
  %v210 = vadd.f32 %v141, %v209
  %v211 = vpop.f32.mrb[0].mxu0
  %212 = vdwg.mxu0
  %v213 = vld [vmem:[%s5] sm:$0xff]
  %v214 = vld [vmem:[%s5 + $0x8] sm:$0xff]
  %v215 = vld [vmem:[%s5 + $0x10] sm:$0xff]
  %v216 = vld [vmem:[%s5 + $0x18] sm:$0xff]
  %v217 = vld [vmem:[%s6] sm:$0x1]
  %v219 = vlaneseq
  %v220 = vshrl.u32 %v219, 7
  %v221 = vsub.s32 0, %v220
  %v222 = vrot.slane %v217, %v221
  %vm224 = vcmask 261120
  %v226 = vsel %vm224, %v210, 0
  %228 = vmatprep.subr.mxu0 0.0
  %229 = vmatpush1.msra.mxu0 %v213
  %230 = vmatprep.subr.mxu0 0.0
  %231 = vmatpush1.msra.mxu0 %v214
  %232 = vmatprep.subr.mxu0 0.0
  %233 = vmatpush1.msra.mxu0 %v215
  %234 = vmatprep.subr.mxu0 0.0
  %235 = vmatpush1.msra.mxu0 %v216
  %236 = vmatprep.subr.mxu0 0.0
  %237 = vmatpush1.msra.mxu0 0.0
  %238 = vmatprep.subr.mxu0 0.0
  %239 = vmatpush1.msra.mxu0 0.0
  %240 = vmatprep.subr.mxu0 0.0
  %241 = vmatpush1.msra.mxu0 0.0
  %242 = vmatprep.subr.mxu0 0.0
  %243 = vmatpush1.msra.mxu0 0.0
  %244 = vmatprep.subr.mxu0 0.0
  %245 = vmatpush1.msra.mxu0 0.0
  %246 = vmatprep.subr.mxu0 0.0
  %247 = vmatpush1.msra.mxu0 0.0
  %248 = vmatprep.subr.mxu0 0.0
  %249 = vmatpush1.msra.mxu0 0.0
  %250 = vmatprep.subr.mxu0 0.0
  %251 = vmatpush1.msra.mxu0 0.0
  %252 = vmatprep.subr.mxu0 0.0
  %253 = vmatpush1.msra.mxu0 0.0
  %254 = vmatprep.subr.mxu0 0.0
  %255 = vmatpush1.msra.mxu0 0.0
  %256 = vmatprep.subr.mxu0 0.0
  %257 = vmatpush1.msra.mxu0 0.0
  %258 = vmatprep.subr.mxu0 0.0
  %259 = vmatpush1.msra.mxu0 0.0
  %260 = vmatprep.subr.mxu0 0.0
  %261 = vmatpush1.msra.mxu0 0.0
  %262 = vmatprep.subr.mxu0 0.0
  %263 = vmatpush1.msra.mxu0 0.0
  %264 = vmatprep.subr.mxu0 0.0
  %265 = vmatpush1.msra.mxu0 0.0
  %266 = vmatprep.subr.mxu0 0.0
  %267 = vmatpush1.msra.mxu0 0.0
  %268 = vmatprep.subr.mxu0 0.0
  %269 = vmatpush1.msra.mxu0 0.0
  %270 = vmatprep.subr.mxu0 0.0
  %271 = vmatpush1.msra.mxu0 0.0
  %272 = vmatprep.subr.mxu0 0.0
  %273 = vmatpush1.msra.mxu0 0.0
  %274 = vmatprep.subr.mxu0 0.0
  %275 = vmatpush1.msra.mxu0 0.0
  %276 = vmatprep.subr.mxu0 0.0
  %277 = vmatpush1.msra.mxu0 0.0
  %278 = vmatprep.subr.mxu0 0.0
  %279 = vmatpush1.msra.mxu0 0.0
  %280 = vmatprep.subr.mxu0 0.0
  %281 = vmatpush1.msra.mxu0 0.0
  %282 = vmatprep.subr.mxu0 0.0
  %283 = vmatpush1.msra.mxu0 0.0
  %284 = vmatprep.subr.mxu0 0.0
  %285 = vmatpush1.msra.mxu0 0.0
  %286 = vmatprep.subr.mxu0 0.0
  %287 = vmatpush1.msra.mxu0 0.0
  %288 = vmatprep.subr.mxu0 0.0
  %289 = vmatpush1.msra.mxu0 0.0
  %290 = vmatprep.subr.mxu0 0.0
  %291 = vmatpush1.msra.mxu0 0.0
  %292 = vmatprep.mubr.f32.mxu0 0.0
  %293 = vmatmul.mubr.f32.gmra.mrb[0].mxu0 %v226
  %v294 = vpop.f32.mrb[0].mxu0
  %v295 = vadd.f32 %v222, %v294
  %v296 = vpop.f32.mrb[0].mxu0
  %297 = vdwg.mxu0
  %298 = vst [vmem:[%s7] sm:$0xf] %v295
  // Predicated region
  $region30: #{_lambda_.7} parent=0 // pred_check
    _
  $region31: #{_lambda_.7} parent=0 // pred_check_branch
    %300 = sbr.rel (0) target = $region33
  $region32: #{_lambda_.7} parent=0 // pred_region
    _
  $region33: #{_lambda_.7} parent=0 // pred_fallthru
    _
  // Predicated region
  $region34: #{_lambda_.7} parent=0 // pred_check
    _
  $region35: #{_lambda_.7} parent=0 // pred_check_branch
    %302 = sbr.rel (0) target = $region37
  $region36: #{_lambda_.7} parent=0 // pred_region
    _
  $region37: #{_lambda_.7} parent=0 // pred_fallthru
    _

// kernel: _lambda_.8
$region0: #{_lambda_.8}
  #allocation0 [shape = 'u32[]', space=smem, size = 0x4, offset = 0x4, fixed_abs, tag = 'smem constant byte address 0x4 - core index']
  #allocation1 [shape = 'u32[144,128]{1,0:T(1,128)}', space=vmem, size = 0x12000, scoped, tag = 'internal scratch']
  %s0 = inlined_call_operand.vmem [shape: f32[6,128], index: 0, kind: input, shape index: {}]
  %s1 = inlined_call_operand.vmem [shape: f32[128,128], index: 1, kind: input, shape index: {}]
  %s2 = inlined_call_operand.vmem [shape: f32[128,128], index: 2, kind: input, shape index: {}]
  %s3 = inlined_call_operand.vmem [shape: f32[128,128], index: 3, kind: input, shape index: {}]
  %s4 = inlined_call_operand.vmem [shape: f32[1,128], index: 4, kind: input, shape index: {}]
  %s5 = inlined_call_operand.vmem [shape: f32[1,128], index: 5, kind: input, shape index: {}]
  %s6 = inlined_call_operand.vmem [shape: f32[1,128], index: 6, kind: input, shape index: {}]
  %s7 = inlined_call_operand.vmem [shape: f32[128,128], index: 7, kind: input, shape index: {}]
  %s8 = inlined_call_operand.vmem [shape: f32[1,128], index: 8, kind: input, shape index: {}]
  %s9 = inlined_call_operand.vmem [shape: f32[6,128], index: 9, kind: output, shape index: {}]
  %s10 = sld [smem:[#allocation0]]
  $region46: #{_lambda_.8} parent=0
    _
  %s12 = ssub.s32 1, %s10
  %s13 = scalar_select 0, %s12, %s10
  // Predicated region
  $region2: #{_lambda_.8} parent=0 // pred_check
    _
  $region3: #{_lambda_.8} parent=0 // pred_check_branch
    %15 = sbr.rel (0) target = $region5
  $region4: #{_lambda_.8} parent=0 // pred_region
    _
  $region5: #{_lambda_.8} parent=0 // pred_fallthru
    _
  // Predicated region
  $region6: #{_lambda_.8} parent=0 // pred_check
    _
  $region7: #{_lambda_.8} parent=0 // pred_check_branch
    %17 = sbr.rel (0) target = $region9
  $region8: #{_lambda_.8} parent=0 // pred_region
    _
  $region9: #{_lambda_.8} parent=0 // pred_fallthru
    _
  // Predicated region
  $region10: #{_lambda_.8} parent=0 // pred_check
    _
  $region11: #{_lambda_.8} parent=0 // pred_check_branch
    %19 = sbr.rel (0) target = $region13
  $region12: #{_lambda_.8} parent=0 // pred_region
    _
  $region13: #{_lambda_.8} parent=0 // pred_fallthru
    _
  // Predicated region
  $region14: #{_lambda_.8} parent=0 // pred_check
    _
  $region15: #{_lambda_.8} parent=0 // pred_check_branch
    %21 = sbr.rel (0) target = $region17
  $region16: #{_lambda_.8} parent=0 // pred_region
    _
  $region17: #{_lambda_.8} parent=0 // pred_fallthru
    _
  // Predicated region
  $region18: #{_lambda_.8} parent=0 // pred_check
    _
  $region19: #{_lambda_.8} parent=0 // pred_check_branch
    %23 = sbr.rel (0) target = $region21
  $region20: #{_lambda_.8} parent=0 // pred_region
    _
  $region21: #{_lambda_.8} parent=0 // pred_fallthru
    _
  // Predicated region
  $region22: #{_lambda_.8} parent=0 // pred_check
    _
  $region23: #{_lambda_.8} parent=0 // pred_check_branch
    %25 = sbr.rel (0) target = $region25
  $region24: #{_lambda_.8} parent=0 // pred_region
    _
  $region25: #{_lambda_.8} parent=0 // pred_fallthru
    _
  // Predicated region
  $region26: #{_lambda_.8} parent=0 // pred_check
    _
  $region27: #{_lambda_.8} parent=0 // pred_check_branch
    %27 = sbr.rel (0) target = $region29
  $region28: #{_lambda_.8} parent=0 // pred_region
    _
  $region29: #{_lambda_.8} parent=0 // pred_fallthru
    _
  // Predicated region
  $region30: #{_lambda_.8} parent=0 // pred_check
    _
  $region31: #{_lambda_.8} parent=0 // pred_check_branch
    %29 = sbr.rel (0) target = $region33
  $region32: #{_lambda_.8} parent=0 // pred_region
    _
  $region33: #{_lambda_.8} parent=0 // pred_fallthru
    _
  // Predicated region
  $region34: #{_lambda_.8} parent=0 // pred_check
    _
  $region35: #{_lambda_.8} parent=0 // pred_check_branch
    %31 = sbr.rel (0) target = $region37
  $region36: #{_lambda_.8} parent=0 // pred_region
    _
  $region37: #{_lambda_.8} parent=0 // pred_fallthru
    _
  %v32 = vld [vmem:[%s0] sm:$0x3f]
  %v33 = vld [vmem:[%s1] sm:$0xff]
  %v34 = vld [vmem:[%s1 + $0x8] sm:$0xff]
  %v35 = vld [vmem:[%s1 + $0x10] sm:$0xff]
  %v36 = vld [vmem:[%s1 + $0x18] sm:$0xff]
  %v37 = vld [vmem:[%s1 + $0x20] sm:$0xff]
  %v38 = vld [vmem:[%s1 + $0x28] sm:$0xff]
  %v39 = vld [vmem:[%s1 + $0x30] sm:$0xff]
  %v40 = vld [vmem:[%s1 + $0x38] sm:$0xff]
  %v41 = vld [vmem:[%s1 + $0x40] sm:$0xff]
  %v42 = vld [vmem:[%s1 + $0x48] sm:$0xff]
  %v43 = vld [vmem:[%s1 + $0x50] sm:$0xff]
  %v44 = vld [vmem:[%s1 + $0x58] sm:$0xff]
  %v45 = vld [vmem:[%s1 + $0x60] sm:$0xff]
  %v46 = vld [vmem:[%s1 + $0x68] sm:$0xff]
  %v47 = vld [vmem:[%s1 + $0x70] sm:$0xff]
  %v48 = vld [vmem:[%s1 + $0x78] sm:$0xff]
  %v49 = vld [vmem:[%s4] sm:$0x1]
  %v51 = vlaneseq
  %v52 = vshrl.u32 %v51, 7
  %v53 = vsub.s32 0, %v52
  %v54 = vrot.slane %v49, %v53
  %56 = vmatprep.subr.mxu0 0.0
  %57 = vmatpush1.msra.mxu0 %v33
  %58 = vmatprep.subr.mxu0 0.0
  %59 = vmatpush1.msra.mxu0 %v34
  %60 = vmatprep.subr.mxu0 0.0
  %61 = vmatpush1.msra.mxu0 %v35
  %62 = vmatprep.subr.mxu0 0.0
  %63 = vmatpush1.msra.mxu0 %v36
  %64 = vmatprep.subr.mxu0 0.0
  %65 = vmatpush1.msra.mxu0 %v37
  %66 = vmatprep.subr.mxu0 0.0
  %67 = vmatpush1.msra.mxu0 %v38
  %68 = vmatprep.subr.mxu0 0.0
  %69 = vmatpush1.msra.mxu0 %v39
  %70 = vmatprep.subr.mxu0 0.0
  %71 = vmatpush1.msra.mxu0 %v40
  %72 = vmatprep.subr.mxu0 0.0
  %73 = vmatpush1.msra.mxu0 %v41
  %74 = vmatprep.subr.mxu0 0.0
  %75 = vmatpush1.msra.mxu0 %v42
  %76 = vmatprep.subr.mxu0 0.0
  %77 = vmatpush1.msra.mxu0 %v43
  %78 = vmatprep.subr.mxu0 0.0
  %79 = vmatpush1.msra.mxu0 %v44
  %80 = vmatprep.subr.mxu0 0.0
  %81 = vmatpush1.msra.mxu0 %v45
  %82 = vmatprep.subr.mxu0 0.0
  %83 = vmatpush1.msra.mxu0 %v46
  %84 = vmatprep.subr.mxu0 0.0
  %85 = vmatpush1.msra.mxu0 %v47
  %86 = vmatprep.subr.mxu0 0.0
  %87 = vmatpush1.msra.mxu0 %v48
  %88 = vmatprep.subr.mxu0 0.0
  %89 = vmatpush1.msra.mxu0 0.0
  %90 = vmatprep.subr.mxu0 0.0
  %91 = vmatpush1.msra.mxu0 0.0
  %92 = vmatprep.subr.mxu0 0.0
  %93 = vmatpush1.msra.mxu0 0.0
  %94 = vmatprep.subr.mxu0 0.0
  %95 = vmatpush1.msra.mxu0 0.0
  %96 = vmatprep.subr.mxu0 0.0
  %97 = vmatpush1.msra.mxu0 0.0
  %98 = vmatprep.subr.mxu0 0.0
  %99 = vmatpush1.msra.mxu0 0.0
  %100 = vmatprep.subr.mxu0 0.0
  %101 = vmatpush1.msra.mxu0 0.0
  %102 = vmatprep.subr.mxu0 0.0
  %103 = vmatpush1.msra.mxu0 0.0
  %104 = vmatprep.subr.mxu0 0.0
  %105 = vmatpush1.msra.mxu0 0.0
  %106 = vmatprep.subr.mxu0 0.0
  %107 = vmatpush1.msra.mxu0 0.0
  %108 = vmatprep.subr.mxu0 0.0
  %109 = vmatpush1.msra.mxu0 0.0
  %110 = vmatprep.subr.mxu0 0.0
  %111 = vmatpush1.msra.mxu0 0.0
  %112 = vmatprep.subr.mxu0 0.0
  %113 = vmatpush1.msra.mxu0 0.0
  %114 = vmatprep.subr.mxu0 0.0
  %115 = vmatpush1.msra.mxu0 0.0
  %116 = vmatprep.subr.mxu0 0.0
  %117 = vmatpush1.msra.mxu0 0.0
  %118 = vmatprep.subr.mxu0 0.0
  %119 = vmatpush1.msra.mxu0 0.0
  %120 = vmatprep.mubr.f32.mxu0 0.0
  %121 = vmatmul.mubr.f32.gmra.mrb[0].mxu0 %v32
  %v122 = vpop.f32.mrb[0].mxu0
  %v123 = vadd.f32 %v54, %v122
  %v124 = vpop.f32.mrb[0].mxu0
  %125 = vdwg.mxu0
  %v126 = vld [vmem:[%s2] sm:$0xff]
  %v127 = vld [vmem:[%s2 + $0x8] sm:$0xff]
  %v128 = vld [vmem:[%s2 + $0x10] sm:$0xff]
  %v129 = vld [vmem:[%s2 + $0x18] sm:$0xff]
  %v130 = vld [vmem:[%s2 + $0x20] sm:$0xff]
  %v131 = vld [vmem:[%s2 + $0x28] sm:$0xff]
  %v132 = vld [vmem:[%s2 + $0x30] sm:$0xff]
  %v133 = vld [vmem:[%s2 + $0x38] sm:$0xff]
  %v134 = vld [vmem:[%s2 + $0x40] sm:$0xff]
  %v135 = vld [vmem:[%s2 + $0x48] sm:$0xff]
  %v136 = vld [vmem:[%s2 + $0x50] sm:$0xff]
  %v137 = vld [vmem:[%s2 + $0x58] sm:$0xff]
  %v138 = vld [vmem:[%s2 + $0x60] sm:$0xff]
  %v139 = vld [vmem:[%s2 + $0x68] sm:$0xff]
  %v140 = vld [vmem:[%s2 + $0x70] sm:$0xff]
  %v141 = vld [vmem:[%s2 + $0x78] sm:$0xff]
  %v142 = vld [vmem:[%s5] sm:$0x1]
  %v144 = vlaneseq
  %v145 = vshrl.u32 %v144, 7
  %v146 = vsub.s32 0, %v145
  %v147 = vrot.slane %v142, %v146
  %149 = vmatprep.subr.mxu0 0.0
  %150 = vmatpush1.msra.mxu0 %v126
  %151 = vmatprep.subr.mxu0 0.0
  %152 = vmatpush1.msra.mxu0 %v127
  %153 = vmatprep.subr.mxu0 0.0
  %154 = vmatpush1.msra.mxu0 %v128
  %155 = vmatprep.subr.mxu0 0.0
  %156 = vmatpush1.msra.mxu0 %v129
  %157 = vmatprep.subr.mxu0 0.0
  %158 = vmatpush1.msra.mxu0 %v130
  %159 = vmatprep.subr.mxu0 0.0
  %160 = vmatpush1.msra.mxu0 %v131
  %161 = vmatprep.subr.mxu0 0.0
  %162 = vmatpush1.msra.mxu0 %v132
  %163 = vmatprep.subr.mxu0 0.0
  %164 = vmatpush1.msra.mxu0 %v133
  %165 = vmatprep.subr.mxu0 0.0
  %166 = vmatpush1.msra.mxu0 %v134
  %167 = vmatprep.subr.mxu0 0.0
  %168 = vmatpush1.msra.mxu0 %v135
  %169 = vmatprep.subr.mxu0 0.0
  %170 = vmatpush1.msra.mxu0 %v136
  %171 = vmatprep.subr.mxu0 0.0
  %172 = vmatpush1.msra.mxu0 %v137
  %173 = vmatprep.subr.mxu0 0.0
  %174 = vmatpush1.msra.mxu0 %v138
  %175 = vmatprep.subr.mxu0 0.0
  %176 = vmatpush1.msra.mxu0 %v139
  %177 = vmatprep.subr.mxu0 0.0
  %178 = vmatpush1.msra.mxu0 %v140
  %179 = vmatprep.subr.mxu0 0.0
  %180 = vmatpush1.msra.mxu0 %v141
  %181 = vmatprep.subr.mxu0 0.0
  %182 = vmatpush1.msra.mxu0 0.0
  %183 = vmatprep.subr.mxu0 0.0
  %184 = vmatpush1.msra.mxu0 0.0
  %185 = vmatprep.subr.mxu0 0.0
  %186 = vmatpush1.msra.mxu0 0.0
  %187 = vmatprep.subr.mxu0 0.0
  %188 = vmatpush1.msra.mxu0 0.0
  %189 = vmatprep.subr.mxu0 0.0
  %190 = vmatpush1.msra.mxu0 0.0
  %191 = vmatprep.subr.mxu0 0.0
  %192 = vmatpush1.msra.mxu0 0.0
  %193 = vmatprep.subr.mxu0 0.0
  %194 = vmatpush1.msra.mxu0 0.0
  %195 = vmatprep.subr.mxu0 0.0
  %196 = vmatpush1.msra.mxu0 0.0
  %197 = vmatprep.subr.mxu0 0.0
  %198 = vmatpush1.msra.mxu0 0.0
  %199 = vmatprep.subr.mxu0 0.0
  %200 = vmatpush1.msra.mxu0 0.0
  %201 = vmatprep.subr.mxu0 0.0
  %202 = vmatpush1.msra.mxu0 0.0
  %203 = vmatprep.subr.mxu0 0.0
  %204 = vmatpush1.msra.mxu0 0.0
  %205 = vmatprep.subr.mxu0 0.0
  %206 = vmatpush1.msra.mxu0 0.0
  %207 = vmatprep.subr.mxu0 0.0
  %208 = vmatpush1.msra.mxu0 0.0
  %209 = vmatprep.subr.mxu0 0.0
  %210 = vmatpush1.msra.mxu0 0.0
  %211 = vmatprep.subr.mxu0 0.0
  %212 = vmatpush1.msra.mxu0 0.0
  %213 = vmatprep.mubr.f32.mxu0 0.0
  %214 = vmatmul.mubr.f32.gmra.mrb[0].mxu0 %v32
  %v215 = vpop.f32.mrb[0].mxu0
  %v216 = vadd.f32 %v147, %v215
  %v217 = vpop.f32.mrb[0].mxu0
  %218 = vdwg.mxu0
  %v219 = vld [vmem:[%s3] sm:$0xff]
  %v220 = vld [vmem:[%s3 + $0x8] sm:$0xff]
  %v221 = vld [vmem:[%s3 + $0x10] sm:$0xff]
  %v222 = vld [vmem:[%s3 + $0x18] sm:$0xff]
  %v223 = vld [vmem:[%s3 + $0x20] sm:$0xff]
  %v224 = vld [vmem:[%s3 + $0x28] sm:$0xff]
  %v225 = vld [vmem:[%s3 + $0x30] sm:$0xff]
  %v226 = vld [vmem:[%s3 + $0x38] sm:$0xff]
  %v227 = vld [vmem:[%s3 + $0x40] sm:$0xff]
  %v228 = vld [vmem:[%s3 + $0x48] sm:$0xff]
  %v229 = vld [vmem:[%s3 + $0x50] sm:$0xff]
  %v230 = vld [vmem:[%s3 + $0x58] sm:$0xff]
  %v231 = vld [vmem:[%s3 + $0x60] sm:$0xff]
  %v232 = vld [vmem:[%s3 + $0x68] sm:$0xff]
  %v233 = vld [vmem:[%s3 + $0x70] sm:$0xff]
  %v234 = vld [vmem:[%s3 + $0x78] sm:$0xff]
  %v235 = vld [vmem:[%s6] sm:$0x1]
  %v237 = vlaneseq
  %v238 = vshrl.u32 %v237, 7
  %v239 = vsub.s32 0, %v238
  %v240 = vrot.slane %v235, %v239
  %242 = vmatprep.subr.mxu0 0.0
  %243 = vmatpush1.msra.mxu0 %v219
  %244 = vmatprep.subr.mxu0 0.0
  %245 = vmatpush1.msra.mxu0 %v220
  %246 = vmatprep.subr.mxu0 0.0
  %247 = vmatpush1.msra.mxu0 %v221
  %248 = vmatprep.subr.mxu0 0.0
  %249 = vmatpush1.msra.mxu0 %v222
  %250 = vmatprep.subr.mxu0 0.0
  %251 = vmatpush1.msra.mxu0 %v223
  %252 = vmatprep.subr.mxu0 0.0
  %253 = vmatpush1.msra.mxu0 %v224
  %254 = vmatprep.subr.mxu0 0.0
  %255 = vmatpush1.msra.mxu0 %v225
  %256 = vmatprep.subr.mxu0 0.0
  %257 = vmatpush1.msra.mxu0 %v226
  %258 = vmatprep.subr.mxu0 0.0
  %259 = vmatpush1.msra.mxu0 %v227
  %260 = vmatprep.subr.mxu0 0.0
  %261 = vmatpush1.msra.mxu0 %v228
  %262 = vmatprep.subr.mxu0 0.0
  %263 = vmatpush1.msra.mxu0 %v229
  %264 = vmatprep.subr.mxu0 0.0
  %265 = vmatpush1.msra.mxu0 %v230
  %266 = vmatprep.subr.mxu0 0.0
  %267 = vmatpush1.msra.mxu0 %v231
  %268 = vmatprep.subr.mxu0 0.0
  %269 = vmatpush1.msra.mxu0 %v232
  %270 = vmatprep.subr.mxu0 0.0
  %271 = vmatpush1.msra.mxu0 %v233
  %272 = vmatprep.subr.mxu0 0.0
  %273 = vmatpush1.msra.mxu0 %v234
  %274 = vmatprep.subr.mxu0 0.0
  %275 = vmatpush1.msra.mxu0 0.0
  %276 = vmatprep.subr.mxu0 0.0
  %277 = vmatpush1.msra.mxu0 0.0
  %278 = vmatprep.subr.mxu0 0.0
  %279 = vmatpush1.msra.mxu0 0.0
  %280 = vmatprep.subr.mxu0 0.0
  %281 = vmatpush1.msra.mxu0 0.0
  %282 = vmatprep.subr.mxu0 0.0
  %283 = vmatpush1.msra.mxu0 0.0
  %284 = vmatprep.subr.mxu0 0.0
  %285 = vmatpush1.msra.mxu0 0.0
  %286 = vmatprep.subr.mxu0 0.0
  %287 = vmatpush1.msra.mxu0 0.0
  %288 = vmatprep.subr.mxu0 0.0
  %289 = vmatpush1.msra.mxu0 0.0
  %290 = vmatprep.subr.mxu0 0.0
  %291 = vmatpush1.msra.mxu0 0.0
  %292 = vmatprep.subr.mxu0 0.0
  %293 = vmatpush1.msra.mxu0 0.0
  %294 = vmatprep.subr.mxu0 0.0
  %295 = vmatpush1.msra.mxu0 0.0
  %296 = vmatprep.subr.mxu0 0.0
  %297 = vmatpush1.msra.mxu0 0.0
  %298 = vmatprep.subr.mxu0 0.0
  %299 = vmatpush1.msra.mxu0 0.0
  %300 = vmatprep.subr.mxu0 0.0
  %301 = vmatpush1.msra.mxu0 0.0
  %302 = vmatprep.subr.mxu0 0.0
  %303 = vmatpush1.msra.mxu0 0.0
  %304 = vmatprep.subr.mxu0 0.0
  %305 = vmatpush1.msra.mxu0 0.0
  %306 = vmatprep.mubr.f32.mxu0 0.0
  %307 = vmatmul.mubr.f32.gmra.mrb[0].mxu0 %v32
  %v308 = vpop.f32.mrb[0].mxu0
  %v309 = vadd.f32 %v240, %v308
  %v310 = vpop.f32.mrb[0].mxu0
  %311 = vdwg.mxu0
  %vm312 = vcmask 523264
  %v314 = vsel %vm312, %v123, 0
  %v317 = vsel %vm312, %v216, 0
  %319 = vmatprep.subr.mxu0 0.0
  %320 = vmatpush1.xpose.msra.mxu0 %v317
  %321 = vmatprep.subr.mxu0 0.0
  %322 = vmatpush1.xpose.msra.mxu0 0.0
  %323 = vmatprep.subr.mxu0 0.0
  %324 = vmatpush1.xpose.msra.mxu0 0.0
  %325 = vmatprep.subr.mxu0 0.0
  %326 = vmatpush1.xpose.msra.mxu0 0.0
  %327 = vmatprep.subr.mxu0 0.0
  %328 = vmatpush1.xpose.msra.mxu0 0.0
  %329 = vmatprep.subr.mxu0 0.0
  %330 = vmatpush1.xpose.msra.mxu0 0.0
  %331 = vmatprep.subr.mxu0 0.0
  %332 = vmatpush1.xpose.msra.mxu0 0.0
  %333 = vmatprep.subr.mxu0 0.0
  %334 = vmatpush1.xpose.msra.mxu0 0.0
  %335 = vmatprep.subr.mxu0 0.0
  %336 = vmatpush1.xpose.msra.mxu0 0.0
  %337 = vmatprep.subr.mxu0 0.0
  %338 = vmatpush1.xpose.msra.mxu0 0.0
  %339 = vmatprep.subr.mxu0 0.0
  %340 = vmatpush1.xpose.msra.mxu0 0.0
  %341 = vmatprep.subr.mxu0 0.0
  %342 = vmatpush1.xpose.msra.mxu0 0.0
  %343 = vmatprep.subr.mxu0 0.0
  %344 = vmatpush1.xpose.msra.mxu0 0.0
  %345 = vmatprep.subr.mxu0 0.0
  %346 = vmatpush1.xpose.msra.mxu0 0.0
  %347 = vmatprep.subr.mxu0 0.0
  %348 = vmatpush1.xpose.msra.mxu0 0.0
  %349 = vmatprep.subr.mxu0 0.0
  %350 = vmatpush1.xpose.msra.mxu0 0.0
  %351 = vmatprep.subr.mxu0 0.0
  %352 = vmatpush1.xpose.msra.mxu0 0.0
  %353 = vmatprep.subr.mxu0 0.0
  %354 = vmatpush1.xpose.msra.mxu0 0.0
  %355 = vmatprep.subr.mxu0 0.0
  %356 = vmatpush1.xpose.msra.mxu0 0.0
  %357 = vmatprep.subr.mxu0 0.0
  %358 = vmatpush1.xpose.msra.mxu0 0.0
  %359 = vmatprep.subr.mxu0 0.0
  %360 = vmatpush1.xpose.msra.mxu0 0.0
  %361 = vmatprep.subr.mxu0 0.0
  %362 = vmatpush1.xpose.msra.mxu0 0.0
  %363 = vmatprep.subr.mxu0 0.0
  %364 = vmatpush1.xpose.msra.mxu0 0.0
  %365 = vmatprep.subr.mxu0 0.0
  %366 = vmatpush1.xpose.msra.mxu0 0.0
  %367 = vmatprep.subr.mxu0 0.0
  %368 = vmatpush1.xpose.msra.mxu0 0.0
  %369 = vmatprep.subr.mxu0 0.0
  %370 = vmatpush1.xpose.msra.mxu0 0.0
  %371 = vmatprep.subr.mxu0 0.0
  %372 = vmatpush1.xpose.msra.mxu0 0.0
  %373 = vmatprep.subr.mxu0 0.0
  %374 = vmatpush1.xpose.msra.mxu0 0.0
  %375 = vmatprep.subr.mxu0 0.0
  %376 = vmatpush1.xpose.msra.mxu0 0.0
  %377 = vmatprep.subr.mxu0 0.0
  %378 = vmatpush1.xpose.msra.mxu0 0.0
  %379 = vmatprep.subr.mxu0 0.0
  %380 = vmatpush1.xpose.msra.mxu0 0.0
  %381 = vmatprep.subr.mxu0 0.0
  %382 = vmatpush1.xpose.msra.mxu0 0.0
  %383 = vmatprep.mubr.f32.mxu0 0.0
  %384 = vmatmul.mubr.f32.gmra.mrb[0].mxu0 %v314
  %v385 = vpop.f32.mrb[0].mxu0
  %v386 = vadd.f32 0.0, %v385
  %v387 = vpop.f32.mrb[0].mxu0
  %388 = vdwg.mxu0
  %vm389 = vcmask 18432
  %v390 = vsel %vm389, %v386, -inf
  %391 = vmax.xlane.f32.xlu0 %v390
  %v392 = vpop.xlane.xlu0 %391
  %v393 = vsub.f32 %v386, %v392
  %v394 = vmul.f32 %v393, 1.442695
  %v395 = vpow.pop %v394
  %v396 = vsel %vm389, %v395, 0.0
  %397 = vadd.xlane.f32.xlu0 %v396
  %v398 = vpop.xlane.xlu0 %397
  %v399 = vrcp.pop %v398
  %v400 = vmul.f32 %v395, %v399
  %vm401 = vcmask 23552
  %v403 = vsel %vm401, %v400, 0
  %vm405 = vcmask 1042432
  %v407 = vsel %vm405, %v309, 0
  %409 = vmatprep.subr.mxu0 0.0
  %410 = vmatpush1.msra.mxu0 %v407
  %411 = vmatprep.subr.mxu0 0.0
  %412 = vmatpush1.msra.mxu0 0.0
  %413 = vmatprep.subr.mxu0 0.0
  %414 = vmatpush1.msra.mxu0 0.0
  %415 = vmatprep.subr.mxu0 0.0
  %416 = vmatpush1.msra.mxu0 0.0
  %417 = vmatprep.subr.mxu0 0.0
  %418 = vmatpush1.msra.mxu0 0.0
  %419 = vmatprep.subr.mxu0 0.0
  %420 = vmatpush1.msra.mxu0 0.0
  %421 = vmatprep.subr.mxu0 0.0
  %422 = vmatpush1.msra.mxu0 0.0
  %423 = vmatprep.subr.mxu0 0.0
  %424 = vmatpush1.msra.mxu0 0.0
  %425 = vmatprep.subr.mxu0 0.0
  %426 = vmatpush1.msra.mxu0 0.0
  %427 = vmatprep.subr.mxu0 0.0
  %428 = vmatpush1.msra.mxu0 0.0
  %429 = vmatprep.subr.mxu0 0.0
  %430 = vmatpush1.msra.mxu0 0.0
  %431 = vmatprep.subr.mxu0 0.0
  %432 = vmatpush1.msra.mxu0 0.0
  %433 = vmatprep.subr.mxu0 0.0
  %434 = vmatpush1.msra.mxu0 0.0
  %435 = vmatprep.subr.mxu0 0.0
  %436 = vmatpush1.msra.mxu0 0.0
  %437 = vmatprep.subr.mxu0 0.0
  %438 = vmatpush1.msra.mxu0 0.0
  %439 = vmatprep.subr.mxu0 0.0
  %440 = vmatpush1.msra.mxu0 0.0
  %441 = vmatprep.subr.mxu0 0.0
  %442 = vmatpush1.msra.mxu0 0.0
  %443 = vmatprep.subr.mxu0 0.0
  %444 = vmatpush1.msra.mxu0 0.0
  %445 = vmatprep.subr.mxu0 0.0
  %446 = vmatpush1.msra.mxu0 0.0
  %447 = vmatprep.subr.mxu0 0.0
  %448 = vmatpush1.msra.mxu0 0.0
  %449 = vmatprep.subr.mxu0 0.0
  %450 = vmatpush1.msra.mxu0 0.0
  %451 = vmatprep.subr.mxu0 0.0
  %452 = vmatpush1.msra.mxu0 0.0
  %453 = vmatprep.subr.mxu0 0.0
  %454 = vmatpush1.msra.mxu0 0.0
  %455 = vmatprep.subr.mxu0 0.0
  %456 = vmatpush1.msra.mxu0 0.0
  %457 = vmatprep.subr.mxu0 0.0
  %458 = vmatpush1.msra.mxu0 0.0
  %459 = vmatprep.subr.mxu0 0.0
  %460 = vmatpush1.msra.mxu0 0.0
  %461 = vmatprep.subr.mxu0 0.0
  %462 = vmatpush1.msra.mxu0 0.0
  %463 = vmatprep.subr.mxu0 0.0
  %464 = vmatpush1.msra.mxu0 0.0
  %465 = vmatprep.subr.mxu0 0.0
  %466 = vmatpush1.msra.mxu0 0.0
  %467 = vmatprep.subr.mxu0 0.0
  %468 = vmatpush1.msra.mxu0 0.0
  %469 = vmatprep.subr.mxu0 0.0
  %470 = vmatpush1.msra.mxu0 0.0
  %471 = vmatprep.subr.mxu0 0.0
  %472 = vmatpush1.msra.mxu0 0.0
  %473 = vmatprep.mubr.f32.mxu0 0.0
  %474 = vmatmul.mubr.f32.gmra.mrb[0].mxu0 %v403
  %v475 = vpop.f32.mrb[0].mxu0
  %v476 = vadd.f32 0.0, %v475
  %v477 = vpop.f32.mrb[0].mxu0
  %478 = vdwg.mxu0
  %v479 = vld [vmem:[%s7] sm:$0xff]
  %v480 = vld [vmem:[%s7 + $0x8] sm:$0xff]
  %v481 = vld [vmem:[%s7 + $0x10] sm:$0xff]
  %v482 = vld [vmem:[%s7 + $0x18] sm:$0xff]
  %v483 = vld [vmem:[%s7 + $0x20] sm:$0xff]
  %v484 = vld [vmem:[%s7 + $0x28] sm:$0xff]
  %v485 = vld [vmem:[%s7 + $0x30] sm:$0xff]
  %v486 = vld [vmem:[%s7 + $0x38] sm:$0xff]
  %487 = vrot.lane.b32.xlu0 %v123, 64
  %v488 = vpop.permute.xlu0 %487
  %489 = vrot.lane.b32.xlu0 %v216, 64
  %v490 = vpop.permute.xlu0 %489
  %v491 = vsel %vm312, %v488, 0
  %v493 = vsel %vm312, %v490, 0
  %495 = vmatprep.subr.mxu0 0.0
  %496 = vmatpush1.xpose.msra.mxu0 %v493
  %497 = vmatprep.subr.mxu0 0.0
  %498 = vmatpush1.xpose.msra.mxu0 0.0
  %499 = vmatprep.subr.mxu0 0.0
  %500 = vmatpush1.xpose.msra.mxu0 0.0
  %501 = vmatprep.subr.mxu0 0.0
  %502 = vmatpush1.xpose.msra.mxu0 0.0
  %503 = vmatprep.subr.mxu0 0.0
  %504 = vmatpush1.xpose.msra.mxu0 0.0
  %505 = vmatprep.subr.mxu0 0.0
  %506 = vmatpush1.xpose.msra.mxu0 0.0
  %507 = vmatprep.subr.mxu0 0.0
  %508 = vmatpush1.xpose.msra.mxu0 0.0
  %509 = vmatprep.subr.mxu0 0.0
  %510 = vmatpush1.xpose.msra.mxu0 0.0
  %511 = vmatprep.subr.mxu0 0.0
  %512 = vmatpush1.xpose.msra.mxu0 0.0
  %513 = vmatprep.subr.mxu0 0.0
  %514 = vmatpush1.xpose.msra.mxu0 0.0
  %515 = vmatprep.subr.mxu0 0.0
  %516 = vmatpush1.xpose.msra.mxu0 0.0
  %517 = vmatprep.subr.mxu0 0.0
  %518 = vmatpush1.xpose.msra.mxu0 0.0
  %519 = vmatprep.subr.mxu0 0.0
  %520 = vmatpush1.xpose.msra.mxu0 0.0
  %521 = vmatprep.subr.mxu0 0.0
  %522 = vmatpush1.xpose.msra.mxu0 0.0
  %523 = vmatprep.subr.mxu0 0.0
  %524 = vmatpush1.xpose.msra.mxu0 0.0
  %525 = vmatprep.subr.mxu0 0.0
  %526 = vmatpush1.xpose.msra.mxu0 0.0
  %527 = vmatprep.subr.mxu0 0.0
  %528 = vmatpush1.xpose.msra.mxu0 0.0
  %529 = vmatprep.subr.mxu0 0.0
  %530 = vmatpush1.xpose.msra.mxu0 0.0
  %531 = vmatprep.subr.mxu0 0.0
  %532 = vmatpush1.xpose.msra.mxu0 0.0
  %533 = vmatprep.subr.mxu0 0.0
  %534 = vmatpush1.xpose.msra.mxu0 0.0
  %535 = vmatprep.subr.mxu0 0.0
  %536 = vmatpush1.xpose.msra.mxu0 0.0
  %537 = vmatprep.subr.mxu0 0.0
  %538 = vmatpush1.xpose.msra.mxu0 0.0
  %539 = vmatprep.subr.mxu0 0.0
  %540 = vmatpush1.xpose.msra.mxu0 0.0
  %541 = vmatprep.subr.mxu0 0.0
  %542 = vmatpush1.xpose.msra.mxu0 0.0
  %543 = vmatprep.subr.mxu0 0.0
  %544 = vmatpush1.xpose.msra.mxu0 0.0
  %545 = vmatprep.subr.mxu0 0.0
  %546 = vmatpush1.xpose.msra.mxu0 0.0
  %547 = vmatprep.subr.mxu0 0.0
  %548 = vmatpush1.xpose.msra.mxu0 0.0
  %549 = vmatprep.subr.mxu0 0.0
  %550 = vmatpush1.xpose.msra.mxu0 0.0
  %551 = vmatprep.subr.mxu0 0.0
  %552 = vmatpush1.xpose.msra.mxu0 0.0
  %553 = vmatprep.subr.mxu0 0.0
  %554 = vmatpush1.xpose.msra.mxu0 0.0
  %555 = vmatprep.subr.mxu0 0.0
  %556 = vmatpush1.xpose.msra.mxu0 0.0
  %557 = vmatprep.subr.mxu0 0.0
  %558 = vmatpush1.xpose.msra.mxu0 0.0
  %559 = vmatprep.mubr.f32.mxu0 0.0
  %560 = vmatmul.mubr.f32.gmra.mrb[0].mxu0 %v491
  %v561 = vpop.f32.mrb[0].mxu0
  %v562 = vadd.f32 0.0, %v561
  %v563 = vpop.f32.mrb[0].mxu0
  %564 = vdwg.mxu0
  %v565 = vsel %vm389, %v562, -inf
  %566 = vmax.xlane.f32.xlu0 %v565
  %v567 = vpop.xlane.xlu0 %566
  %v568 = vsub.f32 %v562, %v567
  %v569 = vmul.f32 %v568, 1.442695
  %v570 = vpow.pop %v569
  %v571 = vsel %vm389, %v570, 0.0
  %572 = vadd.xlane.f32.xlu0 %v571
  %v573 = vpop.xlane.xlu0 %572
  %v574 = vrcp.pop %v573
  %v575 = vmul.f32 %v570, %v574
  %576 = vrot.lane.b32.xlu0 %v309, 64
  %v577 = vpop.permute.xlu0 %576
  %v579 = vsel %vm401, %v575, 0
  %v581 = vsel %vm405, %v577, 0
  %583 = vmatprep.subr.mxu0 0.0
  %584 = vmatpush1.msra.mxu0 %v581
  %585 = vmatprep.subr.mxu0 0.0
  %586 = vmatpush1.msra.mxu0 0.0
  %587 = vmatprep.subr.mxu0 0.0
  %588 = vmatpush1.msra.mxu0 0.0
  %589 = vmatprep.subr.mxu0 0.0
  %590 = vmatpush1.msra.mxu0 0.0
  %591 = vmatprep.subr.mxu0 0.0
  %592 = vmatpush1.msra.mxu0 0.0
  %593 = vmatprep.subr.mxu0 0.0
  %594 = vmatpush1.msra.mxu0 0.0
  %595 = vmatprep.subr.mxu0 0.0
  %596 = vmatpush1.msra.mxu0 0.0
  %597 = vmatprep.subr.mxu0 0.0
  %598 = vmatpush1.msra.mxu0 0.0
  %599 = vmatprep.subr.mxu0 0.0
  %600 = vmatpush1.msra.mxu0 0.0
  %601 = vmatprep.subr.mxu0 0.0
  %602 = vmatpush1.msra.mxu0 0.0
  %603 = vmatprep.subr.mxu0 0.0
  %604 = vmatpush1.msra.mxu0 0.0
  %605 = vmatprep.subr.mxu0 0.0
  %606 = vmatpush1.msra.mxu0 0.0
  %607 = vmatprep.subr.mxu0 0.0
  %608 = vmatpush1.msra.mxu0 0.0
  %609 = vmatprep.subr.mxu0 0.0
  %610 = vmatpush1.msra.mxu0 0.0
  %611 = vmatprep.subr.mxu0 0.0
  %612 = vmatpush1.msra.mxu0 0.0
  %613 = vmatprep.subr.mxu0 0.0
  %614 = vmatpush1.msra.mxu0 0.0
  %615 = vmatprep.subr.mxu0 0.0
  %616 = vmatpush1.msra.mxu0 0.0
  %617 = vmatprep.subr.mxu0 0.0
  %618 = vmatpush1.msra.mxu0 0.0
  %619 = vmatprep.subr.mxu0 0.0
  %620 = vmatpush1.msra.mxu0 0.0
  %621 = vmatprep.subr.mxu0 0.0
  %622 = vmatpush1.msra.mxu0 0.0
  %623 = vmatprep.subr.mxu0 0.0
  %624 = vmatpush1.msra.mxu0 0.0
  %625 = vmatprep.subr.mxu0 0.0
  %626 = vmatpush1.msra.mxu0 0.0
  %627 = vmatprep.subr.mxu0 0.0
  %628 = vmatpush1.msra.mxu0 0.0
  %629 = vmatprep.subr.mxu0 0.0
  %630 = vmatpush1.msra.mxu0 0.0
  %631 = vmatprep.subr.mxu0 0.0
  %632 = vmatpush1.msra.mxu0 0.0
  %633 = vmatprep.subr.mxu0 0.0
  %634 = vmatpush1.msra.mxu0 0.0
  %635 = vmatprep.subr.mxu0 0.0
  %636 = vmatpush1.msra.mxu0 0.0
  %637 = vmatprep.subr.mxu0 0.0
  %638 = vmatpush1.msra.mxu0 0.0
  %639 = vmatprep.subr.mxu0 0.0
  %640 = vmatpush1.msra.mxu0 0.0
  %641 = vmatprep.subr.mxu0 0.0
  %642 = vmatpush1.msra.mxu0 0.0
  %643 = vmatprep.subr.mxu0 0.0
  %644 = vmatpush1.msra.mxu0 0.0
  %645 = vmatprep.subr.mxu0 0.0
  %646 = vmatpush1.msra.mxu0 0.0
  %647 = vmatprep.mubr.f32.mxu0 0.0
  %648 = vmatmul.mubr.f32.gmra.mrb[0].mxu0 %v579
  %v649 = vpop.f32.mrb[0].mxu0
  %v650 = vadd.f32 0.0, %v649
  %v651 = vpop.f32.mrb[0].mxu0
  %652 = vdwg.mxu0
  %v653 = vld [vmem:[%s7 + $0x40] sm:$0xff]
  %v654 = vld [vmem:[%s7 + $0x48] sm:$0xff]
  %v655 = vld [vmem:[%s7 + $0x50] sm:$0xff]
  %v656 = vld [vmem:[%s7 + $0x58] sm:$0xff]
  %v657 = vld [vmem:[%s7 + $0x60] sm:$0xff]
  %v658 = vld [vmem:[%s7 + $0x68] sm:$0xff]
  %v659 = vld [vmem:[%s7 + $0x70] sm:$0xff]
  %v660 = vld [vmem:[%s7 + $0x78] sm:$0xff]
  %v662 = vsel %vm312, %v650, 0
  %664 = vmatprep.subr.mxu0 0.0
  %665 = vmatpush1.msra.mxu0 %v653
  %666 = vmatprep.subr.mxu0 0.0
  %667 = vmatpush1.msra.mxu0 %v654
  %668 = vmatprep.subr.mxu0 0.0
  %669 = vmatpush1.msra.mxu0 %v655
  %670 = vmatprep.subr.mxu0 0.0
  %671 = vmatpush1.msra.mxu0 %v656
  %672 = vmatprep.subr.mxu0 0.0
  %673 = vmatpush1.msra.mxu0 %v657
  %674 = vmatprep.subr.mxu0 0.0
  %675 = vmatpush1.msra.mxu0 %v658
  %676 = vmatprep.subr.mxu0 0.0
  %677 = vmatpush1.msra.mxu0 %v659
  %678 = vmatprep.subr.mxu0 0.0
  %679 = vmatpush1.msra.mxu0 %v660
  %680 = vmatprep.subr.mxu0 0.0
  %681 = vmatpush1.msra.mxu0 0.0
  %682 = vmatprep.subr.mxu0 0.0
  %683 = vmatpush1.msra.mxu0 0.0
  %684 = vmatprep.subr.mxu0 0.0
  %685 = vmatpush1.msra.mxu0 0.0
  %686 = vmatprep.subr.mxu0 0.0
  %687 = vmatpush1.msra.mxu0 0.0
  %688 = vmatprep.subr.mxu0 0.0
  %689 = vmatpush1.msra.mxu0 0.0
  %690 = vmatprep.subr.mxu0 0.0
  %691 = vmatpush1.msra.mxu0 0.0
  %692 = vmatprep.subr.mxu0 0.0
  %693 = vmatpush1.msra.mxu0 0.0
  %694 = vmatprep.subr.mxu0 0.0
  %695 = vmatpush1.msra.mxu0 0.0
  %696 = vmatprep.subr.mxu0 0.0
  %697 = vmatpush1.msra.mxu0 0.0
  %698 = vmatprep.subr.mxu0 0.0
  %699 = vmatpush1.msra.mxu0 0.0
  %700 = vmatprep.subr.mxu0 0.0
  %701 = vmatpush1.msra.mxu0 0.0
  %702 = vmatprep.subr.mxu0 0.0
  %703 = vmatpush1.msra.mxu0 0.0
  %704 = vmatprep.subr.mxu0 0.0
  %705 = vmatpush1.msra.mxu0 0.0
  %706 = vmatprep.subr.mxu0 0.0
  %707 = vmatpush1.msra.mxu0 0.0
  %708 = vmatprep.subr.mxu0 0.0
  %709 = vmatpush1.msra.mxu0 0.0
  %710 = vmatprep.subr.mxu0 0.0
  %711 = vmatpush1.msra.mxu0 0.0
  %712 = vmatprep.subr.mxu0 0.0
  %713 = vmatpush1.msra.mxu0 0.0
  %714 = vmatprep.subr.mxu0 0.0
  %715 = vmatpush1.msra.mxu0 0.0
  %716 = vmatprep.subr.mxu0 0.0
  %717 = vmatpush1.msra.mxu0 0.0
  %718 = vmatprep.subr.mxu0 0.0
  %719 = vmatpush1.msra.mxu0 0.0
  %720 = vmatprep.subr.mxu0 0.0
  %721 = vmatpush1.msra.mxu0 0.0
  %722 = vmatprep.subr.mxu0 0.0
  %723 = vmatpush1.msra.mxu0 0.0
  %724 = vmatprep.subr.mxu0 0.0
  %725 = vmatpush1.msra.mxu0 0.0
  %726 = vmatprep.subr.mxu0 0.0
  %727 = vmatpush1.msra.mxu0 0.0
  %728 = vmatprep.mubr.f32.mxu0 0.0
  %729 = vmatmul.mubr.f32.gmra.mrb[0].mxu0 %v662
  %v730 = vpop.f32.mrb[0].mxu0
  %v731 = vadd.f32 0.0, %v730
  %v732 = vpop.f32.mrb[0].mxu0
  %733 = vdwg.mxu0
  %v735 = vsel %vm312, %v476, 0
  %737 = vmatprep.subr.mxu0 0.0
  %738 = vmatpush1.msra.mxu0 %v479
  %739 = vmatprep.subr.mxu0 0.0
  %740 = vmatpush1.msra.mxu0 %v480
  %741 = vmatprep.subr.mxu0 0.0
  %742 = vmatpush1.msra.mxu0 %v481
  %743 = vmatprep.subr.mxu0 0.0
  %744 = vmatpush1.msra.mxu0 %v482
  %745 = vmatprep.subr.mxu0 0.0
  %746 = vmatpush1.msra.mxu0 %v483
  %747 = vmatprep.subr.mxu0 0.0
  %748 = vmatpush1.msra.mxu0 %v484
  %749 = vmatprep.subr.mxu0 0.0
  %750 = vmatpush1.msra.mxu0 %v485
  %751 = vmatprep.subr.mxu0 0.0
  %752 = vmatpush1.msra.mxu0 %v486
  %753 = vmatprep.subr.mxu0 0.0
  %754 = vmatpush1.msra.mxu0 0.0
  %755 = vmatprep.subr.mxu0 0.0
  %756 = vmatpush1.msra.mxu0 0.0
  %757 = vmatprep.subr.mxu0 0.0
  %758 = vmatpush1.msra.mxu0 0.0
  %759 = vmatprep.subr.mxu0 0.0
  %760 = vmatpush1.msra.mxu0 0.0
  %761 = vmatprep.subr.mxu0 0.0
  %762 = vmatpush1.msra.mxu0 0.0
  %763 = vmatprep.subr.mxu0 0.0
  %764 = vmatpush1.msra.mxu0 0.0
  %765 = vmatprep.subr.mxu0 0.0
  %766 = vmatpush1.msra.mxu0 0.0
  %767 = vmatprep.subr.mxu0 0.0
  %768 = vmatpush1.msra.mxu0 0.0
  %769 = vmatprep.subr.mxu0 0.0
  %770 = vmatpush1.msra.mxu0 0.0
  %771 = vmatprep.subr.mxu0 0.0
  %772 = vmatpush1.msra.mxu0 0.0
  %773 = vmatprep.subr.mxu0 0.0
  %774 = vmatpush1.msra.mxu0 0.0
  %775 = vmatprep.subr.mxu0 0.0
  %776 = vmatpush1.msra.mxu0 0.0
  %777 = vmatprep.subr.mxu0 0.0
  %778 = vmatpush1.msra.mxu0 0.0
  %779 = vmatprep.subr.mxu0 0.0
  %780 = vmatpush1.msra.mxu0 0.0
  %781 = vmatprep.subr.mxu0 0.0
  %782 = vmatpush1.msra.mxu0 0.0
  %783 = vmatprep.subr.mxu0 0.0
  %784 = vmatpush1.msra.mxu0 0.0
  %785 = vmatprep.subr.mxu0 0.0
  %786 = vmatpush1.msra.mxu0 0.0
  %787 = vmatprep.subr.mxu0 0.0
  %788 = vmatpush1.msra.mxu0 0.0
  %789 = vmatprep.subr.mxu0 0.0
  %790 = vmatpush1.msra.mxu0 0.0
  %791 = vmatprep.subr.mxu0 0.0
  %792 = vmatpush1.msra.mxu0 0.0
  %793 = vmatprep.subr.mxu0 0.0
  %794 = vmatpush1.msra.mxu0 0.0
  %795 = vmatprep.subr.mxu0 0.0
  %796 = vmatpush1.msra.mxu0 0.0
  %797 = vmatprep.subr.mxu0 0.0
  %798 = vmatpush1.msra.mxu0 0.0
  %799 = vmatprep.subr.mxu0 0.0
  %800 = vmatpush1.msra.mxu0 0.0
  %801 = vmatprep.mubr.f32.mxu0 0.0
  %802 = vmatmul.mubr.f32.gmra.mrb[0].mxu0 %v735
  %v803 = vpop.f32.mrb[0].mxu0
  %v804 = vadd.f32 %v731, %v803
  %v805 = vpop.f32.mrb[0].mxu0
  %806 = vdwg.mxu0
  %v807 = vld [vmem:[%s8] sm:$0x1]
  %v809 = vlaneseq
  %v810 = vshrl.u32 %v809, 7
  %v811 = vsub.s32 0, %v810
  %v812 = vrot.slane %v807, %v811
  %v814 = vadd.f32 %v804, %v812
  %815 = vst [vmem:[%s9] sm:$0x7] %v814
  %v816 = vrot.slane %v123, 3
  %v817 = vrot.slane %v216, 3
  %v818 = vsel %vm312, %v816, 0
  %v820 = vsel %vm312, %v817, 0
  %822 = vmatprep.subr.mxu0 0.0
  %823 = vmatpush1.xpose.msra.mxu0 %v820
  %824 = vmatprep.subr.mxu0 0.0
  %825 = vmatpush1.xpose.msra.mxu0 0.0
  %826 = vmatprep.subr.mxu0 0.0
  %827 = vmatpush1.xpose.msra.mxu0 0.0
  %828 = vmatprep.subr.mxu0 0.0
  %829 = vmatpush1.xpose.msra.mxu0 0.0
  %830 = vmatprep.subr.mxu0 0.0
  %831 = vmatpush1.xpose.msra.mxu0 0.0
  %832 = vmatprep.subr.mxu0 0.0
  %833 = vmatpush1.xpose.msra.mxu0 0.0
  %834 = vmatprep.subr.mxu0 0.0
  %835 = vmatpush1.xpose.msra.mxu0 0.0
  %836 = vmatprep.subr.mxu0 0.0
  %837 = vmatpush1.xpose.msra.mxu0 0.0
  %838 = vmatprep.subr.mxu0 0.0
  %839 = vmatpush1.xpose.msra.mxu0 0.0
  %840 = vmatprep.subr.mxu0 0.0
  %841 = vmatpush1.xpose.msra.mxu0 0.0
  %842 = vmatprep.subr.mxu0 0.0
  %843 = vmatpush1.xpose.msra.mxu0 0.0
  %844 = vmatprep.subr.mxu0 0.0
  %845 = vmatpush1.xpose.msra.mxu0 0.0
  %846 = vmatprep.subr.mxu0 0.0
  %847 = vmatpush1.xpose.msra.mxu0 0.0
  %848 = vmatprep.subr.mxu0 0.0
  %849 = vmatpush1.xpose.msra.mxu0 0.0
  %850 = vmatprep.subr.mxu0 0.0
  %851 = vmatpush1.xpose.msra.mxu0 0.0
  %852 = vmatprep.subr.mxu0 0.0
  %853 = vmatpush1.xpose.msra.mxu0 0.0
  %854 = vmatprep.subr.mxu0 0.0
  %855 = vmatpush1.xpose.msra.mxu0 0.0
  %856 = vmatprep.subr.mxu0 0.0
  %857 = vmatpush1.xpose.msra.mxu0 0.0
  %858 = vmatprep.subr.mxu0 0.0
  %859 = vmatpush1.xpose.msra.mxu0 0.0
  %860 = vmatprep.subr.mxu0 0.0
  %861 = vmatpush1.xpose.msra.mxu0 0.0
  %862 = vmatprep.subr.mxu0 0.0
  %863 = vmatpush1.xpose.msra.mxu0 0.0
  %864 = vmatprep.subr.mxu0 0.0
  %865 = vmatpush1.xpose.msra.mxu0 0.0
  %866 = vmatprep.subr.mxu0 0.0
  %867 = vmatpush1.xpose.msra.mxu0 0.0
  %868 = vmatprep.subr.mxu0 0.0
  %869 = vmatpush1.xpose.msra.mxu0 0.0
  %870 = vmatprep.subr.mxu0 0.0
  %871 = vmatpush1.xpose.msra.mxu0 0.0
  %872 = vmatprep.subr.mxu0 0.0
  %873 = vmatpush1.xpose.msra.mxu0 0.0
  %874 = vmatprep.subr.mxu0 0.0
  %875 = vmatpush1.xpose.msra.mxu0 0.0
  %876 = vmatprep.subr.mxu0 0.0
  %877 = vmatpush1.xpose.msra.mxu0 0.0
  %878 = vmatprep.subr.mxu0 0.0
  %879 = vmatpush1.xpose.msra.mxu0 0.0
  %880 = vmatprep.subr.mxu0 0.0
  %881 = vmatpush1.xpose.msra.mxu0 0.0
  %882 = vmatprep.subr.mxu0 0.0
  %883 = vmatpush1.xpose.msra.mxu0 0.0
  %884 = vmatprep.subr.mxu0 0.0
  %885 = vmatpush1.xpose.msra.mxu0 0.0
  %886 = vmatprep.mubr.f32.mxu0 0.0
  %887 = vmatmul.mubr.f32.gmra.mrb[0].mxu0 %v818
  %v888 = vpop.f32.mrb[0].mxu0
  %v889 = vadd.f32 0.0, %v888
  %v890 = vpop.f32.mrb[0].mxu0
  %891 = vdwg.mxu0
  %v892 = vsel %vm389, %v889, -inf
  %893 = vmax.xlane.f32.xlu0 %v892
  %v894 = vpop.xlane.xlu0 %893
  %v895 = vsub.f32 %v889, %v894
  %v896 = vmul.f32 %v895, 1.442695
  %v897 = vpow.pop %v896
  %v898 = vsel %vm389, %v897, 0.0
  %899 = vadd.xlane.f32.xlu0 %v898
  %v900 = vpop.xlane.xlu0 %899
  %v901 = vrcp.pop %v900
  %v902 = vmul.f32 %v897, %v901
  %v903 = vrot.slane %v309, 3
  %v905 = vsel %vm401, %v902, 0
  %v907 = vsel %vm405, %v903, 0
  %909 = vmatprep.subr.mxu0 0.0
  %910 = vmatpush1.msra.mxu0 %v907
  %911 = vmatprep.subr.mxu0 0.0
  %912 = vmatpush1.msra.mxu0 0.0
  %913 = vmatprep.subr.mxu0 0.0
  %914 = vmatpush1.msra.mxu0 0.0
  %915 = vmatprep.subr.mxu0 0.0
  %916 = vmatpush1.msra.mxu0 0.0
  %917 = vmatprep.subr.mxu0 0.0
  %918 = vmatpush1.msra.mxu0 0.0
  %919 = vmatprep.subr.mxu0 0.0
  %920 = vmatpush1.msra.mxu0 0.0
  %921 = vmatprep.subr.mxu0 0.0
  %922 = vmatpush1.msra.mxu0 0.0
  %923 = vmatprep.subr.mxu0 0.0
  %924 = vmatpush1.msra.mxu0 0.0
  %925 = vmatprep.subr.mxu0 0.0
  %926 = vmatpush1.msra.mxu0 0.0
  %927 = vmatprep.subr.mxu0 0.0
  %928 = vmatpush1.msra.mxu0 0.0
  %929 = vmatprep.subr.mxu0 0.0
  %930 = vmatpush1.msra.mxu0 0.0
  %931 = vmatprep.subr.mxu0 0.0
  %932 = vmatpush1.msra.mxu0 0.0
  %933 = vmatprep.subr.mxu0 0.0
  %934 = vmatpush1.msra.mxu0 0.0
  %935 = vmatprep.subr.mxu0 0.0
  %936 = vmatpush1.msra.mxu0 0.0
  %937 = vmatprep.subr.mxu0 0.0
  %938 = vmatpush1.msra.mxu0 0.0
  %939 = vmatprep.subr.mxu0 0.0
  %940 = vmatpush1.msra.mxu0 0.0
  %941 = vmatprep.subr.mxu0 0.0
  %942 = vmatpush1.msra.mxu0 0.0
  %943 = vmatprep.subr.mxu0 0.0
  %944 = vmatpush1.msra.mxu0 0.0
  %945 = vmatprep.subr.mxu0 0.0
  %946 = vmatpush1.msra.mxu0 0.0
  %947 = vmatprep.subr.mxu0 0.0
  %948 = vmatpush1.msra.mxu0 0.0
  %949 = vmatprep.subr.mxu0 0.0
  %950 = vmatpush1.msra.mxu0 0.0
  %951 = vmatprep.subr.mxu0 0.0
  %952 = vmatpush1.msra.mxu0 0.0
  %953 = vmatprep.subr.mxu0 0.0
  %954 = vmatpush1.msra.mxu0 0.0
  %955 = vmatprep.subr.mxu0 0.0
  %956 = vmatpush1.msra.mxu0 0.0
  %957 = vmatprep.subr.mxu0 0.0
  %958 = vmatpush1.msra.mxu0 0.0
  %959 = vmatprep.subr.mxu0 0.0
  %960 = vmatpush1.msra.mxu0 0.0
  %961 = vmatprep.subr.mxu0 0.0
  %962 = vmatpush1.msra.mxu0 0.0
  %963 = vmatprep.subr.mxu0 0.0
  %964 = vmatpush1.msra.mxu0 0.0
  %965 = vmatprep.subr.mxu0 0.0
  %966 = vmatpush1.msra.mxu0 0.0
  %967 = vmatprep.subr.mxu0 0.0
  %968 = vmatpush1.msra.mxu0 0.0
  %969 = vmatprep.subr.mxu0 0.0
  %970 = vmatpush1.msra.mxu0 0.0
  %971 = vmatprep.subr.mxu0 0.0
  %972 = vmatpush1.msra.mxu0 0.0
  %973 = vmatprep.mubr.f32.mxu0 0.0
  %974 = vmatmul.mubr.f32.gmra.mrb[0].mxu0 %v905
  %v975 = vpop.f32.mrb[0].mxu0
  %v976 = vadd.f32 0.0, %v975
  %v977 = vpop.f32.mrb[0].mxu0
  %978 = vdwg.mxu0
  %v979 = vld [vmem:[%s7] sm:$0xff]
  %v980 = vld [vmem:[%s7 + $0x8] sm:$0xff]
  %v981 = vld [vmem:[%s7 + $0x10] sm:$0xff]
  %v982 = vld [vmem:[%s7 + $0x18] sm:$0xff]
  %v983 = vld [vmem:[%s7 + $0x20] sm:$0xff]
  %v984 = vld [vmem:[%s7 + $0x28] sm:$0xff]
  %v985 = vld [vmem:[%s7 + $0x30] sm:$0xff]
  %v986 = vld [vmem:[%s7 + $0x38] sm:$0xff]
  %987 = vrot.lane.b32.xlu0 %v816, 64
  %v988 = vpop.permute.xlu0 %987
  %989 = vrot.lane.b32.xlu0 %v817, 64
  %v990 = vpop.permute.xlu0 %989
  %v991 = vsel %vm312, %v988, 0
  %v993 = vsel %vm312, %v990, 0
  %995 = vmatprep.subr.mxu0 0.0
  %996 = vmatpush1.xpose.msra.mxu0 %v993
  %997 = vmatprep.subr.mxu0 0.0
  %998 = vmatpush1.xpose.msra.mxu0 0.0
  %999 = vmatprep.subr.mxu0 0.0
  %1000 = vmatpush1.xpose.msra.mxu0 0.0
  %1001 = vmatprep.subr.mxu0 0.0
  %1002 = vmatpush1.xpose.msra.mxu0 0.0
  %1003 = vmatprep.subr.mxu0 0.0
  %1004 = vmatpush1.xpose.msra.mxu0 0.0
  %1005 = vmatprep.subr.mxu0 0.0
  %1006 = vmatpush1.xpose.msra.mxu0 0.0
  %1007 = vmatprep.subr.mxu0 0.0
  %1008 = vmatpush1.xpose.msra.mxu0 0.0
  %1009 = vmatprep.subr.mxu0 0.0
  %1010 = vmatpush1.xpose.msra.mxu0 0.0
  %1011 = vmatprep.subr.mxu0 0.0
  %1012 = vmatpush1.xpose.msra.mxu0 0.0
  %1013 = vmatprep.subr.mxu0 0.0
  %1014 = vmatpush1.xpose.msra.mxu0 0.0
  %1015 = vmatprep.subr.mxu0 0.0
  %1016 = vmatpush1.xpose.msra.mxu0 0.0
  %1017 = vmatprep.subr.mxu0 0.0
  %1018 = vmatpush1.xpose.msra.mxu0 0.0
  %1019 = vmatprep.subr.mxu0 0.0
  %1020 = vmatpush1.xpose.msra.mxu0 0.0
  %1021 = vmatprep.subr.mxu0 0.0
  %1022 = vmatpush1.xpose.msra.mxu0 0.0
  %1023 = vmatprep.subr.mxu0 0.0
  %1024 = vmatpush1.xpose.msra.mxu0 0.0
  %1025 = vmatprep.subr.mxu0 0.0
  %1026 = vmatpush1.xpose.msra.mxu0 0.0
  %1027 = vmatprep.subr.mxu0 0.0
  %1028 = vmatpush1.xpose.msra.mxu0 0.0
  %1029 = vmatprep.subr.mxu0 0.0
  %1030 = vmatpush1.xpose.msra.mxu0 0.0
  %1031 = vmatprep.subr.mxu0 0.0
  %1032 = vmatpush1.xpose.msra.mxu0 0.0
  %1033 = vmatprep.subr.mxu0 0.0
  %1034 = vmatpush1.xpose.msra.mxu0 0.0
  %1035 = vmatprep.subr.mxu0 0.0
  %1036 = vmatpush1.xpose.msra.mxu0 0.0
  %1037 = vmatprep.subr.mxu0 0.0
  %1038 = vmatpush1.xpose.msra.mxu0 0.0
  %1039 = vmatprep.subr.mxu0 0.0
  %1040 = vmatpush1.xpose.msra.mxu0 0.0
  %1041 = vmatprep.subr.mxu0 0.0
  %1042 = vmatpush1.xpose.msra.mxu0 0.0
  %1043 = vmatprep.subr.mxu0 0.0
  %1044 = vmatpush1.xpose.msra.mxu0 0.0
  %1045 = vmatprep.subr.mxu0 0.0
  %1046 = vmatpush1.xpose.msra.mxu0 0.0
  %1047 = vmatprep.subr.mxu0 0.0
  %1048 = vmatpush1.xpose.msra.mxu0 0.0
  %1049 = vmatprep.subr.mxu0 0.0
  %1050 = vmatpush1.xpose.msra.mxu0 0.0
  %1051 = vmatprep.subr.mxu0 0.0
  %1052 = vmatpush1.xpose.msra.mxu0 0.0
  %1053 = vmatprep.subr.mxu0 0.0
  %1054 = vmatpush1.xpose.msra.mxu0 0.0
  %1055 = vmatprep.subr.mxu0 0.0
  %1056 = vmatpush1.xpose.msra.mxu0 0.0
  %1057 = vmatprep.subr.mxu0 0.0
  %1058 = vmatpush1.xpose.msra.mxu0 0.0
  %1059 = vmatprep.mubr.f32.mxu0 0.0
  %1060 = vmatmul.mubr.f32.gmra.mrb[0].mxu0 %v991
  %v1061 = vpop.f32.mrb[0].mxu0
  %v1062 = vadd.f32 0.0, %v1061
  %v1063 = vpop.f32.mrb[0].mxu0
  %1064 = vdwg.mxu0
  %v1065 = vsel %vm389, %v1062, -inf
  %1066 = vmax.xlane.f32.xlu0 %v1065
  %v1067 = vpop.xlane.xlu0 %1066
  %v1068 = vsub.f32 %v1062, %v1067
  %v1069 = vmul.f32 %v1068, 1.442695
  %v1070 = vpow.pop %v1069
  %v1071 = vsel %vm389, %v1070, 0.0
  %1072 = vadd.xlane.f32.xlu0 %v1071
  %v1073 = vpop.xlane.xlu0 %1072
  %v1074 = vrcp.pop %v1073
  %v1075 = vmul.f32 %v1070, %v1074
  %1076 = vrot.lane.b32.xlu0 %v903, 64
  %v1077 = vpop.permute.xlu0 %1076
  %v1079 = vsel %vm401, %v1075, 0
  %v1081 = vsel %vm405, %v1077, 0
  %1083 = vmatprep.subr.mxu0 0.0
  %1084 = vmatpush1.msra.mxu0 %v1081
  %1085 = vmatprep.subr.mxu0 0.0
  %1086 = vmatpush1.msra.mxu0 0.0
  %1087 = vmatprep.subr.mxu0 0.0
  %1088 = vmatpush1.msra.mxu0 0.0
  %1089 = vmatprep.subr.mxu0 0.0
  %1090 = vmatpush1.msra.mxu0 0.0
  %1091 = vmatprep.subr.mxu0 0.0
  %1092 = vmatpush1.msra.mxu0 0.0
  %1093 = vmatprep.subr.mxu0 0.0
  %1094 = vmatpush1.msra.mxu0 0.0
  %1095 = vmatprep.subr.mxu0 0.0
  %1096 = vmatpush1.msra.mxu0 0.0
  %1097 = vmatprep.subr.mxu0 0.0
  %1098 = vmatpush1.msra.mxu0 0.0
  %1099 = vmatprep.subr.mxu0 0.0
  %1100 = vmatpush1.msra.mxu0 0.0
  %1101 = vmatprep.subr.mxu0 0.0
  %1102 = vmatpush1.msra.mxu0 0.0
  %1103 = vmatprep.subr.mxu0 0.0
  %1104 = vmatpush1.msra.mxu0 0.0
  %1105 = vmatprep.subr.mxu0 0.0
  %1106 = vmatpush1.msra.mxu0 0.0
  %1107 = vmatprep.subr.mxu0 0.0
  %1108 = vmatpush1.msra.mxu0 0.0
  %1109 = vmatprep.subr.mxu0 0.0
  %1110 = vmatpush1.msra.mxu0 0.0
  %1111 = vmatprep.subr.mxu0 0.0
  %1112 = vmatpush1.msra.mxu0 0.0
  %1113 = vmatprep.subr.mxu0 0.0
  %1114 = vmatpush1.msra.mxu0 0.0
  %1115 = vmatprep.subr.mxu0 0.0
  %1116 = vmatpush1.msra.mxu0 0.0
  %1117 = vmatprep.subr.mxu0 0.0
  %1118 = vmatpush1.msra.mxu0 0.0
  %1119 = vmatprep.subr.mxu0 0.0
  %1120 = vmatpush1.msra.mxu0 0.0
  %1121 = vmatprep.subr.mxu0 0.0
  %1122 = vmatpush1.msra.mxu0 0.0
  %1123 = vmatprep.subr.mxu0 0.0
  %1124 = vmatpush1.msra.mxu0 0.0
  %1125 = vmatprep.subr.mxu0 0.0
  %1126 = vmatpush1.msra.mxu0 0.0
  %1127 = vmatprep.subr.mxu0 0.0
  %1128 = vmatpush1.msra.mxu0 0.0
  %1129 = vmatprep.subr.mxu0 0.0
  %1130 = vmatpush1.msra.mxu0 0.0
  %1131 = vmatprep.subr.mxu0 0.0
  %1132 = vmatpush1.msra.mxu0 0.0
  %1133 = vmatprep.subr.mxu0 0.0
  %1134 = vmatpush1.msra.mxu0 0.0
  %1135 = vmatprep.subr.mxu0 0.0
  %1136 = vmatpush1.msra.mxu0 0.0
  %1137 = vmatprep.subr.mxu0 0.0
  %1138 = vmatpush1.msra.mxu0 0.0
  %1139 = vmatprep.subr.mxu0 0.0
  %1140 = vmatpush1.msra.mxu0 0.0
  %1141 = vmatprep.subr.mxu0 0.0
  %1142 = vmatpush1.msra.mxu0 0.0
  %1143 = vmatprep.subr.mxu0 0.0
  %1144 = vmatpush1.msra.mxu0 0.0
  %1145 = vmatprep.subr.mxu0 0.0
  %1146 = vmatpush1.msra.mxu0 0.0
  %1147 = vmatprep.mubr.f32.mxu0 0.0
  %1148 = vmatmul.mubr.f32.gmra.mrb[0].mxu0 %v1079
  %v1149 = vpop.f32.mrb[0].mxu0
  %v1150 = vadd.f32 0.0, %v1149
  %v1151 = vpop.f32.mrb[0].mxu0
  %1152 = vdwg.mxu0
  %v1153 = vld [vmem:[%s7 + $0x40] sm:$0xff]
  %v1154 = vld [vmem:[%s7 + $0x48] sm:$0xff]
  %v1155 = vld [vmem:[%s7 + $0x50] sm:$0xff]
  %v1156 = vld [vmem:[%s7 + $0x58] sm:$0xff]
  %v1157 = vld [vmem:[%s7 + $0x60] sm:$0xff]
  %v1158 = vld [vmem:[%s7 + $0x68] sm:$0xff]
  %v1159 = vld [vmem:[%s7 + $0x70] sm:$0xff]
  %v1160 = vld [vmem:[%s7 + $0x78] sm:$0xff]
  %v1162 = vsel %vm312, %v1150, 0
  %1164 = vmatprep.subr.mxu0 0.0
  %1165 = vmatpush1.msra.mxu0 %v1153
  %1166 = vmatprep.subr.mxu0 0.0
  %1167 = vmatpush1.msra.mxu0 %v1154
  %1168 = vmatprep.subr.mxu0 0.0
  %1169 = vmatpush1.msra.mxu0 %v1155
  %1170 = vmatprep.subr.mxu0 0.0
  %1171 = vmatpush1.msra.mxu0 %v1156
  %1172 = vmatprep.subr.mxu0 0.0
  %1173 = vmatpush1.msra.mxu0 %v1157
  %1174 = vmatprep.subr.mxu0 0.0
  %1175 = vmatpush1.msra.mxu0 %v1158
  %1176 = vmatprep.subr.mxu0 0.0
  %1177 = vmatpush1.msra.mxu0 %v1159
  %1178 = vmatprep.subr.mxu0 0.0
  %1179 = vmatpush1.msra.mxu0 %v1160
  %1180 = vmatprep.subr.mxu0 0.0
  %1181 = vmatpush1.msra.mxu0 0.0
  %1182 = vmatprep.subr.mxu0 0.0
  %1183 = vmatpush1.msra.mxu0 0.0
  %1184 = vmatprep.subr.mxu0 0.0
  %1185 = vmatpush1.msra.mxu0 0.0
  %1186 = vmatprep.subr.mxu0 0.0
  %1187 = vmatpush1.msra.mxu0 0.0
  %1188 = vmatprep.subr.mxu0 0.0
  %1189 = vmatpush1.msra.mxu0 0.0
  %1190 = vmatprep.subr.mxu0 0.0
  %1191 = vmatpush1.msra.mxu0 0.0
  %1192 = vmatprep.subr.mxu0 0.0
  %1193 = vmatpush1.msra.mxu0 0.0
  %1194 = vmatprep.subr.mxu0 0.0
  %1195 = vmatpush1.msra.mxu0 0.0
  %1196 = vmatprep.subr.mxu0 0.0
  %1197 = vmatpush1.msra.mxu0 0.0
  %1198 = vmatprep.subr.mxu0 0.0
  %1199 = vmatpush1.msra.mxu0 0.0
  %1200 = vmatprep.subr.mxu0 0.0
  %1201 = vmatpush1.msra.mxu0 0.0
  %1202 = vmatprep.subr.mxu0 0.0
  %1203 = vmatpush1.msra.mxu0 0.0
  %1204 = vmatprep.subr.mxu0 0.0
  %1205 = vmatpush1.msra.mxu0 0.0
  %1206 = vmatprep.subr.mxu0 0.0
  %1207 = vmatpush1.msra.mxu0 0.0
  %1208 = vmatprep.subr.mxu0 0.0
  %1209 = vmatpush1.msra.mxu0 0.0
  %1210 = vmatprep.subr.mxu0 0.0
  %1211 = vmatpush1.msra.mxu0 0.0
  %1212 = vmatprep.subr.mxu0 0.0
  %1213 = vmatpush1.msra.mxu0 0.0
  %1214 = vmatprep.subr.mxu0 0.0
  %1215 = vmatpush1.msra.mxu0 0.0
  %1216 = vmatprep.subr.mxu0 0.0
  %1217 = vmatpush1.msra.mxu0 0.0
  %1218 = vmatprep.subr.mxu0 0.0
  %1219 = vmatpush1.msra.mxu0 0.0
  %1220 = vmatprep.subr.mxu0 0.0
  %1221 = vmatpush1.msra.mxu0 0.0
  %1222 = vmatprep.subr.mxu0 0.0
  %1223 = vmatpush1.msra.mxu0 0.0
  %1224 = vmatprep.subr.mxu0 0.0
  %1225 = vmatpush1.msra.mxu0 0.0
  %1226 = vmatprep.subr.mxu0 0.0
  %1227 = vmatpush1.msra.mxu0 0.0
  %1228 = vmatprep.mubr.f32.mxu0 0.0
  %1229 = vmatmul.mubr.f32.gmra.mrb[0].mxu0 %v1162
  %v1230 = vpop.f32.mrb[0].mxu0
  %v1231 = vadd.f32 0.0, %v1230
  %v1232 = vpop.f32.mrb[0].mxu0
  %1233 = vdwg.mxu0
  %v1235 = vsel %vm312, %v976, 0
  %1237 = vmatprep.subr.mxu0 0.0
  %1238 = vmatpush1.msra.mxu0 %v979
  %1239 = vmatprep.subr.mxu0 0.0
  %1240 = vmatpush1.msra.mxu0 %v980
  %1241 = vmatprep.subr.mxu0 0.0
  %1242 = vmatpush1.msra.mxu0 %v981
  %1243 = vmatprep.subr.mxu0 0.0
  %1244 = vmatpush1.msra.mxu0 %v982
  %1245 = vmatprep.subr.mxu0 0.0
  %1246 = vmatpush1.msra.mxu0 %v983
  %1247 = vmatprep.subr.mxu0 0.0
  %1248 = vmatpush1.msra.mxu0 %v984
  %1249 = vmatprep.subr.mxu0 0.0
  %1250 = vmatpush1.msra.mxu0 %v985
  %1251 = vmatprep.subr.mxu0 0.0
  %1252 = vmatpush1.msra.mxu0 %v986
  %1253 = vmatprep.subr.mxu0 0.0
  %1254 = vmatpush1.msra.mxu0 0.0
  %1255 = vmatprep.subr.mxu0 0.0
  %1256 = vmatpush1.msra.mxu0 0.0
  %1257 = vmatprep.subr.mxu0 0.0
  %1258 = vmatpush1.msra.mxu0 0.0
  %1259 = vmatprep.subr.mxu0 0.0
  %1260 = vmatpush1.msra.mxu0 0.0
  %1261 = vmatprep.subr.mxu0 0.0
  %1262 = vmatpush1.msra.mxu0 0.0
  %1263 = vmatprep.subr.mxu0 0.0
  %1264 = vmatpush1.msra.mxu0 0.0
  %1265 = vmatprep.subr.mxu0 0.0
  %1266 = vmatpush1.msra.mxu0 0.0
  %1267 = vmatprep.subr.mxu0 0.0
  %1268 = vmatpush1.msra.mxu0 0.0
  %1269 = vmatprep.subr.mxu0 0.0
  %1270 = vmatpush1.msra.mxu0 0.0
  %1271 = vmatprep.subr.mxu0 0.0
  %1272 = vmatpush1.msra.mxu0 0.0
  %1273 = vmatprep.subr.mxu0 0.0
  %1274 = vmatpush1.msra.mxu0 0.0
  %1275 = vmatprep.subr.mxu0 0.0
  %1276 = vmatpush1.msra.mxu0 0.0
  %1277 = vmatprep.subr.mxu0 0.0
  %1278 = vmatpush1.msra.mxu0 0.0
  %1279 = vmatprep.subr.mxu0 0.0
  %1280 = vmatpush1.msra.mxu0 0.0
  %1281 = vmatprep.subr.mxu0 0.0
  %1282 = vmatpush1.msra.mxu0 0.0
  %1283 = vmatprep.subr.mxu0 0.0
  %1284 = vmatpush1.msra.mxu0 0.0
  %1285 = vmatprep.subr.mxu0 0.0
  %1286 = vmatpush1.msra.mxu0 0.0
  %1287 = vmatprep.subr.mxu0 0.0
  %1288 = vmatpush1.msra.mxu0 0.0
  %1289 = vmatprep.subr.mxu0 0.0
  %1290 = vmatpush1.msra.mxu0 0.0
  %1291 = vmatprep.subr.mxu0 0.0
  %1292 = vmatpush1.msra.mxu0 0.0
  %1293 = vmatprep.subr.mxu0 0.0
  %1294 = vmatpush1.msra.mxu0 0.0
  %1295 = vmatprep.subr.mxu0 0.0
  %1296 = vmatpush1.msra.mxu0 0.0
  %1297 = vmatprep.subr.mxu0 0.0
  %1298 = vmatpush1.msra.mxu0 0.0
  %1299 = vmatprep.subr.mxu0 0.0
  %1300 = vmatpush1.msra.mxu0 0.0
  %1301 = vmatprep.mubr.f32.mxu0 0.0
  %1302 = vmatmul.mubr.f32.gmra.mrb[0].mxu0 %v1235
  %v1303 = vpop.f32.mrb[0].mxu0
  %v1304 = vadd.f32 %v1231, %v1303
  %v1305 = vpop.f32.mrb[0].mxu0
  %1306 = vdwg.mxu0
  %v1307 = vld [vmem:[%s8] sm:$0x1]
  %v1309 = vlaneseq
  %v1310 = vshrl.u32 %v1309, 7
  %v1311 = vsub.s32 0, %v1310
  %v1312 = vrot.slane %v1307, %v1311
  %v1314 = vadd.f32 %v1304, %v1312
  %1315 = vst [vmem:[%s9 + $0x3] sm:$0x7] %v1314
  // Predicated region
  $region38: #{_lambda_.8} parent=0 // pred_check
    _
  $region39: #{_lambda_.8} parent=0 // pred_check_branch
    %1317 = sbr.rel (0) target = $region41
  $region40: #{_lambda_.8} parent=0 // pred_region
    _
  $region41: #{_lambda_.8} parent=0 // pred_fallthru
    _
  // Predicated region
  $region42: #{_lambda_.8} parent=0 // pred_check
    _
  $region43: #{_lambda_.8} parent=0 // pred_check_branch
    %1319 = sbr.rel (0) target = $region45
  $region44: #{_lambda_.8} parent=0 // pred_region
    _
  $region45: #{_lambda_.8} parent=0 // pred_fallthru
    _

// kernel: _lambda_.9
$region0: #{_lambda_.9}
  #allocation0 [shape = 'u32[]', space=smem, size = 0x4, offset = 0x4, fixed_abs, tag = 'smem constant byte address 0x4 - core index']
  #allocation1 [shape = 'u32[144,128]{1,0:T(1,128)}', space=vmem, size = 0x12000, scoped, tag = 'internal scratch']
  #allocation2 [shape = 'f32[1,1]{1,0:T(1,128)S(1)}', space=vmem, size = 0x200, scoped, tag = 'scoped memory for _lambda_.9']
  %s0 = inlined_call_operand.vmem [shape: f32[2,384], index: 0, kind: input, shape index: {}]
  %s1 = inlined_call_operand.vmem [shape: f32[384,128], index: 1, kind: input, shape index: {}]
  %s2 = inlined_call_operand.vmem [shape: f32[1,128], index: 2, kind: input, shape index: {}]
  %s3 = inlined_call_operand.vmem [shape: f32[128,32], index: 3, kind: input, shape index: {}]
  %s4 = inlined_call_operand.vmem [shape: f32[1,32], index: 4, kind: input, shape index: {}]
  %s5 = inlined_call_operand.vmem [shape: f32[32,1], index: 5, kind: input, shape index: {}]
  %s6 = inlined_call_operand.<no memory space> [shape: f32[1,1], index: 6, kind: input, shape index: {}]
  %s7 = inlined_call_operand.vmem [shape: f32[2,1], index: 7, kind: output, shape index: {}]
  %s8 = sld [smem:[#allocation0]]
  $region38: #{_lambda_.9} parent=0
    _
  %s10 = ssub.s32 1, %s8
  %s11 = scalar_select 0, %s10, %s8
  %v12 = vstv %s6
  %13 = vst [vmem:[#allocation2] sm:$0x1] %v12
  // Predicated region
  $region2: #{_lambda_.9} parent=0 // pred_check
    _
  $region3: #{_lambda_.9} parent=0 // pred_check_branch
    %15 = sbr.rel (0) target = $region5
  $region4: #{_lambda_.9} parent=0 // pred_region
    _
  $region5: #{_lambda_.9} parent=0 // pred_fallthru
    _
  // Predicated region
  $region6: #{_lambda_.9} parent=0 // pred_check
    _
  $region7: #{_lambda_.9} parent=0 // pred_check_branch
    %17 = sbr.rel (0) target = $region9
  $region8: #{_lambda_.9} parent=0 // pred_region
    _
  $region9: #{_lambda_.9} parent=0 // pred_fallthru
    _
  // Predicated region
  $region10: #{_lambda_.9} parent=0 // pred_check
    _
  $region11: #{_lambda_.9} parent=0 // pred_check_branch
    %19 = sbr.rel (0) target = $region13
  $region12: #{_lambda_.9} parent=0 // pred_region
    _
  $region13: #{_lambda_.9} parent=0 // pred_fallthru
    _
  // Predicated region
  $region14: #{_lambda_.9} parent=0 // pred_check
    _
  $region15: #{_lambda_.9} parent=0 // pred_check_branch
    %21 = sbr.rel (0) target = $region17
  $region16: #{_lambda_.9} parent=0 // pred_region
    _
  $region17: #{_lambda_.9} parent=0 // pred_fallthru
    _
  // Predicated region
  $region18: #{_lambda_.9} parent=0 // pred_check
    _
  $region19: #{_lambda_.9} parent=0 // pred_check_branch
    %23 = sbr.rel (0) target = $region21
  $region20: #{_lambda_.9} parent=0 // pred_region
    _
  $region21: #{_lambda_.9} parent=0 // pred_fallthru
    _
  // Predicated region
  $region22: #{_lambda_.9} parent=0 // pred_check
    _
  $region23: #{_lambda_.9} parent=0 // pred_check_branch
    %25 = sbr.rel (0) target = $region25
  $region24: #{_lambda_.9} parent=0 // pred_region
    _
  $region25: #{_lambda_.9} parent=0 // pred_fallthru
    _
  // Predicated region
  $region26: #{_lambda_.9} parent=0 // pred_check
    _
  $region27: #{_lambda_.9} parent=0 // pred_check_branch
    %27 = sbr.rel (0) target = $region29
  $region28: #{_lambda_.9} parent=0 // pred_region
    _
  $region29: #{_lambda_.9} parent=0 // pred_fallthru
    _
  %v28 = vld [vmem:[%s0] sm:$0x3f]
  %v29 = vld [vmem:[%s1] sm:$0xff]
  %v30 = vld [vmem:[%s1 + $0x8] sm:$0xff]
  %v31 = vld [vmem:[%s1 + $0x10] sm:$0xff]
  %v32 = vld [vmem:[%s1 + $0x18] sm:$0xff]
  %v33 = vld [vmem:[%s1 + $0x20] sm:$0xff]
  %v34 = vld [vmem:[%s1 + $0x28] sm:$0xff]
  %v35 = vld [vmem:[%s1 + $0x30] sm:$0xff]
  %v36 = vld [vmem:[%s1 + $0x38] sm:$0xff]
  %v37 = vld [vmem:[%s1 + $0x40] sm:$0xff]
  %v38 = vld [vmem:[%s1 + $0x48] sm:$0xff]
  %v39 = vld [vmem:[%s1 + $0x50] sm:$0xff]
  %v40 = vld [vmem:[%s1 + $0x58] sm:$0xff]
  %v41 = vld [vmem:[%s1 + $0x60] sm:$0xff]
  %v42 = vld [vmem:[%s1 + $0x68] sm:$0xff]
  %v43 = vld [vmem:[%s1 + $0x70] sm:$0xff]
  %v44 = vld [vmem:[%s1 + $0x78] sm:$0xff]
  %v45 = vld [vmem:[%s1 + $0x80] sm:$0xff]
  %v46 = vld [vmem:[%s1 + $0x88] sm:$0xff]
  %v47 = vld [vmem:[%s1 + $0x90] sm:$0xff]
  %v48 = vld [vmem:[%s1 + $0x98] sm:$0xff]
  %v49 = vld [vmem:[%s1 + $0xa0] sm:$0xff]
  %v50 = vld [vmem:[%s1 + $0xa8] sm:$0xff]
  %v51 = vld [vmem:[%s1 + $0xb0] sm:$0xff]
  %v52 = vld [vmem:[%s1 + $0xb8] sm:$0xff]
  %v53 = vld [vmem:[%s1 + $0xc0] sm:$0xff]
  %v54 = vld [vmem:[%s1 + $0xc8] sm:$0xff]
  %v55 = vld [vmem:[%s1 + $0xd0] sm:$0xff]
  %v56 = vld [vmem:[%s1 + $0xd8] sm:$0xff]
  %v57 = vld [vmem:[%s1 + $0xe0] sm:$0xff]
  %v58 = vld [vmem:[%s1 + $0xe8] sm:$0xff]
  %v59 = vld [vmem:[%s1 + $0xf0] sm:$0xff]
  %v60 = vld [vmem:[%s1 + $0xf8] sm:$0xff]
  %v61 = vld [vmem:[%s1 + $0x100] sm:$0xff]
  %v62 = vld [vmem:[%s1 + $0x108] sm:$0xff]
  %v63 = vld [vmem:[%s1 + $0x110] sm:$0xff]
  %v64 = vld [vmem:[%s1 + $0x118] sm:$0xff]
  %v65 = vld [vmem:[%s1 + $0x120] sm:$0xff]
  %v66 = vld [vmem:[%s1 + $0x128] sm:$0xff]
  %v67 = vld [vmem:[%s1 + $0x130] sm:$0xff]
  %v68 = vld [vmem:[%s1 + $0x138] sm:$0xff]
  %v69 = vld [vmem:[%s1 + $0x140] sm:$0xff]
  %v70 = vld [vmem:[%s1 + $0x148] sm:$0xff]
  %v71 = vld [vmem:[%s1 + $0x150] sm:$0xff]
  %v72 = vld [vmem:[%s1 + $0x158] sm:$0xff]
  %v73 = vld [vmem:[%s1 + $0x160] sm:$0xff]
  %v74 = vld [vmem:[%s1 + $0x168] sm:$0xff]
  %v75 = vld [vmem:[%s1 + $0x170] sm:$0xff]
  %v76 = vld [vmem:[%s1 + $0x178] sm:$0xff]
  %v77 = vld [vmem:[%s2] sm:$0x1]
  %v79 = vlaneseq
  %v80 = vshrl.u32 %v79, 7
  %v81 = vsub.s32 0, %v80
  %v82 = vrot.slane %v77, %v81
  %v85 = vcombine.high %v28, %v28
  %v87 = vunpack.c.l.s4 1983009808
  %v88 = vunpack.c.0.s8 %v87
  %v89 = vlaneseq
  %v90 = vshrl.u32 %v89, 7
  %v91 = vsub.s32 %v88, %v90
  %v92 = vrot.slane %v28, %v91
  %v94 = vunpack.c.l.s4 1983009808
  %v95 = vunpack.c.0.s8 %v94
  %v96 = vlaneseq
  %v97 = vshrl.u32 %v96, 7
  %v98 = vsub.s32 %v95, %v97
  %v99 = vrot.slane %v85, %v98
  %v100 = vcombine.high %v92, %v92
  %104 = vmatprep.subr.mxu0 0.0
  %105 = vmatpush1.msra.mxu0 %v29
  %106 = vmatprep.subr.mxu0 0.0
  %107 = vmatpush1.msra.mxu0 %v30
  %108 = vmatprep.subr.mxu0 0.0
  %109 = vmatpush1.msra.mxu0 %v31
  %110 = vmatprep.subr.mxu0 0.0
  %111 = vmatpush1.msra.mxu0 %v32
  %112 = vmatprep.subr.mxu0 0.0
  %113 = vmatpush1.msra.mxu0 %v33
  %114 = vmatprep.subr.mxu0 0.0
  %115 = vmatpush1.msra.mxu0 %v34
  %116 = vmatprep.subr.mxu0 0.0
  %117 = vmatpush1.msra.mxu0 %v35
  %118 = vmatprep.subr.mxu0 0.0
  %119 = vmatpush1.msra.mxu0 %v36
  %120 = vmatprep.subr.mxu0 0.0
  %121 = vmatpush1.msra.mxu0 %v37
  %122 = vmatprep.subr.mxu0 0.0
  %123 = vmatpush1.msra.mxu0 %v38
  %124 = vmatprep.subr.mxu0 0.0
  %125 = vmatpush1.msra.mxu0 %v39
  %126 = vmatprep.subr.mxu0 0.0
  %127 = vmatpush1.msra.mxu0 %v40
  %128 = vmatprep.subr.mxu0 0.0
  %129 = vmatpush1.msra.mxu0 %v41
  %130 = vmatprep.subr.mxu0 0.0
  %131 = vmatpush1.msra.mxu0 %v42
  %132 = vmatprep.subr.mxu0 0.0
  %133 = vmatpush1.msra.mxu0 %v43
  %134 = vmatprep.subr.mxu0 0.0
  %135 = vmatpush1.msra.mxu0 %v44
  %136 = vmatprep.subr.mxu0 0.0
  %137 = vmatpush1.msra.mxu0 %v45
  %138 = vmatprep.subr.mxu0 0.0
  %139 = vmatpush1.msra.mxu0 %v46
  %140 = vmatprep.subr.mxu0 0.0
  %141 = vmatpush1.msra.mxu0 %v47
  %142 = vmatprep.subr.mxu0 0.0
  %143 = vmatpush1.msra.mxu0 %v48
  %144 = vmatprep.subr.mxu0 0.0
  %145 = vmatpush1.msra.mxu0 %v49
  %146 = vmatprep.subr.mxu0 0.0
  %147 = vmatpush1.msra.mxu0 %v50
  %148 = vmatprep.subr.mxu0 0.0
  %149 = vmatpush1.msra.mxu0 %v51
  %150 = vmatprep.subr.mxu0 0.0
  %151 = vmatpush1.msra.mxu0 %v52
  %152 = vmatprep.subr.mxu0 0.0
  %153 = vmatpush1.msra.mxu0 %v53
  %154 = vmatprep.subr.mxu0 0.0
  %155 = vmatpush1.msra.mxu0 %v54
  %156 = vmatprep.subr.mxu0 0.0
  %157 = vmatpush1.msra.mxu0 %v55
  %158 = vmatprep.subr.mxu0 0.0
  %159 = vmatpush1.msra.mxu0 %v56
  %160 = vmatprep.subr.mxu0 0.0
  %161 = vmatpush1.msra.mxu0 %v57
  %162 = vmatprep.subr.mxu0 0.0
  %163 = vmatpush1.msra.mxu0 %v58
  %164 = vmatprep.subr.mxu0 0.0
  %165 = vmatpush1.msra.mxu0 %v59
  %166 = vmatprep.subr.mxu0 0.0
  %167 = vmatpush1.msra.mxu0 %v60
  %168 = vmatprep.mubr.f32.mxu0 %v100
  %169 = vmatmul.mubr.f32.gmra.mrb[0].mxu0 %v92
  %v170 = vpop.f32.mrb[0].mxu0
  %v171 = vadd.f32 %v82, %v170
  %v172 = vpop.f32.mrb[0].mxu0
  %173 = vdwg.mxu0
  %174 = vmatprep.subr.mxu0 0.0
  %175 = vmatpush1.msra.mxu0 %v61
  %176 = vmatprep.subr.mxu0 0.0
  %177 = vmatpush1.msra.mxu0 %v62
  %178 = vmatprep.subr.mxu0 0.0
  %179 = vmatpush1.msra.mxu0 %v63
  %180 = vmatprep.subr.mxu0 0.0
  %181 = vmatpush1.msra.mxu0 %v64
  %182 = vmatprep.subr.mxu0 0.0
  %183 = vmatpush1.msra.mxu0 %v65
  %184 = vmatprep.subr.mxu0 0.0
  %185 = vmatpush1.msra.mxu0 %v66
  %186 = vmatprep.subr.mxu0 0.0
  %187 = vmatpush1.msra.mxu0 %v67
  %188 = vmatprep.subr.mxu0 0.0
  %189 = vmatpush1.msra.mxu0 %v68
  %190 = vmatprep.subr.mxu0 0.0
  %191 = vmatpush1.msra.mxu0 %v69
  %192 = vmatprep.subr.mxu0 0.0
  %193 = vmatpush1.msra.mxu0 %v70
  %194 = vmatprep.subr.mxu0 0.0
  %195 = vmatpush1.msra.mxu0 %v71
  %196 = vmatprep.subr.mxu0 0.0
  %197 = vmatpush1.msra.mxu0 %v72
  %198 = vmatprep.subr.mxu0 0.0
  %199 = vmatpush1.msra.mxu0 %v73
  %200 = vmatprep.subr.mxu0 0.0
  %201 = vmatpush1.msra.mxu0 %v74
  %202 = vmatprep.subr.mxu0 0.0
  %203 = vmatpush1.msra.mxu0 %v75
  %204 = vmatprep.subr.mxu0 0.0
  %205 = vmatpush1.msra.mxu0 %v76
  %206 = vmatprep.subr.mxu0 0.0
  %207 = vmatpush1.msra.mxu0 0.0
  %208 = vmatprep.subr.mxu0 0.0
  %209 = vmatpush1.msra.mxu0 0.0
  %210 = vmatprep.subr.mxu0 0.0
  %211 = vmatpush1.msra.mxu0 0.0
  %212 = vmatprep.subr.mxu0 0.0
  %213 = vmatpush1.msra.mxu0 0.0
  %214 = vmatprep.subr.mxu0 0.0
  %215 = vmatpush1.msra.mxu0 0.0
  %216 = vmatprep.subr.mxu0 0.0
  %217 = vmatpush1.msra.mxu0 0.0
  %218 = vmatprep.subr.mxu0 0.0
  %219 = vmatpush1.msra.mxu0 0.0
  %220 = vmatprep.subr.mxu0 0.0
  %221 = vmatpush1.msra.mxu0 0.0
  %222 = vmatprep.subr.mxu0 0.0
  %223 = vmatpush1.msra.mxu0 0.0
  %224 = vmatprep.subr.mxu0 0.0
  %225 = vmatpush1.msra.mxu0 0.0
  %226 = vmatprep.subr.mxu0 0.0
  %227 = vmatpush1.msra.mxu0 0.0
  %228 = vmatprep.subr.mxu0 0.0
  %229 = vmatpush1.msra.mxu0 0.0
  %230 = vmatprep.subr.mxu0 0.0
  %231 = vmatpush1.msra.mxu0 0.0
  %232 = vmatprep.subr.mxu0 0.0
  %233 = vmatpush1.msra.mxu0 0.0
  %234 = vmatprep.subr.mxu0 0.0
  %235 = vmatpush1.msra.mxu0 0.0
  %236 = vmatprep.subr.mxu0 0.0
  %237 = vmatpush1.msra.mxu0 0.0
  %238 = vmatprep.mubr.f32.mxu0 0.0
  %239 = vmatmul.mubr.f32.gmra.mrb[0].mxu0 %v99
  %v240 = vpop.f32.mrb[0].mxu0
  %v241 = vadd.f32 %v171, %v240
  %v242 = vpop.f32.mrb[0].mxu0
  %243 = vdwg.mxu0
  %v244 = vld [vmem:[%s3] sm:$0xff]
  %v245 = vld [vmem:[%s3 + $0x8] sm:$0xff]
  %v246 = vld [vmem:[%s3 + $0x10] sm:$0xff]
  %v247 = vld [vmem:[%s3 + $0x18] sm:$0xff]
  %v248 = vld [vmem:[%s3 + $0x20] sm:$0xff]
  %v249 = vld [vmem:[%s3 + $0x28] sm:$0xff]
  %v250 = vld [vmem:[%s3 + $0x30] sm:$0xff]
  %v251 = vld [vmem:[%s3 + $0x38] sm:$0xff]
  %v252 = vld [vmem:[%s3 + $0x40] sm:$0xff]
  %v253 = vld [vmem:[%s3 + $0x48] sm:$0xff]
  %v254 = vld [vmem:[%s3 + $0x50] sm:$0xff]
  %v255 = vld [vmem:[%s3 + $0x58] sm:$0xff]
  %v256 = vld [vmem:[%s3 + $0x60] sm:$0xff]
  %v257 = vld [vmem:[%s3 + $0x68] sm:$0xff]
  %v258 = vld [vmem:[%s3 + $0x70] sm:$0xff]
  %v259 = vld [vmem:[%s3 + $0x78] sm:$0xff]
  %v260 = vld [vmem:[%s4] sm:$0x1]
  %v262 = vlaneseq
  %v263 = vshrl.u32 %v262, 7
  %v264 = vsub.s32 0, %v263
  %v265 = vrot.slane %v260, %v264
  %267 = vmatprep.subr.mxu0 0.0
  %268 = vmatpush1.msra.mxu0 %v244
  %269 = vmatprep.subr.mxu0 0.0
  %270 = vmatpush1.msra.mxu0 %v245
  %271 = vmatprep.subr.mxu0 0.0
  %272 = vmatpush1.msra.mxu0 %v246
  %273 = vmatprep.subr.mxu0 0.0
  %274 = vmatpush1.msra.mxu0 %v247
  %275 = vmatprep.subr.mxu0 0.0
  %276 = vmatpush1.msra.mxu0 %v248
  %277 = vmatprep.subr.mxu0 0.0
  %278 = vmatpush1.msra.mxu0 %v249
  %279 = vmatprep.subr.mxu0 0.0
  %280 = vmatpush1.msra.mxu0 %v250
  %281 = vmatprep.subr.mxu0 0.0
  %282 = vmatpush1.msra.mxu0 %v251
  %283 = vmatprep.subr.mxu0 0.0
  %284 = vmatpush1.msra.mxu0 %v252
  %285 = vmatprep.subr.mxu0 0.0
  %286 = vmatpush1.msra.mxu0 %v253
  %287 = vmatprep.subr.mxu0 0.0
  %288 = vmatpush1.msra.mxu0 %v254
  %289 = vmatprep.subr.mxu0 0.0
  %290 = vmatpush1.msra.mxu0 %v255
  %291 = vmatprep.subr.mxu0 0.0
  %292 = vmatpush1.msra.mxu0 %v256
  %293 = vmatprep.subr.mxu0 0.0
  %294 = vmatpush1.msra.mxu0 %v257
  %295 = vmatprep.subr.mxu0 0.0
  %296 = vmatpush1.msra.mxu0 %v258
  %297 = vmatprep.subr.mxu0 0.0
  %298 = vmatpush1.msra.mxu0 %v259
  %299 = vmatprep.subr.mxu0 0.0
  %300 = vmatpush1.msra.mxu0 0.0
  %301 = vmatprep.subr.mxu0 0.0
  %302 = vmatpush1.msra.mxu0 0.0
  %303 = vmatprep.subr.mxu0 0.0
  %304 = vmatpush1.msra.mxu0 0.0
  %305 = vmatprep.subr.mxu0 0.0
  %306 = vmatpush1.msra.mxu0 0.0
  %307 = vmatprep.subr.mxu0 0.0
  %308 = vmatpush1.msra.mxu0 0.0
  %309 = vmatprep.subr.mxu0 0.0
  %310 = vmatpush1.msra.mxu0 0.0
  %311 = vmatprep.subr.mxu0 0.0
  %312 = vmatpush1.msra.mxu0 0.0
  %313 = vmatprep.subr.mxu0 0.0
  %314 = vmatpush1.msra.mxu0 0.0
  %315 = vmatprep.subr.mxu0 0.0
  %316 = vmatpush1.msra.mxu0 0.0
  %317 = vmatprep.subr.mxu0 0.0
  %318 = vmatpush1.msra.mxu0 0.0
  %319 = vmatprep.subr.mxu0 0.0
  %320 = vmatpush1.msra.mxu0 0.0
  %321 = vmatprep.subr.mxu0 0.0
  %322 = vmatpush1.msra.mxu0 0.0
  %323 = vmatprep.subr.mxu0 0.0
  %324 = vmatpush1.msra.mxu0 0.0
  %325 = vmatprep.subr.mxu0 0.0
  %326 = vmatpush1.msra.mxu0 0.0
  %327 = vmatprep.subr.mxu0 0.0
  %328 = vmatpush1.msra.mxu0 0.0
  %329 = vmatprep.subr.mxu0 0.0
  %330 = vmatpush1.msra.mxu0 0.0
  %331 = vmatprep.mubr.f32.mxu0 0.0
  %332 = vmatmul.mubr.f32.gmra.mrb[0].mxu0 %v241
  %v333 = vpop.f32.mrb[0].mxu0
  %v334 = vadd.f32 %v265, %v333
  %v335 = vpop.f32.mrb[0].mxu0
  %336 = vdwg.mxu0
  %v337 = vld [vmem:[%s5] sm:$0xff]
  %v338 = vld [vmem:[%s5 + $0x8] sm:$0xff]
  %v339 = vld [vmem:[%s5 + $0x10] sm:$0xff]
  %v340 = vld [vmem:[%s5 + $0x18] sm:$0xff]
  %v341 = vld [vmem:[#allocation2] sm:$0x1]
  %v343 = vlaneseq
  %v344 = vshrl.u32 %v343, 7
  %v345 = vsub.s32 0, %v344
  %v346 = vrot.slane %v341, %v345
  %vm348 = vcmask 261120
  %v350 = vsel %vm348, %v334, 0
  %352 = vmatprep.subr.mxu0 0.0
  %353 = vmatpush1.msra.mxu0 %v337
  %354 = vmatprep.subr.mxu0 0.0
  %355 = vmatpush1.msra.mxu0 %v338
  %356 = vmatprep.subr.mxu0 0.0
  %357 = vmatpush1.msra.mxu0 %v339
  %358 = vmatprep.subr.mxu0 0.0
  %359 = vmatpush1.msra.mxu0 %v340
  %360 = vmatprep.subr.mxu0 0.0
  %361 = vmatpush1.msra.mxu0 0.0
  %362 = vmatprep.subr.mxu0 0.0
  %363 = vmatpush1.msra.mxu0 0.0
  %364 = vmatprep.subr.mxu0 0.0
  %365 = vmatpush1.msra.mxu0 0.0
  %366 = vmatprep.subr.mxu0 0.0
  %367 = vmatpush1.msra.mxu0 0.0
  %368 = vmatprep.subr.mxu0 0.0
  %369 = vmatpush1.msra.mxu0 0.0
  %370 = vmatprep.subr.mxu0 0.0
  %371 = vmatpush1.msra.mxu0 0.0
  %372 = vmatprep.subr.mxu0 0.0
  %373 = vmatpush1.msra.mxu0 0.0
  %374 = vmatprep.subr.mxu0 0.0
  %375 = vmatpush1.msra.mxu0 0.0
  %376 = vmatprep.subr.mxu0 0.0
  %377 = vmatpush1.msra.mxu0 0.0
  %378 = vmatprep.subr.mxu0 0.0
  %379 = vmatpush1.msra.mxu0 0.0
  %380 = vmatprep.subr.mxu0 0.0
  %381 = vmatpush1.msra.mxu0 0.0
  %382 = vmatprep.subr.mxu0 0.0
  %383 = vmatpush1.msra.mxu0 0.0
  %384 = vmatprep.subr.mxu0 0.0
  %385 = vmatpush1.msra.mxu0 0.0
  %386 = vmatprep.subr.mxu0 0.0
  %387 = vmatpush1.msra.mxu0 0.0
  %388 = vmatprep.subr.mxu0 0.0
  %389 = vmatpush1.msra.mxu0 0.0
  %390 = vmatprep.subr.mxu0 0.0
  %391 = vmatpush1.msra.mxu0 0.0
  %392 = vmatprep.subr.mxu0 0.0
  %393 = vmatpush1.msra.mxu0 0.0
  %394 = vmatprep.subr.mxu0 0.0
  %395 = vmatpush1.msra.mxu0 0.0
  %396 = vmatprep.subr.mxu0 0.0
  %397 = vmatpush1.msra.mxu0 0.0
  %398 = vmatprep.subr.mxu0 0.0
  %399 = vmatpush1.msra.mxu0 0.0
  %400 = vmatprep.subr.mxu0 0.0
  %401 = vmatpush1.msra.mxu0 0.0
  %402 = vmatprep.subr.mxu0 0.0
  %403 = vmatpush1.msra.mxu0 0.0
  %404 = vmatprep.subr.mxu0 0.0
  %405 = vmatpush1.msra.mxu0 0.0
  %406 = vmatprep.subr.mxu0 0.0
  %407 = vmatpush1.msra.mxu0 0.0
  %408 = vmatprep.subr.mxu0 0.0
  %409 = vmatpush1.msra.mxu0 0.0
  %410 = vmatprep.subr.mxu0 0.0
  %411 = vmatpush1.msra.mxu0 0.0
  %412 = vmatprep.subr.mxu0 0.0
  %413 = vmatpush1.msra.mxu0 0.0
  %414 = vmatprep.subr.mxu0 0.0
  %415 = vmatpush1.msra.mxu0 0.0
  %416 = vmatprep.mubr.f32.mxu0 0.0
  %417 = vmatmul.mubr.f32.gmra.mrb[0].mxu0 %v350
  %v418 = vpop.f32.mrb[0].mxu0
  %v419 = vadd.f32 %v346, %v418
  %v420 = vpop.f32.mrb[0].mxu0
  %421 = vdwg.mxu0
  %v422 = vxor.u32 %v419, 2147483648
  %v423 = vmul.f32 %v422, 1.442695
  %v424 = vpow.pop %v423
  %v425 = vadd.f32 %v424, 1.0
  %v426 = vrcp.pop %v425
  %v427 = vmul.f32 1.0, %v426
  %vm428 = vcmask 1024
  %429 = vst.msk [vmem:[%s7] sm:$0x3] %vm428, %v427
  // Predicated region
  $region30: #{_lambda_.9} parent=0 // pred_check
    _
  $region31: #{_lambda_.9} parent=0 // pred_check_branch
    %431 = sbr.rel (0) target = $region33
  $region32: #{_lambda_.9} parent=0 // pred_region
    _
  $region33: #{_lambda_.9} parent=0 // pred_fallthru
    _
  // Predicated region
  $region34: #{_lambda_.9} parent=0 // pred_check
    _
  $region35: #{_lambda_.9} parent=0 // pred_check_branch
    %433 = sbr.rel (0) target = $region37
  $region36: #{_lambda_.9} parent=0 // pred_region
    _
  $region37: #{_lambda_.9} parent=0 // pred_fallthru
    _

// kernel: _lambda_.6
$region0: #{_lambda_.6}
  #allocation0 [shape = 'u32[]', space=smem, size = 0x4, offset = 0x4, fixed_abs, tag = 'smem constant byte address 0x4 - core index']
  #allocation1 [shape = 'u32[144,128]{1,0:T(1,128)}', space=vmem, size = 0x12000, scoped, tag = 'internal scratch']
  #allocation2 [shape = 'f32[32,512]{1,0:T(8,128)}', space=vmem, size = 0x10000, scoped, tag = 'scratch operand']
  #allocation3 [shape = 'f32[32,128]{1,0:T(8,128)}', space=vmem, size = 0x4000, scoped, tag = 'scratch operand']
  %s0 = inlined_call_operand.vmem [shape: f32[32,64], index: 0, kind: input, shape index: {}]
  %s1 = inlined_call_operand.vmem [shape: f32[64,512], index: 1, kind: input, shape index: {}]
  %s2 = inlined_call_operand.hbm [shape: f32[128,512], index: 2, kind: input, shape index: {}]
  %s3 = inlined_call_operand.vmem [shape: f32[1,512], index: 3, kind: input, shape index: {}]
  %s4 = inlined_call_operand.hbm [shape: f32[128,512], index: 4, kind: input, shape index: {}]
  %s5 = inlined_call_operand.hbm [shape: f32[128,512], index: 5, kind: input, shape index: {}]
  %s6 = inlined_call_operand.vmem [shape: f32[1,512], index: 6, kind: input, shape index: {}]
  %s7 = inlined_call_operand.vmem [shape: f32[4,128], index: 7, kind: output, shape index: {}]
  %s8 = sld [smem:[#allocation0]]
  $region50: #{_lambda_.6} parent=0
    _
  %s10 = ssub.s32 1, %s8
  %s11 = scalar_select 0, %s10, %s8
  $region1: #{_lambda_.6} parent=0
    #allocation4 [shape = 'u8[262144]{0}', space=vmem, size = 0x40000, scoped, tag = 'input window, operand 2, single buffered']
    #allocation5 [shape = 's32[1]{0}', space=sflag, size = 0x4, scoped, tag = 'scoped memory for _lambda_.6']
    #allocation6 [shape = 'u8[262144]{0}', space=vmem, size = 0x40000, scoped, tag = 'input window, operand 4, single buffered']
    #allocation7 [shape = 's32[1]{0}', space=sflag, size = 0x4, scoped, tag = 'scoped memory for _lambda_.6']
    #allocation8 [shape = 'u8[262144]{0}', space=vmem, size = 0x40000, scoped, tag = 'input window, operand 5, single buffered']
    %12 = vsyncpa [#allocation5], 0
    %13 = vsyncpa [#allocation7], 0
    // Predicated region
    $region2: #{_lambda_.6} parent=1 // pred_check
      _
    $region3: #{_lambda_.6} parent=1 // pred_check_branch
      %15 = sbr.rel (0) target = $region5
    $region4: #{_lambda_.6} parent=1 // pred_region
      _
    $region5: #{_lambda_.6} parent=1 // pred_fallthru
      _
    // Predicated region
    $region6: #{_lambda_.6} parent=1 // pred_check
      _
    $region7: #{_lambda_.6} parent=1 // pred_check_branch
      %17 = sbr.rel (0) target = $region9
    $region8: #{_lambda_.6} parent=1 // pred_region
      _
    $region9: #{_lambda_.6} parent=1 // pred_fallthru
      _
    // Predicated region
    $region10: #{_lambda_.6} parent=1 // pred_check
      _
    $region11: #{_lambda_.6} parent=1 // pred_check_branch
      %19 = sbr.rel (0) target = $region13
    $region12: #{_lambda_.6} parent=1 // pred_region
      %s21 = ssub.s32 8192, 8192
      %22 = vsyncadd [#allocation5], %s21
      %s23 = sshll.u32 [#allocation4], 4
      %s24 = int_to_ptr.vmem [resolvable:$true] %s23
      %29 = dma.hbm_to_vmem [thread:$0]  %s2, 8192, %s24, [#allocation5], 512, 512, 32
    $region13: #{_lambda_.6} parent=1 // pred_fallthru
      _
    // Predicated region
    $region14: #{_lambda_.6} parent=1 // pred_check
      _
    $region15: #{_lambda_.6} parent=1 // pred_check_branch
      %31 = sbr.rel (0) target = $region17
    $region16: #{_lambda_.6} parent=1 // pred_region
      _
    $region17: #{_lambda_.6} parent=1 // pred_fallthru
      _
    // Predicated region
    $region18: #{_lambda_.6} parent=1 // pred_check
      _
    $region19: #{_lambda_.6} parent=1 // pred_check_branch
      %33 = sbr.rel (0) target = $region21
    $region20: #{_lambda_.6} parent=1 // pred_region
      %s35 = ssub.s32 8192, 8192
      %36 = vsyncadd [#allocation7], %s35
      %s37 = sshll.u32 [#allocation6], 4
      %s38 = int_to_ptr.vmem [resolvable:$true] %s37
      %43 = dma.hbm_to_vmem [thread:$0]  %s4, 8192, %s38, [#allocation7], 512, 512, 32
    $region21: #{_lambda_.6} parent=1 // pred_fallthru
      _
    // Predicated region
    $region22: #{_lambda_.6} parent=1 // pred_check
      _
    $region23: #{_lambda_.6} parent=1 // pred_check_branch
      %45 = sbr.rel (0) target = $region25
    $region24: #{_lambda_.6} parent=1 // pred_region
      %s47 = ssub.s32 8192, 8192
      %48 = vsyncadd [#allocation7], %s47
      %s49 = sshll.u32 [#allocation8], 4
      %s50 = int_to_ptr.vmem [resolvable:$true] %s49
      %55 = dma.hbm_to_vmem [thread:$0]  %s5, 8192, %s50, [#allocation7], 512, 512, 32
    $region25: #{_lambda_.6} parent=1 // pred_fallthru
      _
    // Predicated region
    $region26: #{_lambda_.6} parent=1 // pred_check
      _
    $region27: #{_lambda_.6} parent=1 // pred_check_branch
      %57 = sbr.rel (0) target = $region29
    $region28: #{_lambda_.6} parent=1 // pred_region
      _
    $region29: #{_lambda_.6} parent=1 // pred_fallthru
      _
    // Predicated region
    $region30: #{_lambda_.6} parent=1 // pred_check
      _
    $region31: #{_lambda_.6} parent=1 // pred_check_branch
      %59 = sbr.rel (0) target = $region33
    $region32: #{_lambda_.6} parent=1 // pred_region
      %60 = dma.done [#allocation5], 8192
    $region33: #{_lambda_.6} parent=1 // pred_fallthru
      _
    // Predicated region
    $region34: #{_lambda_.6} parent=1 // pred_check
      _
    $region35: #{_lambda_.6} parent=1 // pred_check_branch
      %62 = sbr.rel (0) target = $region37
    $region36: #{_lambda_.6} parent=1 // pred_region
      %63 = dma.done [#allocation7], 8192
    $region37: #{_lambda_.6} parent=1 // pred_fallthru
      _
    // Predicated region
    $region38: #{_lambda_.6} parent=1 // pred_check
      _
    $region39: #{_lambda_.6} parent=1 // pred_check_branch
      %65 = sbr.rel (0) target = $region41
    $region40: #{_lambda_.6} parent=1 // pred_region
      %66 = dma.done [#allocation7], 8192
    $region41: #{_lambda_.6} parent=1 // pred_fallthru
      _
    %v67 = vld [vmem:[%s0] sm:$0xff]
    %v68 = vld [vmem:[%s0 + $0x8] sm:$0xff]
    %v69 = vld [vmem:[%s0 + $0x10] sm:$0xff]
    %v70 = vld [vmem:[%s0 + $0x18] sm:$0xff]
    %v71 = vld [vmem:[%s1] sm:$0xff]
    %v72 = vld [vmem:[%s1 + $0x8] sm:$0xff]
    %v73 = vld [vmem:[%s1 + $0x10] sm:$0xff]
    %v74 = vld [vmem:[%s1 + $0x18] sm:$0xff]
    %v75 = vld [vmem:[%s1 + $0x20] sm:$0xff]
    %v76 = vld [vmem:[%s1 + $0x28] sm:$0xff]
    %v77 = vld [vmem:[%s1 + $0x30] sm:$0xff]
    %v78 = vld [vmem:[%s1 + $0x38] sm:$0xff]
    %v79 = vld [vmem:[%s1 + $0x40] sm:$0xff]
    %v80 = vld [vmem:[%s1 + $0x48] sm:$0xff]
    %v81 = vld [vmem:[%s1 + $0x50] sm:$0xff]
    %v82 = vld [vmem:[%s1 + $0x58] sm:$0xff]
    %v83 = vld [vmem:[%s1 + $0x60] sm:$0xff]
    %v84 = vld [vmem:[%s1 + $0x68] sm:$0xff]
    %v85 = vld [vmem:[%s1 + $0x70] sm:$0xff]
    %v86 = vld [vmem:[%s1 + $0x78] sm:$0xff]
    %v87 = vld [vmem:[%s1 + $0x80] sm:$0xff]
    %v88 = vld [vmem:[%s1 + $0x88] sm:$0xff]
    %v89 = vld [vmem:[%s1 + $0x90] sm:$0xff]
    %v90 = vld [vmem:[%s1 + $0x98] sm:$0xff]
    %v91 = vld [vmem:[%s1 + $0xa0] sm:$0xff]
    %v92 = vld [vmem:[%s1 + $0xa8] sm:$0xff]
    %v93 = vld [vmem:[%s1 + $0xb0] sm:$0xff]
    %v94 = vld [vmem:[%s1 + $0xb8] sm:$0xff]
    %v95 = vld [vmem:[%s1 + $0xc0] sm:$0xff]
    %v96 = vld [vmem:[%s1 + $0xc8] sm:$0xff]
    %v97 = vld [vmem:[%s1 + $0xd0] sm:$0xff]
    %v98 = vld [vmem:[%s1 + $0xd8] sm:$0xff]
    %v99 = vld [vmem:[%s1 + $0xe0] sm:$0xff]
    %v100 = vld [vmem:[%s1 + $0xe8] sm:$0xff]
    %v101 = vld [vmem:[%s1 + $0xf0] sm:$0xff]
    %v102 = vld [vmem:[%s1 + $0xf8] sm:$0xff]
    %v103 = vld [vmem:[%s3] sm:$0xf]
    %v105 = vlaneseq
    %v106 = vshrl.u32 %v105, 7
    %v107 = vsub.s32 0, %v106
    %v108 = vrot.slane %v103, %v107
    %v109 = vlaneseq
    %v110 = vshrl.u32 %v109, 7
    %v111 = vsub.s32 1, %v110
    %v112 = vrot.slane %v103, %v111
    %v113 = vlaneseq
    %v114 = vshrl.u32 %v113, 7
    %v115 = vsub.s32 2, %v114
    %v116 = vrot.slane %v103, %v115
    %v117 = vlaneseq
    %v118 = vshrl.u32 %v117, 7
    %v119 = vsub.s32 3, %v118
    %v120 = vrot.slane %v103, %v119
    %vm125 = vcmask 523264
    %v127 = vsel %vm125, %v67, 0
    %v130 = vsel %vm125, %v68, 0
    %v133 = vsel %vm125, %v69, 0
    %v136 = vsel %vm125, %v70, 0
    %138 = vmatprep.subr.mxu0 %v72
    %139 = vmatpush1.msra.mxu0 %v71
    %140 = vmatprep.subr.mxu0 %v76
    %141 = vmatpush1.msra.mxu0 %v75
    %142 = vmatprep.subr.mxu0 %v80
    %143 = vmatpush1.msra.mxu0 %v79
    %144 = vmatprep.subr.mxu0 %v84
    %145 = vmatpush1.msra.mxu0 %v83
    %146 = vmatprep.subr.mxu0 %v88
    %147 = vmatpush1.msra.mxu0 %v87
    %148 = vmatprep.subr.mxu0 %v92
    %149 = vmatpush1.msra.mxu0 %v91
    %150 = vmatprep.subr.mxu0 %v96
    %151 = vmatpush1.msra.mxu0 %v95
    %152 = vmatprep.subr.mxu0 %v100
    %153 = vmatpush1.msra.mxu0 %v99
    %154 = vmatprep.subr.mxu0 0.0
    %155 = vmatpush1.msra.mxu0 0.0
    %156 = vmatprep.subr.mxu0 0.0
    %157 = vmatpush1.msra.mxu0 0.0
    %158 = vmatprep.subr.mxu0 0.0
    %159 = vmatpush1.msra.mxu0 0.0
    %160 = vmatprep.subr.mxu0 0.0
    %161 = vmatpush1.msra.mxu0 0.0
    %162 = vmatprep.subr.mxu0 0.0
    %163 = vmatpush1.msra.mxu0 0.0
    %164 = vmatprep.subr.mxu0 0.0
    %165 = vmatpush1.msra.mxu0 0.0
    %166 = vmatprep.subr.mxu0 0.0
    %167 = vmatpush1.msra.mxu0 0.0
    %168 = vmatprep.subr.mxu0 0.0
    %169 = vmatpush1.msra.mxu0 0.0
    %170 = vmatprep.subr.mxu0 0.0
    %171 = vmatpush1.msra.mxu0 0.0
    %172 = vmatprep.subr.mxu0 0.0
    %173 = vmatpush1.msra.mxu0 0.0
    %174 = vmatprep.subr.mxu0 0.0
    %175 = vmatpush1.msra.mxu0 0.0
    %176 = vmatprep.subr.mxu0 0.0
    %177 = vmatpush1.msra.mxu0 0.0
    %178 = vmatprep.subr.mxu0 0.0
    %179 = vmatpush1.msra.mxu0 0.0
    %180 = vmatprep.subr.mxu0 0.0
    %181 = vmatpush1.msra.mxu0 0.0
    %182 = vmatprep.subr.mxu0 0.0
    %183 = vmatpush1.msra.mxu0 0.0
    %184 = vmatprep.subr.mxu0 0.0
    %185 = vmatpush1.msra.mxu0 0.0
    %186 = vmatprep.subr.mxu0 0.0
    %187 = vmatpush1.msra.mxu0 0.0
    %188 = vmatprep.subr.mxu0 0.0
    %189 = vmatpush1.msra.mxu0 0.0
    %190 = vmatprep.subr.mxu0 0.0
    %191 = vmatpush1.msra.mxu0 0.0
    %192 = vmatprep.subr.mxu0 0.0
    %193 = vmatpush1.msra.mxu0 0.0
    %194 = vmatprep.subr.mxu0 0.0
    %195 = vmatpush1.msra.mxu0 0.0
    %196 = vmatprep.subr.mxu0 0.0
    %197 = vmatpush1.msra.mxu0 0.0
    %198 = vmatprep.subr.mxu0 0.0
    %199 = vmatpush1.msra.mxu0 0.0
    %200 = vmatprep.subr.mxu0 0.0
    %201 = vmatpush1.msra.mxu0 0.0
    %202 = vmatprep.mubr.f32.mxu0 0.0
    %203 = vmatmul.mubr.f32.gmra.mrb[0].mxu0 %v127
    %v204 = vpop.f32.mrb[0].mxu0
    %v205 = vadd.f32 %v108, %v204
    %v206 = vpop.f32.mrb[0].mxu0
    %v207 = vadd.f32 %v112, %v206
    %208 = vmatprep.mubr.f32.mxu0 0.0
    %209 = vmatmul.mubr.f32.gmra.mrb[0].mxu0 %v130
    %v210 = vpop.f32.mrb[0].mxu0
    %v211 = vadd.f32 %v108, %v210
    %v212 = vpop.f32.mrb[0].mxu0
    %v213 = vadd.f32 %v112, %v212
    %214 = vmatprep.mubr.f32.mxu0 0.0
    %215 = vmatmul.mubr.f32.gmra.mrb[0].mxu0 %v133
    %v216 = vpop.f32.mrb[0].mxu0
    %v217 = vadd.f32 %v108, %v216
    %v218 = vpop.f32.mrb[0].mxu0
    %v219 = vadd.f32 %v112, %v218
    %220 = vmatprep.mubr.f32.mxu0 0.0
    %221 = vmatmul.mubr.f32.gmra.mrb[0].mxu0 %v136
    %v222 = vpop.f32.mrb[0].mxu0
    %v223 = vadd.f32 %v108, %v222
    %v224 = vpop.f32.mrb[0].mxu0
    %v225 = vadd.f32 %v112, %v224
    %226 = vdwg.mxu0
    %227 = vmatprep.subr.mxu0 %v74
    %228 = vmatpush1.msra.mxu0 %v73
    %229 = vmatprep.subr.mxu0 %v78
    %230 = vmatpush1.msra.mxu0 %v77
    %231 = vmatprep.subr.mxu0 %v82
    %232 = vmatpush1.msra.mxu0 %v81
    %233 = vmatprep.subr.mxu0 %v86
    %234 = vmatpush1.msra.mxu0 %v85
    %235 = vmatprep.subr.mxu0 %v90
    %236 = vmatpush1.msra.mxu0 %v89
    %237 = vmatprep.subr.mxu0 %v94
    %238 = vmatpush1.msra.mxu0 %v93
    %239 = vmatprep.subr.mxu0 %v98
    %240 = vmatpush1.msra.mxu0 %v97
    %241 = vmatprep.subr.mxu0 %v102
    %242 = vmatpush1.msra.mxu0 %v101
    %243 = vmatprep.subr.mxu0 0.0
    %244 = vmatpush1.msra.mxu0 0.0
    %245 = vmatprep.subr.mxu0 0.0
    %246 = vmatpush1.msra.mxu0 0.0
    %247 = vmatprep.subr.mxu0 0.0
    %248 = vmatpush1.msra.mxu0 0.0
    %249 = vmatprep.subr.mxu0 0.0
    %250 = vmatpush1.msra.mxu0 0.0
    %251 = vmatprep.subr.mxu0 0.0
    %252 = vmatpush1.msra.mxu0 0.0
    %253 = vmatprep.subr.mxu0 0.0
    %254 = vmatpush1.msra.mxu0 0.0
    %255 = vmatprep.subr.mxu0 0.0
    %256 = vmatpush1.msra.mxu0 0.0
    %257 = vmatprep.subr.mxu0 0.0
    %258 = vmatpush1.msra.mxu0 0.0
    %259 = vmatprep.subr.mxu0 0.0
    %260 = vmatpush1.msra.mxu0 0.0
    %261 = vmatprep.subr.mxu0 0.0
    %262 = vmatpush1.msra.mxu0 0.0
    %263 = vmatprep.subr.mxu0 0.0
    %264 = vmatpush1.msra.mxu0 0.0
    %265 = vmatprep.subr.mxu0 0.0
    %266 = vmatpush1.msra.mxu0 0.0
    %267 = vmatprep.subr.mxu0 0.0
    %268 = vmatpush1.msra.mxu0 0.0
    %269 = vmatprep.subr.mxu0 0.0
    %270 = vmatpush1.msra.mxu0 0.0
    %271 = vmatprep.subr.mxu0 0.0
    %272 = vmatpush1.msra.mxu0 0.0
    %273 = vmatprep.subr.mxu0 0.0
    %274 = vmatpush1.msra.mxu0 0.0
    %275 = vmatprep.subr.mxu0 0.0
    %276 = vmatpush1.msra.mxu0 0.0
    %277 = vmatprep.subr.mxu0 0.0
    %278 = vmatpush1.msra.mxu0 0.0
    %279 = vmatprep.subr.mxu0 0.0
    %280 = vmatpush1.msra.mxu0 0.0
    %281 = vmatprep.subr.mxu0 0.0
    %282 = vmatpush1.msra.mxu0 0.0
    %283 = vmatprep.subr.mxu0 0.0
    %284 = vmatpush1.msra.mxu0 0.0
    %285 = vmatprep.subr.mxu0 0.0
    %286 = vmatpush1.msra.mxu0 0.0
    %287 = vmatprep.subr.mxu0 0.0
    %288 = vmatpush1.msra.mxu0 0.0
    %289 = vmatprep.subr.mxu0 0.0
    %290 = vmatpush1.msra.mxu0 0.0
    %291 = vmatprep.mubr.f32.mxu0 0.0
    %292 = vmatmul.mubr.f32.gmra.mrb[0].mxu0 %v127
    %v293 = vpop.f32.mrb[0].mxu0
    %v294 = vadd.f32 %v116, %v293
    %v295 = vpop.f32.mrb[0].mxu0
    %v296 = vadd.f32 %v120, %v295
    %297 = vmatprep.mubr.f32.mxu0 0.0
    %298 = vmatmul.mubr.f32.gmra.mrb[0].mxu0 %v130
    %v299 = vpop.f32.mrb[0].mxu0
    %v300 = vadd.f32 %v116, %v299
    %v301 = vpop.f32.mrb[0].mxu0
    %v302 = vadd.f32 %v120, %v301
    %303 = vmatprep.mubr.f32.mxu0 0.0
    %304 = vmatmul.mubr.f32.gmra.mrb[0].mxu0 %v133
    %v305 = vpop.f32.mrb[0].mxu0
    %v306 = vadd.f32 %v116, %v305
    %v307 = vpop.f32.mrb[0].mxu0
    %v308 = vadd.f32 %v120, %v307
    %309 = vmatprep.mubr.f32.mxu0 0.0
    %310 = vmatmul.mubr.f32.gmra.mrb[0].mxu0 %v136
    %v311 = vpop.f32.mrb[0].mxu0
    %v312 = vadd.f32 %v116, %v311
    %v313 = vpop.f32.mrb[0].mxu0
    %v314 = vadd.f32 %v120, %v313
    %315 = vdwg.mxu0
    %316 = vst [vmem:[#allocation2] sm:$0xff] %v205
    %317 = vst [vmem:[#allocation2 + $0x8] sm:$0xff] %v207
    %318 = vst [vmem:[#allocation2 + $0x10] sm:$0xff] %v294
    %319 = vst [vmem:[#allocation2 + $0x18] sm:$0xff] %v296
    %320 = vst [vmem:[#allocation2 + $0x20] sm:$0xff] %v211
    %321 = vst [vmem:[#allocation2 + $0x28] sm:$0xff] %v213
    %322 = vst [vmem:[#allocation2 + $0x30] sm:$0xff] %v300
    %323 = vst [vmem:[#allocation2 + $0x38] sm:$0xff] %v302
    %324 = vst [vmem:[#allocation2 + $0x40] sm:$0xff] %v217
    %325 = vst [vmem:[#allocation2 + $0x48] sm:$0xff] %v219
    %326 = vst [vmem:[#allocation2 + $0x50] sm:$0xff] %v306
    %327 = vst [vmem:[#allocation2 + $0x58] sm:$0xff] %v308
    %328 = vst [vmem:[#allocation2 + $0x60] sm:$0xff] %v223
    %329 = vst [vmem:[#allocation2 + $0x68] sm:$0xff] %v225
    %330 = vst [vmem:[#allocation2 + $0x70] sm:$0xff] %v312
    %331 = vst [vmem:[#allocation2 + $0x78] sm:$0xff] %v314
    %v332 = vld [vmem:[#allocation2] sm:$0xf]
    %v333 = vld [vmem:[#allocation2 + $0x8] sm:$0xf]
    %v334 = vld [vmem:[#allocation2 + $0x10] sm:$0xf]
    %v335 = vld [vmem:[#allocation2 + $0x18] sm:$0xf]
    %v336 = vld [vmem:[#allocation4] sm:$0xff]
    %v337 = vld [vmem:[#allocation4 + $0x8] sm:$0xff]
    %v338 = vld [vmem:[#allocation4 + $0x10] sm:$0xff]
    %v339 = vld [vmem:[#allocation4 + $0x18] sm:$0xff]
    %v340 = vld [vmem:[#allocation4 + $0x20] sm:$0xff]
    %v341 = vld [vmem:[#allocation4 + $0x28] sm:$0xff]
    %v342 = vld [vmem:[#allocation4 + $0x30] sm:$0xff]
    %v343 = vld [vmem:[#allocation4 + $0x38] sm:$0xff]
    %v344 = vld [vmem:[#allocation4 + $0x40] sm:$0xff]
    %v345 = vld [vmem:[#allocation4 + $0x48] sm:$0xff]
    %v346 = vld [vmem:[#allocation4 + $0x50] sm:$0xff]
    %v347 = vld [vmem:[#allocation4 + $0x58] sm:$0xff]
    %v348 = vld [vmem:[#allocation4 + $0x60] sm:$0xff]
    %v349 = vld [vmem:[#allocation4 + $0x68] sm:$0xff]
    %v350 = vld [vmem:[#allocation4 + $0x70] sm:$0xff]
    %v351 = vld [vmem:[#allocation4 + $0x78] sm:$0xff]
    %v352 = vld [vmem:[#allocation4 + $0x80] sm:$0xff]
    %v353 = vld [vmem:[#allocation4 + $0x88] sm:$0xff]
    %v354 = vld [vmem:[#allocation4 + $0x90] sm:$0xff]
    %v355 = vld [vmem:[#allocation4 + $0x98] sm:$0xff]
    %v356 = vld [vmem:[#allocation4 + $0xa0] sm:$0xff]
    %v357 = vld [vmem:[#allocation4 + $0xa8] sm:$0xff]
    %v358 = vld [vmem:[#allocation4 + $0xb0] sm:$0xff]
    %v359 = vld [vmem:[#allocation4 + $0xb8] sm:$0xff]
    %v360 = vld [vmem:[#allocation4 + $0xc0] sm:$0xff]
    %v361 = vld [vmem:[#allocation4 + $0xc8] sm:$0xff]
    %v362 = vld [vmem:[#allocation4 + $0xd0] sm:$0xff]
    %v363 = vld [vmem:[#allocation4 + $0xd8] sm:$0xff]
    %v364 = vld [vmem:[#allocation4 + $0xe0] sm:$0xff]
    %v365 = vld [vmem:[#allocation4 + $0xe8] sm:$0xff]
    %v366 = vld [vmem:[#allocation4 + $0xf0] sm:$0xff]
    %v367 = vld [vmem:[#allocation4 + $0xf8] sm:$0xff]
    %v368 = vld [vmem:[#allocation4 + $0x100] sm:$0xff]
    %v369 = vld [vmem:[#allocation4 + $0x108] sm:$0xff]
    %v370 = vld [vmem:[#allocation4 + $0x110] sm:$0xff]
    %v371 = vld [vmem:[#allocation4 + $0x118] sm:$0xff]
    %v372 = vld [vmem:[#allocation4 + $0x120] sm:$0xff]
    %v373 = vld [vmem:[#allocation4 + $0x128] sm:$0xff]
    %v374 = vld [vmem:[#allocation4 + $0x130] sm:$0xff]
    %v375 = vld [vmem:[#allocation4 + $0x138] sm:$0xff]
    %v376 = vld [vmem:[#allocation4 + $0x140] sm:$0xff]
    %v377 = vld [vmem:[#allocation4 + $0x148] sm:$0xff]
    %v378 = vld [vmem:[#allocation4 + $0x150] sm:$0xff]
    %v379 = vld [vmem:[#allocation4 + $0x158] sm:$0xff]
    %v380 = vld [vmem:[#allocation4 + $0x160] sm:$0xff]
    %v381 = vld [vmem:[#allocation4 + $0x168] sm:$0xff]
    %v382 = vld [vmem:[#allocation4 + $0x170] sm:$0xff]
    %v383 = vld [vmem:[#allocation4 + $0x178] sm:$0xff]
    %v384 = vld [vmem:[#allocation4 + $0x180] sm:$0xff]
    %v385 = vld [vmem:[#allocation4 + $0x188] sm:$0xff]
    %v386 = vld [vmem:[#allocation4 + $0x190] sm:$0xff]
    %v387 = vld [vmem:[#allocation4 + $0x198] sm:$0xff]
    %v388 = vld [vmem:[#allocation4 + $0x1a0] sm:$0xff]
    %v389 = vld [vmem:[#allocation4 + $0x1a8] sm:$0xff]
    %v390 = vld [vmem:[#allocation4 + $0x1b0] sm:$0xff]
    %v391 = vld [vmem:[#allocation4 + $0x1b8] sm:$0xff]
    %v392 = vld [vmem:[#allocation4 + $0x1c0] sm:$0xff]
    %v393 = vld [vmem:[#allocation4 + $0x1c8] sm:$0xff]
    %v394 = vld [vmem:[#allocation4 + $0x1d0] sm:$0xff]
    %v395 = vld [vmem:[#allocation4 + $0x1d8] sm:$0xff]
    %v396 = vld [vmem:[#allocation4 + $0x1e0] sm:$0xff]
    %v397 = vld [vmem:[#allocation4 + $0x1e8] sm:$0xff]
    %v398 = vld [vmem:[#allocation4 + $0x1f0] sm:$0xff]
    %v399 = vld [vmem:[#allocation4 + $0x1f8] sm:$0xff]
    %400 = vmatprep.subr.mxu0 %v337
    %401 = vmatpush1.msra.mxu0 %v336
    %402 = vmatprep.subr.mxu0 %v341
    %403 = vmatpush1.msra.mxu0 %v340
    %404 = vmatprep.subr.mxu0 %v345
    %405 = vmatpush1.msra.mxu0 %v344
    %406 = vmatprep.subr.mxu0 %v349
    %407 = vmatpush1.msra.mxu0 %v348
    %408 = vmatprep.subr.mxu0 %v353
    %409 = vmatpush1.msra.mxu0 %v352
    %410 = vmatprep.subr.mxu0 %v357
    %411 = vmatpush1.msra.mxu0 %v356
    %412 = vmatprep.subr.mxu0 %v361
    %413 = vmatpush1.msra.mxu0 %v360
    %414 = vmatprep.subr.mxu0 %v365
    %415 = vmatpush1.msra.mxu0 %v364
    %416 = vmatprep.subr.mxu0 %v369
    %417 = vmatpush1.msra.mxu0 %v368
    %418 = vmatprep.subr.mxu0 %v373
    %419 = vmatpush1.msra.mxu0 %v372
    %420 = vmatprep.subr.mxu0 %v377
    %421 = vmatpush1.msra.mxu0 %v376
    %422 = vmatprep.subr.mxu0 %v381
    %423 = vmatpush1.msra.mxu0 %v380
    %424 = vmatprep.subr.mxu0 %v385
    %425 = vmatpush1.msra.mxu0 %v384
    %426 = vmatprep.subr.mxu0 %v389
    %427 = vmatpush1.msra.mxu0 %v388
    %428 = vmatprep.subr.mxu0 %v393
    %429 = vmatpush1.msra.mxu0 %v392
    %430 = vmatprep.subr.mxu0 %v397
    %431 = vmatpush1.msra.mxu0 %v396
    %432 = vmatprep.subr.mxu0 0.0
    %433 = vmatpush1.msra.mxu0 0.0
    %434 = vmatprep.subr.mxu0 0.0
    %435 = vmatpush1.msra.mxu0 0.0
    %436 = vmatprep.subr.mxu0 0.0
    %437 = vmatpush1.msra.mxu0 0.0
    %438 = vmatprep.subr.mxu0 0.0
    %439 = vmatpush1.msra.mxu0 0.0
    %440 = vmatprep.subr.mxu0 0.0
    %441 = vmatpush1.msra.mxu0 0.0
    %442 = vmatprep.subr.mxu0 0.0
    %443 = vmatpush1.msra.mxu0 0.0
    %444 = vmatprep.subr.mxu0 0.0
    %445 = vmatpush1.msra.mxu0 0.0
    %446 = vmatprep.subr.mxu0 0.0
    %447 = vmatpush1.msra.mxu0 0.0
    %448 = vmatprep.subr.mxu0 0.0
    %449 = vmatpush1.msra.mxu0 0.0
    %450 = vmatprep.subr.mxu0 0.0
    %451 = vmatpush1.msra.mxu0 0.0
    %452 = vmatprep.subr.mxu0 0.0
    %453 = vmatpush1.msra.mxu0 0.0
    %454 = vmatprep.subr.mxu0 0.0
    %455 = vmatpush1.msra.mxu0 0.0
    %456 = vmatprep.subr.mxu0 0.0
    %457 = vmatpush1.msra.mxu0 0.0
    %458 = vmatprep.subr.mxu0 0.0
    %459 = vmatpush1.msra.mxu0 0.0
    %460 = vmatprep.subr.mxu0 0.0
    %461 = vmatpush1.msra.mxu0 0.0
    %462 = vmatprep.subr.mxu0 0.0
    %463 = vmatpush1.msra.mxu0 0.0
    %464 = vmatprep.mubr.f32.mxu0 0.0
    %465 = vmatmul.mubr.f32.gmra.mrb[0].mxu0 0.0
    %v466 = vpop.f32.mrb[0].mxu0
    %v467 = vadd.f32 0.0, %v466
    %v468 = vpop.f32.mrb[0].mxu0
    %v469 = vadd.f32 0.0, %v468
    %470 = vdwg.mxu0
    %471 = vmatprep.subr.mxu0 %v339
    %472 = vmatpush1.msra.mxu0 %v338
    %473 = vmatprep.subr.mxu0 %v343
    %474 = vmatpush1.msra.mxu0 %v342
    %475 = vmatprep.subr.mxu0 %v347
    %476 = vmatpush1.msra.mxu0 %v346
    %477 = vmatprep.subr.mxu0 %v351
    %478 = vmatpush1.msra.mxu0 %v350
    %479 = vmatprep.subr.mxu0 %v355
    %480 = vmatpush1.msra.mxu0 %v354
    %481 = vmatprep.subr.mxu0 %v359
    %482 = vmatpush1.msra.mxu0 %v358
    %483 = vmatprep.subr.mxu0 %v363
    %484 = vmatpush1.msra.mxu0 %v362
    %485 = vmatprep.subr.mxu0 %v367
    %486 = vmatpush1.msra.mxu0 %v366
    %487 = vmatprep.subr.mxu0 %v371
    %488 = vmatpush1.msra.mxu0 %v370
    %489 = vmatprep.subr.mxu0 %v375
    %490 = vmatpush1.msra.mxu0 %v374
    %491 = vmatprep.subr.mxu0 %v379
    %492 = vmatpush1.msra.mxu0 %v378
    %493 = vmatprep.subr.mxu0 %v383
    %494 = vmatpush1.msra.mxu0 %v382
    %495 = vmatprep.subr.mxu0 %v387
    %496 = vmatpush1.msra.mxu0 %v386
    %497 = vmatprep.subr.mxu0 %v391
    %498 = vmatpush1.msra.mxu0 %v390
    %499 = vmatprep.subr.mxu0 %v395
    %500 = vmatpush1.msra.mxu0 %v394
    %501 = vmatprep.subr.mxu0 %v399
    %502 = vmatpush1.msra.mxu0 %v398
    %503 = vmatprep.subr.mxu0 0.0
    %504 = vmatpush1.msra.mxu0 0.0
    %505 = vmatprep.subr.mxu0 0.0
    %506 = vmatpush1.msra.mxu0 0.0
    %507 = vmatprep.subr.mxu0 0.0
    %508 = vmatpush1.msra.mxu0 0.0
    %509 = vmatprep.subr.mxu0 0.0
    %510 = vmatpush1.msra.mxu0 0.0
    %511 = vmatprep.subr.mxu0 0.0
    %512 = vmatpush1.msra.mxu0 0.0
    %513 = vmatprep.subr.mxu0 0.0
    %514 = vmatpush1.msra.mxu0 0.0
    %515 = vmatprep.subr.mxu0 0.0
    %516 = vmatpush1.msra.mxu0 0.0
    %517 = vmatprep.subr.mxu0 0.0
    %518 = vmatpush1.msra.mxu0 0.0
    %519 = vmatprep.subr.mxu0 0.0
    %520 = vmatpush1.msra.mxu0 0.0
    %521 = vmatprep.subr.mxu0 0.0
    %522 = vmatpush1.msra.mxu0 0.0
    %523 = vmatprep.subr.mxu0 0.0
    %524 = vmatpush1.msra.mxu0 0.0
    %525 = vmatprep.subr.mxu0 0.0
    %526 = vmatpush1.msra.mxu0 0.0
    %527 = vmatprep.subr.mxu0 0.0
    %528 = vmatpush1.msra.mxu0 0.0
    %529 = vmatprep.subr.mxu0 0.0
    %530 = vmatpush1.msra.mxu0 0.0
    %531 = vmatprep.subr.mxu0 0.0
    %532 = vmatpush1.msra.mxu0 0.0
    %533 = vmatprep.subr.mxu0 0.0
    %534 = vmatpush1.msra.mxu0 0.0
    %535 = vmatprep.mubr.f32.mxu0 0.0
    %536 = vmatmul.mubr.f32.gmra.mrb[0].mxu0 0.0
    %v537 = vpop.f32.mrb[0].mxu0
    %v538 = vadd.f32 0.0, %v537
    %v539 = vpop.f32.mrb[0].mxu0
    %v540 = vadd.f32 0.0, %v539
    %541 = vdwg.mxu0
    %v542 = vadd.f32 %v332, %v467
    %v543 = vadd.f32 %v333, %v469
    %v544 = vadd.f32 %v334, %v538
    %v545 = vadd.f32 %v335, %v540
    %v546 = vxor.u32 %v542, 2147483648
    %v547 = vmul.f32 %v546, 1.442695
    %v548 = vpow.pop %v547
    %v549 = vadd.f32 %v548, 1.0
    %v550 = vrcp.pop %v549
    %v551 = vmul.f32 1.0, %v550
    %v552 = vxor.u32 %v543, 2147483648
    %v553 = vmul.f32 %v552, 1.442695
    %v554 = vpow.pop %v553
    %v555 = vadd.f32 %v554, 1.0
    %v556 = vrcp.pop %v555
    %v557 = vmul.f32 1.0, %v556
    %v558 = vtanh.pop %v544
    %v559 = vxor.u32 %v545, 2147483648
    %v560 = vmul.f32 %v559, 1.442695
    %v561 = vpow.pop %v560
    %v562 = vadd.f32 %v561, 1.0
    %v563 = vrcp.pop %v562
    %v564 = vmul.f32 1.0, %v563
    %v565 = vmul.f32 %v557, 0.0
    %v566 = vmul.f32 %v551, %v558
    %v567 = vadd.f32 %v565, %v566
    %v568 = vtanh.pop %v567
    %v569 = vmul.f32 %v564, %v568
    %570 = vst [vmem:[#allocation3] sm:$0xf] %v569
    %v571 = vld [vmem:[#allocation2] sm:$0xf0]
    %v572 = vld [vmem:[#allocation2 + $0x8] sm:$0xf0]
    %v573 = vld [vmem:[#allocation2 + $0x10] sm:$0xf0]
    %v574 = vld [vmem:[#allocation2 + $0x18] sm:$0xf0]
    %v575 = vld [vmem:[#allocation4] sm:$0xff]
    %v576 = vld [vmem:[#allocation4 + $0x8] sm:$0xff]
    %v577 = vld [vmem:[#allocation4 + $0x10] sm:$0xff]
    %v578 = vld [vmem:[#allocation4 + $0x18] sm:$0xff]
    %v579 = vld [vmem:[#allocation4 + $0x20] sm:$0xff]
    %v580 = vld [vmem:[#allocation4 + $0x28] sm:$0xff]
    %v581 = vld [vmem:[#allocation4 + $0x30] sm:$0xff]
    %v582 = vld [vmem:[#allocation4 + $0x38] sm:$0xff]
    %v583 = vld [vmem:[#allocation4 + $0x40] sm:$0xff]
    %v584 = vld [vmem:[#allocation4 + $0x48] sm:$0xff]
    %v585 = vld [vmem:[#allocation4 + $0x50] sm:$0xff]
    %v586 = vld [vmem:[#allocation4 + $0x58] sm:$0xff]
    %v587 = vld [vmem:[#allocation4 + $0x60] sm:$0xff]
    %v588 = vld [vmem:[#allocation4 + $0x68] sm:$0xff]
    %v589 = vld [vmem:[#allocation4 + $0x70] sm:$0xff]
    %v590 = vld [vmem:[#allocation4 + $0x78] sm:$0xff]
    %v591 = vld [vmem:[#allocation4 + $0x80] sm:$0xff]
    %v592 = vld [vmem:[#allocation4 + $0x88] sm:$0xff]
    %v593 = vld [vmem:[#allocation4 + $0x90] sm:$0xff]
    %v594 = vld [vmem:[#allocation4 + $0x98] sm:$0xff]
    %v595 = vld [vmem:[#allocation4 + $0xa0] sm:$0xff]
    %v596 = vld [vmem:[#allocation4 + $0xa8] sm:$0xff]
    %v597 = vld [vmem:[#allocation4 + $0xb0] sm:$0xff]
    %v598 = vld [vmem:[#allocation4 + $0xb8] sm:$0xff]
    %v599 = vld [vmem:[#allocation4 + $0xc0] sm:$0xff]
    %v600 = vld [vmem:[#allocation4 + $0xc8] sm:$0xff]
    %v601 = vld [vmem:[#allocation4 + $0xd0] sm:$0xff]
    %v602 = vld [vmem:[#allocation4 + $0xd8] sm:$0xff]
    %v603 = vld [vmem:[#allocation4 + $0xe0] sm:$0xff]
    %v604 = vld [vmem:[#allocation4 + $0xe8] sm:$0xff]
    %v605 = vld [vmem:[#allocation4 + $0xf0] sm:$0xff]
    %v606 = vld [vmem:[#allocation4 + $0xf8] sm:$0xff]
    %v607 = vld [vmem:[#allocation4 + $0x100] sm:$0xff]
    %v608 = vld [vmem:[#allocation4 + $0x108] sm:$0xff]
    %v609 = vld [vmem:[#allocation4 + $0x110] sm:$0xff]
    %v610 = vld [vmem:[#allocation4 + $0x118] sm:$0xff]
    %v611 = vld [vmem:[#allocation4 + $0x120] sm:$0xff]
    %v612 = vld [vmem:[#allocation4 + $0x128] sm:$0xff]
    %v613 = vld [vmem:[#allocation4 + $0x130] sm:$0xff]
    %v614 = vld [vmem:[#allocation4 + $0x138] sm:$0xff]
    %v615 = vld [vmem:[#allocation4 + $0x140] sm:$0xff]
    %v616 = vld [vmem:[#allocation4 + $0x148] sm:$0xff]
    %v617 = vld [vmem:[#allocation4 + $0x150] sm:$0xff]
    %v618 = vld [vmem:[#allocation4 + $0x158] sm:$0xff]
    %v619 = vld [vmem:[#allocation4 + $0x160] sm:$0xff]
    %v620 = vld [vmem:[#allocation4 + $0x168] sm:$0xff]
    %v621 = vld [vmem:[#allocation4 + $0x170] sm:$0xff]
    %v622 = vld [vmem:[#allocation4 + $0x178] sm:$0xff]
    %v623 = vld [vmem:[#allocation4 + $0x180] sm:$0xff]
    %v624 = vld [vmem:[#allocation4 + $0x188] sm:$0xff]
    %v625 = vld [vmem:[#allocation4 + $0x190] sm:$0xff]
    %v626 = vld [vmem:[#allocation4 + $0x198] sm:$0xff]
    %v627 = vld [vmem:[#allocation4 + $0x1a0] sm:$0xff]
    %v628 = vld [vmem:[#allocation4 + $0x1a8] sm:$0xff]
    %v629 = vld [vmem:[#allocation4 + $0x1b0] sm:$0xff]
    %v630 = vld [vmem:[#allocation4 + $0x1b8] sm:$0xff]
    %v631 = vld [vmem:[#allocation4 + $0x1c0] sm:$0xff]
    %v632 = vld [vmem:[#allocation4 + $0x1c8] sm:$0xff]
    %v633 = vld [vmem:[#allocation4 + $0x1d0] sm:$0xff]
    %v634 = vld [vmem:[#allocation4 + $0x1d8] sm:$0xff]
    %v635 = vld [vmem:[#allocation4 + $0x1e0] sm:$0xff]
    %v636 = vld [vmem:[#allocation4 + $0x1e8] sm:$0xff]
    %v637 = vld [vmem:[#allocation4 + $0x1f0] sm:$0xff]
    %v638 = vld [vmem:[#allocation4 + $0x1f8] sm:$0xff]
    %639 = vmatprep.subr.mxu0 %v576
    %640 = vmatpush1.msra.mxu0 %v575
    %641 = vmatprep.subr.mxu0 %v580
    %642 = vmatpush1.msra.mxu0 %v579
    %643 = vmatprep.subr.mxu0 %v584
    %644 = vmatpush1.msra.mxu0 %v583
    %645 = vmatprep.subr.mxu0 %v588
    %646 = vmatpush1.msra.mxu0 %v587
    %647 = vmatprep.subr.mxu0 %v592
    %648 = vmatpush1.msra.mxu0 %v591
    %649 = vmatprep.subr.mxu0 %v596
    %650 = vmatpush1.msra.mxu0 %v595
    %651 = vmatprep.subr.mxu0 %v600
    %652 = vmatpush1.msra.mxu0 %v599
    %653 = vmatprep.subr.mxu0 %v604
    %654 = vmatpush1.msra.mxu0 %v603
    %655 = vmatprep.subr.mxu0 %v608
    %656 = vmatpush1.msra.mxu0 %v607
    %657 = vmatprep.subr.mxu0 %v612
    %658 = vmatpush1.msra.mxu0 %v611
    %659 = vmatprep.subr.mxu0 %v616
    %660 = vmatpush1.msra.mxu0 %v615
    %661 = vmatprep.subr.mxu0 %v620
    %662 = vmatpush1.msra.mxu0 %v619
    %663 = vmatprep.subr.mxu0 %v624
    %664 = vmatpush1.msra.mxu0 %v623
    %665 = vmatprep.subr.mxu0 %v628
    %666 = vmatpush1.msra.mxu0 %v627
    %667 = vmatprep.subr.mxu0 %v632
    %668 = vmatpush1.msra.mxu0 %v631
    %669 = vmatprep.subr.mxu0 %v636
    %670 = vmatpush1.msra.mxu0 %v635
    %671 = vmatprep.subr.mxu0 0.0
    %672 = vmatpush1.msra.mxu0 0.0
    %673 = vmatprep.subr.mxu0 0.0
    %674 = vmatpush1.msra.mxu0 0.0
    %675 = vmatprep.subr.mxu0 0.0
    %676 = vmatpush1.msra.mxu0 0.0
    %677 = vmatprep.subr.mxu0 0.0
    %678 = vmatpush1.msra.mxu0 0.0
    %679 = vmatprep.subr.mxu0 0.0
    %680 = vmatpush1.msra.mxu0 0.0
    %681 = vmatprep.subr.mxu0 0.0
    %682 = vmatpush1.msra.mxu0 0.0
    %683 = vmatprep.subr.mxu0 0.0
    %684 = vmatpush1.msra.mxu0 0.0
    %685 = vmatprep.subr.mxu0 0.0
    %686 = vmatpush1.msra.mxu0 0.0
    %687 = vmatprep.subr.mxu0 0.0
    %688 = vmatpush1.msra.mxu0 0.0
    %689 = vmatprep.subr.mxu0 0.0
    %690 = vmatpush1.msra.mxu0 0.0
    %691 = vmatprep.subr.mxu0 0.0
    %692 = vmatpush1.msra.mxu0 0.0
    %693 = vmatprep.subr.mxu0 0.0
    %694 = vmatpush1.msra.mxu0 0.0
    %695 = vmatprep.subr.mxu0 0.0
    %696 = vmatpush1.msra.mxu0 0.0
    %697 = vmatprep.subr.mxu0 0.0
    %698 = vmatpush1.msra.mxu0 0.0
    %699 = vmatprep.subr.mxu0 0.0
    %700 = vmatpush1.msra.mxu0 0.0
    %701 = vmatprep.subr.mxu0 0.0
    %702 = vmatpush1.msra.mxu0 0.0
    %703 = vmatprep.mubr.f32.mxu0 0.0
    %704 = vmatmul.mubr.f32.gmra.mrb[0].mxu0 %v569
    %v705 = vpop.f32.mrb[0].mxu0
    %v706 = vadd.f32 0.0, %v705
    %v707 = vpop.f32.mrb[0].mxu0
    %v708 = vadd.f32 0.0, %v707
    %709 = vdwg.mxu0
    %710 = vmatprep.subr.mxu0 %v578
    %711 = vmatpush1.msra.mxu0 %v577
    %712 = vmatprep.subr.mxu0 %v582
    %713 = vmatpush1.msra.mxu0 %v581
    %714 = vmatprep.subr.mxu0 %v586
    %715 = vmatpush1.msra.mxu0 %v585
    %716 = vmatprep.subr.mxu0 %v590
    %717 = vmatpush1.msra.mxu0 %v589
    %718 = vmatprep.subr.mxu0 %v594
    %719 = vmatpush1.msra.mxu0 %v593
    %720 = vmatprep.subr.mxu0 %v598
    %721 = vmatpush1.msra.mxu0 %v597
    %722 = vmatprep.subr.mxu0 %v602
    %723 = vmatpush1.msra.mxu0 %v601
    %724 = vmatprep.subr.mxu0 %v606
    %725 = vmatpush1.msra.mxu0 %v605
    %726 = vmatprep.subr.mxu0 %v610
    %727 = vmatpush1.msra.mxu0 %v609
    %728 = vmatprep.subr.mxu0 %v614
    %729 = vmatpush1.msra.mxu0 %v613
    %730 = vmatprep.subr.mxu0 %v618
    %731 = vmatpush1.msra.mxu0 %v617
    %732 = vmatprep.subr.mxu0 %v622
    %733 = vmatpush1.msra.mxu0 %v621
    %734 = vmatprep.subr.mxu0 %v626
    %735 = vmatpush1.msra.mxu0 %v625
    %736 = vmatprep.subr.mxu0 %v630
    %737 = vmatpush1.msra.mxu0 %v629
    %738 = vmatprep.subr.mxu0 %v634
    %739 = vmatpush1.msra.mxu0 %v633
    %740 = vmatprep.subr.mxu0 %v638
    %741 = vmatpush1.msra.mxu0 %v637
    %742 = vmatprep.subr.mxu0 0.0
    %743 = vmatpush1.msra.mxu0 0.0
    %744 = vmatprep.subr.mxu0 0.0
    %745 = vmatpush1.msra.mxu0 0.0
    %746 = vmatprep.subr.mxu0 0.0
    %747 = vmatpush1.msra.mxu0 0.0
    %748 = vmatprep.subr.mxu0 0.0
    %749 = vmatpush1.msra.mxu0 0.0
    %750 = vmatprep.subr.mxu0 0.0
    %751 = vmatpush1.msra.mxu0 0.0
    %752 = vmatprep.subr.mxu0 0.0
    %753 = vmatpush1.msra.mxu0 0.0
    %754 = vmatprep.subr.mxu0 0.0
    %755 = vmatpush1.msra.mxu0 0.0
    %756 = vmatprep.subr.mxu0 0.0
    %757 = vmatpush1.msra.mxu0 0.0
    %758 = vmatprep.subr.mxu0 0.0
    %759 = vmatpush1.msra.mxu0 0.0
    %760 = vmatprep.subr.mxu0 0.0
    %761 = vmatpush1.msra.mxu0 0.0
    %762 = vmatprep.subr.mxu0 0.0
    %763 = vmatpush1.msra.mxu0 0.0
    %764 = vmatprep.subr.mxu0 0.0
    %765 = vmatpush1.msra.mxu0 0.0
    %766 = vmatprep.subr.mxu0 0.0
    %767 = vmatpush1.msra.mxu0 0.0
    %768 = vmatprep.subr.mxu0 0.0
    %769 = vmatpush1.msra.mxu0 0.0
    %770 = vmatprep.subr.mxu0 0.0
    %771 = vmatpush1.msra.mxu0 0.0
    %772 = vmatprep.subr.mxu0 0.0
    %773 = vmatpush1.msra.mxu0 0.0
    %774 = vmatprep.mubr.f32.mxu0 0.0
    %775 = vmatmul.mubr.f32.gmra.mrb[0].mxu0 %v569
    %v776 = vpop.f32.mrb[0].mxu0
    %v777 = vadd.f32 0.0, %v776
    %v778 = vpop.f32.mrb[0].mxu0
    %v779 = vadd.f32 0.0, %v778
    %780 = vdwg.mxu0
    %v785 = vrot.slane %v706, 4
    %v786 = vrot.slane %v708, 4
    %v787 = vrot.slane %v777, 4
    %v788 = vrot.slane %v779, 4
    %v793 = vadd.f32 %v571, %v785
    %v794 = vadd.f32 %v572, %v786
    %v795 = vadd.f32 %v573, %v787
    %v796 = vadd.f32 %v574, %v788
    %v797 = vxor.u32 %v793, 2147483648
    %v798 = vmul.f32 %v797, 1.442695
    %v799 = vpow.pop %v798
    %v800 = vadd.f32 %v799, 1.0
    %v801 = vrcp.pop %v800
    %v802 = vmul.f32 1.0, %v801
    %v803 = vxor.u32 %v794, 2147483648
    %v804 = vmul.f32 %v803, 1.442695
    %v805 = vpow.pop %v804
    %v806 = vadd.f32 %v805, 1.0
    %v807 = vrcp.pop %v806
    %v808 = vmul.f32 1.0, %v807
    %v809 = vtanh.pop %v795
    %v810 = vxor.u32 %v796, 2147483648
    %v811 = vmul.f32 %v810, 1.442695
    %v812 = vpow.pop %v811
    %v813 = vadd.f32 %v812, 1.0
    %v814 = vrcp.pop %v813
    %v815 = vmul.f32 1.0, %v814
    %v817 = vrot.slane %v567, 4
    %v819 = vmul.f32 %v808, %v817
    %v820 = vmul.f32 %v802, %v809
    %v821 = vadd.f32 %v819, %v820
    %v822 = vtanh.pop %v821
    %v823 = vmul.f32 %v815, %v822
    %824 = vst [vmem:[#allocation3] sm:$0xf0] %v823
    %v825 = vld [vmem:[#allocation2 + $0x20] sm:$0xf]
    %v826 = vld [vmem:[#allocation2 + $0x28] sm:$0xf]
    %v827 = vld [vmem:[#allocation2 + $0x30] sm:$0xf]
    %v828 = vld [vmem:[#allocation2 + $0x38] sm:$0xf]
    %v829 = vld [vmem:[#allocation4] sm:$0xff]
    %v830 = vld [vmem:[#allocation4 + $0x8] sm:$0xff]
    %v831 = vld [vmem:[#allocation4 + $0x10] sm:$0xff]
    %v832 = vld [vmem:[#allocation4 + $0x18] sm:$0xff]
    %v833 = vld [vmem:[#allocation4 + $0x20] sm:$0xff]
    %v834 = vld [vmem:[#allocation4 + $0x28] sm:$0xff]
    %v835 = vld [vmem:[#allocation4 + $0x30] sm:$0xff]
    %v836 = vld [vmem:[#allocation4 + $0x38] sm:$0xff]
    %v837 = vld [vmem:[#allocation4 + $0x40] sm:$0xff]
    %v838 = vld [vmem:[#allocation4 + $0x48] sm:$0xff]
    %v839 = vld [vmem:[#allocation4 + $0x50] sm:$0xff]
    %v840 = vld [vmem:[#allocation4 + $0x58] sm:$0xff]
    %v841 = vld [vmem:[#allocation4 + $0x60] sm:$0xff]
    %v842 = vld [vmem:[#allocation4 + $0x68] sm:$0xff]
    %v843 = vld [vmem:[#allocation4 + $0x70] sm:$0xff]
    %v844 = vld [vmem:[#allocation4 + $0x78] sm:$0xff]
    %v845 = vld [vmem:[#allocation4 + $0x80] sm:$0xff]
    %v846 = vld [vmem:[#allocation4 + $0x88] sm:$0xff]
    %v847 = vld [vmem:[#allocation4 + $0x90] sm:$0xff]
    %v848 = vld [vmem:[#allocation4 + $0x98] sm:$0xff]
    %v849 = vld [vmem:[#allocation4 + $0xa0] sm:$0xff]
    %v850 = vld [vmem:[#allocation4 + $0xa8] sm:$0xff]
    %v851 = vld [vmem:[#allocation4 + $0xb0] sm:$0xff]
    %v852 = vld [vmem:[#allocation4 + $0xb8] sm:$0xff]
    %v853 = vld [vmem:[#allocation4 + $0xc0] sm:$0xff]
    %v854 = vld [vmem:[#allocation4 + $0xc8] sm:$0xff]
    %v855 = vld [vmem:[#allocation4 + $0xd0] sm:$0xff]
    %v856 = vld [vmem:[#allocation4 + $0xd8] sm:$0xff]
    %v857 = vld [vmem:[#allocation4 + $0xe0] sm:$0xff]
    %v858 = vld [vmem:[#allocation4 + $0xe8] sm:$0xff]
    %v859 = vld [vmem:[#allocation4 + $0xf0] sm:$0xff]
    %v860 = vld [vmem:[#allocation4 + $0xf8] sm:$0xff]
    %v861 = vld [vmem:[#allocation4 + $0x100] sm:$0xff]
    %v862 = vld [vmem:[#allocation4 + $0x108] sm:$0xff]
    %v863 = vld [vmem:[#allocation4 + $0x110] sm:$0xff]
    %v864 = vld [vmem:[#allocation4 + $0x118] sm:$0xff]
    %v865 = vld [vmem:[#allocation4 + $0x120] sm:$0xff]
    %v866 = vld [vmem:[#allocation4 + $0x128] sm:$0xff]
    %v867 = vld [vmem:[#allocation4 + $0x130] sm:$0xff]
    %v868 = vld [vmem:[#allocation4 + $0x138] sm:$0xff]
    %v869 = vld [vmem:[#allocation4 + $0x140] sm:$0xff]
    %v870 = vld [vmem:[#allocation4 + $0x148] sm:$0xff]
    %v871 = vld [vmem:[#allocation4 + $0x150] sm:$0xff]
    %v872 = vld [vmem:[#allocation4 + $0x158] sm:$0xff]
    %v873 = vld [vmem:[#allocation4 + $0x160] sm:$0xff]
    %v874 = vld [vmem:[#allocation4 + $0x168] sm:$0xff]
    %v875 = vld [vmem:[#allocation4 + $0x170] sm:$0xff]
    %v876 = vld [vmem:[#allocation4 + $0x178] sm:$0xff]
    %v877 = vld [vmem:[#allocation4 + $0x180] sm:$0xff]
    %v878 = vld [vmem:[#allocation4 + $0x188] sm:$0xff]
    %v879 = vld [vmem:[#allocation4 + $0x190] sm:$0xff]
    %v880 = vld [vmem:[#allocation4 + $0x198] sm:$0xff]
    %v881 = vld [vmem:[#allocation4 + $0x1a0] sm:$0xff]
    %v882 = vld [vmem:[#allocation4 + $0x1a8] sm:$0xff]
    %v883 = vld [vmem:[#allocation4 + $0x1b0] sm:$0xff]
    %v884 = vld [vmem:[#allocation4 + $0x1b8] sm:$0xff]
    %v885 = vld [vmem:[#allocation4 + $0x1c0] sm:$0xff]
    %v886 = vld [vmem:[#allocation4 + $0x1c8] sm:$0xff]
    %v887 = vld [vmem:[#allocation4 + $0x1d0] sm:$0xff]
    %v888 = vld [vmem:[#allocation4 + $0x1d8] sm:$0xff]
    %v889 = vld [vmem:[#allocation4 + $0x1e0] sm:$0xff]
    %v890 = vld [vmem:[#allocation4 + $0x1e8] sm:$0xff]
    %v891 = vld [vmem:[#allocation4 + $0x1f0] sm:$0xff]
    %v892 = vld [vmem:[#allocation4 + $0x1f8] sm:$0xff]
    %v894 = vrot.slane %v823, 4
    %896 = vmatprep.subr.mxu0 %v830
    %897 = vmatpush1.msra.mxu0 %v829
    %898 = vmatprep.subr.mxu0 %v834
    %899 = vmatpush1.msra.mxu0 %v833
    %900 = vmatprep.subr.mxu0 %v838
    %901 = vmatpush1.msra.mxu0 %v837
    %902 = vmatprep.subr.mxu0 %v842
    %903 = vmatpush1.msra.mxu0 %v841
    %904 = vmatprep.subr.mxu0 %v846
    %905 = vmatpush1.msra.mxu0 %v845
    %906 = vmatprep.subr.mxu0 %v850
    %907 = vmatpush1.msra.mxu0 %v849
    %908 = vmatprep.subr.mxu0 %v854
    %909 = vmatpush1.msra.mxu0 %v853
    %910 = vmatprep.subr.mxu0 %v858
    %911 = vmatpush1.msra.mxu0 %v857
    %912 = vmatprep.subr.mxu0 %v862
    %913 = vmatpush1.msra.mxu0 %v861
    %914 = vmatprep.subr.mxu0 %v866
    %915 = vmatpush1.msra.mxu0 %v865
    %916 = vmatprep.subr.mxu0 %v870
    %917 = vmatpush1.msra.mxu0 %v869
    %918 = vmatprep.subr.mxu0 %v874
    %919 = vmatpush1.msra.mxu0 %v873
    %920 = vmatprep.subr.mxu0 %v878
    %921 = vmatpush1.msra.mxu0 %v877
    %922 = vmatprep.subr.mxu0 %v882
    %923 = vmatpush1.msra.mxu0 %v881
    %924 = vmatprep.subr.mxu0 %v886
    %925 = vmatpush1.msra.mxu0 %v885
    %926 = vmatprep.subr.mxu0 %v890
    %927 = vmatpush1.msra.mxu0 %v889
    %928 = vmatprep.subr.mxu0 0.0
    %929 = vmatpush1.msra.mxu0 0.0
    %930 = vmatprep.subr.mxu0 0.0
    %931 = vmatpush1.msra.mxu0 0.0
    %932 = vmatprep.subr.mxu0 0.0
    %933 = vmatpush1.msra.mxu0 0.0
    %934 = vmatprep.subr.mxu0 0.0
    %935 = vmatpush1.msra.mxu0 0.0
    %936 = vmatprep.subr.mxu0 0.0
    %937 = vmatpush1.msra.mxu0 0.0
    %938 = vmatprep.subr.mxu0 0.0
    %939 = vmatpush1.msra.mxu0 0.0
    %940 = vmatprep.subr.mxu0 0.0
    %941 = vmatpush1.msra.mxu0 0.0
    %942 = vmatprep.subr.mxu0 0.0
    %943 = vmatpush1.msra.mxu0 0.0
    %944 = vmatprep.subr.mxu0 0.0
    %945 = vmatpush1.msra.mxu0 0.0
    %946 = vmatprep.subr.mxu0 0.0
    %947 = vmatpush1.msra.mxu0 0.0
    %948 = vmatprep.subr.mxu0 0.0
    %949 = vmatpush1.msra.mxu0 0.0
    %950 = vmatprep.subr.mxu0 0.0
    %951 = vmatpush1.msra.mxu0 0.0
    %952 = vmatprep.subr.mxu0 0.0
    %953 = vmatpush1.msra.mxu0 0.0
    %954 = vmatprep.subr.mxu0 0.0
    %955 = vmatpush1.msra.mxu0 0.0
    %956 = vmatprep.subr.mxu0 0.0
    %957 = vmatpush1.msra.mxu0 0.0
    %958 = vmatprep.subr.mxu0 0.0
    %959 = vmatpush1.msra.mxu0 0.0
    %960 = vmatprep.mubr.f32.mxu0 0.0
    %961 = vmatmul.mubr.f32.gmra.mrb[0].mxu0 %v894
    %v962 = vpop.f32.mrb[0].mxu0
    %v963 = vadd.f32 0.0, %v962
    %v964 = vpop.f32.mrb[0].mxu0
    %v965 = vadd.f32 0.0, %v964
    %966 = vdwg.mxu0
    %967 = vmatprep.subr.mxu0 %v832
    %968 = vmatpush1.msra.mxu0 %v831
    %969 = vmatprep.subr.mxu0 %v836
    %970 = vmatpush1.msra.mxu0 %v835
    %971 = vmatprep.subr.mxu0 %v840
    %972 = vmatpush1.msra.mxu0 %v839
    %973 = vmatprep.subr.mxu0 %v844
    %974 = vmatpush1.msra.mxu0 %v843
    %975 = vmatprep.subr.mxu0 %v848
    %976 = vmatpush1.msra.mxu0 %v847
    %977 = vmatprep.subr.mxu0 %v852
    %978 = vmatpush1.msra.mxu0 %v851
    %979 = vmatprep.subr.mxu0 %v856
    %980 = vmatpush1.msra.mxu0 %v855
    %981 = vmatprep.subr.mxu0 %v860
    %982 = vmatpush1.msra.mxu0 %v859
    %983 = vmatprep.subr.mxu0 %v864
    %984 = vmatpush1.msra.mxu0 %v863
    %985 = vmatprep.subr.mxu0 %v868
    %986 = vmatpush1.msra.mxu0 %v867
    %987 = vmatprep.subr.mxu0 %v872
    %988 = vmatpush1.msra.mxu0 %v871
    %989 = vmatprep.subr.mxu0 %v876
    %990 = vmatpush1.msra.mxu0 %v875
    %991 = vmatprep.subr.mxu0 %v880
    %992 = vmatpush1.msra.mxu0 %v879
    %993 = vmatprep.subr.mxu0 %v884
    %994 = vmatpush1.msra.mxu0 %v883
    %995 = vmatprep.subr.mxu0 %v888
    %996 = vmatpush1.msra.mxu0 %v887
    %997 = vmatprep.subr.mxu0 %v892
    %998 = vmatpush1.msra.mxu0 %v891
    %999 = vmatprep.subr.mxu0 0.0
    %1000 = vmatpush1.msra.mxu0 0.0
    %1001 = vmatprep.subr.mxu0 0.0
    %1002 = vmatpush1.msra.mxu0 0.0
    %1003 = vmatprep.subr.mxu0 0.0
    %1004 = vmatpush1.msra.mxu0 0.0
    %1005 = vmatprep.subr.mxu0 0.0
    %1006 = vmatpush1.msra.mxu0 0.0
    %1007 = vmatprep.subr.mxu0 0.0
    %1008 = vmatpush1.msra.mxu0 0.0
    %1009 = vmatprep.subr.mxu0 0.0
    %1010 = vmatpush1.msra.mxu0 0.0
    %1011 = vmatprep.subr.mxu0 0.0
    %1012 = vmatpush1.msra.mxu0 0.0
    %1013 = vmatprep.subr.mxu0 0.0
    %1014 = vmatpush1.msra.mxu0 0.0
    %1015 = vmatprep.subr.mxu0 0.0
    %1016 = vmatpush1.msra.mxu0 0.0
    %1017 = vmatprep.subr.mxu0 0.0
    %1018 = vmatpush1.msra.mxu0 0.0
    %1019 = vmatprep.subr.mxu0 0.0
    %1020 = vmatpush1.msra.mxu0 0.0
    %1021 = vmatprep.subr.mxu0 0.0
    %1022 = vmatpush1.msra.mxu0 0.0
    %1023 = vmatprep.subr.mxu0 0.0
    %1024 = vmatpush1.msra.mxu0 0.0
    %1025 = vmatprep.subr.mxu0 0.0
    %1026 = vmatpush1.msra.mxu0 0.0
    %1027 = vmatprep.subr.mxu0 0.0
    %1028 = vmatpush1.msra.mxu0 0.0
    %1029 = vmatprep.subr.mxu0 0.0
    %1030 = vmatpush1.msra.mxu0 0.0
    %1031 = vmatprep.mubr.f32.mxu0 0.0
    %1032 = vmatmul.mubr.f32.gmra.mrb[0].mxu0 %v894
    %v1033 = vpop.f32.mrb[0].mxu0
    %v1034 = vadd.f32 0.0, %v1033
    %v1035 = vpop.f32.mrb[0].mxu0
    %v1036 = vadd.f32 0.0, %v1035
    %1037 = vdwg.mxu0
    %v1038 = vadd.f32 %v825, %v963
    %v1039 = vadd.f32 %v826, %v965
    %v1040 = vadd.f32 %v827, %v1034
    %v1041 = vadd.f32 %v828, %v1036
    %v1042 = vxor.u32 %v1038, 2147483648
    %v1043 = vmul.f32 %v1042, 1.442695
    %v1044 = vpow.pop %v1043
    %v1045 = vadd.f32 %v1044, 1.0
    %v1046 = vrcp.pop %v1045
    %v1047 = vmul.f32 1.0, %v1046
    %v1048 = vxor.u32 %v1039, 2147483648
    %v1049 = vmul.f32 %v1048, 1.442695
    %v1050 = vpow.pop %v1049
    %v1051 = vadd.f32 %v1050, 1.0
    %v1052 = vrcp.pop %v1051
    %v1053 = vmul.f32 1.0, %v1052
    %v1054 = vtanh.pop %v1040
    %v1055 = vxor.u32 %v1041, 2147483648
    %v1056 = vmul.f32 %v1055, 1.442695
    %v1057 = vpow.pop %v1056
    %v1058 = vadd.f32 %v1057, 1.0
    %v1059 = vrcp.pop %v1058
    %v1060 = vmul.f32 1.0, %v1059
    %v1062 = vrot.slane %v821, 4
    %v1064 = vmul.f32 %v1053, %v1062
    %v1065 = vmul.f32 %v1047, %v1054
    %v1066 = vadd.f32 %v1064, %v1065
    %v1067 = vtanh.pop %v1066
    %v1068 = vmul.f32 %v1060, %v1067
    %1069 = vst [vmem:[#allocation3 + $0x8] sm:$0xf] %v1068
    %v1070 = vld [vmem:[#allocation2 + $0x20] sm:$0xf0]
    %v1071 = vld [vmem:[#allocation2 + $0x28] sm:$0xf0]
    %v1072 = vld [vmem:[#allocation2 + $0x30] sm:$0xf0]
    %v1073 = vld [vmem:[#allocation2 + $0x38] sm:$0xf0]
    %v1074 = vld [vmem:[#allocation4] sm:$0xff]
    %v1075 = vld [vmem:[#allocation4 + $0x8] sm:$0xff]
    %v1076 = vld [vmem:[#allocation4 + $0x10] sm:$0xff]
    %v1077 = vld [vmem:[#allocation4 + $0x18] sm:$0xff]
    %v1078 = vld [vmem:[#allocation4 + $0x20] sm:$0xff]
    %v1079 = vld [vmem:[#allocation4 + $0x28] sm:$0xff]
    %v1080 = vld [vmem:[#allocation4 + $0x30] sm:$0xff]
    %v1081 = vld [vmem:[#allocation4 + $0x38] sm:$0xff]
    %v1082 = vld [vmem:[#allocation4 + $0x40] sm:$0xff]
    %v1083 = vld [vmem:[#allocation4 + $0x48] sm:$0xff]
    %v1084 = vld [vmem:[#allocation4 + $0x50] sm:$0xff]
    %v1085 = vld [vmem:[#allocation4 + $0x58] sm:$0xff]
    %v1086 = vld [vmem:[#allocation4 + $0x60] sm:$0xff]
    %v1087 = vld [vmem:[#allocation4 + $0x68] sm:$0xff]
    %v1088 = vld [vmem:[#allocation4 + $0x70] sm:$0xff]
    %v1089 = vld [vmem:[#allocation4 + $0x78] sm:$0xff]
    %v1090 = vld [vmem:[#allocation4 + $0x80] sm:$0xff]
    %v1091 = vld [vmem:[#allocation4 + $0x88] sm:$0xff]
    %v1092 = vld [vmem:[#allocation4 + $0x90] sm:$0xff]
    %v1093 = vld [vmem:[#allocation4 + $0x98] sm:$0xff]
    %v1094 = vld [vmem:[#allocation4 + $0xa0] sm:$0xff]
    %v1095 = vld [vmem:[#allocation4 + $0xa8] sm:$0xff]
    %v1096 = vld [vmem:[#allocation4 + $0xb0] sm:$0xff]
    %v1097 = vld [vmem:[#allocation4 + $0xb8] sm:$0xff]
    %v1098 = vld [vmem:[#allocation4 + $0xc0] sm:$0xff]
    %v1099 = vld [vmem:[#allocation4 + $0xc8] sm:$0xff]
    %v1100 = vld [vmem:[#allocation4 + $0xd0] sm:$0xff]
    %v1101 = vld [vmem:[#allocation4 + $0xd8] sm:$0xff]
    %v1102 = vld [vmem:[#allocation4 + $0xe0] sm:$0xff]
    %v1103 = vld [vmem:[#allocation4 + $0xe8] sm:$0xff]
    %v1104 = vld [vmem:[#allocation4 + $0xf0] sm:$0xff]
    %v1105 = vld [vmem:[#allocation4 + $0xf8] sm:$0xff]
    %v1106 = vld [vmem:[#allocation4 + $0x100] sm:$0xff]
    %v1107 = vld [vmem:[#allocation4 + $0x108] sm:$0xff]
    %v1108 = vld [vmem:[#allocation4 + $0x110] sm:$0xff]
    %v1109 = vld [vmem:[#allocation4 + $0x118] sm:$0xff]
    %v1110 = vld [vmem:[#allocation4 + $0x120] sm:$0xff]
    %v1111 = vld [vmem:[#allocation4 + $0x128] sm:$0xff]
    %v1112 = vld [vmem:[#allocation4 + $0x130] sm:$0xff]
    %v1113 = vld [vmem:[#allocation4 + $0x138] sm:$0xff]
    %v1114 = vld [vmem:[#allocation4 + $0x140] sm:$0xff]
    %v1115 = vld [vmem:[#allocation4 + $0x148] sm:$0xff]
    %v1116 = vld [vmem:[#allocation4 + $0x150] sm:$0xff]
    %v1117 = vld [vmem:[#allocation4 + $0x158] sm:$0xff]
    %v1118 = vld [vmem:[#allocation4 + $0x160] sm:$0xff]
    %v1119 = vld [vmem:[#allocation4 + $0x168] sm:$0xff]
    %v1120 = vld [vmem:[#allocation4 + $0x170] sm:$0xff]
    %v1121 = vld [vmem:[#allocation4 + $0x178] sm:$0xff]
    %v1122 = vld [vmem:[#allocation4 + $0x180] sm:$0xff]
    %v1123 = vld [vmem:[#allocation4 + $0x188] sm:$0xff]
    %v1124 = vld [vmem:[#allocation4 + $0x190] sm:$0xff]
    %v1125 = vld [vmem:[#allocation4 + $0x198] sm:$0xff]
    %v1126 = vld [vmem:[#allocation4 + $0x1a0] sm:$0xff]
    %v1127 = vld [vmem:[#allocation4 + $0x1a8] sm:$0xff]
    %v1128 = vld [vmem:[#allocation4 + $0x1b0] sm:$0xff]
    %v1129 = vld [vmem:[#allocation4 + $0x1b8] sm:$0xff]
    %v1130 = vld [vmem:[#allocation4 + $0x1c0] sm:$0xff]
    %v1131 = vld [vmem:[#allocation4 + $0x1c8] sm:$0xff]
    %v1132 = vld [vmem:[#allocation4 + $0x1d0] sm:$0xff]
    %v1133 = vld [vmem:[#allocation4 + $0x1d8] sm:$0xff]
    %v1134 = vld [vmem:[#allocation4 + $0x1e0] sm:$0xff]
    %v1135 = vld [vmem:[#allocation4 + $0x1e8] sm:$0xff]
    %v1136 = vld [vmem:[#allocation4 + $0x1f0] sm:$0xff]
    %v1137 = vld [vmem:[#allocation4 + $0x1f8] sm:$0xff]
    %1138 = vmatprep.subr.mxu0 %v1075
    %1139 = vmatpush1.msra.mxu0 %v1074
    %1140 = vmatprep.subr.mxu0 %v1079
    %1141 = vmatpush1.msra.mxu0 %v1078
    %1142 = vmatprep.subr.mxu0 %v1083
    %1143 = vmatpush1.msra.mxu0 %v1082
    %1144 = vmatprep.subr.mxu0 %v1087
    %1145 = vmatpush1.msra.mxu0 %v1086
    %1146 = vmatprep.subr.mxu0 %v1091
    %1147 = vmatpush1.msra.mxu0 %v1090
    %1148 = vmatprep.subr.mxu0 %v1095
    %1149 = vmatpush1.msra.mxu0 %v1094
    %1150 = vmatprep.subr.mxu0 %v1099
    %1151 = vmatpush1.msra.mxu0 %v1098
    %1152 = vmatprep.subr.mxu0 %v1103
    %1153 = vmatpush1.msra.mxu0 %v1102
    %1154 = vmatprep.subr.mxu0 %v1107
    %1155 = vmatpush1.msra.mxu0 %v1106
    %1156 = vmatprep.subr.mxu0 %v1111
    %1157 = vmatpush1.msra.mxu0 %v1110
    %1158 = vmatprep.subr.mxu0 %v1115
    %1159 = vmatpush1.msra.mxu0 %v1114
    %1160 = vmatprep.subr.mxu0 %v1119
    %1161 = vmatpush1.msra.mxu0 %v1118
    %1162 = vmatprep.subr.mxu0 %v1123
    %1163 = vmatpush1.msra.mxu0 %v1122
    %1164 = vmatprep.subr.mxu0 %v1127
    %1165 = vmatpush1.msra.mxu0 %v1126
    %1166 = vmatprep.subr.mxu0 %v1131
    %1167 = vmatpush1.msra.mxu0 %v1130
    %1168 = vmatprep.subr.mxu0 %v1135
    %1169 = vmatpush1.msra.mxu0 %v1134
    %1170 = vmatprep.subr.mxu0 0.0
    %1171 = vmatpush1.msra.mxu0 0.0
    %1172 = vmatprep.subr.mxu0 0.0
    %1173 = vmatpush1.msra.mxu0 0.0
    %1174 = vmatprep.subr.mxu0 0.0
    %1175 = vmatpush1.msra.mxu0 0.0
    %1176 = vmatprep.subr.mxu0 0.0
    %1177 = vmatpush1.msra.mxu0 0.0
    %1178 = vmatprep.subr.mxu0 0.0
    %1179 = vmatpush1.msra.mxu0 0.0
    %1180 = vmatprep.subr.mxu0 0.0
    %1181 = vmatpush1.msra.mxu0 0.0
    %1182 = vmatprep.subr.mxu0 0.0
    %1183 = vmatpush1.msra.mxu0 0.0
    %1184 = vmatprep.subr.mxu0 0.0
    %1185 = vmatpush1.msra.mxu0 0.0
    %1186 = vmatprep.subr.mxu0 0.0
    %1187 = vmatpush1.msra.mxu0 0.0
    %1188 = vmatprep.subr.mxu0 0.0
    %1189 = vmatpush1.msra.mxu0 0.0
    %1190 = vmatprep.subr.mxu0 0.0
    %1191 = vmatpush1.msra.mxu0 0.0
    %1192 = vmatprep.subr.mxu0 0.0
    %1193 = vmatpush1.msra.mxu0 0.0
    %1194 = vmatprep.subr.mxu0 0.0
    %1195 = vmatpush1.msra.mxu0 0.0
    %1196 = vmatprep.subr.mxu0 0.0
    %1197 = vmatpush1.msra.mxu0 0.0
    %1198 = vmatprep.subr.mxu0 0.0
    %1199 = vmatpush1.msra.mxu0 0.0
    %1200 = vmatprep.subr.mxu0 0.0
    %1201 = vmatpush1.msra.mxu0 0.0
    %1202 = vmatprep.mubr.f32.mxu0 0.0
    %1203 = vmatmul.mubr.f32.gmra.mrb[0].mxu0 %v1068
    %v1204 = vpop.f32.mrb[0].mxu0
    %v1205 = vadd.f32 0.0, %v1204
    %v1206 = vpop.f32.mrb[0].mxu0
    %v1207 = vadd.f32 0.0, %v1206
    %1208 = vdwg.mxu0
    %1209 = vmatprep.subr.mxu0 %v1077
    %1210 = vmatpush1.msra.mxu0 %v1076
    %1211 = vmatprep.subr.mxu0 %v1081
    %1212 = vmatpush1.msra.mxu0 %v1080
    %1213 = vmatprep.subr.mxu0 %v1085
    %1214 = vmatpush1.msra.mxu0 %v1084
    %1215 = vmatprep.subr.mxu0 %v1089
    %1216 = vmatpush1.msra.mxu0 %v1088
    %1217 = vmatprep.subr.mxu0 %v1093
    %1218 = vmatpush1.msra.mxu0 %v1092
    %1219 = vmatprep.subr.mxu0 %v1097
    %1220 = vmatpush1.msra.mxu0 %v1096
    %1221 = vmatprep.subr.mxu0 %v1101
    %1222 = vmatpush1.msra.mxu0 %v1100
    %1223 = vmatprep.subr.mxu0 %v1105
    %1224 = vmatpush1.msra.mxu0 %v1104
    %1225 = vmatprep.subr.mxu0 %v1109
    %1226 = vmatpush1.msra.mxu0 %v1108
    %1227 = vmatprep.subr.mxu0 %v1113
    %1228 = vmatpush1.msra.mxu0 %v1112
    %1229 = vmatprep.subr.mxu0 %v1117
    %1230 = vmatpush1.msra.mxu0 %v1116
    %1231 = vmatprep.subr.mxu0 %v1121
    %1232 = vmatpush1.msra.mxu0 %v1120
    %1233 = vmatprep.subr.mxu0 %v1125
    %1234 = vmatpush1.msra.mxu0 %v1124
    %1235 = vmatprep.subr.mxu0 %v1129
    %1236 = vmatpush1.msra.mxu0 %v1128
    %1237 = vmatprep.subr.mxu0 %v1133
    %1238 = vmatpush1.msra.mxu0 %v1132
    %1239 = vmatprep.subr.mxu0 %v1137
    %1240 = vmatpush1.msra.mxu0 %v1136
    %1241 = vmatprep.subr.mxu0 0.0
    %1242 = vmatpush1.msra.mxu0 0.0
    %1243 = vmatprep.subr.mxu0 0.0
    %1244 = vmatpush1.msra.mxu0 0.0
    %1245 = vmatprep.subr.mxu0 0.0
    %1246 = vmatpush1.msra.mxu0 0.0
    %1247 = vmatprep.subr.mxu0 0.0
    %1248 = vmatpush1.msra.mxu0 0.0
    %1249 = vmatprep.subr.mxu0 0.0
    %1250 = vmatpush1.msra.mxu0 0.0
    %1251 = vmatprep.subr.mxu0 0.0
    %1252 = vmatpush1.msra.mxu0 0.0
    %1253 = vmatprep.subr.mxu0 0.0
    %1254 = vmatpush1.msra.mxu0 0.0
    %1255 = vmatprep.subr.mxu0 0.0
    %1256 = vmatpush1.msra.mxu0 0.0
    %1257 = vmatprep.subr.mxu0 0.0
    %1258 = vmatpush1.msra.mxu0 0.0
    %1259 = vmatprep.subr.mxu0 0.0
    %1260 = vmatpush1.msra.mxu0 0.0
    %1261 = vmatprep.subr.mxu0 0.0
    %1262 = vmatpush1.msra.mxu0 0.0
    %1263 = vmatprep.subr.mxu0 0.0
    %1264 = vmatpush1.msra.mxu0 0.0
    %1265 = vmatprep.subr.mxu0 0.0
    %1266 = vmatpush1.msra.mxu0 0.0
    %1267 = vmatprep.subr.mxu0 0.0
    %1268 = vmatpush1.msra.mxu0 0.0
    %1269 = vmatprep.subr.mxu0 0.0
    %1270 = vmatpush1.msra.mxu0 0.0
    %1271 = vmatprep.subr.mxu0 0.0
    %1272 = vmatpush1.msra.mxu0 0.0
    %1273 = vmatprep.mubr.f32.mxu0 0.0
    %1274 = vmatmul.mubr.f32.gmra.mrb[0].mxu0 %v1068
    %v1275 = vpop.f32.mrb[0].mxu0
    %v1276 = vadd.f32 0.0, %v1275
    %v1277 = vpop.f32.mrb[0].mxu0
    %v1278 = vadd.f32 0.0, %v1277
    %1279 = vdwg.mxu0
    %v1284 = vrot.slane %v1205, 4
    %v1285 = vrot.slane %v1207, 4
    %v1286 = vrot.slane %v1276, 4
    %v1287 = vrot.slane %v1278, 4
    %v1292 = vadd.f32 %v1070, %v1284
    %v1293 = vadd.f32 %v1071, %v1285
    %v1294 = vadd.f32 %v1072, %v1286
    %v1295 = vadd.f32 %v1073, %v1287
    %v1296 = vxor.u32 %v1292, 2147483648
    %v1297 = vmul.f32 %v1296, 1.442695
    %v1298 = vpow.pop %v1297
    %v1299 = vadd.f32 %v1298, 1.0
    %v1300 = vrcp.pop %v1299
    %v1301 = vmul.f32 1.0, %v1300
    %v1302 = vxor.u32 %v1293, 2147483648
    %v1303 = vmul.f32 %v1302, 1.442695
    %v1304 = vpow.pop %v1303
    %v1305 = vadd.f32 %v1304, 1.0
    %v1306 = vrcp.pop %v1305
    %v1307 = vmul.f32 1.0, %v1306
    %v1308 = vtanh.pop %v1294
    %v1309 = vxor.u32 %v1295, 2147483648
    %v1310 = vmul.f32 %v1309, 1.442695
    %v1311 = vpow.pop %v1310
    %v1312 = vadd.f32 %v1311, 1.0
    %v1313 = vrcp.pop %v1312
    %v1314 = vmul.f32 1.0, %v1313
    %v1316 = vrot.slane %v1066, 4
    %v1318 = vmul.f32 %v1307, %v1316
    %v1319 = vmul.f32 %v1301, %v1308
    %v1320 = vadd.f32 %v1318, %v1319
    %v1321 = vtanh.pop %v1320
    %v1322 = vmul.f32 %v1314, %v1321
    %1323 = vst [vmem:[#allocation3 + $0x8] sm:$0xf0] %v1322
    %v1324 = vld [vmem:[#allocation2 + $0x40] sm:$0xf]
    %v1325 = vld [vmem:[#allocation2 + $0x48] sm:$0xf]
    %v1326 = vld [vmem:[#allocation2 + $0x50] sm:$0xf]
    %v1327 = vld [vmem:[#allocation2 + $0x58] sm:$0xf]
    %v1328 = vld [vmem:[#allocation4] sm:$0xff]
    %v1329 = vld [vmem:[#allocation4 + $0x8] sm:$0xff]
    %v1330 = vld [vmem:[#allocation4 + $0x10] sm:$0xff]
    %v1331 = vld [vmem:[#allocation4 + $0x18] sm:$0xff]
    %v1332 = vld [vmem:[#allocation4 + $0x20] sm:$0xff]
    %v1333 = vld [vmem:[#allocation4 + $0x28] sm:$0xff]
    %v1334 = vld [vmem:[#allocation4 + $0x30] sm:$0xff]
    %v1335 = vld [vmem:[#allocation4 + $0x38] sm:$0xff]
    %v1336 = vld [vmem:[#allocation4 + $0x40] sm:$0xff]
    %v1337 = vld [vmem:[#allocation4 + $0x48] sm:$0xff]
    %v1338 = vld [vmem:[#allocation4 + $0x50] sm:$0xff]
    %v1339 = vld [vmem:[#allocation4 + $0x58] sm:$0xff]
    %v1340 = vld [vmem:[#allocation4 + $0x60] sm:$0xff]
    %v1341 = vld [vmem:[#allocation4 + $0x68] sm:$0xff]
    %v1342 = vld [vmem:[#allocation4 + $0x70] sm:$0xff]
    %v1343 = vld [vmem:[#allocation4 + $0x78] sm:$0xff]
    %v1344 = vld [vmem:[#allocation4 + $0x80] sm:$0xff]
    %v1345 = vld [vmem:[#allocation4 + $0x88] sm:$0xff]
    %v1346 = vld [vmem:[#allocation4 + $0x90] sm:$0xff]
    %v1347 = vld [vmem:[#allocation4 + $0x98] sm:$0xff]
    %v1348 = vld [vmem:[#allocation4 + $0xa0] sm:$0xff]
    %v1349 = vld [vmem:[#allocation4 + $0xa8] sm:$0xff]
    %v1350 = vld [vmem:[#allocation4 + $0xb0] sm:$0xff]
    %v1351 = vld [vmem:[#allocation4 + $0xb8] sm:$0xff]
    %v1352 = vld [vmem:[#allocation4 + $0xc0] sm:$0xff]
    %v1353 = vld [vmem:[#allocation4 + $0xc8] sm:$0xff]
    %v1354 = vld [vmem:[#allocation4 + $0xd0] sm:$0xff]
    %v1355 = vld [vmem:[#allocation4 + $0xd8] sm:$0xff]
    %v1356 = vld [vmem:[#allocation4 + $0xe0] sm:$0xff]
    %v1357 = vld [vmem:[#allocation4 + $0xe8] sm:$0xff]
    %v1358 = vld [vmem:[#allocation4 + $0xf0] sm:$0xff]
    %v1359 = vld [vmem:[#allocation4 + $0xf8] sm:$0xff]
    %v1360 = vld [vmem:[#allocation4 + $0x100] sm:$0xff]
    %v1361 = vld [vmem:[#allocation4 + $0x108] sm:$0xff]
    %v1362 = vld [vmem:[#allocation4 + $0x110] sm:$0xff]
    %v1363 = vld [vmem:[#allocation4 + $0x118] sm:$0xff]
    %v1364 = vld [vmem:[#allocation4 + $0x120] sm:$0xff]
    %v1365 = vld [vmem:[#allocation4 + $0x128] sm:$0xff]
    %v1366 = vld [vmem:[#allocation4 + $0x130] sm:$0xff]
    %v1367 = vld [vmem:[#allocation4 + $0x138] sm:$0xff]
    %v1368 = vld [vmem:[#allocation4 + $0x140] sm:$0xff]
    %v1369 = vld [vmem:[#allocation4 + $0x148] sm:$0xff]
    %v1370 = vld [vmem:[#allocation4 + $0x150] sm:$0xff]
    %v1371 = vld [vmem:[#allocation4 + $0x158] sm:$0xff]
    %v1372 = vld [vmem:[#allocation4 + $0x160] sm:$0xff]
    %v1373 = vld [vmem:[#allocation4 + $0x168] sm:$0xff]
    %v1374 = vld [vmem:[#allocation4 + $0x170] sm:$0xff]
    %v1375 = vld [vmem:[#allocation4 + $0x178] sm:$0xff]
    %v1376 = vld [vmem:[#allocation4 + $0x180] sm:$0xff]
    %v1377 = vld [vmem:[#allocation4 + $0x188] sm:$0xff]
    %v1378 = vld [vmem:[#allocation4 + $0x190] sm:$0xff]
    %v1379 = vld [vmem:[#allocation4 + $0x198] sm:$0xff]
    %v1380 = vld [vmem:[#allocation4 + $0x1a0] sm:$0xff]
    %v1381 = vld [vmem:[#allocation4 + $0x1a8] sm:$0xff]
    %v1382 = vld [vmem:[#allocation4 + $0x1b0] sm:$0xff]
    %v1383 = vld [vmem:[#allocation4 + $0x1b8] sm:$0xff]
    %v1384 = vld [vmem:[#allocation4 + $0x1c0] sm:$0xff]
    %v1385 = vld [vmem:[#allocation4 + $0x1c8] sm:$0xff]
    %v1386 = vld [vmem:[#allocation4 + $0x1d0] sm:$0xff]
    %v1387 = vld [vmem:[#allocation4 + $0x1d8] sm:$0xff]
    %v1388 = vld [vmem:[#allocation4 + $0x1e0] sm:$0xff]
    %v1389 = vld [vmem:[#allocation4 + $0x1e8] sm:$0xff]
    %v1390 = vld [vmem:[#allocation4 + $0x1f0] sm:$0xff]
    %v1391 = vld [vmem:[#allocation4 + $0x1f8] sm:$0xff]
    %v1393 = vrot.slane %v1322, 4
    %1395 = vmatprep.subr.mxu0 %v1329
    %1396 = vmatpush1.msra.mxu0 %v1328
    %1397 = vmatprep.subr.mxu0 %v1333
    %1398 = vmatpush1.msra.mxu0 %v1332
    %1399 = vmatprep.subr.mxu0 %v1337
    %1400 = vmatpush1.msra.mxu0 %v1336
    %1401 = vmatprep.subr.mxu0 %v1341
    %1402 = vmatpush1.msra.mxu0 %v1340
    %1403 = vmatprep.subr.mxu0 %v1345
    %1404 = vmatpush1.msra.mxu0 %v1344
    %1405 = vmatprep.subr.mxu0 %v1349
    %1406 = vmatpush1.msra.mxu0 %v1348
    %1407 = vmatprep.subr.mxu0 %v1353
    %1408 = vmatpush1.msra.mxu0 %v1352
    %1409 = vmatprep.subr.mxu0 %v1357
    %1410 = vmatpush1.msra.mxu0 %v1356
    %1411 = vmatprep.subr.mxu0 %v1361
    %1412 = vmatpush1.msra.mxu0 %v1360
    %1413 = vmatprep.subr.mxu0 %v1365
    %1414 = vmatpush1.msra.mxu0 %v1364
    %1415 = vmatprep.subr.mxu0 %v1369
    %1416 = vmatpush1.msra.mxu0 %v1368
    %1417 = vmatprep.subr.mxu0 %v1373
    %1418 = vmatpush1.msra.mxu0 %v1372
    %1419 = vmatprep.subr.mxu0 %v1377
    %1420 = vmatpush1.msra.mxu0 %v1376
    %1421 = vmatprep.subr.mxu0 %v1381
    %1422 = vmatpush1.msra.mxu0 %v1380
    %1423 = vmatprep.subr.mxu0 %v1385
    %1424 = vmatpush1.msra.mxu0 %v1384
    %1425 = vmatprep.subr.mxu0 %v1389
    %1426 = vmatpush1.msra.mxu0 %v1388
    %1427 = vmatprep.subr.mxu0 0.0
    %1428 = vmatpush1.msra.mxu0 0.0
    %1429 = vmatprep.subr.mxu0 0.0
    %1430 = vmatpush1.msra.mxu0 0.0
    %1431 = vmatprep.subr.mxu0 0.0
    %1432 = vmatpush1.msra.mxu0 0.0
    %1433 = vmatprep.subr.mxu0 0.0
    %1434 = vmatpush1.msra.mxu0 0.0
    %1435 = vmatprep.subr.mxu0 0.0
    %1436 = vmatpush1.msra.mxu0 0.0
    %1437 = vmatprep.subr.mxu0 0.0
    %1438 = vmatpush1.msra.mxu0 0.0
    %1439 = vmatprep.subr.mxu0 0.0
    %1440 = vmatpush1.msra.mxu0 0.0
    %1441 = vmatprep.subr.mxu0 0.0
    %1442 = vmatpush1.msra.mxu0 0.0
    %1443 = vmatprep.subr.mxu0 0.0
    %1444 = vmatpush1.msra.mxu0 0.0
    %1445 = vmatprep.subr.mxu0 0.0
    %1446 = vmatpush1.msra.mxu0 0.0
    %1447 = vmatprep.subr.mxu0 0.0
    %1448 = vmatpush1.msra.mxu0 0.0
    %1449 = vmatprep.subr.mxu0 0.0
    %1450 = vmatpush1.msra.mxu0 0.0
    %1451 = vmatprep.subr.mxu0 0.0
    %1452 = vmatpush1.msra.mxu0 0.0
    %1453 = vmatprep.subr.mxu0 0.0
    %1454 = vmatpush1.msra.mxu0 0.0
    %1455 = vmatprep.subr.mxu0 0.0
    %1456 = vmatpush1.msra.mxu0 0.0
    %1457 = vmatprep.subr.mxu0 0.0
    %1458 = vmatpush1.msra.mxu0 0.0
    %1459 = vmatprep.mubr.f32.mxu0 0.0
    %1460 = vmatmul.mubr.f32.gmra.mrb[0].mxu0 %v1393
    %v1461 = vpop.f32.mrb[0].mxu0
    %v1462 = vadd.f32 0.0, %v1461
    %v1463 = vpop.f32.mrb[0].mxu0
    %v1464 = vadd.f32 0.0, %v1463
    %1465 = vdwg.mxu0
    %1466 = vmatprep.subr.mxu0 %v1331
    %1467 = vmatpush1.msra.mxu0 %v1330
    %1468 = vmatprep.subr.mxu0 %v1335
    %1469 = vmatpush1.msra.mxu0 %v1334
    %1470 = vmatprep.subr.mxu0 %v1339
    %1471 = vmatpush1.msra.mxu0 %v1338
    %1472 = vmatprep.subr.mxu0 %v1343
    %1473 = vmatpush1.msra.mxu0 %v1342
    %1474 = vmatprep.subr.mxu0 %v1347
    %1475 = vmatpush1.msra.mxu0 %v1346
    %1476 = vmatprep.subr.mxu0 %v1351
    %1477 = vmatpush1.msra.mxu0 %v1350
    %1478 = vmatprep.subr.mxu0 %v1355
    %1479 = vmatpush1.msra.mxu0 %v1354
    %1480 = vmatprep.subr.mxu0 %v1359
    %1481 = vmatpush1.msra.mxu0 %v1358
    %1482 = vmatprep.subr.mxu0 %v1363
    %1483 = vmatpush1.msra.mxu0 %v1362
    %1484 = vmatprep.subr.mxu0 %v1367
    %1485 = vmatpush1.msra.mxu0 %v1366
    %1486 = vmatprep.subr.mxu0 %v1371
    %1487 = vmatpush1.msra.mxu0 %v1370
    %1488 = vmatprep.subr.mxu0 %v1375
    %1489 = vmatpush1.msra.mxu0 %v1374
    %1490 = vmatprep.subr.mxu0 %v1379
    %1491 = vmatpush1.msra.mxu0 %v1378
    %1492 = vmatprep.subr.mxu0 %v1383
    %1493 = vmatpush1.msra.mxu0 %v1382
    %1494 = vmatprep.subr.mxu0 %v1387
    %1495 = vmatpush1.msra.mxu0 %v1386
    %1496 = vmatprep.subr.mxu0 %v1391
    %1497 = vmatpush1.msra.mxu0 %v1390
    %1498 = vmatprep.subr.mxu0 0.0
    %1499 = vmatpush1.msra.mxu0 0.0
    %1500 = vmatprep.subr.mxu0 0.0
    %1501 = vmatpush1.msra.mxu0 0.0
    %1502 = vmatprep.subr.mxu0 0.0
    %1503 = vmatpush1.msra.mxu0 0.0
    %1504 = vmatprep.subr.mxu0 0.0
    %1505 = vmatpush1.msra.mxu0 0.0
    %1506 = vmatprep.subr.mxu0 0.0
    %1507 = vmatpush1.msra.mxu0 0.0
    %1508 = vmatprep.subr.mxu0 0.0
    %1509 = vmatpush1.msra.mxu0 0.0
    %1510 = vmatprep.subr.mxu0 0.0
    %1511 = vmatpush1.msra.mxu0 0.0
    %1512 = vmatprep.subr.mxu0 0.0
    %1513 = vmatpush1.msra.mxu0 0.0
    %1514 = vmatprep.subr.mxu0 0.0
    %1515 = vmatpush1.msra.mxu0 0.0
    %1516 = vmatprep.subr.mxu0 0.0
    %1517 = vmatpush1.msra.mxu0 0.0
    %1518 = vmatprep.subr.mxu0 0.0
    %1519 = vmatpush1.msra.mxu0 0.0
    %1520 = vmatprep.subr.mxu0 0.0
    %1521 = vmatpush1.msra.mxu0 0.0
    %1522 = vmatprep.subr.mxu0 0.0
    %1523 = vmatpush1.msra.mxu0 0.0
    %1524 = vmatprep.subr.mxu0 0.0
    %1525 = vmatpush1.msra.mxu0 0.0
    %1526 = vmatprep.subr.mxu0 0.0
    %1527 = vmatpush1.msra.mxu0 0.0
    %1528 = vmatprep.subr.mxu0 0.0
    %1529 = vmatpush1.msra.mxu0 0.0
    %1530 = vmatprep.mubr.f32.mxu0 0.0
    %1531 = vmatmul.mubr.f32.gmra.mrb[0].mxu0 %v1393
    %v1532 = vpop.f32.mrb[0].mxu0
    %v1533 = vadd.f32 0.0, %v1532
    %v1534 = vpop.f32.mrb[0].mxu0
    %v1535 = vadd.f32 0.0, %v1534
    %1536 = vdwg.mxu0
    %v1537 = vadd.f32 %v1324, %v1462
    %v1538 = vadd.f32 %v1325, %v1464
    %v1539 = vadd.f32 %v1326, %v1533
    %v1540 = vadd.f32 %v1327, %v1535
    %v1541 = vxor.u32 %v1537, 2147483648
    %v1542 = vmul.f32 %v1541, 1.442695
    %v1543 = vpow.pop %v1542
    %v1544 = vadd.f32 %v1543, 1.0
    %v1545 = vrcp.pop %v1544
    %v1546 = vmul.f32 1.0, %v1545
    %v1547 = vxor.u32 %v1538, 2147483648
    %v1548 = vmul.f32 %v1547, 1.442695
    %v1549 = vpow.pop %v1548
    %v1550 = vadd.f32 %v1549, 1.0
    %v1551 = vrcp.pop %v1550
    %v1552 = vmul.f32 1.0, %v1551
    %v1553 = vtanh.pop %v1539
    %v1554 = vxor.u32 %v1540, 2147483648
    %v1555 = vmul.f32 %v1554, 1.442695
    %v1556 = vpow.pop %v1555
    %v1557 = vadd.f32 %v1556, 1.0
    %v1558 = vrcp.pop %v1557
    %v1559 = vmul.f32 1.0, %v1558
    %v1561 = vrot.slane %v1320, 4
    %v1563 = vmul.f32 %v1552, %v1561
    %v1564 = vmul.f32 %v1546, %v1553
    %v1565 = vadd.f32 %v1563, %v1564
    %v1566 = vtanh.pop %v1565
    %v1567 = vmul.f32 %v1559, %v1566
    %1568 = vst [vmem:[#allocation3 + $0x10] sm:$0xf] %v1567
    %v1569 = vld [vmem:[#allocation2 + $0x40] sm:$0xf0]
    %v1570 = vld [vmem:[#allocation2 + $0x48] sm:$0xf0]
    %v1571 = vld [vmem:[#allocation2 + $0x50] sm:$0xf0]
    %v1572 = vld [vmem:[#allocation2 + $0x58] sm:$0xf0]
    %v1573 = vld [vmem:[#allocation4] sm:$0xff]
    %v1574 = vld [vmem:[#allocation4 + $0x8] sm:$0xff]
    %v1575 = vld [vmem:[#allocation4 + $0x10] sm:$0xff]
    %v1576 = vld [vmem:[#allocation4 + $0x18] sm:$0xff]
    %v1577 = vld [vmem:[#allocation4 + $0x20] sm:$0xff]
    %v1578 = vld [vmem:[#allocation4 + $0x28] sm:$0xff]
    %v1579 = vld [vmem:[#allocation4 + $0x30] sm:$0xff]
    %v1580 = vld [vmem:[#allocation4 + $0x38] sm:$0xff]
    %v1581 = vld [vmem:[#allocation4 + $0x40] sm:$0xff]
    %v1582 = vld [vmem:[#allocation4 + $0x48] sm:$0xff]
    %v1583 = vld [vmem:[#allocation4 + $0x50] sm:$0xff]
    %v1584 = vld [vmem:[#allocation4 + $0x58] sm:$0xff]
    %v1585 = vld [vmem:[#allocation4 + $0x60] sm:$0xff]
    %v1586 = vld [vmem:[#allocation4 + $0x68] sm:$0xff]
    %v1587 = vld [vmem:[#allocation4 + $0x70] sm:$0xff]
    %v1588 = vld [vmem:[#allocation4 + $0x78] sm:$0xff]
    %v1589 = vld [vmem:[#allocation4 + $0x80] sm:$0xff]
    %v1590 = vld [vmem:[#allocation4 + $0x88] sm:$0xff]
    %v1591 = vld [vmem:[#allocation4 + $0x90] sm:$0xff]
    %v1592 = vld [vmem:[#allocation4 + $0x98] sm:$0xff]
    %v1593 = vld [vmem:[#allocation4 + $0xa0] sm:$0xff]
    %v1594 = vld [vmem:[#allocation4 + $0xa8] sm:$0xff]
    %v1595 = vld [vmem:[#allocation4 + $0xb0] sm:$0xff]
    %v1596 = vld [vmem:[#allocation4 + $0xb8] sm:$0xff]
    %v1597 = vld [vmem:[#allocation4 + $0xc0] sm:$0xff]
    %v1598 = vld [vmem:[#allocation4 + $0xc8] sm:$0xff]
    %v1599 = vld [vmem:[#allocation4 + $0xd0] sm:$0xff]
    %v1600 = vld [vmem:[#allocation4 + $0xd8] sm:$0xff]
    %v1601 = vld [vmem:[#allocation4 + $0xe0] sm:$0xff]
    %v1602 = vld [vmem:[#allocation4 + $0xe8] sm:$0xff]
    %v1603 = vld [vmem:[#allocation4 + $0xf0] sm:$0xff]
    %v1604 = vld [vmem:[#allocation4 + $0xf8] sm:$0xff]
    %v1605 = vld [vmem:[#allocation4 + $0x100] sm:$0xff]
    %v1606 = vld [vmem:[#allocation4 + $0x108] sm:$0xff]
    %v1607 = vld [vmem:[#allocation4 + $0x110] sm:$0xff]
    %v1608 = vld [vmem:[#allocation4 + $0x118] sm:$0xff]
    %v1609 = vld [vmem:[#allocation4 + $0x120] sm:$0xff]
    %v1610 = vld [vmem:[#allocation4 + $0x128] sm:$0xff]
    %v1611 = vld [vmem:[#allocation4 + $0x130] sm:$0xff]
    %v1612 = vld [vmem:[#allocation4 + $0x138] sm:$0xff]
    %v1613 = vld [vmem:[#allocation4 + $0x140] sm:$0xff]
    %v1614 = vld [vmem:[#allocation4 + $0x148] sm:$0xff]
    %v1615 = vld [vmem:[#allocation4 + $0x150] sm:$0xff]
    %v1616 = vld [vmem:[#allocation4 + $0x158] sm:$0xff]
    %v1617 = vld [vmem:[#allocation4 + $0x160] sm:$0xff]
    %v1618 = vld [vmem:[#allocation4 + $0x168] sm:$0xff]
    %v1619 = vld [vmem:[#allocation4 + $0x170] sm:$0xff]
    %v1620 = vld [vmem:[#allocation4 + $0x178] sm:$0xff]
    %v1621 = vld [vmem:[#allocation4 + $0x180] sm:$0xff]
    %v1622 = vld [vmem:[#allocation4 + $0x188] sm:$0xff]
    %v1623 = vld [vmem:[#allocation4 + $0x190] sm:$0xff]
    %v1624 = vld [vmem:[#allocation4 + $0x198] sm:$0xff]
    %v1625 = vld [vmem:[#allocation4 + $0x1a0] sm:$0xff]
    %v1626 = vld [vmem:[#allocation4 + $0x1a8] sm:$0xff]
    %v1627 = vld [vmem:[#allocation4 + $0x1b0] sm:$0xff]
    %v1628 = vld [vmem:[#allocation4 + $0x1b8] sm:$0xff]
    %v1629 = vld [vmem:[#allocation4 + $0x1c0] sm:$0xff]
    %v1630 = vld [vmem:[#allocation4 + $0x1c8] sm:$0xff]
    %v1631 = vld [vmem:[#allocation4 + $0x1d0] sm:$0xff]
    %v1632 = vld [vmem:[#allocation4 + $0x1d8] sm:$0xff]
    %v1633 = vld [vmem:[#allocation4 + $0x1e0] sm:$0xff]
    %v1634 = vld [vmem:[#allocation4 + $0x1e8] sm:$0xff]
    %v1635 = vld [vmem:[#allocation4 + $0x1f0] sm:$0xff]
    %v1636 = vld [vmem:[#allocation4 + $0x1f8] sm:$0xff]
    %1637 = vmatprep.subr.mxu0 %v1574
    %1638 = vmatpush1.msra.mxu0 %v1573
    %1639 = vmatprep.subr.mxu0 %v1578
    %1640 = vmatpush1.msra.mxu0 %v1577
    %1641 = vmatprep.subr.mxu0 %v1582
    %1642 = vmatpush1.msra.mxu0 %v1581
    %1643 = vmatprep.subr.mxu0 %v1586
    %1644 = vmatpush1.msra.mxu0 %v1585
    %1645 = vmatprep.subr.mxu0 %v1590
    %1646 = vmatpush1.msra.mxu0 %v1589
    %1647 = vmatprep.subr.mxu0 %v1594
    %1648 = vmatpush1.msra.mxu0 %v1593
    %1649 = vmatprep.subr.mxu0 %v1598
    %1650 = vmatpush1.msra.mxu0 %v1597
    %1651 = vmatprep.subr.mxu0 %v1602
    %1652 = vmatpush1.msra.mxu0 %v1601
    %1653 = vmatprep.subr.mxu0 %v1606
    %1654 = vmatpush1.msra.mxu0 %v1605
    %1655 = vmatprep.subr.mxu0 %v1610
    %1656 = vmatpush1.msra.mxu0 %v1609
    %1657 = vmatprep.subr.mxu0 %v1614
    %1658 = vmatpush1.msra.mxu0 %v1613
    %1659 = vmatprep.subr.mxu0 %v1618
    %1660 = vmatpush1.msra.mxu0 %v1617
    %1661 = vmatprep.subr.mxu0 %v1622
    %1662 = vmatpush1.msra.mxu0 %v1621
    %1663 = vmatprep.subr.mxu0 %v1626
    %1664 = vmatpush1.msra.mxu0 %v1625
    %1665 = vmatprep.subr.mxu0 %v1630
    %1666 = vmatpush1.msra.mxu0 %v1629
    %1667 = vmatprep.subr.mxu0 %v1634
    %1668 = vmatpush1.msra.mxu0 %v1633
    %1669 = vmatprep.subr.mxu0 0.0
    %1670 = vmatpush1.msra.mxu0 0.0
    %1671 = vmatprep.subr.mxu0 0.0
    %1672 = vmatpush1.msra.mxu0 0.0
    %1673 = vmatprep.subr.mxu0 0.0
    %1674 = vmatpush1.msra.mxu0 0.0
    %1675 = vmatprep.subr.mxu0 0.0
    %1676 = vmatpush1.msra.mxu0 0.0
    %1677 = vmatprep.subr.mxu0 0.0
    %1678 = vmatpush1.msra.mxu0 0.0
    %1679 = vmatprep.subr.mxu0 0.0
    %1680 = vmatpush1.msra.mxu0 0.0
    %1681 = vmatprep.subr.mxu0 0.0
    %1682 = vmatpush1.msra.mxu0 0.0
    %1683 = vmatprep.subr.mxu0 0.0
    %1684 = vmatpush1.msra.mxu0 0.0
    %1685 = vmatprep.subr.mxu0 0.0
    %1686 = vmatpush1.msra.mxu0 0.0
    %1687 = vmatprep.subr.mxu0 0.0
    %1688 = vmatpush1.msra.mxu0 0.0
    %1689 = vmatprep.subr.mxu0 0.0
    %1690 = vmatpush1.msra.mxu0 0.0
    %1691 = vmatprep.subr.mxu0 0.0
    %1692 = vmatpush1.msra.mxu0 0.0
    %1693 = vmatprep.subr.mxu0 0.0
    %1694 = vmatpush1.msra.mxu0 0.0
    %1695 = vmatprep.subr.mxu0 0.0
    %1696 = vmatpush1.msra.mxu0 0.0
    %1697 = vmatprep.subr.mxu0 0.0
    %1698 = vmatpush1.msra.mxu0 0.0
    %1699 = vmatprep.subr.mxu0 0.0
    %1700 = vmatpush1.msra.mxu0 0.0
    %1701 = vmatprep.mubr.f32.mxu0 0.0
    %1702 = vmatmul.mubr.f32.gmra.mrb[0].mxu0 %v1567
    %v1703 = vpop.f32.mrb[0].mxu0
    %v1704 = vadd.f32 0.0, %v1703
    %v1705 = vpop.f32.mrb[0].mxu0
    %v1706 = vadd.f32 0.0, %v1705
    %1707 = vdwg.mxu0
    %1708 = vmatprep.subr.mxu0 %v1576
    %1709 = vmatpush1.msra.mxu0 %v1575
    %1710 = vmatprep.subr.mxu0 %v1580
    %1711 = vmatpush1.msra.mxu0 %v1579
    %1712 = vmatprep.subr.mxu0 %v1584
    %1713 = vmatpush1.msra.mxu0 %v1583
    %1714 = vmatprep.subr.mxu0 %v1588
    %1715 = vmatpush1.msra.mxu0 %v1587
    %1716 = vmatprep.subr.mxu0 %v1592
    %1717 = vmatpush1.msra.mxu0 %v1591
    %1718 = vmatprep.subr.mxu0 %v1596
    %1719 = vmatpush1.msra.mxu0 %v1595
    %1720 = vmatprep.subr.mxu0 %v1600
    %1721 = vmatpush1.msra.mxu0 %v1599
    %1722 = vmatprep.subr.mxu0 %v1604
    %1723 = vmatpush1.msra.mxu0 %v1603
    %1724 = vmatprep.subr.mxu0 %v1608
    %1725 = vmatpush1.msra.mxu0 %v1607
    %1726 = vmatprep.subr.mxu0 %v1612
    %1727 = vmatpush1.msra.mxu0 %v1611
    %1728 = vmatprep.subr.mxu0 %v1616
    %1729 = vmatpush1.msra.mxu0 %v1615
    %1730 = vmatprep.subr.mxu0 %v1620
    %1731 = vmatpush1.msra.mxu0 %v1619
    %1732 = vmatprep.subr.mxu0 %v1624
    %1733 = vmatpush1.msra.mxu0 %v1623
    %1734 = vmatprep.subr.mxu0 %v1628
    %1735 = vmatpush1.msra.mxu0 %v1627
    %1736 = vmatprep.subr.mxu0 %v1632
    %1737 = vmatpush1.msra.mxu0 %v1631
    %1738 = vmatprep.subr.mxu0 %v1636
    %1739 = vmatpush1.msra.mxu0 %v1635
    %1740 = vmatprep.subr.mxu0 0.0
    %1741 = vmatpush1.msra.mxu0 0.0
    %1742 = vmatprep.subr.mxu0 0.0
    %1743 = vmatpush1.msra.mxu0 0.0
    %1744 = vmatprep.subr.mxu0 0.0
    %1745 = vmatpush1.msra.mxu0 0.0
    %1746 = vmatprep.subr.mxu0 0.0
    %1747 = vmatpush1.msra.mxu0 0.0
    %1748 = vmatprep.subr.mxu0 0.0
    %1749 = vmatpush1.msra.mxu0 0.0
    %1750 = vmatprep.subr.mxu0 0.0
    %1751 = vmatpush1.msra.mxu0 0.0
    %1752 = vmatprep.subr.mxu0 0.0
    %1753 = vmatpush1.msra.mxu0 0.0
    %1754 = vmatprep.subr.mxu0 0.0
    %1755 = vmatpush1.msra.mxu0 0.0
    %1756 = vmatprep.subr.mxu0 0.0
    %1757 = vmatpush1.msra.mxu0 0.0
    %1758 = vmatprep.subr.mxu0 0.0
    %1759 = vmatpush1.msra.mxu0 0.0
    %1760 = vmatprep.subr.mxu0 0.0
    %1761 = vmatpush1.msra.mxu0 0.0
    %1762 = vmatprep.subr.mxu0 0.0
    %1763 = vmatpush1.msra.mxu0 0.0
    %1764 = vmatprep.subr.mxu0 0.0
    %1765 = vmatpush1.msra.mxu0 0.0
    %1766 = vmatprep.subr.mxu0 0.0
    %1767 = vmatpush1.msra.mxu0 0.0
    %1768 = vmatprep.subr.mxu0 0.0
    %1769 = vmatpush1.msra.mxu0 0.0
    %1770 = vmatprep.subr.mxu0 0.0
    %1771 = vmatpush1.msra.mxu0 0.0
    %1772 = vmatprep.mubr.f32.mxu0 0.0
    %1773 = vmatmul.mubr.f32.gmra.mrb[0].mxu0 %v1567
    %v1774 = vpop.f32.mrb[0].mxu0
    %v1775 = vadd.f32 0.0, %v1774
    %v1776 = vpop.f32.mrb[0].mxu0
    %v1777 = vadd.f32 0.0, %v1776
    %1778 = vdwg.mxu0
    %v1783 = vrot.slane %v1704, 4
    %v1784 = vrot.slane %v1706, 4
    %v1785 = vrot.slane %v1775, 4
    %v1786 = vrot.slane %v1777, 4
    %v1791 = vadd.f32 %v1569, %v1783
    %v1792 = vadd.f32 %v1570, %v1784
    %v1793 = vadd.f32 %v1571, %v1785
    %v1794 = vadd.f32 %v1572, %v1786
    %v1795 = vxor.u32 %v1791, 2147483648
    %v1796 = vmul.f32 %v1795, 1.442695
    %v1797 = vpow.pop %v1796
    %v1798 = vadd.f32 %v1797, 1.0
    %v1799 = vrcp.pop %v1798
    %v1800 = vmul.f32 1.0, %v1799
    %v1801 = vxor.u32 %v1792, 2147483648
    %v1802 = vmul.f32 %v1801, 1.442695
    %v1803 = vpow.pop %v1802
    %v1804 = vadd.f32 %v1803, 1.0
    %v1805 = vrcp.pop %v1804
    %v1806 = vmul.f32 1.0, %v1805
    %v1807 = vtanh.pop %v1793
    %v1808 = vxor.u32 %v1794, 2147483648
    %v1809 = vmul.f32 %v1808, 1.442695
    %v1810 = vpow.pop %v1809
    %v1811 = vadd.f32 %v1810, 1.0
    %v1812 = vrcp.pop %v1811
    %v1813 = vmul.f32 1.0, %v1812
    %v1815 = vrot.slane %v1565, 4
    %v1817 = vmul.f32 %v1806, %v1815
    %v1818 = vmul.f32 %v1800, %v1807
    %v1819 = vadd.f32 %v1817, %v1818
    %v1820 = vtanh.pop %v1819
    %v1821 = vmul.f32 %v1813, %v1820
    %1822 = vst [vmem:[#allocation3 + $0x10] sm:$0xf0] %v1821
    %v1823 = vld [vmem:[#allocation2 + $0x60] sm:$0xf]
    %v1824 = vld [vmem:[#allocation2 + $0x68] sm:$0xf]
    %v1825 = vld [vmem:[#allocation2 + $0x70] sm:$0xf]
    %v1826 = vld [vmem:[#allocation2 + $0x78] sm:$0xf]
    %v1827 = vld [vmem:[#allocation4] sm:$0xff]
    %v1828 = vld [vmem:[#allocation4 + $0x8] sm:$0xff]
    %v1829 = vld [vmem:[#allocation4 + $0x10] sm:$0xff]
    %v1830 = vld [vmem:[#allocation4 + $0x18] sm:$0xff]
    %v1831 = vld [vmem:[#allocation4 + $0x20] sm:$0xff]
    %v1832 = vld [vmem:[#allocation4 + $0x28] sm:$0xff]
    %v1833 = vld [vmem:[#allocation4 + $0x30] sm:$0xff]
    %v1834 = vld [vmem:[#allocation4 + $0x38] sm:$0xff]
    %v1835 = vld [vmem:[#allocation4 + $0x40] sm:$0xff]
    %v1836 = vld [vmem:[#allocation4 + $0x48] sm:$0xff]
    %v1837 = vld [vmem:[#allocation4 + $0x50] sm:$0xff]
    %v1838 = vld [vmem:[#allocation4 + $0x58] sm:$0xff]
    %v1839 = vld [vmem:[#allocation4 + $0x60] sm:$0xff]
    %v1840 = vld [vmem:[#allocation4 + $0x68] sm:$0xff]
    %v1841 = vld [vmem:[#allocation4 + $0x70] sm:$0xff]
    %v1842 = vld [vmem:[#allocation4 + $0x78] sm:$0xff]
    %v1843 = vld [vmem:[#allocation4 + $0x80] sm:$0xff]
    %v1844 = vld [vmem:[#allocation4 + $0x88] sm:$0xff]
    %v1845 = vld [vmem:[#allocation4 + $0x90] sm:$0xff]
    %v1846 = vld [vmem:[#allocation4 + $0x98] sm:$0xff]
    %v1847 = vld [vmem:[#allocation4 + $0xa0] sm:$0xff]
    %v1848 = vld [vmem:[#allocation4 + $0xa8] sm:$0xff]
    %v1849 = vld [vmem:[#allocation4 + $0xb0] sm:$0xff]
    %v1850 = vld [vmem:[#allocation4 + $0xb8] sm:$0xff]
    %v1851 = vld [vmem:[#allocation4 + $0xc0] sm:$0xff]
    %v1852 = vld [vmem:[#allocation4 + $0xc8] sm:$0xff]
    %v1853 = vld [vmem:[#allocation4 + $0xd0] sm:$0xff]
    %v1854 = vld [vmem:[#allocation4 + $0xd8] sm:$0xff]
    %v1855 = vld [vmem:[#allocation4 + $0xe0] sm:$0xff]
    %v1856 = vld [vmem:[#allocation4 + $0xe8] sm:$0xff]
    %v1857 = vld [vmem:[#allocation4 + $0xf0] sm:$0xff]
    %v1858 = vld [vmem:[#allocation4 + $0xf8] sm:$0xff]
    %v1859 = vld [vmem:[#allocation4 + $0x100] sm:$0xff]
    %v1860 = vld [vmem:[#allocation4 + $0x108] sm:$0xff]
    %v1861 = vld [vmem:[#allocation4 + $0x110] sm:$0xff]
    %v1862 = vld [vmem:[#allocation4 + $0x118] sm:$0xff]
    %v1863 = vld [vmem:[#allocation4 + $0x120] sm:$0xff]
    %v1864 = vld [vmem:[#allocation4 + $0x128] sm:$0xff]
    %v1865 = vld [vmem:[#allocation4 + $0x130] sm:$0xff]
    %v1866 = vld [vmem:[#allocation4 + $0x138] sm:$0xff]
    %v1867 = vld [vmem:[#allocation4 + $0x140] sm:$0xff]
    %v1868 = vld [vmem:[#allocation4 + $0x148] sm:$0xff]
    %v1869 = vld [vmem:[#allocation4 + $0x150] sm:$0xff]
    %v1870 = vld [vmem:[#allocation4 + $0x158] sm:$0xff]
    %v1871 = vld [vmem:[#allocation4 + $0x160] sm:$0xff]
    %v1872 = vld [vmem:[#allocation4 + $0x168] sm:$0xff]
    %v1873 = vld [vmem:[#allocation4 + $0x170] sm:$0xff]
    %v1874 = vld [vmem:[#allocation4 + $0x178] sm:$0xff]
    %v1875 = vld [vmem:[#allocation4 + $0x180] sm:$0xff]
    %v1876 = vld [vmem:[#allocation4 + $0x188] sm:$0xff]
    %v1877 = vld [vmem:[#allocation4 + $0x190] sm:$0xff]
    %v1878 = vld [vmem:[#allocation4 + $0x198] sm:$0xff]
    %v1879 = vld [vmem:[#allocation4 + $0x1a0] sm:$0xff]
    %v1880 = vld [vmem:[#allocation4 + $0x1a8] sm:$0xff]
    %v1881 = vld [vmem:[#allocation4 + $0x1b0] sm:$0xff]
    %v1882 = vld [vmem:[#allocation4 + $0x1b8] sm:$0xff]
    %v1883 = vld [vmem:[#allocation4 + $0x1c0] sm:$0xff]
    %v1884 = vld [vmem:[#allocation4 + $0x1c8] sm:$0xff]
    %v1885 = vld [vmem:[#allocation4 + $0x1d0] sm:$0xff]
    %v1886 = vld [vmem:[#allocation4 + $0x1d8] sm:$0xff]
    %v1887 = vld [vmem:[#allocation4 + $0x1e0] sm:$0xff]
    %v1888 = vld [vmem:[#allocation4 + $0x1e8] sm:$0xff]
    %v1889 = vld [vmem:[#allocation4 + $0x1f0] sm:$0xff]
    %v1890 = vld [vmem:[#allocation4 + $0x1f8] sm:$0xff]
    %v1892 = vrot.slane %v1821, 4
    %1894 = vmatprep.subr.mxu0 %v1828
    %1895 = vmatpush1.msra.mxu0 %v1827
    %1896 = vmatprep.subr.mxu0 %v1832
    %1897 = vmatpush1.msra.mxu0 %v1831
    %1898 = vmatprep.subr.mxu0 %v1836
    %1899 = vmatpush1.msra.mxu0 %v1835
    %1900 = vmatprep.subr.mxu0 %v1840
    %1901 = vmatpush1.msra.mxu0 %v1839
    %1902 = vmatprep.subr.mxu0 %v1844
    %1903 = vmatpush1.msra.mxu0 %v1843
    %1904 = vmatprep.subr.mxu0 %v1848
    %1905 = vmatpush1.msra.mxu0 %v1847
    %1906 = vmatprep.subr.mxu0 %v1852
    %1907 = vmatpush1.msra.mxu0 %v1851
    %1908 = vmatprep.subr.mxu0 %v1856
    %1909 = vmatpush1.msra.mxu0 %v1855
    %1910 = vmatprep.subr.mxu0 %v1860
    %1911 = vmatpush1.msra.mxu0 %v1859
    %1912 = vmatprep.subr.mxu0 %v1864
    %1913 = vmatpush1.msra.mxu0 %v1863
    %1914 = vmatprep.subr.mxu0 %v1868
    %1915 = vmatpush1.msra.mxu0 %v1867
    %1916 = vmatprep.subr.mxu0 %v1872
    %1917 = vmatpush1.msra.mxu0 %v1871
    %1918 = vmatprep.subr.mxu0 %v1876
    %1919 = vmatpush1.msra.mxu0 %v1875
    %1920 = vmatprep.subr.mxu0 %v1880
    %1921 = vmatpush1.msra.mxu0 %v1879
    %1922 = vmatprep.subr.mxu0 %v1884
    %1923 = vmatpush1.msra.mxu0 %v1883
    %1924 = vmatprep.subr.mxu0 %v1888
    %1925 = vmatpush1.msra.mxu0 %v1887
    %1926 = vmatprep.subr.mxu0 0.0
    %1927 = vmatpush1.msra.mxu0 0.0
    %1928 = vmatprep.subr.mxu0 0.0
    %1929 = vmatpush1.msra.mxu0 0.0
    %1930 = vmatprep.subr.mxu0 0.0
    %1931 = vmatpush1.msra.mxu0 0.0
    %1932 = vmatprep.subr.mxu0 0.0
    %1933 = vmatpush1.msra.mxu0 0.0
    %1934 = vmatprep.subr.mxu0 0.0
    %1935 = vmatpush1.msra.mxu0 0.0
    %1936 = vmatprep.subr.mxu0 0.0
    %1937 = vmatpush1.msra.mxu0 0.0
    %1938 = vmatprep.subr.mxu0 0.0
    %1939 = vmatpush1.msra.mxu0 0.0
    %1940 = vmatprep.subr.mxu0 0.0
    %1941 = vmatpush1.msra.mxu0 0.0
    %1942 = vmatprep.subr.mxu0 0.0
    %1943 = vmatpush1.msra.mxu0 0.0
    %1944 = vmatprep.subr.mxu0 0.0
    %1945 = vmatpush1.msra.mxu0 0.0
    %1946 = vmatprep.subr.mxu0 0.0
    %1947 = vmatpush1.msra.mxu0 0.0
    %1948 = vmatprep.subr.mxu0 0.0
    %1949 = vmatpush1.msra.mxu0 0.0
    %1950 = vmatprep.subr.mxu0 0.0
    %1951 = vmatpush1.msra.mxu0 0.0
    %1952 = vmatprep.subr.mxu0 0.0
    %1953 = vmatpush1.msra.mxu0 0.0
    %1954 = vmatprep.subr.mxu0 0.0
    %1955 = vmatpush1.msra.mxu0 0.0
    %1956 = vmatprep.subr.mxu0 0.0
    %1957 = vmatpush1.msra.mxu0 0.0
    %1958 = vmatprep.mubr.f32.mxu0 0.0
    %1959 = vmatmul.mubr.f32.gmra.mrb[0].mxu0 %v1892
    %v1960 = vpop.f32.mrb[0].mxu0
    %v1961 = vadd.f32 0.0, %v1960
    %v1962 = vpop.f32.mrb[0].mxu0
    %v1963 = vadd.f32 0.0, %v1962
    %1964 = vdwg.mxu0
    %1965 = vmatprep.subr.mxu0 %v1830
    %1966 = vmatpush1.msra.mxu0 %v1829
    %1967 = vmatprep.subr.mxu0 %v1834
    %1968 = vmatpush1.msra.mxu0 %v1833
    %1969 = vmatprep.subr.mxu0 %v1838
    %1970 = vmatpush1.msra.mxu0 %v1837
    %1971 = vmatprep.subr.mxu0 %v1842
    %1972 = vmatpush1.msra.mxu0 %v1841
    %1973 = vmatprep.subr.mxu0 %v1846
    %1974 = vmatpush1.msra.mxu0 %v1845
    %1975 = vmatprep.subr.mxu0 %v1850
    %1976 = vmatpush1.msra.mxu0 %v1849
    %1977 = vmatprep.subr.mxu0 %v1854
    %1978 = vmatpush1.msra.mxu0 %v1853
    %1979 = vmatprep.subr.mxu0 %v1858
    %1980 = vmatpush1.msra.mxu0 %v1857
    %1981 = vmatprep.subr.mxu0 %v1862
    %1982 = vmatpush1.msra.mxu0 %v1861
    %1983 = vmatprep.subr.mxu0 %v1866
    %1984 = vmatpush1.msra.mxu0 %v1865
    %1985 = vmatprep.subr.mxu0 %v1870
    %1986 = vmatpush1.msra.mxu0 %v1869
    %1987 = vmatprep.subr.mxu0 %v1874
    %1988 = vmatpush1.msra.mxu0 %v1873
    %1989 = vmatprep.subr.mxu0 %v1878
    %1990 = vmatpush1.msra.mxu0 %v1877
    %1991 = vmatprep.subr.mxu0 %v1882
    %1992 = vmatpush1.msra.mxu0 %v1881
    %1993 = vmatprep.subr.mxu0 %v1886
    %1994 = vmatpush1.msra.mxu0 %v1885
    %1995 = vmatprep.subr.mxu0 %v1890
    %1996 = vmatpush1.msra.mxu0 %v1889
    %1997 = vmatprep.subr.mxu0 0.0
    %1998 = vmatpush1.msra.mxu0 0.0
    %1999 = vmatprep.subr.mxu0 0.0
    %2000 = vmatpush1.msra.mxu0 0.0
    %2001 = vmatprep.subr.mxu0 0.0
    %2002 = vmatpush1.msra.mxu0 0.0
    %2003 = vmatprep.subr.mxu0 0.0
    %2004 = vmatpush1.msra.mxu0 0.0
    %2005 = vmatprep.subr.mxu0 0.0
    %2006 = vmatpush1.msra.mxu0 0.0
    %2007 = vmatprep.subr.mxu0 0.0
    %2008 = vmatpush1.msra.mxu0 0.0
    %2009 = vmatprep.subr.mxu0 0.0
    %2010 = vmatpush1.msra.mxu0 0.0
    %2011 = vmatprep.subr.mxu0 0.0
    %2012 = vmatpush1.msra.mxu0 0.0
    %2013 = vmatprep.subr.mxu0 0.0
    %2014 = vmatpush1.msra.mxu0 0.0
    %2015 = vmatprep.subr.mxu0 0.0
    %2016 = vmatpush1.msra.mxu0 0.0
    %2017 = vmatprep.subr.mxu0 0.0
    %2018 = vmatpush1.msra.mxu0 0.0
    %2019 = vmatprep.subr.mxu0 0.0
    %2020 = vmatpush1.msra.mxu0 0.0
    %2021 = vmatprep.subr.mxu0 0.0
    %2022 = vmatpush1.msra.mxu0 0.0
    %2023 = vmatprep.subr.mxu0 0.0
    %2024 = vmatpush1.msra.mxu0 0.0
    %2025 = vmatprep.subr.mxu0 0.0
    %2026 = vmatpush1.msra.mxu0 0.0
    %2027 = vmatprep.subr.mxu0 0.0
    %2028 = vmatpush1.msra.mxu0 0.0
    %2029 = vmatprep.mubr.f32.mxu0 0.0
    %2030 = vmatmul.mubr.f32.gmra.mrb[0].mxu0 %v1892
    %v2031 = vpop.f32.mrb[0].mxu0
    %v2032 = vadd.f32 0.0, %v2031
    %v2033 = vpop.f32.mrb[0].mxu0
    %v2034 = vadd.f32 0.0, %v2033
    %2035 = vdwg.mxu0
    %v2036 = vadd.f32 %v1823, %v1961
    %v2037 = vadd.f32 %v1824, %v1963
    %v2038 = vadd.f32 %v1825, %v2032
    %v2039 = vadd.f32 %v1826, %v2034
    %v2040 = vxor.u32 %v2036, 2147483648
    %v2041 = vmul.f32 %v2040, 1.442695
    %v2042 = vpow.pop %v2041
    %v2043 = vadd.f32 %v2042, 1.0
    %v2044 = vrcp.pop %v2043
    %v2045 = vmul.f32 1.0, %v2044
    %v2046 = vxor.u32 %v2037, 2147483648
    %v2047 = vmul.f32 %v2046, 1.442695
    %v2048 = vpow.pop %v2047
    %v2049 = vadd.f32 %v2048, 1.0
    %v2050 = vrcp.pop %v2049
    %v2051 = vmul.f32 1.0, %v2050
    %v2052 = vtanh.pop %v2038
    %v2053 = vxor.u32 %v2039, 2147483648
    %v2054 = vmul.f32 %v2053, 1.442695
    %v2055 = vpow.pop %v2054
    %v2056 = vadd.f32 %v2055, 1.0
    %v2057 = vrcp.pop %v2056
    %v2058 = vmul.f32 1.0, %v2057
    %v2060 = vrot.slane %v1819, 4
    %v2062 = vmul.f32 %v2051, %v2060
    %v2063 = vmul.f32 %v2045, %v2052
    %v2064 = vadd.f32 %v2062, %v2063
    %v2065 = vtanh.pop %v2064
    %v2066 = vmul.f32 %v2058, %v2065
    %2067 = vst [vmem:[#allocation3 + $0x18] sm:$0xf] %v2066
    %v2068 = vld [vmem:[#allocation2 + $0x60] sm:$0xf0]
    %v2069 = vld [vmem:[#allocation2 + $0x68] sm:$0xf0]
    %v2070 = vld [vmem:[#allocation2 + $0x70] sm:$0xf0]
    %v2071 = vld [vmem:[#allocation2 + $0x78] sm:$0xf0]
    %v2072 = vld [vmem:[#allocation4] sm:$0xff]
    %v2073 = vld [vmem:[#allocation4 + $0x8] sm:$0xff]
    %v2074 = vld [vmem:[#allocation4 + $0x10] sm:$0xff]
    %v2075 = vld [vmem:[#allocation4 + $0x18] sm:$0xff]
    %v2076 = vld [vmem:[#allocation4 + $0x20] sm:$0xff]
    %v2077 = vld [vmem:[#allocation4 + $0x28] sm:$0xff]
    %v2078 = vld [vmem:[#allocation4 + $0x30] sm:$0xff]
    %v2079 = vld [vmem:[#allocation4 + $0x38] sm:$0xff]
    %v2080 = vld [vmem:[#allocation4 + $0x40] sm:$0xff]
    %v2081 = vld [vmem:[#allocation4 + $0x48] sm:$0xff]
    %v2082 = vld [vmem:[#allocation4 + $0x50] sm:$0xff]
    %v2083 = vld [vmem:[#allocation4 + $0x58] sm:$0xff]
    %v2084 = vld [vmem:[#allocation4 + $0x60] sm:$0xff]
    %v2085 = vld [vmem:[#allocation4 + $0x68] sm:$0xff]
    %v2086 = vld [vmem:[#allocation4 + $0x70] sm:$0xff]
    %v2087 = vld [vmem:[#allocation4 + $0x78] sm:$0xff]
    %v2088 = vld [vmem:[#allocation4 + $0x80] sm:$0xff]
    %v2089 = vld [vmem:[#allocation4 + $0x88] sm:$0xff]
    %v2090 = vld [vmem:[#allocation4 + $0x90] sm:$0xff]
    %v2091 = vld [vmem:[#allocation4 + $0x98] sm:$0xff]
    %v2092 = vld [vmem:[#allocation4 + $0xa0] sm:$0xff]
    %v2093 = vld [vmem:[#allocation4 + $0xa8] sm:$0xff]
    %v2094 = vld [vmem:[#allocation4 + $0xb0] sm:$0xff]
    %v2095 = vld [vmem:[#allocation4 + $0xb8] sm:$0xff]
    %v2096 = vld [vmem:[#allocation4 + $0xc0] sm:$0xff]
    %v2097 = vld [vmem:[#allocation4 + $0xc8] sm:$0xff]
    %v2098 = vld [vmem:[#allocation4 + $0xd0] sm:$0xff]
    %v2099 = vld [vmem:[#allocation4 + $0xd8] sm:$0xff]
    %v2100 = vld [vmem:[#allocation4 + $0xe0] sm:$0xff]
    %v2101 = vld [vmem:[#allocation4 + $0xe8] sm:$0xff]
    %v2102 = vld [vmem:[#allocation4 + $0xf0] sm:$0xff]
    %v2103 = vld [vmem:[#allocation4 + $0xf8] sm:$0xff]
    %v2104 = vld [vmem:[#allocation4 + $0x100] sm:$0xff]
    %v2105 = vld [vmem:[#allocation4 + $0x108] sm:$0xff]
    %v2106 = vld [vmem:[#allocation4 + $0x110] sm:$0xff]
    %v2107 = vld [vmem:[#allocation4 + $0x118] sm:$0xff]
    %v2108 = vld [vmem:[#allocation4 + $0x120] sm:$0xff]
    %v2109 = vld [vmem:[#allocation4 + $0x128] sm:$0xff]
    %v2110 = vld [vmem:[#allocation4 + $0x130] sm:$0xff]
    %v2111 = vld [vmem:[#allocation4 + $0x138] sm:$0xff]
    %v2112 = vld [vmem:[#allocation4 + $0x140] sm:$0xff]
    %v2113 = vld [vmem:[#allocation4 + $0x148] sm:$0xff]
    %v2114 = vld [vmem:[#allocation4 + $0x150] sm:$0xff]
    %v2115 = vld [vmem:[#allocation4 + $0x158] sm:$0xff]
    %v2116 = vld [vmem:[#allocation4 + $0x160] sm:$0xff]
    %v2117 = vld [vmem:[#allocation4 + $0x168] sm:$0xff]
    %v2118 = vld [vmem:[#allocation4 + $0x170] sm:$0xff]
    %v2119 = vld [vmem:[#allocation4 + $0x178] sm:$0xff]
    %v2120 = vld [vmem:[#allocation4 + $0x180] sm:$0xff]
    %v2121 = vld [vmem:[#allocation4 + $0x188] sm:$0xff]
    %v2122 = vld [vmem:[#allocation4 + $0x190] sm:$0xff]
    %v2123 = vld [vmem:[#allocation4 + $0x198] sm:$0xff]
    %v2124 = vld [vmem:[#allocation4 + $0x1a0] sm:$0xff]
    %v2125 = vld [vmem:[#allocation4 + $0x1a8] sm:$0xff]
    %v2126 = vld [vmem:[#allocation4 + $0x1b0] sm:$0xff]
    %v2127 = vld [vmem:[#allocation4 + $0x1b8] sm:$0xff]
    %v2128 = vld [vmem:[#allocation4 + $0x1c0] sm:$0xff]
    %v2129 = vld [vmem:[#allocation4 + $0x1c8] sm:$0xff]
    %v2130 = vld [vmem:[#allocation4 + $0x1d0] sm:$0xff]
    %v2131 = vld [vmem:[#allocation4 + $0x1d8] sm:$0xff]
    %v2132 = vld [vmem:[#allocation4 + $0x1e0] sm:$0xff]
    %v2133 = vld [vmem:[#allocation4 + $0x1e8] sm:$0xff]
    %v2134 = vld [vmem:[#allocation4 + $0x1f0] sm:$0xff]
    %v2135 = vld [vmem:[#allocation4 + $0x1f8] sm:$0xff]
    %2136 = vmatprep.subr.mxu0 %v2073
    %2137 = vmatpush1.msra.mxu0 %v2072
    %2138 = vmatprep.subr.mxu0 %v2077
    %2139 = vmatpush1.msra.mxu0 %v2076
    %2140 = vmatprep.subr.mxu0 %v2081
    %2141 = vmatpush1.msra.mxu0 %v2080
    %2142 = vmatprep.subr.mxu0 %v2085
    %2143 = vmatpush1.msra.mxu0 %v2084
    %2144 = vmatprep.subr.mxu0 %v2089
    %2145 = vmatpush1.msra.mxu0 %v2088
    %2146 = vmatprep.subr.mxu0 %v2093
    %2147 = vmatpush1.msra.mxu0 %v2092
    %2148 = vmatprep.subr.mxu0 %v2097
    %2149 = vmatpush1.msra.mxu0 %v2096
    %2150 = vmatprep.subr.mxu0 %v2101
    %2151 = vmatpush1.msra.mxu0 %v2100
    %2152 = vmatprep.subr.mxu0 %v2105
    %2153 = vmatpush1.msra.mxu0 %v2104
    %2154 = vmatprep.subr.mxu0 %v2109
    %2155 = vmatpush1.msra.mxu0 %v2108
    %2156 = vmatprep.subr.mxu0 %v2113
    %2157 = vmatpush1.msra.mxu0 %v2112
    %2158 = vmatprep.subr.mxu0 %v2117
    %2159 = vmatpush1.msra.mxu0 %v2116
    %2160 = vmatprep.subr.mxu0 %v2121
    %2161 = vmatpush1.msra.mxu0 %v2120
    %2162 = vmatprep.subr.mxu0 %v2125
    %2163 = vmatpush1.msra.mxu0 %v2124
    %2164 = vmatprep.subr.mxu0 %v2129
    %2165 = vmatpush1.msra.mxu0 %v2128
    %2166 = vmatprep.subr.mxu0 %v2133
    %2167 = vmatpush1.msra.mxu0 %v2132
    %2168 = vmatprep.subr.mxu0 0.0
    %2169 = vmatpush1.msra.mxu0 0.0
    %2170 = vmatprep.subr.mxu0 0.0
    %2171 = vmatpush1.msra.mxu0 0.0
    %2172 = vmatprep.subr.mxu0 0.0
    %2173 = vmatpush1.msra.mxu0 0.0
    %2174 = vmatprep.subr.mxu0 0.0
    %2175 = vmatpush1.msra.mxu0 0.0
    %2176 = vmatprep.subr.mxu0 0.0
    %2177 = vmatpush1.msra.mxu0 0.0
    %2178 = vmatprep.subr.mxu0 0.0
    %2179 = vmatpush1.msra.mxu0 0.0
    %2180 = vmatprep.subr.mxu0 0.0
    %2181 = vmatpush1.msra.mxu0 0.0
    %2182 = vmatprep.subr.mxu0 0.0
    %2183 = vmatpush1.msra.mxu0 0.0
    %2184 = vmatprep.subr.mxu0 0.0
    %2185 = vmatpush1.msra.mxu0 0.0
    %2186 = vmatprep.subr.mxu0 0.0
    %2187 = vmatpush1.msra.mxu0 0.0
    %2188 = vmatprep.subr.mxu0 0.0
    %2189 = vmatpush1.msra.mxu0 0.0
    %2190 = vmatprep.subr.mxu0 0.0
    %2191 = vmatpush1.msra.mxu0 0.0
    %2192 = vmatprep.subr.mxu0 0.0
    %2193 = vmatpush1.msra.mxu0 0.0
    %2194 = vmatprep.subr.mxu0 0.0
    %2195 = vmatpush1.msra.mxu0 0.0
    %2196 = vmatprep.subr.mxu0 0.0
    %2197 = vmatpush1.msra.mxu0 0.0
    %2198 = vmatprep.subr.mxu0 0.0
    %2199 = vmatpush1.msra.mxu0 0.0
    %2200 = vmatprep.mubr.f32.mxu0 0.0
    %2201 = vmatmul.mubr.f32.gmra.mrb[0].mxu0 %v2066
    %v2202 = vpop.f32.mrb[0].mxu0
    %v2203 = vadd.f32 0.0, %v2202
    %v2204 = vpop.f32.mrb[0].mxu0
    %v2205 = vadd.f32 0.0, %v2204
    %2206 = vdwg.mxu0
    %2207 = vmatprep.subr.mxu0 %v2075
    %2208 = vmatpush1.msra.mxu0 %v2074
    %2209 = vmatprep.subr.mxu0 %v2079
    %2210 = vmatpush1.msra.mxu0 %v2078
    %2211 = vmatprep.subr.mxu0 %v2083
    %2212 = vmatpush1.msra.mxu0 %v2082
    %2213 = vmatprep.subr.mxu0 %v2087
    %2214 = vmatpush1.msra.mxu0 %v2086
    %2215 = vmatprep.subr.mxu0 %v2091
    %2216 = vmatpush1.msra.mxu0 %v2090
    %2217 = vmatprep.subr.mxu0 %v2095
    %2218 = vmatpush1.msra.mxu0 %v2094
    %2219 = vmatprep.subr.mxu0 %v2099
    %2220 = vmatpush1.msra.mxu0 %v2098
    %2221 = vmatprep.subr.mxu0 %v2103
    %2222 = vmatpush1.msra.mxu0 %v2102
    %2223 = vmatprep.subr.mxu0 %v2107
    %2224 = vmatpush1.msra.mxu0 %v2106
    %2225 = vmatprep.subr.mxu0 %v2111
    %2226 = vmatpush1.msra.mxu0 %v2110
    %2227 = vmatprep.subr.mxu0 %v2115
    %2228 = vmatpush1.msra.mxu0 %v2114
    %2229 = vmatprep.subr.mxu0 %v2119
    %2230 = vmatpush1.msra.mxu0 %v2118
    %2231 = vmatprep.subr.mxu0 %v2123
    %2232 = vmatpush1.msra.mxu0 %v2122
    %2233 = vmatprep.subr.mxu0 %v2127
    %2234 = vmatpush1.msra.mxu0 %v2126
    %2235 = vmatprep.subr.mxu0 %v2131
    %2236 = vmatpush1.msra.mxu0 %v2130
    %2237 = vmatprep.subr.mxu0 %v2135
    %2238 = vmatpush1.msra.mxu0 %v2134
    %2239 = vmatprep.subr.mxu0 0.0
    %2240 = vmatpush1.msra.mxu0 0.0
    %2241 = vmatprep.subr.mxu0 0.0
    %2242 = vmatpush1.msra.mxu0 0.0
    %2243 = vmatprep.subr.mxu0 0.0
    %2244 = vmatpush1.msra.mxu0 0.0
    %2245 = vmatprep.subr.mxu0 0.0
    %2246 = vmatpush1.msra.mxu0 0.0
    %2247 = vmatprep.subr.mxu0 0.0
    %2248 = vmatpush1.msra.mxu0 0.0
    %2249 = vmatprep.subr.mxu0 0.0
    %2250 = vmatpush1.msra.mxu0 0.0
    %2251 = vmatprep.subr.mxu0 0.0
    %2252 = vmatpush1.msra.mxu0 0.0
    %2253 = vmatprep.subr.mxu0 0.0
    %2254 = vmatpush1.msra.mxu0 0.0
    %2255 = vmatprep.subr.mxu0 0.0
    %2256 = vmatpush1.msra.mxu0 0.0
    %2257 = vmatprep.subr.mxu0 0.0
    %2258 = vmatpush1.msra.mxu0 0.0
    %2259 = vmatprep.subr.mxu0 0.0
    %2260 = vmatpush1.msra.mxu0 0.0
    %2261 = vmatprep.subr.mxu0 0.0
    %2262 = vmatpush1.msra.mxu0 0.0
    %2263 = vmatprep.subr.mxu0 0.0
    %2264 = vmatpush1.msra.mxu0 0.0
    %2265 = vmatprep.subr.mxu0 0.0
    %2266 = vmatpush1.msra.mxu0 0.0
    %2267 = vmatprep.subr.mxu0 0.0
    %2268 = vmatpush1.msra.mxu0 0.0
    %2269 = vmatprep.subr.mxu0 0.0
    %2270 = vmatpush1.msra.mxu0 0.0
    %2271 = vmatprep.mubr.f32.mxu0 0.0
    %2272 = vmatmul.mubr.f32.gmra.mrb[0].mxu0 %v2066
    %v2273 = vpop.f32.mrb[0].mxu0
    %v2274 = vadd.f32 0.0, %v2273
    %v2275 = vpop.f32.mrb[0].mxu0
    %v2276 = vadd.f32 0.0, %v2275
    %2277 = vdwg.mxu0
    %v2282 = vrot.slane %v2203, 4
    %v2283 = vrot.slane %v2205, 4
    %v2284 = vrot.slane %v2274, 4
    %v2285 = vrot.slane %v2276, 4
    %v2290 = vadd.f32 %v2068, %v2282
    %v2291 = vadd.f32 %v2069, %v2283
    %v2292 = vadd.f32 %v2070, %v2284
    %v2293 = vadd.f32 %v2071, %v2285
    %v2294 = vxor.u32 %v2290, 2147483648
    %v2295 = vmul.f32 %v2294, 1.442695
    %v2296 = vpow.pop %v2295
    %v2297 = vadd.f32 %v2296, 1.0
    %v2298 = vrcp.pop %v2297
    %v2299 = vmul.f32 1.0, %v2298
    %v2300 = vxor.u32 %v2291, 2147483648
    %v2301 = vmul.f32 %v2300, 1.442695
    %v2302 = vpow.pop %v2301
    %v2303 = vadd.f32 %v2302, 1.0
    %v2304 = vrcp.pop %v2303
    %v2305 = vmul.f32 1.0, %v2304
    %v2306 = vtanh.pop %v2292
    %v2307 = vxor.u32 %v2293, 2147483648
    %v2308 = vmul.f32 %v2307, 1.442695
    %v2309 = vpow.pop %v2308
    %v2310 = vadd.f32 %v2309, 1.0
    %v2311 = vrcp.pop %v2310
    %v2312 = vmul.f32 1.0, %v2311
    %v2314 = vrot.slane %v2064, 4
    %v2316 = vmul.f32 %v2305, %v2314
    %v2317 = vmul.f32 %v2299, %v2306
    %v2318 = vadd.f32 %v2316, %v2317
    %v2319 = vtanh.pop %v2318
    %v2320 = vmul.f32 %v2312, %v2319
    %2321 = vst [vmem:[#allocation3 + $0x18] sm:$0xf0] %v2320
    %v2322 = vld [vmem:[#allocation3] sm:$0xff]
    %v2323 = vld [vmem:[#allocation3 + $0x8] sm:$0xff]
    %v2324 = vld [vmem:[#allocation3 + $0x10] sm:$0xff]
    %v2325 = vld [vmem:[#allocation3 + $0x18] sm:$0xff]
    %v2326 = vld [vmem:[#allocation6] sm:$0xff]
    %v2327 = vld [vmem:[#allocation6 + $0x8] sm:$0xff]
    %v2328 = vld [vmem:[#allocation6 + $0x10] sm:$0xff]
    %v2329 = vld [vmem:[#allocation6 + $0x18] sm:$0xff]
    %v2330 = vld [vmem:[#allocation6 + $0x20] sm:$0xff]
    %v2331 = vld [vmem:[#allocation6 + $0x28] sm:$0xff]
    %v2332 = vld [vmem:[#allocation6 + $0x30] sm:$0xff]
    %v2333 = vld [vmem:[#allocation6 + $0x38] sm:$0xff]
    %v2334 = vld [vmem:[#allocation6 + $0x40] sm:$0xff]
    %v2335 = vld [vmem:[#allocation6 + $0x48] sm:$0xff]
    %v2336 = vld [vmem:[#allocation6 + $0x50] sm:$0xff]
    %v2337 = vld [vmem:[#allocation6 + $0x58] sm:$0xff]
    %v2338 = vld [vmem:[#allocation6 + $0x60] sm:$0xff]
    %v2339 = vld [vmem:[#allocation6 + $0x68] sm:$0xff]
    %v2340 = vld [vmem:[#allocation6 + $0x70] sm:$0xff]
    %v2341 = vld [vmem:[#allocation6 + $0x78] sm:$0xff]
    %v2342 = vld [vmem:[#allocation6 + $0x80] sm:$0xff]
    %v2343 = vld [vmem:[#allocation6 + $0x88] sm:$0xff]
    %v2344 = vld [vmem:[#allocation6 + $0x90] sm:$0xff]
    %v2345 = vld [vmem:[#allocation6 + $0x98] sm:$0xff]
    %v2346 = vld [vmem:[#allocation6 + $0xa0] sm:$0xff]
    %v2347 = vld [vmem:[#allocation6 + $0xa8] sm:$0xff]
    %v2348 = vld [vmem:[#allocation6 + $0xb0] sm:$0xff]
    %v2349 = vld [vmem:[#allocation6 + $0xb8] sm:$0xff]
    %v2350 = vld [vmem:[#allocation6 + $0xc0] sm:$0xff]
    %v2351 = vld [vmem:[#allocation6 + $0xc8] sm:$0xff]
    %v2352 = vld [vmem:[#allocation6 + $0xd0] sm:$0xff]
    %v2353 = vld [vmem:[#allocation6 + $0xd8] sm:$0xff]
    %v2354 = vld [vmem:[#allocation6 + $0xe0] sm:$0xff]
    %v2355 = vld [vmem:[#allocation6 + $0xe8] sm:$0xff]
    %v2356 = vld [vmem:[#allocation6 + $0xf0] sm:$0xff]
    %v2357 = vld [vmem:[#allocation6 + $0xf8] sm:$0xff]
    %v2358 = vld [vmem:[#allocation6 + $0x100] sm:$0xff]
    %v2359 = vld [vmem:[#allocation6 + $0x108] sm:$0xff]
    %v2360 = vld [vmem:[#allocation6 + $0x110] sm:$0xff]
    %v2361 = vld [vmem:[#allocation6 + $0x118] sm:$0xff]
    %v2362 = vld [vmem:[#allocation6 + $0x120] sm:$0xff]
    %v2363 = vld [vmem:[#allocation6 + $0x128] sm:$0xff]
    %v2364 = vld [vmem:[#allocation6 + $0x130] sm:$0xff]
    %v2365 = vld [vmem:[#allocation6 + $0x138] sm:$0xff]
    %v2366 = vld [vmem:[#allocation6 + $0x140] sm:$0xff]
    %v2367 = vld [vmem:[#allocation6 + $0x148] sm:$0xff]
    %v2368 = vld [vmem:[#allocation6 + $0x150] sm:$0xff]
    %v2369 = vld [vmem:[#allocation6 + $0x158] sm:$0xff]
    %v2370 = vld [vmem:[#allocation6 + $0x160] sm:$0xff]
    %v2371 = vld [vmem:[#allocation6 + $0x168] sm:$0xff]
    %v2372 = vld [vmem:[#allocation6 + $0x170] sm:$0xff]
    %v2373 = vld [vmem:[#allocation6 + $0x178] sm:$0xff]
    %v2374 = vld [vmem:[#allocation6 + $0x180] sm:$0xff]
    %v2375 = vld [vmem:[#allocation6 + $0x188] sm:$0xff]
    %v2376 = vld [vmem:[#allocation6 + $0x190] sm:$0xff]
    %v2377 = vld [vmem:[#allocation6 + $0x198] sm:$0xff]
    %v2378 = vld [vmem:[#allocation6 + $0x1a0] sm:$0xff]
    %v2379 = vld [vmem:[#allocation6 + $0x1a8] sm:$0xff]
    %v2380 = vld [vmem:[#allocation6 + $0x1b0] sm:$0xff]
    %v2381 = vld [vmem:[#allocation6 + $0x1b8] sm:$0xff]
    %v2382 = vld [vmem:[#allocation6 + $0x1c0] sm:$0xff]
    %v2383 = vld [vmem:[#allocation6 + $0x1c8] sm:$0xff]
    %v2384 = vld [vmem:[#allocation6 + $0x1d0] sm:$0xff]
    %v2385 = vld [vmem:[#allocation6 + $0x1d8] sm:$0xff]
    %v2386 = vld [vmem:[#allocation6 + $0x1e0] sm:$0xff]
    %v2387 = vld [vmem:[#allocation6 + $0x1e8] sm:$0xff]
    %v2388 = vld [vmem:[#allocation6 + $0x1f0] sm:$0xff]
    %v2389 = vld [vmem:[#allocation6 + $0x1f8] sm:$0xff]
    %v2390 = vld [vmem:[%s6] sm:$0xf]
    %v2392 = vlaneseq
    %v2393 = vshrl.u32 %v2392, 7
    %v2394 = vsub.s32 0, %v2393
    %v2395 = vrot.slane %v2390, %v2394
    %v2396 = vlaneseq
    %v2397 = vshrl.u32 %v2396, 7
    %v2398 = vsub.s32 1, %v2397
    %v2399 = vrot.slane %v2390, %v2398
    %v2400 = vlaneseq
    %v2401 = vshrl.u32 %v2400, 7
    %v2402 = vsub.s32 2, %v2401
    %v2403 = vrot.slane %v2390, %v2402
    %v2404 = vlaneseq
    %v2405 = vshrl.u32 %v2404, 7
    %v2406 = vsub.s32 3, %v2405
    %v2407 = vrot.slane %v2390, %v2406
    %2412 = vmatprep.subr.mxu0 %v2327
    %2413 = vmatpush1.msra.mxu0 %v2326
    %2414 = vmatprep.subr.mxu0 %v2331
    %2415 = vmatpush1.msra.mxu0 %v2330
    %2416 = vmatprep.subr.mxu0 %v2335
    %2417 = vmatpush1.msra.mxu0 %v2334
    %2418 = vmatprep.subr.mxu0 %v2339
    %2419 = vmatpush1.msra.mxu0 %v2338
    %2420 = vmatprep.subr.mxu0 %v2343
    %2421 = vmatpush1.msra.mxu0 %v2342
    %2422 = vmatprep.subr.mxu0 %v2347
    %2423 = vmatpush1.msra.mxu0 %v2346
    %2424 = vmatprep.subr.mxu0 %v2351
    %2425 = vmatpush1.msra.mxu0 %v2350
    %2426 = vmatprep.subr.mxu0 %v2355
    %2427 = vmatpush1.msra.mxu0 %v2354
    %2428 = vmatprep.subr.mxu0 %v2359
    %2429 = vmatpush1.msra.mxu0 %v2358
    %2430 = vmatprep.subr.mxu0 %v2363
    %2431 = vmatpush1.msra.mxu0 %v2362
    %2432 = vmatprep.subr.mxu0 %v2367
    %2433 = vmatpush1.msra.mxu0 %v2366
    %2434 = vmatprep.subr.mxu0 %v2371
    %2435 = vmatpush1.msra.mxu0 %v2370
    %2436 = vmatprep.subr.mxu0 %v2375
    %2437 = vmatpush1.msra.mxu0 %v2374
    %2438 = vmatprep.subr.mxu0 %v2379
    %2439 = vmatpush1.msra.mxu0 %v2378
    %2440 = vmatprep.subr.mxu0 %v2383
    %2441 = vmatpush1.msra.mxu0 %v2382
    %2442 = vmatprep.subr.mxu0 %v2387
    %2443 = vmatpush1.msra.mxu0 %v2386
    %2444 = vmatprep.subr.mxu0 0.0
    %2445 = vmatpush1.msra.mxu0 0.0
    %2446 = vmatprep.subr.mxu0 0.0
    %2447 = vmatpush1.msra.mxu0 0.0
    %2448 = vmatprep.subr.mxu0 0.0
    %2449 = vmatpush1.msra.mxu0 0.0
    %2450 = vmatprep.subr.mxu0 0.0
    %2451 = vmatpush1.msra.mxu0 0.0
    %2452 = vmatprep.subr.mxu0 0.0
    %2453 = vmatpush1.msra.mxu0 0.0
    %2454 = vmatprep.subr.mxu0 0.0
    %2455 = vmatpush1.msra.mxu0 0.0
    %2456 = vmatprep.subr.mxu0 0.0
    %2457 = vmatpush1.msra.mxu0 0.0
    %2458 = vmatprep.subr.mxu0 0.0
    %2459 = vmatpush1.msra.mxu0 0.0
    %2460 = vmatprep.subr.mxu0 0.0
    %2461 = vmatpush1.msra.mxu0 0.0
    %2462 = vmatprep.subr.mxu0 0.0
    %2463 = vmatpush1.msra.mxu0 0.0
    %2464 = vmatprep.subr.mxu0 0.0
    %2465 = vmatpush1.msra.mxu0 0.0
    %2466 = vmatprep.subr.mxu0 0.0
    %2467 = vmatpush1.msra.mxu0 0.0
    %2468 = vmatprep.subr.mxu0 0.0
    %2469 = vmatpush1.msra.mxu0 0.0
    %2470 = vmatprep.subr.mxu0 0.0
    %2471 = vmatpush1.msra.mxu0 0.0
    %2472 = vmatprep.subr.mxu0 0.0
    %2473 = vmatpush1.msra.mxu0 0.0
    %2474 = vmatprep.subr.mxu0 0.0
    %2475 = vmatpush1.msra.mxu0 0.0
    %2476 = vmatprep.mubr.f32.mxu0 0.0
    %2477 = vmatmul.mubr.f32.gmra.mrb[0].mxu0 %v2322
    %v2478 = vpop.f32.mrb[0].mxu0
    %v2479 = vadd.f32 %v2395, %v2478
    %v2480 = vpop.f32.mrb[0].mxu0
    %v2481 = vadd.f32 %v2399, %v2480
    %2482 = vmatprep.mubr.f32.mxu0 0.0
    %2483 = vmatmul.mubr.f32.gmra.mrb[0].mxu0 %v2323
    %v2484 = vpop.f32.mrb[0].mxu0
    %v2485 = vadd.f32 %v2395, %v2484
    %v2486 = vpop.f32.mrb[0].mxu0
    %v2487 = vadd.f32 %v2399, %v2486
    %2488 = vmatprep.mubr.f32.mxu0 0.0
    %2489 = vmatmul.mubr.f32.gmra.mrb[0].mxu0 %v2324
    %v2490 = vpop.f32.mrb[0].mxu0
    %v2491 = vadd.f32 %v2395, %v2490
    %v2492 = vpop.f32.mrb[0].mxu0
    %v2493 = vadd.f32 %v2399, %v2492
    %2494 = vmatprep.mubr.f32.mxu0 0.0
    %2495 = vmatmul.mubr.f32.gmra.mrb[0].mxu0 %v2325
    %v2496 = vpop.f32.mrb[0].mxu0
    %v2497 = vadd.f32 %v2395, %v2496
    %v2498 = vpop.f32.mrb[0].mxu0
    %v2499 = vadd.f32 %v2399, %v2498
    %2500 = vdwg.mxu0
    %2501 = vmatprep.subr.mxu0 %v2329
    %2502 = vmatpush1.msra.mxu0 %v2328
    %2503 = vmatprep.subr.mxu0 %v2333
    %2504 = vmatpush1.msra.mxu0 %v2332
    %2505 = vmatprep.subr.mxu0 %v2337
    %2506 = vmatpush1.msra.mxu0 %v2336
    %2507 = vmatprep.subr.mxu0 %v2341
    %2508 = vmatpush1.msra.mxu0 %v2340
    %2509 = vmatprep.subr.mxu0 %v2345
    %2510 = vmatpush1.msra.mxu0 %v2344
    %2511 = vmatprep.subr.mxu0 %v2349
    %2512 = vmatpush1.msra.mxu0 %v2348
    %2513 = vmatprep.subr.mxu0 %v2353
    %2514 = vmatpush1.msra.mxu0 %v2352
    %2515 = vmatprep.subr.mxu0 %v2357
    %2516 = vmatpush1.msra.mxu0 %v2356
    %2517 = vmatprep.subr.mxu0 %v2361
    %2518 = vmatpush1.msra.mxu0 %v2360
    %2519 = vmatprep.subr.mxu0 %v2365
    %2520 = vmatpush1.msra.mxu0 %v2364
    %2521 = vmatprep.subr.mxu0 %v2369
    %2522 = vmatpush1.msra.mxu0 %v2368
    %2523 = vmatprep.subr.mxu0 %v2373
    %2524 = vmatpush1.msra.mxu0 %v2372
    %2525 = vmatprep.subr.mxu0 %v2377
    %2526 = vmatpush1.msra.mxu0 %v2376
    %2527 = vmatprep.subr.mxu0 %v2381
    %2528 = vmatpush1.msra.mxu0 %v2380
    %2529 = vmatprep.subr.mxu0 %v2385
    %2530 = vmatpush1.msra.mxu0 %v2384
    %2531 = vmatprep.subr.mxu0 %v2389
    %2532 = vmatpush1.msra.mxu0 %v2388
    %2533 = vmatprep.subr.mxu0 0.0
    %2534 = vmatpush1.msra.mxu0 0.0
    %2535 = vmatprep.subr.mxu0 0.0
    %2536 = vmatpush1.msra.mxu0 0.0
    %2537 = vmatprep.subr.mxu0 0.0
    %2538 = vmatpush1.msra.mxu0 0.0
    %2539 = vmatprep.subr.mxu0 0.0
    %2540 = vmatpush1.msra.mxu0 0.0
    %2541 = vmatprep.subr.mxu0 0.0
    %2542 = vmatpush1.msra.mxu0 0.0
    %2543 = vmatprep.subr.mxu0 0.0
    %2544 = vmatpush1.msra.mxu0 0.0
    %2545 = vmatprep.subr.mxu0 0.0
    %2546 = vmatpush1.msra.mxu0 0.0
    %2547 = vmatprep.subr.mxu0 0.0
    %2548 = vmatpush1.msra.mxu0 0.0
    %2549 = vmatprep.subr.mxu0 0.0
    %2550 = vmatpush1.msra.mxu0 0.0
    %2551 = vmatprep.subr.mxu0 0.0
    %2552 = vmatpush1.msra.mxu0 0.0
    %2553 = vmatprep.subr.mxu0 0.0
    %2554 = vmatpush1.msra.mxu0 0.0
    %2555 = vmatprep.subr.mxu0 0.0
    %2556 = vmatpush1.msra.mxu0 0.0
    %2557 = vmatprep.subr.mxu0 0.0
    %2558 = vmatpush1.msra.mxu0 0.0
    %2559 = vmatprep.subr.mxu0 0.0
    %2560 = vmatpush1.msra.mxu0 0.0
    %2561 = vmatprep.subr.mxu0 0.0
    %2562 = vmatpush1.msra.mxu0 0.0
    %2563 = vmatprep.subr.mxu0 0.0
    %2564 = vmatpush1.msra.mxu0 0.0
    %2565 = vmatprep.mubr.f32.mxu0 0.0
    %2566 = vmatmul.mubr.f32.gmra.mrb[0].mxu0 %v2322
    %v2567 = vpop.f32.mrb[0].mxu0
    %v2568 = vadd.f32 %v2403, %v2567
    %v2569 = vpop.f32.mrb[0].mxu0
    %v2570 = vadd.f32 %v2407, %v2569
    %2571 = vmatprep.mubr.f32.mxu0 0.0
    %2572 = vmatmul.mubr.f32.gmra.mrb[0].mxu0 %v2323
    %v2573 = vpop.f32.mrb[0].mxu0
    %v2574 = vadd.f32 %v2403, %v2573
    %v2575 = vpop.f32.mrb[0].mxu0
    %v2576 = vadd.f32 %v2407, %v2575
    %2577 = vmatprep.mubr.f32.mxu0 0.0
    %2578 = vmatmul.mubr.f32.gmra.mrb[0].mxu0 %v2324
    %v2579 = vpop.f32.mrb[0].mxu0
    %v2580 = vadd.f32 %v2403, %v2579
    %v2581 = vpop.f32.mrb[0].mxu0
    %v2582 = vadd.f32 %v2407, %v2581
    %2583 = vmatprep.mubr.f32.mxu0 0.0
    %2584 = vmatmul.mubr.f32.gmra.mrb[0].mxu0 %v2325
    %v2585 = vpop.f32.mrb[0].mxu0
    %v2586 = vadd.f32 %v2403, %v2585
    %v2587 = vpop.f32.mrb[0].mxu0
    %v2588 = vadd.f32 %v2407, %v2587
    %2589 = vdwg.mxu0
    %2590 = vst [vmem:[#allocation2] sm:$0xff] %v2479
    %2591 = vst [vmem:[#allocation2 + $0x8] sm:$0xff] %v2481
    %2592 = vst [vmem:[#allocation2 + $0x10] sm:$0xff] %v2568
    %2593 = vst [vmem:[#allocation2 + $0x18] sm:$0xff] %v2570
    %2594 = vst [vmem:[#allocation2 + $0x20] sm:$0xff] %v2485
    %2595 = vst [vmem:[#allocation2 + $0x28] sm:$0xff] %v2487
    %2596 = vst [vmem:[#allocation2 + $0x30] sm:$0xff] %v2574
    %2597 = vst [vmem:[#allocation2 + $0x38] sm:$0xff] %v2576
    %2598 = vst [vmem:[#allocation2 + $0x40] sm:$0xff] %v2491
    %2599 = vst [vmem:[#allocation2 + $0x48] sm:$0xff] %v2493
    %2600 = vst [vmem:[#allocation2 + $0x50] sm:$0xff] %v2580
    %2601 = vst [vmem:[#allocation2 + $0x58] sm:$0xff] %v2582
    %2602 = vst [vmem:[#allocation2 + $0x60] sm:$0xff] %v2497
    %2603 = vst [vmem:[#allocation2 + $0x68] sm:$0xff] %v2499
    %2604 = vst [vmem:[#allocation2 + $0x70] sm:$0xff] %v2586
    %2605 = vst [vmem:[#allocation2 + $0x78] sm:$0xff] %v2588
    %v2606 = vld [vmem:[#allocation2] sm:$0xf]
    %v2607 = vld [vmem:[#allocation2 + $0x8] sm:$0xf]
    %v2608 = vld [vmem:[#allocation2 + $0x10] sm:$0xf]
    %v2609 = vld [vmem:[#allocation2 + $0x18] sm:$0xf]
    %v2610 = vld [vmem:[#allocation8] sm:$0xff]
    %v2611 = vld [vmem:[#allocation8 + $0x8] sm:$0xff]
    %v2612 = vld [vmem:[#allocation8 + $0x10] sm:$0xff]
    %v2613 = vld [vmem:[#allocation8 + $0x18] sm:$0xff]
    %v2614 = vld [vmem:[#allocation8 + $0x20] sm:$0xff]
    %v2615 = vld [vmem:[#allocation8 + $0x28] sm:$0xff]
    %v2616 = vld [vmem:[#allocation8 + $0x30] sm:$0xff]
    %v2617 = vld [vmem:[#allocation8 + $0x38] sm:$0xff]
    %v2618 = vld [vmem:[#allocation8 + $0x40] sm:$0xff]
    %v2619 = vld [vmem:[#allocation8 + $0x48] sm:$0xff]
    %v2620 = vld [vmem:[#allocation8 + $0x50] sm:$0xff]
    %v2621 = vld [vmem:[#allocation8 + $0x58] sm:$0xff]
    %v2622 = vld [vmem:[#allocation8 + $0x60] sm:$0xff]
    %v2623 = vld [vmem:[#allocation8 + $0x68] sm:$0xff]
    %v2624 = vld [vmem:[#allocation8 + $0x70] sm:$0xff]
    %v2625 = vld [vmem:[#allocation8 + $0x78] sm:$0xff]
    %v2626 = vld [vmem:[#allocation8 + $0x80] sm:$0xff]
    %v2627 = vld [vmem:[#allocation8 + $0x88] sm:$0xff]
    %v2628 = vld [vmem:[#allocation8 + $0x90] sm:$0xff]
    %v2629 = vld [vmem:[#allocation8 + $0x98] sm:$0xff]
    %v2630 = vld [vmem:[#allocation8 + $0xa0] sm:$0xff]
    %v2631 = vld [vmem:[#allocation8 + $0xa8] sm:$0xff]
    %v2632 = vld [vmem:[#allocation8 + $0xb0] sm:$0xff]
    %v2633 = vld [vmem:[#allocation8 + $0xb8] sm:$0xff]
    %v2634 = vld [vmem:[#allocation8 + $0xc0] sm:$0xff]
    %v2635 = vld [vmem:[#allocation8 + $0xc8] sm:$0xff]
    %v2636 = vld [vmem:[#allocation8 + $0xd0] sm:$0xff]
    %v2637 = vld [vmem:[#allocation8 + $0xd8] sm:$0xff]
    %v2638 = vld [vmem:[#allocation8 + $0xe0] sm:$0xff]
    %v2639 = vld [vmem:[#allocation8 + $0xe8] sm:$0xff]
    %v2640 = vld [vmem:[#allocation8 + $0xf0] sm:$0xff]
    %v2641 = vld [vmem:[#allocation8 + $0xf8] sm:$0xff]
    %v2642 = vld [vmem:[#allocation8 + $0x100] sm:$0xff]
    %v2643 = vld [vmem:[#allocation8 + $0x108] sm:$0xff]
    %v2644 = vld [vmem:[#allocation8 + $0x110] sm:$0xff]
    %v2645 = vld [vmem:[#allocation8 + $0x118] sm:$0xff]
    %v2646 = vld [vmem:[#allocation8 + $0x120] sm:$0xff]
    %v2647 = vld [vmem:[#allocation8 + $0x128] sm:$0xff]
    %v2648 = vld [vmem:[#allocation8 + $0x130] sm:$0xff]
    %v2649 = vld [vmem:[#allocation8 + $0x138] sm:$0xff]
    %v2650 = vld [vmem:[#allocation8 + $0x140] sm:$0xff]
    %v2651 = vld [vmem:[#allocation8 + $0x148] sm:$0xff]
    %v2652 = vld [vmem:[#allocation8 + $0x150] sm:$0xff]
    %v2653 = vld [vmem:[#allocation8 + $0x158] sm:$0xff]
    %v2654 = vld [vmem:[#allocation8 + $0x160] sm:$0xff]
    %v2655 = vld [vmem:[#allocation8 + $0x168] sm:$0xff]
    %v2656 = vld [vmem:[#allocation8 + $0x170] sm:$0xff]
    %v2657 = vld [vmem:[#allocation8 + $0x178] sm:$0xff]
    %v2658 = vld [vmem:[#allocation8 + $0x180] sm:$0xff]
    %v2659 = vld [vmem:[#allocation8 + $0x188] sm:$0xff]
    %v2660 = vld [vmem:[#allocation8 + $0x190] sm:$0xff]
    %v2661 = vld [vmem:[#allocation8 + $0x198] sm:$0xff]
    %v2662 = vld [vmem:[#allocation8 + $0x1a0] sm:$0xff]
    %v2663 = vld [vmem:[#allocation8 + $0x1a8] sm:$0xff]
    %v2664 = vld [vmem:[#allocation8 + $0x1b0] sm:$0xff]
    %v2665 = vld [vmem:[#allocation8 + $0x1b8] sm:$0xff]
    %v2666 = vld [vmem:[#allocation8 + $0x1c0] sm:$0xff]
    %v2667 = vld [vmem:[#allocation8 + $0x1c8] sm:$0xff]
    %v2668 = vld [vmem:[#allocation8 + $0x1d0] sm:$0xff]
    %v2669 = vld [vmem:[#allocation8 + $0x1d8] sm:$0xff]
    %v2670 = vld [vmem:[#allocation8 + $0x1e0] sm:$0xff]
    %v2671 = vld [vmem:[#allocation8 + $0x1e8] sm:$0xff]
    %v2672 = vld [vmem:[#allocation8 + $0x1f0] sm:$0xff]
    %v2673 = vld [vmem:[#allocation8 + $0x1f8] sm:$0xff]
    %2674 = vmatprep.subr.mxu0 %v2611
    %2675 = vmatpush1.msra.mxu0 %v2610
    %2676 = vmatprep.subr.mxu0 %v2615
    %2677 = vmatpush1.msra.mxu0 %v2614
    %2678 = vmatprep.subr.mxu0 %v2619
    %2679 = vmatpush1.msra.mxu0 %v2618
    %2680 = vmatprep.subr.mxu0 %v2623
    %2681 = vmatpush1.msra.mxu0 %v2622
    %2682 = vmatprep.subr.mxu0 %v2627
    %2683 = vmatpush1.msra.mxu0 %v2626
    %2684 = vmatprep.subr.mxu0 %v2631
    %2685 = vmatpush1.msra.mxu0 %v2630
    %2686 = vmatprep.subr.mxu0 %v2635
    %2687 = vmatpush1.msra.mxu0 %v2634
    %2688 = vmatprep.subr.mxu0 %v2639
    %2689 = vmatpush1.msra.mxu0 %v2638
    %2690 = vmatprep.subr.mxu0 %v2643
    %2691 = vmatpush1.msra.mxu0 %v2642
    %2692 = vmatprep.subr.mxu0 %v2647
    %2693 = vmatpush1.msra.mxu0 %v2646
    %2694 = vmatprep.subr.mxu0 %v2651
    %2695 = vmatpush1.msra.mxu0 %v2650
    %2696 = vmatprep.subr.mxu0 %v2655
    %2697 = vmatpush1.msra.mxu0 %v2654
    %2698 = vmatprep.subr.mxu0 %v2659
    %2699 = vmatpush1.msra.mxu0 %v2658
    %2700 = vmatprep.subr.mxu0 %v2663
    %2701 = vmatpush1.msra.mxu0 %v2662
    %2702 = vmatprep.subr.mxu0 %v2667
    %2703 = vmatpush1.msra.mxu0 %v2666
    %2704 = vmatprep.subr.mxu0 %v2671
    %2705 = vmatpush1.msra.mxu0 %v2670
    %2706 = vmatprep.subr.mxu0 0.0
    %2707 = vmatpush1.msra.mxu0 0.0
    %2708 = vmatprep.subr.mxu0 0.0
    %2709 = vmatpush1.msra.mxu0 0.0
    %2710 = vmatprep.subr.mxu0 0.0
    %2711 = vmatpush1.msra.mxu0 0.0
    %2712 = vmatprep.subr.mxu0 0.0
    %2713 = vmatpush1.msra.mxu0 0.0
    %2714 = vmatprep.subr.mxu0 0.0
    %2715 = vmatpush1.msra.mxu0 0.0
    %2716 = vmatprep.subr.mxu0 0.0
    %2717 = vmatpush1.msra.mxu0 0.0
    %2718 = vmatprep.subr.mxu0 0.0
    %2719 = vmatpush1.msra.mxu0 0.0
    %2720 = vmatprep.subr.mxu0 0.0
    %2721 = vmatpush1.msra.mxu0 0.0
    %2722 = vmatprep.subr.mxu0 0.0
    %2723 = vmatpush1.msra.mxu0 0.0
    %2724 = vmatprep.subr.mxu0 0.0
    %2725 = vmatpush1.msra.mxu0 0.0
    %2726 = vmatprep.subr.mxu0 0.0
    %2727 = vmatpush1.msra.mxu0 0.0
    %2728 = vmatprep.subr.mxu0 0.0
    %2729 = vmatpush1.msra.mxu0 0.0
    %2730 = vmatprep.subr.mxu0 0.0
    %2731 = vmatpush1.msra.mxu0 0.0
    %2732 = vmatprep.subr.mxu0 0.0
    %2733 = vmatpush1.msra.mxu0 0.0
    %2734 = vmatprep.subr.mxu0 0.0
    %2735 = vmatpush1.msra.mxu0 0.0
    %2736 = vmatprep.subr.mxu0 0.0
    %2737 = vmatpush1.msra.mxu0 0.0
    %2738 = vmatprep.mubr.f32.mxu0 0.0
    %2739 = vmatmul.mubr.f32.gmra.mrb[0].mxu0 0.0
    %v2740 = vpop.f32.mrb[0].mxu0
    %v2741 = vadd.f32 0.0, %v2740
    %v2742 = vpop.f32.mrb[0].mxu0
    %v2743 = vadd.f32 0.0, %v2742
    %2744 = vdwg.mxu0
    %2745 = vmatprep.subr.mxu0 %v2613
    %2746 = vmatpush1.msra.mxu0 %v2612
    %2747 = vmatprep.subr.mxu0 %v2617
    %2748 = vmatpush1.msra.mxu0 %v2616
    %2749 = vmatprep.subr.mxu0 %v2621
    %2750 = vmatpush1.msra.mxu0 %v2620
    %2751 = vmatprep.subr.mxu0 %v2625
    %2752 = vmatpush1.msra.mxu0 %v2624
    %2753 = vmatprep.subr.mxu0 %v2629
    %2754 = vmatpush1.msra.mxu0 %v2628
    %2755 = vmatprep.subr.mxu0 %v2633
    %2756 = vmatpush1.msra.mxu0 %v2632
    %2757 = vmatprep.subr.mxu0 %v2637
    %2758 = vmatpush1.msra.mxu0 %v2636
    %2759 = vmatprep.subr.mxu0 %v2641
    %2760 = vmatpush1.msra.mxu0 %v2640
    %2761 = vmatprep.subr.mxu0 %v2645
    %2762 = vmatpush1.msra.mxu0 %v2644
    %2763 = vmatprep.subr.mxu0 %v2649
    %2764 = vmatpush1.msra.mxu0 %v2648
    %2765 = vmatprep.subr.mxu0 %v2653
    %2766 = vmatpush1.msra.mxu0 %v2652
    %2767 = vmatprep.subr.mxu0 %v2657
    %2768 = vmatpush1.msra.mxu0 %v2656
    %2769 = vmatprep.subr.mxu0 %v2661
    %2770 = vmatpush1.msra.mxu0 %v2660
    %2771 = vmatprep.subr.mxu0 %v2665
    %2772 = vmatpush1.msra.mxu0 %v2664
    %2773 = vmatprep.subr.mxu0 %v2669
    %2774 = vmatpush1.msra.mxu0 %v2668
    %2775 = vmatprep.subr.mxu0 %v2673
    %2776 = vmatpush1.msra.mxu0 %v2672
    %2777 = vmatprep.subr.mxu0 0.0
    %2778 = vmatpush1.msra.mxu0 0.0
    %2779 = vmatprep.subr.mxu0 0.0
    %2780 = vmatpush1.msra.mxu0 0.0
    %2781 = vmatprep.subr.mxu0 0.0
    %2782 = vmatpush1.msra.mxu0 0.0
    %2783 = vmatprep.subr.mxu0 0.0
    %2784 = vmatpush1.msra.mxu0 0.0
    %2785 = vmatprep.subr.mxu0 0.0
    %2786 = vmatpush1.msra.mxu0 0.0
    %2787 = vmatprep.subr.mxu0 0.0
    %2788 = vmatpush1.msra.mxu0 0.0
    %2789 = vmatprep.subr.mxu0 0.0
    %2790 = vmatpush1.msra.mxu0 0.0
    %2791 = vmatprep.subr.mxu0 0.0
    %2792 = vmatpush1.msra.mxu0 0.0
    %2793 = vmatprep.subr.mxu0 0.0
    %2794 = vmatpush1.msra.mxu0 0.0
    %2795 = vmatprep.subr.mxu0 0.0
    %2796 = vmatpush1.msra.mxu0 0.0
    %2797 = vmatprep.subr.mxu0 0.0
    %2798 = vmatpush1.msra.mxu0 0.0
    %2799 = vmatprep.subr.mxu0 0.0
    %2800 = vmatpush1.msra.mxu0 0.0
    %2801 = vmatprep.subr.mxu0 0.0
    %2802 = vmatpush1.msra.mxu0 0.0
    %2803 = vmatprep.subr.mxu0 0.0
    %2804 = vmatpush1.msra.mxu0 0.0
    %2805 = vmatprep.subr.mxu0 0.0
    %2806 = vmatpush1.msra.mxu0 0.0
    %2807 = vmatprep.subr.mxu0 0.0
    %2808 = vmatpush1.msra.mxu0 0.0
    %2809 = vmatprep.mubr.f32.mxu0 0.0
    %2810 = vmatmul.mubr.f32.gmra.mrb[0].mxu0 0.0
    %v2811 = vpop.f32.mrb[0].mxu0
    %v2812 = vadd.f32 0.0, %v2811
    %v2813 = vpop.f32.mrb[0].mxu0
    %v2814 = vadd.f32 0.0, %v2813
    %2815 = vdwg.mxu0
    %v2816 = vadd.f32 %v2606, %v2741
    %v2817 = vadd.f32 %v2607, %v2743
    %v2818 = vadd.f32 %v2608, %v2812
    %v2819 = vadd.f32 %v2609, %v2814
    %v2820 = vxor.u32 %v2816, 2147483648
    %v2821 = vmul.f32 %v2820, 1.442695
    %v2822 = vpow.pop %v2821
    %v2823 = vadd.f32 %v2822, 1.0
    %v2824 = vrcp.pop %v2823
    %v2825 = vmul.f32 1.0, %v2824
    %v2826 = vxor.u32 %v2817, 2147483648
    %v2827 = vmul.f32 %v2826, 1.442695
    %v2828 = vpow.pop %v2827
    %v2829 = vadd.f32 %v2828, 1.0
    %v2830 = vrcp.pop %v2829
    %v2831 = vmul.f32 1.0, %v2830
    %v2832 = vtanh.pop %v2818
    %v2833 = vxor.u32 %v2819, 2147483648
    %v2834 = vmul.f32 %v2833, 1.442695
    %v2835 = vpow.pop %v2834
    %v2836 = vadd.f32 %v2835, 1.0
    %v2837 = vrcp.pop %v2836
    %v2838 = vmul.f32 1.0, %v2837
    %v2839 = vmul.f32 %v2831, 0.0
    %v2840 = vmul.f32 %v2825, %v2832
    %v2841 = vadd.f32 %v2839, %v2840
    %v2842 = vtanh.pop %v2841
    %v2843 = vmul.f32 %v2838, %v2842
    %v2844 = vld [vmem:[#allocation2] sm:$0xf0]
    %v2845 = vld [vmem:[#allocation2 + $0x8] sm:$0xf0]
    %v2846 = vld [vmem:[#allocation2 + $0x10] sm:$0xf0]
    %v2847 = vld [vmem:[#allocation2 + $0x18] sm:$0xf0]
    %2848 = vmatprep.subr.mxu0 %v2611
    %2849 = vmatpush1.msra.mxu0 %v2610
    %2850 = vmatprep.subr.mxu0 %v2615
    %2851 = vmatpush1.msra.mxu0 %v2614
    %2852 = vmatprep.subr.mxu0 %v2619
    %2853 = vmatpush1.msra.mxu0 %v2618
    %2854 = vmatprep.subr.mxu0 %v2623
    %2855 = vmatpush1.msra.mxu0 %v2622
    %2856 = vmatprep.subr.mxu0 %v2627
    %2857 = vmatpush1.msra.mxu0 %v2626
    %2858 = vmatprep.subr.mxu0 %v2631
    %2859 = vmatpush1.msra.mxu0 %v2630
    %2860 = vmatprep.subr.mxu0 %v2635
    %2861 = vmatpush1.msra.mxu0 %v2634
    %2862 = vmatprep.subr.mxu0 %v2639
    %2863 = vmatpush1.msra.mxu0 %v2638
    %2864 = vmatprep.subr.mxu0 %v2643
    %2865 = vmatpush1.msra.mxu0 %v2642
    %2866 = vmatprep.subr.mxu0 %v2647
    %2867 = vmatpush1.msra.mxu0 %v2646
    %2868 = vmatprep.subr.mxu0 %v2651
    %2869 = vmatpush1.msra.mxu0 %v2650
    %2870 = vmatprep.subr.mxu0 %v2655
    %2871 = vmatpush1.msra.mxu0 %v2654
    %2872 = vmatprep.subr.mxu0 %v2659
    %2873 = vmatpush1.msra.mxu0 %v2658
    %2874 = vmatprep.subr.mxu0 %v2663
    %2875 = vmatpush1.msra.mxu0 %v2662
    %2876 = vmatprep.subr.mxu0 %v2667
    %2877 = vmatpush1.msra.mxu0 %v2666
    %2878 = vmatprep.subr.mxu0 %v2671
    %2879 = vmatpush1.msra.mxu0 %v2670
    %2880 = vmatprep.subr.mxu0 0.0
    %2881 = vmatpush1.msra.mxu0 0.0
    %2882 = vmatprep.subr.mxu0 0.0
    %2883 = vmatpush1.msra.mxu0 0.0
    %2884 = vmatprep.subr.mxu0 0.0
    %2885 = vmatpush1.msra.mxu0 0.0
    %2886 = vmatprep.subr.mxu0 0.0
    %2887 = vmatpush1.msra.mxu0 0.0
    %2888 = vmatprep.subr.mxu0 0.0
    %2889 = vmatpush1.msra.mxu0 0.0
    %2890 = vmatprep.subr.mxu0 0.0
    %2891 = vmatpush1.msra.mxu0 0.0
    %2892 = vmatprep.subr.mxu0 0.0
    %2893 = vmatpush1.msra.mxu0 0.0
    %2894 = vmatprep.subr.mxu0 0.0
    %2895 = vmatpush1.msra.mxu0 0.0
    %2896 = vmatprep.subr.mxu0 0.0
    %2897 = vmatpush1.msra.mxu0 0.0
    %2898 = vmatprep.subr.mxu0 0.0
    %2899 = vmatpush1.msra.mxu0 0.0
    %2900 = vmatprep.subr.mxu0 0.0
    %2901 = vmatpush1.msra.mxu0 0.0
    %2902 = vmatprep.subr.mxu0 0.0
    %2903 = vmatpush1.msra.mxu0 0.0
    %2904 = vmatprep.subr.mxu0 0.0
    %2905 = vmatpush1.msra.mxu0 0.0
    %2906 = vmatprep.subr.mxu0 0.0
    %2907 = vmatpush1.msra.mxu0 0.0
    %2908 = vmatprep.subr.mxu0 0.0
    %2909 = vmatpush1.msra.mxu0 0.0
    %2910 = vmatprep.subr.mxu0 0.0
    %2911 = vmatpush1.msra.mxu0 0.0
    %2912 = vmatprep.mubr.f32.mxu0 0.0
    %2913 = vmatmul.mubr.f32.gmra.mrb[0].mxu0 %v2843
    %v2914 = vpop.f32.mrb[0].mxu0
    %v2915 = vadd.f32 0.0, %v2914
    %v2916 = vpop.f32.mrb[0].mxu0
    %v2917 = vadd.f32 0.0, %v2916
    %2918 = vdwg.mxu0
    %2919 = vmatprep.subr.mxu0 %v2613
    %2920 = vmatpush1.msra.mxu0 %v2612
    %2921 = vmatprep.subr.mxu0 %v2617
    %2922 = vmatpush1.msra.mxu0 %v2616
    %2923 = vmatprep.subr.mxu0 %v2621
    %2924 = vmatpush1.msra.mxu0 %v2620
    %2925 = vmatprep.subr.mxu0 %v2625
    %2926 = vmatpush1.msra.mxu0 %v2624
    %2927 = vmatprep.subr.mxu0 %v2629
    %2928 = vmatpush1.msra.mxu0 %v2628
    %2929 = vmatprep.subr.mxu0 %v2633
    %2930 = vmatpush1.msra.mxu0 %v2632
    %2931 = vmatprep.subr.mxu0 %v2637
    %2932 = vmatpush1.msra.mxu0 %v2636
    %2933 = vmatprep.subr.mxu0 %v2641
    %2934 = vmatpush1.msra.mxu0 %v2640
    %2935 = vmatprep.subr.mxu0 %v2645
    %2936 = vmatpush1.msra.mxu0 %v2644
    %2937 = vmatprep.subr.mxu0 %v2649
    %2938 = vmatpush1.msra.mxu0 %v2648
    %2939 = vmatprep.subr.mxu0 %v2653
    %2940 = vmatpush1.msra.mxu0 %v2652
    %2941 = vmatprep.subr.mxu0 %v2657
    %2942 = vmatpush1.msra.mxu0 %v2656
    %2943 = vmatprep.subr.mxu0 %v2661
    %2944 = vmatpush1.msra.mxu0 %v2660
    %2945 = vmatprep.subr.mxu0 %v2665
    %2946 = vmatpush1.msra.mxu0 %v2664
    %2947 = vmatprep.subr.mxu0 %v2669
    %2948 = vmatpush1.msra.mxu0 %v2668
    %2949 = vmatprep.subr.mxu0 %v2673
    %2950 = vmatpush1.msra.mxu0 %v2672
    %2951 = vmatprep.subr.mxu0 0.0
    %2952 = vmatpush1.msra.mxu0 0.0
    %2953 = vmatprep.subr.mxu0 0.0
    %2954 = vmatpush1.msra.mxu0 0.0
    %2955 = vmatprep.subr.mxu0 0.0
    %2956 = vmatpush1.msra.mxu0 0.0
    %2957 = vmatprep.subr.mxu0 0.0
    %2958 = vmatpush1.msra.mxu0 0.0
    %2959 = vmatprep.subr.mxu0 0.0
    %2960 = vmatpush1.msra.mxu0 0.0
    %2961 = vmatprep.subr.mxu0 0.0
    %2962 = vmatpush1.msra.mxu0 0.0
    %2963 = vmatprep.subr.mxu0 0.0
    %2964 = vmatpush1.msra.mxu0 0.0
    %2965 = vmatprep.subr.mxu0 0.0
    %2966 = vmatpush1.msra.mxu0 0.0
    %2967 = vmatprep.subr.mxu0 0.0
    %2968 = vmatpush1.msra.mxu0 0.0
    %2969 = vmatprep.subr.mxu0 0.0
    %2970 = vmatpush1.msra.mxu0 0.0
    %2971 = vmatprep.subr.mxu0 0.0
    %2972 = vmatpush1.msra.mxu0 0.0
    %2973 = vmatprep.subr.mxu0 0.0
    %2974 = vmatpush1.msra.mxu0 0.0
    %2975 = vmatprep.subr.mxu0 0.0
    %2976 = vmatpush1.msra.mxu0 0.0
    %2977 = vmatprep.subr.mxu0 0.0
    %2978 = vmatpush1.msra.mxu0 0.0
    %2979 = vmatprep.subr.mxu0 0.0
    %2980 = vmatpush1.msra.mxu0 0.0
    %2981 = vmatprep.subr.mxu0 0.0
    %2982 = vmatpush1.msra.mxu0 0.0
    %2983 = vmatprep.mubr.f32.mxu0 0.0
    %2984 = vmatmul.mubr.f32.gmra.mrb[0].mxu0 %v2843
    %v2985 = vpop.f32.mrb[0].mxu0
    %v2986 = vadd.f32 0.0, %v2985
    %v2987 = vpop.f32.mrb[0].mxu0
    %v2988 = vadd.f32 0.0, %v2987
    %2989 = vdwg.mxu0
    %v2994 = vrot.slane %v2915, 4
    %v2995 = vrot.slane %v2917, 4
    %v2996 = vrot.slane %v2986, 4
    %v2997 = vrot.slane %v2988, 4
    %v3002 = vadd.f32 %v2844, %v2994
    %v3003 = vadd.f32 %v2845, %v2995
    %v3004 = vadd.f32 %v2846, %v2996
    %v3005 = vadd.f32 %v2847, %v2997
    %v3006 = vxor.u32 %v3002, 2147483648
    %v3007 = vmul.f32 %v3006, 1.442695
    %v3008 = vpow.pop %v3007
    %v3009 = vadd.f32 %v3008, 1.0
    %v3010 = vrcp.pop %v3009
    %v3011 = vmul.f32 1.0, %v3010
    %v3012 = vxor.u32 %v3003, 2147483648
    %v3013 = vmul.f32 %v3012, 1.442695
    %v3014 = vpow.pop %v3013
    %v3015 = vadd.f32 %v3014, 1.0
    %v3016 = vrcp.pop %v3015
    %v3017 = vmul.f32 1.0, %v3016
    %v3018 = vtanh.pop %v3004
    %v3019 = vxor.u32 %v3005, 2147483648
    %v3020 = vmul.f32 %v3019, 1.442695
    %v3021 = vpow.pop %v3020
    %v3022 = vadd.f32 %v3021, 1.0
    %v3023 = vrcp.pop %v3022
    %v3024 = vmul.f32 1.0, %v3023
    %v3026 = vrot.slane %v2841, 4
    %v3028 = vmul.f32 %v3017, %v3026
    %v3029 = vmul.f32 %v3011, %v3018
    %v3030 = vadd.f32 %v3028, %v3029
    %v3031 = vtanh.pop %v3030
    %v3032 = vmul.f32 %v3024, %v3031
    %v3033 = vld [vmem:[#allocation2 + $0x20] sm:$0xf]
    %v3034 = vld [vmem:[#allocation2 + $0x28] sm:$0xf]
    %v3035 = vld [vmem:[#allocation2 + $0x30] sm:$0xf]
    %v3036 = vld [vmem:[#allocation2 + $0x38] sm:$0xf]
    %v3038 = vrot.slane %v3032, 4
    %3040 = vmatprep.subr.mxu0 %v2611
    %3041 = vmatpush1.msra.mxu0 %v2610
    %3042 = vmatprep.subr.mxu0 %v2615
    %3043 = vmatpush1.msra.mxu0 %v2614
    %3044 = vmatprep.subr.mxu0 %v2619
    %3045 = vmatpush1.msra.mxu0 %v2618
    %3046 = vmatprep.subr.mxu0 %v2623
    %3047 = vmatpush1.msra.mxu0 %v2622
    %3048 = vmatprep.subr.mxu0 %v2627
    %3049 = vmatpush1.msra.mxu0 %v2626
    %3050 = vmatprep.subr.mxu0 %v2631
    %3051 = vmatpush1.msra.mxu0 %v2630
    %3052 = vmatprep.subr.mxu0 %v2635
    %3053 = vmatpush1.msra.mxu0 %v2634
    %3054 = vmatprep.subr.mxu0 %v2639
    %3055 = vmatpush1.msra.mxu0 %v2638
    %3056 = vmatprep.subr.mxu0 %v2643
    %3057 = vmatpush1.msra.mxu0 %v2642
    %3058 = vmatprep.subr.mxu0 %v2647
    %3059 = vmatpush1.msra.mxu0 %v2646
    %3060 = vmatprep.subr.mxu0 %v2651
    %3061 = vmatpush1.msra.mxu0 %v2650
    %3062 = vmatprep.subr.mxu0 %v2655
    %3063 = vmatpush1.msra.mxu0 %v2654
    %3064 = vmatprep.subr.mxu0 %v2659
    %3065 = vmatpush1.msra.mxu0 %v2658
    %3066 = vmatprep.subr.mxu0 %v2663
    %3067 = vmatpush1.msra.mxu0 %v2662
    %3068 = vmatprep.subr.mxu0 %v2667
    %3069 = vmatpush1.msra.mxu0 %v2666
    %3070 = vmatprep.subr.mxu0 %v2671
    %3071 = vmatpush1.msra.mxu0 %v2670
    %3072 = vmatprep.subr.mxu0 0.0
    %3073 = vmatpush1.msra.mxu0 0.0
    %3074 = vmatprep.subr.mxu0 0.0
    %3075 = vmatpush1.msra.mxu0 0.0
    %3076 = vmatprep.subr.mxu0 0.0
    %3077 = vmatpush1.msra.mxu0 0.0
    %3078 = vmatprep.subr.mxu0 0.0
    %3079 = vmatpush1.msra.mxu0 0.0
    %3080 = vmatprep.subr.mxu0 0.0
    %3081 = vmatpush1.msra.mxu0 0.0
    %3082 = vmatprep.subr.mxu0 0.0
    %3083 = vmatpush1.msra.mxu0 0.0
    %3084 = vmatprep.subr.mxu0 0.0
    %3085 = vmatpush1.msra.mxu0 0.0
    %3086 = vmatprep.subr.mxu0 0.0
    %3087 = vmatpush1.msra.mxu0 0.0
    %3088 = vmatprep.subr.mxu0 0.0
    %3089 = vmatpush1.msra.mxu0 0.0
    %3090 = vmatprep.subr.mxu0 0.0
    %3091 = vmatpush1.msra.mxu0 0.0
    %3092 = vmatprep.subr.mxu0 0.0
    %3093 = vmatpush1.msra.mxu0 0.0
    %3094 = vmatprep.subr.mxu0 0.0
    %3095 = vmatpush1.msra.mxu0 0.0
    %3096 = vmatprep.subr.mxu0 0.0
    %3097 = vmatpush1.msra.mxu0 0.0
    %3098 = vmatprep.subr.mxu0 0.0
    %3099 = vmatpush1.msra.mxu0 0.0
    %3100 = vmatprep.subr.mxu0 0.0
    %3101 = vmatpush1.msra.mxu0 0.0
    %3102 = vmatprep.subr.mxu0 0.0
    %3103 = vmatpush1.msra.mxu0 0.0
    %3104 = vmatprep.mubr.f32.mxu0 0.0
    %3105 = vmatmul.mubr.f32.gmra.mrb[0].mxu0 %v3038
    %v3106 = vpop.f32.mrb[0].mxu0
    %v3107 = vadd.f32 0.0, %v3106
    %v3108 = vpop.f32.mrb[0].mxu0
    %v3109 = vadd.f32 0.0, %v3108
    %3110 = vdwg.mxu0
    %3111 = vmatprep.subr.mxu0 %v2613
    %3112 = vmatpush1.msra.mxu0 %v2612
    %3113 = vmatprep.subr.mxu0 %v2617
    %3114 = vmatpush1.msra.mxu0 %v2616
    %3115 = vmatprep.subr.mxu0 %v2621
    %3116 = vmatpush1.msra.mxu0 %v2620
    %3117 = vmatprep.subr.mxu0 %v2625
    %3118 = vmatpush1.msra.mxu0 %v2624
    %3119 = vmatprep.subr.mxu0 %v2629
    %3120 = vmatpush1.msra.mxu0 %v2628
    %3121 = vmatprep.subr.mxu0 %v2633
    %3122 = vmatpush1.msra.mxu0 %v2632
    %3123 = vmatprep.subr.mxu0 %v2637
    %3124 = vmatpush1.msra.mxu0 %v2636
    %3125 = vmatprep.subr.mxu0 %v2641
    %3126 = vmatpush1.msra.mxu0 %v2640
    %3127 = vmatprep.subr.mxu0 %v2645
    %3128 = vmatpush1.msra.mxu0 %v2644
    %3129 = vmatprep.subr.mxu0 %v2649
    %3130 = vmatpush1.msra.mxu0 %v2648
    %3131 = vmatprep.subr.mxu0 %v2653
    %3132 = vmatpush1.msra.mxu0 %v2652
    %3133 = vmatprep.subr.mxu0 %v2657
    %3134 = vmatpush1.msra.mxu0 %v2656
    %3135 = vmatprep.subr.mxu0 %v2661
    %3136 = vmatpush1.msra.mxu0 %v2660
    %3137 = vmatprep.subr.mxu0 %v2665
    %3138 = vmatpush1.msra.mxu0 %v2664
    %3139 = vmatprep.subr.mxu0 %v2669
    %3140 = vmatpush1.msra.mxu0 %v2668
    %3141 = vmatprep.subr.mxu0 %v2673
    %3142 = vmatpush1.msra.mxu0 %v2672
    %3143 = vmatprep.subr.mxu0 0.0
    %3144 = vmatpush1.msra.mxu0 0.0
    %3145 = vmatprep.subr.mxu0 0.0
    %3146 = vmatpush1.msra.mxu0 0.0
    %3147 = vmatprep.subr.mxu0 0.0
    %3148 = vmatpush1.msra.mxu0 0.0
    %3149 = vmatprep.subr.mxu0 0.0
    %3150 = vmatpush1.msra.mxu0 0.0
    %3151 = vmatprep.subr.mxu0 0.0
    %3152 = vmatpush1.msra.mxu0 0.0
    %3153 = vmatprep.subr.mxu0 0.0
    %3154 = vmatpush1.msra.mxu0 0.0
    %3155 = vmatprep.subr.mxu0 0.0
    %3156 = vmatpush1.msra.mxu0 0.0
    %3157 = vmatprep.subr.mxu0 0.0
    %3158 = vmatpush1.msra.mxu0 0.0
    %3159 = vmatprep.subr.mxu0 0.0
    %3160 = vmatpush1.msra.mxu0 0.0
    %3161 = vmatprep.subr.mxu0 0.0
    %3162 = vmatpush1.msra.mxu0 0.0
    %3163 = vmatprep.subr.mxu0 0.0
    %3164 = vmatpush1.msra.mxu0 0.0
    %3165 = vmatprep.subr.mxu0 0.0
    %3166 = vmatpush1.msra.mxu0 0.0
    %3167 = vmatprep.subr.mxu0 0.0
    %3168 = vmatpush1.msra.mxu0 0.0
    %3169 = vmatprep.subr.mxu0 0.0
    %3170 = vmatpush1.msra.mxu0 0.0
    %3171 = vmatprep.subr.mxu0 0.0
    %3172 = vmatpush1.msra.mxu0 0.0
    %3173 = vmatprep.subr.mxu0 0.0
    %3174 = vmatpush1.msra.mxu0 0.0
    %3175 = vmatprep.mubr.f32.mxu0 0.0
    %3176 = vmatmul.mubr.f32.gmra.mrb[0].mxu0 %v3038
    %v3177 = vpop.f32.mrb[0].mxu0
    %v3178 = vadd.f32 0.0, %v3177
    %v3179 = vpop.f32.mrb[0].mxu0
    %v3180 = vadd.f32 0.0, %v3179
    %3181 = vdwg.mxu0
    %v3182 = vadd.f32 %v3033, %v3107
    %v3183 = vadd.f32 %v3034, %v3109
    %v3184 = vadd.f32 %v3035, %v3178
    %v3185 = vadd.f32 %v3036, %v3180
    %v3186 = vxor.u32 %v3182, 2147483648
    %v3187 = vmul.f32 %v3186, 1.442695
    %v3188 = vpow.pop %v3187
    %v3189 = vadd.f32 %v3188, 1.0
    %v3190 = vrcp.pop %v3189
    %v3191 = vmul.f32 1.0, %v3190
    %v3192 = vxor.u32 %v3183, 2147483648
    %v3193 = vmul.f32 %v3192, 1.442695
    %v3194 = vpow.pop %v3193
    %v3195 = vadd.f32 %v3194, 1.0
    %v3196 = vrcp.pop %v3195
    %v3197 = vmul.f32 1.0, %v3196
    %v3198 = vtanh.pop %v3184
    %v3199 = vxor.u32 %v3185, 2147483648
    %v3200 = vmul.f32 %v3199, 1.442695
    %v3201 = vpow.pop %v3200
    %v3202 = vadd.f32 %v3201, 1.0
    %v3203 = vrcp.pop %v3202
    %v3204 = vmul.f32 1.0, %v3203
    %v3206 = vrot.slane %v3030, 4
    %v3208 = vmul.f32 %v3197, %v3206
    %v3209 = vmul.f32 %v3191, %v3198
    %v3210 = vadd.f32 %v3208, %v3209
    %v3211 = vtanh.pop %v3210
    %v3212 = vmul.f32 %v3204, %v3211
    %v3213 = vld [vmem:[#allocation2 + $0x20] sm:$0xf0]
    %v3214 = vld [vmem:[#allocation2 + $0x28] sm:$0xf0]
    %v3215 = vld [vmem:[#allocation2 + $0x30] sm:$0xf0]
    %v3216 = vld [vmem:[#allocation2 + $0x38] sm:$0xf0]
    %3217 = vmatprep.subr.mxu0 %v2611
    %3218 = vmatpush1.msra.mxu0 %v2610
    %3219 = vmatprep.subr.mxu0 %v2615
    %3220 = vmatpush1.msra.mxu0 %v2614
    %3221 = vmatprep.subr.mxu0 %v2619
    %3222 = vmatpush1.msra.mxu0 %v2618
    %3223 = vmatprep.subr.mxu0 %v2623
    %3224 = vmatpush1.msra.mxu0 %v2622
    %3225 = vmatprep.subr.mxu0 %v2627
    %3226 = vmatpush1.msra.mxu0 %v2626
    %3227 = vmatprep.subr.mxu0 %v2631
    %3228 = vmatpush1.msra.mxu0 %v2630
    %3229 = vmatprep.subr.mxu0 %v2635
    %3230 = vmatpush1.msra.mxu0 %v2634
    %3231 = vmatprep.subr.mxu0 %v2639
    %3232 = vmatpush1.msra.mxu0 %v2638
    %3233 = vmatprep.subr.mxu0 %v2643
    %3234 = vmatpush1.msra.mxu0 %v2642
    %3235 = vmatprep.subr.mxu0 %v2647
    %3236 = vmatpush1.msra.mxu0 %v2646
    %3237 = vmatprep.subr.mxu0 %v2651
    %3238 = vmatpush1.msra.mxu0 %v2650
    %3239 = vmatprep.subr.mxu0 %v2655
    %3240 = vmatpush1.msra.mxu0 %v2654
    %3241 = vmatprep.subr.mxu0 %v2659
    %3242 = vmatpush1.msra.mxu0 %v2658
    %3243 = vmatprep.subr.mxu0 %v2663
    %3244 = vmatpush1.msra.mxu0 %v2662
    %3245 = vmatprep.subr.mxu0 %v2667
    %3246 = vmatpush1.msra.mxu0 %v2666
    %3247 = vmatprep.subr.mxu0 %v2671
    %3248 = vmatpush1.msra.mxu0 %v2670
    %3249 = vmatprep.subr.mxu0 0.0
    %3250 = vmatpush1.msra.mxu0 0.0
    %3251 = vmatprep.subr.mxu0 0.0
    %3252 = vmatpush1.msra.mxu0 0.0
    %3253 = vmatprep.subr.mxu0 0.0
    %3254 = vmatpush1.msra.mxu0 0.0
    %3255 = vmatprep.subr.mxu0 0.0
    %3256 = vmatpush1.msra.mxu0 0.0
    %3257 = vmatprep.subr.mxu0 0.0
    %3258 = vmatpush1.msra.mxu0 0.0
    %3259 = vmatprep.subr.mxu0 0.0
    %3260 = vmatpush1.msra.mxu0 0.0
    %3261 = vmatprep.subr.mxu0 0.0
    %3262 = vmatpush1.msra.mxu0 0.0
    %3263 = vmatprep.subr.mxu0 0.0
    %3264 = vmatpush1.msra.mxu0 0.0
    %3265 = vmatprep.subr.mxu0 0.0
    %3266 = vmatpush1.msra.mxu0 0.0
    %3267 = vmatprep.subr.mxu0 0.0
    %3268 = vmatpush1.msra.mxu0 0.0
    %3269 = vmatprep.subr.mxu0 0.0
    %3270 = vmatpush1.msra.mxu0 0.0
    %3271 = vmatprep.subr.mxu0 0.0
    %3272 = vmatpush1.msra.mxu0 0.0
    %3273 = vmatprep.subr.mxu0 0.0
    %3274 = vmatpush1.msra.mxu0 0.0
    %3275 = vmatprep.subr.mxu0 0.0
    %3276 = vmatpush1.msra.mxu0 0.0
    %3277 = vmatprep.subr.mxu0 0.0
    %3278 = vmatpush1.msra.mxu0 0.0
    %3279 = vmatprep.subr.mxu0 0.0
    %3280 = vmatpush1.msra.mxu0 0.0
    %3281 = vmatprep.mubr.f32.mxu0 0.0
    %3282 = vmatmul.mubr.f32.gmra.mrb[0].mxu0 %v3212
    %v3283 = vpop.f32.mrb[0].mxu0
    %v3284 = vadd.f32 0.0, %v3283
    %v3285 = vpop.f32.mrb[0].mxu0
    %v3286 = vadd.f32 0.0, %v3285
    %3287 = vdwg.mxu0
    %3288 = vmatprep.subr.mxu0 %v2613
    %3289 = vmatpush1.msra.mxu0 %v2612
    %3290 = vmatprep.subr.mxu0 %v2617
    %3291 = vmatpush1.msra.mxu0 %v2616
    %3292 = vmatprep.subr.mxu0 %v2621
    %3293 = vmatpush1.msra.mxu0 %v2620
    %3294 = vmatprep.subr.mxu0 %v2625
    %3295 = vmatpush1.msra.mxu0 %v2624
    %3296 = vmatprep.subr.mxu0 %v2629
    %3297 = vmatpush1.msra.mxu0 %v2628
    %3298 = vmatprep.subr.mxu0 %v2633
    %3299 = vmatpush1.msra.mxu0 %v2632
    %3300 = vmatprep.subr.mxu0 %v2637
    %3301 = vmatpush1.msra.mxu0 %v2636
    %3302 = vmatprep.subr.mxu0 %v2641
    %3303 = vmatpush1.msra.mxu0 %v2640
    %3304 = vmatprep.subr.mxu0 %v2645
    %3305 = vmatpush1.msra.mxu0 %v2644
    %3306 = vmatprep.subr.mxu0 %v2649
    %3307 = vmatpush1.msra.mxu0 %v2648
    %3308 = vmatprep.subr.mxu0 %v2653
    %3309 = vmatpush1.msra.mxu0 %v2652
    %3310 = vmatprep.subr.mxu0 %v2657
    %3311 = vmatpush1.msra.mxu0 %v2656
    %3312 = vmatprep.subr.mxu0 %v2661
    %3313 = vmatpush1.msra.mxu0 %v2660
    %3314 = vmatprep.subr.mxu0 %v2665
    %3315 = vmatpush1.msra.mxu0 %v2664
    %3316 = vmatprep.subr.mxu0 %v2669
    %3317 = vmatpush1.msra.mxu0 %v2668
    %3318 = vmatprep.subr.mxu0 %v2673
    %3319 = vmatpush1.msra.mxu0 %v2672
    %3320 = vmatprep.subr.mxu0 0.0
    %3321 = vmatpush1.msra.mxu0 0.0
    %3322 = vmatprep.subr.mxu0 0.0
    %3323 = vmatpush1.msra.mxu0 0.0
    %3324 = vmatprep.subr.mxu0 0.0
    %3325 = vmatpush1.msra.mxu0 0.0
    %3326 = vmatprep.subr.mxu0 0.0
    %3327 = vmatpush1.msra.mxu0 0.0
    %3328 = vmatprep.subr.mxu0 0.0
    %3329 = vmatpush1.msra.mxu0 0.0
    %3330 = vmatprep.subr.mxu0 0.0
    %3331 = vmatpush1.msra.mxu0 0.0
    %3332 = vmatprep.subr.mxu0 0.0
    %3333 = vmatpush1.msra.mxu0 0.0
    %3334 = vmatprep.subr.mxu0 0.0
    %3335 = vmatpush1.msra.mxu0 0.0
    %3336 = vmatprep.subr.mxu0 0.0
    %3337 = vmatpush1.msra.mxu0 0.0
    %3338 = vmatprep.subr.mxu0 0.0
    %3339 = vmatpush1.msra.mxu0 0.0
    %3340 = vmatprep.subr.mxu0 0.0
    %3341 = vmatpush1.msra.mxu0 0.0
    %3342 = vmatprep.subr.mxu0 0.0
    %3343 = vmatpush1.msra.mxu0 0.0
    %3344 = vmatprep.subr.mxu0 0.0
    %3345 = vmatpush1.msra.mxu0 0.0
    %3346 = vmatprep.subr.mxu0 0.0
    %3347 = vmatpush1.msra.mxu0 0.0
    %3348 = vmatprep.subr.mxu0 0.0
    %3349 = vmatpush1.msra.mxu0 0.0
    %3350 = vmatprep.subr.mxu0 0.0
    %3351 = vmatpush1.msra.mxu0 0.0
    %3352 = vmatprep.mubr.f32.mxu0 0.0
    %3353 = vmatmul.mubr.f32.gmra.mrb[0].mxu0 %v3212
    %v3354 = vpop.f32.mrb[0].mxu0
    %v3355 = vadd.f32 0.0, %v3354
    %v3356 = vpop.f32.mrb[0].mxu0
    %v3357 = vadd.f32 0.0, %v3356
    %3358 = vdwg.mxu0
    %v3363 = vrot.slane %v3284, 4
    %v3364 = vrot.slane %v3286, 4
    %v3365 = vrot.slane %v3355, 4
    %v3366 = vrot.slane %v3357, 4
    %v3371 = vadd.f32 %v3213, %v3363
    %v3372 = vadd.f32 %v3214, %v3364
    %v3373 = vadd.f32 %v3215, %v3365
    %v3374 = vadd.f32 %v3216, %v3366
    %v3375 = vxor.u32 %v3371, 2147483648
    %v3376 = vmul.f32 %v3375, 1.442695
    %v3377 = vpow.pop %v3376
    %v3378 = vadd.f32 %v3377, 1.0
    %v3379 = vrcp.pop %v3378
    %v3380 = vmul.f32 1.0, %v3379
    %v3381 = vxor.u32 %v3372, 2147483648
    %v3382 = vmul.f32 %v3381, 1.442695
    %v3383 = vpow.pop %v3382
    %v3384 = vadd.f32 %v3383, 1.0
    %v3385 = vrcp.pop %v3384
    %v3386 = vmul.f32 1.0, %v3385
    %v3387 = vtanh.pop %v3373
    %v3388 = vxor.u32 %v3374, 2147483648
    %v3389 = vmul.f32 %v3388, 1.442695
    %v3390 = vpow.pop %v3389
    %v3391 = vadd.f32 %v3390, 1.0
    %v3392 = vrcp.pop %v3391
    %v3393 = vmul.f32 1.0, %v3392
    %v3395 = vrot.slane %v3210, 4
    %v3397 = vmul.f32 %v3386, %v3395
    %v3398 = vmul.f32 %v3380, %v3387
    %v3399 = vadd.f32 %v3397, %v3398
    %v3400 = vtanh.pop %v3399
    %v3401 = vmul.f32 %v3393, %v3400
    %v3402 = vld [vmem:[#allocation2 + $0x40] sm:$0xf]
    %v3403 = vld [vmem:[#allocation2 + $0x48] sm:$0xf]
    %v3404 = vld [vmem:[#allocation2 + $0x50] sm:$0xf]
    %v3405 = vld [vmem:[#allocation2 + $0x58] sm:$0xf]
    %v3407 = vrot.slane %v3401, 4
    %3409 = vmatprep.subr.mxu0 %v2611
    %3410 = vmatpush1.msra.mxu0 %v2610
    %3411 = vmatprep.subr.mxu0 %v2615
    %3412 = vmatpush1.msra.mxu0 %v2614
    %3413 = vmatprep.subr.mxu0 %v2619
    %3414 = vmatpush1.msra.mxu0 %v2618
    %3415 = vmatprep.subr.mxu0 %v2623
    %3416 = vmatpush1.msra.mxu0 %v2622
    %3417 = vmatprep.subr.mxu0 %v2627
    %3418 = vmatpush1.msra.mxu0 %v2626
    %3419 = vmatprep.subr.mxu0 %v2631
    %3420 = vmatpush1.msra.mxu0 %v2630
    %3421 = vmatprep.subr.mxu0 %v2635
    %3422 = vmatpush1.msra.mxu0 %v2634
    %3423 = vmatprep.subr.mxu0 %v2639
    %3424 = vmatpush1.msra.mxu0 %v2638
    %3425 = vmatprep.subr.mxu0 %v2643
    %3426 = vmatpush1.msra.mxu0 %v2642
    %3427 = vmatprep.subr.mxu0 %v2647
    %3428 = vmatpush1.msra.mxu0 %v2646
    %3429 = vmatprep.subr.mxu0 %v2651
    %3430 = vmatpush1.msra.mxu0 %v2650
    %3431 = vmatprep.subr.mxu0 %v2655
    %3432 = vmatpush1.msra.mxu0 %v2654
    %3433 = vmatprep.subr.mxu0 %v2659
    %3434 = vmatpush1.msra.mxu0 %v2658
    %3435 = vmatprep.subr.mxu0 %v2663
    %3436 = vmatpush1.msra.mxu0 %v2662
    %3437 = vmatprep.subr.mxu0 %v2667
    %3438 = vmatpush1.msra.mxu0 %v2666
    %3439 = vmatprep.subr.mxu0 %v2671
    %3440 = vmatpush1.msra.mxu0 %v2670
    %3441 = vmatprep.subr.mxu0 0.0
    %3442 = vmatpush1.msra.mxu0 0.0
    %3443 = vmatprep.subr.mxu0 0.0
    %3444 = vmatpush1.msra.mxu0 0.0
    %3445 = vmatprep.subr.mxu0 0.0
    %3446 = vmatpush1.msra.mxu0 0.0
    %3447 = vmatprep.subr.mxu0 0.0
    %3448 = vmatpush1.msra.mxu0 0.0
    %3449 = vmatprep.subr.mxu0 0.0
    %3450 = vmatpush1.msra.mxu0 0.0
    %3451 = vmatprep.subr.mxu0 0.0
    %3452 = vmatpush1.msra.mxu0 0.0
    %3453 = vmatprep.subr.mxu0 0.0
    %3454 = vmatpush1.msra.mxu0 0.0
    %3455 = vmatprep.subr.mxu0 0.0
    %3456 = vmatpush1.msra.mxu0 0.0
    %3457 = vmatprep.subr.mxu0 0.0
    %3458 = vmatpush1.msra.mxu0 0.0
    %3459 = vmatprep.subr.mxu0 0.0
    %3460 = vmatpush1.msra.mxu0 0.0
    %3461 = vmatprep.subr.mxu0 0.0
    %3462 = vmatpush1.msra.mxu0 0.0
    %3463 = vmatprep.subr.mxu0 0.0
    %3464 = vmatpush1.msra.mxu0 0.0
    %3465 = vmatprep.subr.mxu0 0.0
    %3466 = vmatpush1.msra.mxu0 0.0
    %3467 = vmatprep.subr.mxu0 0.0
    %3468 = vmatpush1.msra.mxu0 0.0
    %3469 = vmatprep.subr.mxu0 0.0
    %3470 = vmatpush1.msra.mxu0 0.0
    %3471 = vmatprep.subr.mxu0 0.0
    %3472 = vmatpush1.msra.mxu0 0.0
    %3473 = vmatprep.mubr.f32.mxu0 0.0
    %3474 = vmatmul.mubr.f32.gmra.mrb[0].mxu0 %v3407
    %v3475 = vpop.f32.mrb[0].mxu0
    %v3476 = vadd.f32 0.0, %v3475
    %v3477 = vpop.f32.mrb[0].mxu0
    %v3478 = vadd.f32 0.0, %v3477
    %3479 = vdwg.mxu0
    %3480 = vmatprep.subr.mxu0 %v2613
    %3481 = vmatpush1.msra.mxu0 %v2612
    %3482 = vmatprep.subr.mxu0 %v2617
    %3483 = vmatpush1.msra.mxu0 %v2616
    %3484 = vmatprep.subr.mxu0 %v2621
    %3485 = vmatpush1.msra.mxu0 %v2620
    %3486 = vmatprep.subr.mxu0 %v2625
    %3487 = vmatpush1.msra.mxu0 %v2624
    %3488 = vmatprep.subr.mxu0 %v2629
    %3489 = vmatpush1.msra.mxu0 %v2628
    %3490 = vmatprep.subr.mxu0 %v2633
    %3491 = vmatpush1.msra.mxu0 %v2632
    %3492 = vmatprep.subr.mxu0 %v2637
    %3493 = vmatpush1.msra.mxu0 %v2636
    %3494 = vmatprep.subr.mxu0 %v2641
    %3495 = vmatpush1.msra.mxu0 %v2640
    %3496 = vmatprep.subr.mxu0 %v2645
    %3497 = vmatpush1.msra.mxu0 %v2644
    %3498 = vmatprep.subr.mxu0 %v2649
    %3499 = vmatpush1.msra.mxu0 %v2648
    %3500 = vmatprep.subr.mxu0 %v2653
    %3501 = vmatpush1.msra.mxu0 %v2652
    %3502 = vmatprep.subr.mxu0 %v2657
    %3503 = vmatpush1.msra.mxu0 %v2656
    %3504 = vmatprep.subr.mxu0 %v2661
    %3505 = vmatpush1.msra.mxu0 %v2660
    %3506 = vmatprep.subr.mxu0 %v2665
    %3507 = vmatpush1.msra.mxu0 %v2664
    %3508 = vmatprep.subr.mxu0 %v2669
    %3509 = vmatpush1.msra.mxu0 %v2668
    %3510 = vmatprep.subr.mxu0 %v2673
    %3511 = vmatpush1.msra.mxu0 %v2672
    %3512 = vmatprep.subr.mxu0 0.0
    %3513 = vmatpush1.msra.mxu0 0.0
    %3514 = vmatprep.subr.mxu0 0.0
    %3515 = vmatpush1.msra.mxu0 0.0
    %3516 = vmatprep.subr.mxu0 0.0
    %3517 = vmatpush1.msra.mxu0 0.0
    %3518 = vmatprep.subr.mxu0 0.0
    %3519 = vmatpush1.msra.mxu0 0.0
    %3520 = vmatprep.subr.mxu0 0.0
    %3521 = vmatpush1.msra.mxu0 0.0
    %3522 = vmatprep.subr.mxu0 0.0
    %3523 = vmatpush1.msra.mxu0 0.0
    %3524 = vmatprep.subr.mxu0 0.0
    %3525 = vmatpush1.msra.mxu0 0.0
    %3526 = vmatprep.subr.mxu0 0.0
    %3527 = vmatpush1.msra.mxu0 0.0
    %3528 = vmatprep.subr.mxu0 0.0
    %3529 = vmatpush1.msra.mxu0 0.0
    %3530 = vmatprep.subr.mxu0 0.0
    %3531 = vmatpush1.msra.mxu0 0.0
    %3532 = vmatprep.subr.mxu0 0.0
    %3533 = vmatpush1.msra.mxu0 0.0
    %3534 = vmatprep.subr.mxu0 0.0
    %3535 = vmatpush1.msra.mxu0 0.0
    %3536 = vmatprep.subr.mxu0 0.0
    %3537 = vmatpush1.msra.mxu0 0.0
    %3538 = vmatprep.subr.mxu0 0.0
    %3539 = vmatpush1.msra.mxu0 0.0
    %3540 = vmatprep.subr.mxu0 0.0
    %3541 = vmatpush1.msra.mxu0 0.0
    %3542 = vmatprep.subr.mxu0 0.0
    %3543 = vmatpush1.msra.mxu0 0.0
    %3544 = vmatprep.mubr.f32.mxu0 0.0
    %3545 = vmatmul.mubr.f32.gmra.mrb[0].mxu0 %v3407
    %v3546 = vpop.f32.mrb[0].mxu0
    %v3547 = vadd.f32 0.0, %v3546
    %v3548 = vpop.f32.mrb[0].mxu0
    %v3549 = vadd.f32 0.0, %v3548
    %3550 = vdwg.mxu0
    %v3551 = vadd.f32 %v3402, %v3476
    %v3552 = vadd.f32 %v3403, %v3478
    %v3553 = vadd.f32 %v3404, %v3547
    %v3554 = vadd.f32 %v3405, %v3549
    %v3555 = vxor.u32 %v3551, 2147483648
    %v3556 = vmul.f32 %v3555, 1.442695
    %v3557 = vpow.pop %v3556
    %v3558 = vadd.f32 %v3557, 1.0
    %v3559 = vrcp.pop %v3558
    %v3560 = vmul.f32 1.0, %v3559
    %v3561 = vxor.u32 %v3552, 2147483648
    %v3562 = vmul.f32 %v3561, 1.442695
    %v3563 = vpow.pop %v3562
    %v3564 = vadd.f32 %v3563, 1.0
    %v3565 = vrcp.pop %v3564
    %v3566 = vmul.f32 1.0, %v3565
    %v3567 = vtanh.pop %v3553
    %v3568 = vxor.u32 %v3554, 2147483648
    %v3569 = vmul.f32 %v3568, 1.442695
    %v3570 = vpow.pop %v3569
    %v3571 = vadd.f32 %v3570, 1.0
    %v3572 = vrcp.pop %v3571
    %v3573 = vmul.f32 1.0, %v3572
    %v3575 = vrot.slane %v3399, 4
    %v3577 = vmul.f32 %v3566, %v3575
    %v3578 = vmul.f32 %v3560, %v3567
    %v3579 = vadd.f32 %v3577, %v3578
    %v3580 = vtanh.pop %v3579
    %v3581 = vmul.f32 %v3573, %v3580
    %v3582 = vld [vmem:[#allocation2 + $0x40] sm:$0xf0]
    %v3583 = vld [vmem:[#allocation2 + $0x48] sm:$0xf0]
    %v3584 = vld [vmem:[#allocation2 + $0x50] sm:$0xf0]
    %v3585 = vld [vmem:[#allocation2 + $0x58] sm:$0xf0]
    %3586 = vmatprep.subr.mxu0 %v2611
    %3587 = vmatpush1.msra.mxu0 %v2610
    %3588 = vmatprep.subr.mxu0 %v2615
    %3589 = vmatpush1.msra.mxu0 %v2614
    %3590 = vmatprep.subr.mxu0 %v2619
    %3591 = vmatpush1.msra.mxu0 %v2618
    %3592 = vmatprep.subr.mxu0 %v2623
    %3593 = vmatpush1.msra.mxu0 %v2622
    %3594 = vmatprep.subr.mxu0 %v2627
    %3595 = vmatpush1.msra.mxu0 %v2626
    %3596 = vmatprep.subr.mxu0 %v2631
    %3597 = vmatpush1.msra.mxu0 %v2630
    %3598 = vmatprep.subr.mxu0 %v2635
    %3599 = vmatpush1.msra.mxu0 %v2634
    %3600 = vmatprep.subr.mxu0 %v2639
    %3601 = vmatpush1.msra.mxu0 %v2638
    %3602 = vmatprep.subr.mxu0 %v2643
    %3603 = vmatpush1.msra.mxu0 %v2642
    %3604 = vmatprep.subr.mxu0 %v2647
    %3605 = vmatpush1.msra.mxu0 %v2646
    %3606 = vmatprep.subr.mxu0 %v2651
    %3607 = vmatpush1.msra.mxu0 %v2650
    %3608 = vmatprep.subr.mxu0 %v2655
    %3609 = vmatpush1.msra.mxu0 %v2654
    %3610 = vmatprep.subr.mxu0 %v2659
    %3611 = vmatpush1.msra.mxu0 %v2658
    %3612 = vmatprep.subr.mxu0 %v2663
    %3613 = vmatpush1.msra.mxu0 %v2662
    %3614 = vmatprep.subr.mxu0 %v2667
    %3615 = vmatpush1.msra.mxu0 %v2666
    %3616 = vmatprep.subr.mxu0 %v2671
    %3617 = vmatpush1.msra.mxu0 %v2670
    %3618 = vmatprep.subr.mxu0 0.0
    %3619 = vmatpush1.msra.mxu0 0.0
    %3620 = vmatprep.subr.mxu0 0.0
    %3621 = vmatpush1.msra.mxu0 0.0
    %3622 = vmatprep.subr.mxu0 0.0
    %3623 = vmatpush1.msra.mxu0 0.0
    %3624 = vmatprep.subr.mxu0 0.0
    %3625 = vmatpush1.msra.mxu0 0.0
    %3626 = vmatprep.subr.mxu0 0.0
    %3627 = vmatpush1.msra.mxu0 0.0
    %3628 = vmatprep.subr.mxu0 0.0
    %3629 = vmatpush1.msra.mxu0 0.0
    %3630 = vmatprep.subr.mxu0 0.0
    %3631 = vmatpush1.msra.mxu0 0.0
    %3632 = vmatprep.subr.mxu0 0.0
    %3633 = vmatpush1.msra.mxu0 0.0
    %3634 = vmatprep.subr.mxu0 0.0
    %3635 = vmatpush1.msra.mxu0 0.0
    %3636 = vmatprep.subr.mxu0 0.0
    %3637 = vmatpush1.msra.mxu0 0.0
    %3638 = vmatprep.subr.mxu0 0.0
    %3639 = vmatpush1.msra.mxu0 0.0
    %3640 = vmatprep.subr.mxu0 0.0
    %3641 = vmatpush1.msra.mxu0 0.0
    %3642 = vmatprep.subr.mxu0 0.0
    %3643 = vmatpush1.msra.mxu0 0.0
    %3644 = vmatprep.subr.mxu0 0.0
    %3645 = vmatpush1.msra.mxu0 0.0
    %3646 = vmatprep.subr.mxu0 0.0
    %3647 = vmatpush1.msra.mxu0 0.0
    %3648 = vmatprep.subr.mxu0 0.0
    %3649 = vmatpush1.msra.mxu0 0.0
    %3650 = vmatprep.mubr.f32.mxu0 0.0
    %3651 = vmatmul.mubr.f32.gmra.mrb[0].mxu0 %v3581
    %v3652 = vpop.f32.mrb[0].mxu0
    %v3653 = vadd.f32 0.0, %v3652
    %v3654 = vpop.f32.mrb[0].mxu0
    %v3655 = vadd.f32 0.0, %v3654
    %3656 = vdwg.mxu0
    %3657 = vmatprep.subr.mxu0 %v2613
    %3658 = vmatpush1.msra.mxu0 %v2612
    %3659 = vmatprep.subr.mxu0 %v2617
    %3660 = vmatpush1.msra.mxu0 %v2616
    %3661 = vmatprep.subr.mxu0 %v2621
    %3662 = vmatpush1.msra.mxu0 %v2620
    %3663 = vmatprep.subr.mxu0 %v2625
    %3664 = vmatpush1.msra.mxu0 %v2624
    %3665 = vmatprep.subr.mxu0 %v2629
    %3666 = vmatpush1.msra.mxu0 %v2628
    %3667 = vmatprep.subr.mxu0 %v2633
    %3668 = vmatpush1.msra.mxu0 %v2632
    %3669 = vmatprep.subr.mxu0 %v2637
    %3670 = vmatpush1.msra.mxu0 %v2636
    %3671 = vmatprep.subr.mxu0 %v2641
    %3672 = vmatpush1.msra.mxu0 %v2640
    %3673 = vmatprep.subr.mxu0 %v2645
    %3674 = vmatpush1.msra.mxu0 %v2644
    %3675 = vmatprep.subr.mxu0 %v2649
    %3676 = vmatpush1.msra.mxu0 %v2648
    %3677 = vmatprep.subr.mxu0 %v2653
    %3678 = vmatpush1.msra.mxu0 %v2652
    %3679 = vmatprep.subr.mxu0 %v2657
    %3680 = vmatpush1.msra.mxu0 %v2656
    %3681 = vmatprep.subr.mxu0 %v2661
    %3682 = vmatpush1.msra.mxu0 %v2660
    %3683 = vmatprep.subr.mxu0 %v2665
    %3684 = vmatpush1.msra.mxu0 %v2664
    %3685 = vmatprep.subr.mxu0 %v2669
    %3686 = vmatpush1.msra.mxu0 %v2668
    %3687 = vmatprep.subr.mxu0 %v2673
    %3688 = vmatpush1.msra.mxu0 %v2672
    %3689 = vmatprep.subr.mxu0 0.0
    %3690 = vmatpush1.msra.mxu0 0.0
    %3691 = vmatprep.subr.mxu0 0.0
    %3692 = vmatpush1.msra.mxu0 0.0
    %3693 = vmatprep.subr.mxu0 0.0
    %3694 = vmatpush1.msra.mxu0 0.0
    %3695 = vmatprep.subr.mxu0 0.0
    %3696 = vmatpush1.msra.mxu0 0.0
    %3697 = vmatprep.subr.mxu0 0.0
    %3698 = vmatpush1.msra.mxu0 0.0
    %3699 = vmatprep.subr.mxu0 0.0
    %3700 = vmatpush1.msra.mxu0 0.0
    %3701 = vmatprep.subr.mxu0 0.0
    %3702 = vmatpush1.msra.mxu0 0.0
    %3703 = vmatprep.subr.mxu0 0.0
    %3704 = vmatpush1.msra.mxu0 0.0
    %3705 = vmatprep.subr.mxu0 0.0
    %3706 = vmatpush1.msra.mxu0 0.0
    %3707 = vmatprep.subr.mxu0 0.0
    %3708 = vmatpush1.msra.mxu0 0.0
    %3709 = vmatprep.subr.mxu0 0.0
    %3710 = vmatpush1.msra.mxu0 0.0
    %3711 = vmatprep.subr.mxu0 0.0
    %3712 = vmatpush1.msra.mxu0 0.0
    %3713 = vmatprep.subr.mxu0 0.0
    %3714 = vmatpush1.msra.mxu0 0.0
    %3715 = vmatprep.subr.mxu0 0.0
    %3716 = vmatpush1.msra.mxu0 0.0
    %3717 = vmatprep.subr.mxu0 0.0
    %3718 = vmatpush1.msra.mxu0 0.0
    %3719 = vmatprep.subr.mxu0 0.0
    %3720 = vmatpush1.msra.mxu0 0.0
    %3721 = vmatprep.mubr.f32.mxu0 0.0
    %3722 = vmatmul.mubr.f32.gmra.mrb[0].mxu0 %v3581
    %v3723 = vpop.f32.mrb[0].mxu0
    %v3724 = vadd.f32 0.0, %v3723
    %v3725 = vpop.f32.mrb[0].mxu0
    %v3726 = vadd.f32 0.0, %v3725
    %3727 = vdwg.mxu0
    %v3732 = vrot.slane %v3653, 4
    %v3733 = vrot.slane %v3655, 4
    %v3734 = vrot.slane %v3724, 4
    %v3735 = vrot.slane %v3726, 4
    %v3740 = vadd.f32 %v3582, %v3732
    %v3741 = vadd.f32 %v3583, %v3733
    %v3742 = vadd.f32 %v3584, %v3734
    %v3743 = vadd.f32 %v3585, %v3735
    %v3744 = vxor.u32 %v3740, 2147483648
    %v3745 = vmul.f32 %v3744, 1.442695
    %v3746 = vpow.pop %v3745
    %v3747 = vadd.f32 %v3746, 1.0
    %v3748 = vrcp.pop %v3747
    %v3749 = vmul.f32 1.0, %v3748
    %v3750 = vxor.u32 %v3741, 2147483648
    %v3751 = vmul.f32 %v3750, 1.442695
    %v3752 = vpow.pop %v3751
    %v3753 = vadd.f32 %v3752, 1.0
    %v3754 = vrcp.pop %v3753
    %v3755 = vmul.f32 1.0, %v3754
    %v3756 = vtanh.pop %v3742
    %v3757 = vxor.u32 %v3743, 2147483648
    %v3758 = vmul.f32 %v3757, 1.442695
    %v3759 = vpow.pop %v3758
    %v3760 = vadd.f32 %v3759, 1.0
    %v3761 = vrcp.pop %v3760
    %v3762 = vmul.f32 1.0, %v3761
    %v3764 = vrot.slane %v3579, 4
    %v3766 = vmul.f32 %v3755, %v3764
    %v3767 = vmul.f32 %v3749, %v3756
    %v3768 = vadd.f32 %v3766, %v3767
    %v3769 = vtanh.pop %v3768
    %v3770 = vmul.f32 %v3762, %v3769
    %v3771 = vld [vmem:[#allocation2 + $0x60] sm:$0xf]
    %v3772 = vld [vmem:[#allocation2 + $0x68] sm:$0xf]
    %v3773 = vld [vmem:[#allocation2 + $0x70] sm:$0xf]
    %v3774 = vld [vmem:[#allocation2 + $0x78] sm:$0xf]
    %v3776 = vrot.slane %v3770, 4
    %3778 = vmatprep.subr.mxu0 %v2611
    %3779 = vmatpush1.msra.mxu0 %v2610
    %3780 = vmatprep.subr.mxu0 %v2615
    %3781 = vmatpush1.msra.mxu0 %v2614
    %3782 = vmatprep.subr.mxu0 %v2619
    %3783 = vmatpush1.msra.mxu0 %v2618
    %3784 = vmatprep.subr.mxu0 %v2623
    %3785 = vmatpush1.msra.mxu0 %v2622
    %3786 = vmatprep.subr.mxu0 %v2627
    %3787 = vmatpush1.msra.mxu0 %v2626
    %3788 = vmatprep.subr.mxu0 %v2631
    %3789 = vmatpush1.msra.mxu0 %v2630
    %3790 = vmatprep.subr.mxu0 %v2635
    %3791 = vmatpush1.msra.mxu0 %v2634
    %3792 = vmatprep.subr.mxu0 %v2639
    %3793 = vmatpush1.msra.mxu0 %v2638
    %3794 = vmatprep.subr.mxu0 %v2643
    %3795 = vmatpush1.msra.mxu0 %v2642
    %3796 = vmatprep.subr.mxu0 %v2647
    %3797 = vmatpush1.msra.mxu0 %v2646
    %3798 = vmatprep.subr.mxu0 %v2651
    %3799 = vmatpush1.msra.mxu0 %v2650
    %3800 = vmatprep.subr.mxu0 %v2655
    %3801 = vmatpush1.msra.mxu0 %v2654
    %3802 = vmatprep.subr.mxu0 %v2659
    %3803 = vmatpush1.msra.mxu0 %v2658
    %3804 = vmatprep.subr.mxu0 %v2663
    %3805 = vmatpush1.msra.mxu0 %v2662
    %3806 = vmatprep.subr.mxu0 %v2667
    %3807 = vmatpush1.msra.mxu0 %v2666
    %3808 = vmatprep.subr.mxu0 %v2671
    %3809 = vmatpush1.msra.mxu0 %v2670
    %3810 = vmatprep.subr.mxu0 0.0
    %3811 = vmatpush1.msra.mxu0 0.0
    %3812 = vmatprep.subr.mxu0 0.0
    %3813 = vmatpush1.msra.mxu0 0.0
    %3814 = vmatprep.subr.mxu0 0.0
    %3815 = vmatpush1.msra.mxu0 0.0
    %3816 = vmatprep.subr.mxu0 0.0
    %3817 = vmatpush1.msra.mxu0 0.0
    %3818 = vmatprep.subr.mxu0 0.0
    %3819 = vmatpush1.msra.mxu0 0.0
    %3820 = vmatprep.subr.mxu0 0.0
    %3821 = vmatpush1.msra.mxu0 0.0
    %3822 = vmatprep.subr.mxu0 0.0
    %3823 = vmatpush1.msra.mxu0 0.0
    %3824 = vmatprep.subr.mxu0 0.0
    %3825 = vmatpush1.msra.mxu0 0.0
    %3826 = vmatprep.subr.mxu0 0.0
    %3827 = vmatpush1.msra.mxu0 0.0
    %3828 = vmatprep.subr.mxu0 0.0
    %3829 = vmatpush1.msra.mxu0 0.0
    %3830 = vmatprep.subr.mxu0 0.0
    %3831 = vmatpush1.msra.mxu0 0.0
    %3832 = vmatprep.subr.mxu0 0.0
    %3833 = vmatpush1.msra.mxu0 0.0
    %3834 = vmatprep.subr.mxu0 0.0
    %3835 = vmatpush1.msra.mxu0 0.0
    %3836 = vmatprep.subr.mxu0 0.0
    %3837 = vmatpush1.msra.mxu0 0.0
    %3838 = vmatprep.subr.mxu0 0.0
    %3839 = vmatpush1.msra.mxu0 0.0
    %3840 = vmatprep.subr.mxu0 0.0
    %3841 = vmatpush1.msra.mxu0 0.0
    %3842 = vmatprep.mubr.f32.mxu0 0.0
    %3843 = vmatmul.mubr.f32.gmra.mrb[0].mxu0 %v3776
    %v3844 = vpop.f32.mrb[0].mxu0
    %v3845 = vadd.f32 0.0, %v3844
    %v3846 = vpop.f32.mrb[0].mxu0
    %v3847 = vadd.f32 0.0, %v3846
    %3848 = vdwg.mxu0
    %3849 = vmatprep.subr.mxu0 %v2613
    %3850 = vmatpush1.msra.mxu0 %v2612
    %3851 = vmatprep.subr.mxu0 %v2617
    %3852 = vmatpush1.msra.mxu0 %v2616
    %3853 = vmatprep.subr.mxu0 %v2621
    %3854 = vmatpush1.msra.mxu0 %v2620
    %3855 = vmatprep.subr.mxu0 %v2625
    %3856 = vmatpush1.msra.mxu0 %v2624
    %3857 = vmatprep.subr.mxu0 %v2629
    %3858 = vmatpush1.msra.mxu0 %v2628
    %3859 = vmatprep.subr.mxu0 %v2633
    %3860 = vmatpush1.msra.mxu0 %v2632
    %3861 = vmatprep.subr.mxu0 %v2637
    %3862 = vmatpush1.msra.mxu0 %v2636
    %3863 = vmatprep.subr.mxu0 %v2641
    %3864 = vmatpush1.msra.mxu0 %v2640
    %3865 = vmatprep.subr.mxu0 %v2645
    %3866 = vmatpush1.msra.mxu0 %v2644
    %3867 = vmatprep.subr.mxu0 %v2649
    %3868 = vmatpush1.msra.mxu0 %v2648
    %3869 = vmatprep.subr.mxu0 %v2653
    %3870 = vmatpush1.msra.mxu0 %v2652
    %3871 = vmatprep.subr.mxu0 %v2657
    %3872 = vmatpush1.msra.mxu0 %v2656
    %3873 = vmatprep.subr.mxu0 %v2661
    %3874 = vmatpush1.msra.mxu0 %v2660
    %3875 = vmatprep.subr.mxu0 %v2665
    %3876 = vmatpush1.msra.mxu0 %v2664
    %3877 = vmatprep.subr.mxu0 %v2669
    %3878 = vmatpush1.msra.mxu0 %v2668
    %3879 = vmatprep.subr.mxu0 %v2673
    %3880 = vmatpush1.msra.mxu0 %v2672
    %3881 = vmatprep.subr.mxu0 0.0
    %3882 = vmatpush1.msra.mxu0 0.0
    %3883 = vmatprep.subr.mxu0 0.0
    %3884 = vmatpush1.msra.mxu0 0.0
    %3885 = vmatprep.subr.mxu0 0.0
    %3886 = vmatpush1.msra.mxu0 0.0
    %3887 = vmatprep.subr.mxu0 0.0
    %3888 = vmatpush1.msra.mxu0 0.0
    %3889 = vmatprep.subr.mxu0 0.0
    %3890 = vmatpush1.msra.mxu0 0.0
    %3891 = vmatprep.subr.mxu0 0.0
    %3892 = vmatpush1.msra.mxu0 0.0
    %3893 = vmatprep.subr.mxu0 0.0
    %3894 = vmatpush1.msra.mxu0 0.0
    %3895 = vmatprep.subr.mxu0 0.0
    %3896 = vmatpush1.msra.mxu0 0.0
    %3897 = vmatprep.subr.mxu0 0.0
    %3898 = vmatpush1.msra.mxu0 0.0
    %3899 = vmatprep.subr.mxu0 0.0
    %3900 = vmatpush1.msra.mxu0 0.0
    %3901 = vmatprep.subr.mxu0 0.0
    %3902 = vmatpush1.msra.mxu0 0.0
    %3903 = vmatprep.subr.mxu0 0.0
    %3904 = vmatpush1.msra.mxu0 0.0
    %3905 = vmatprep.subr.mxu0 0.0
    %3906 = vmatpush1.msra.mxu0 0.0
    %3907 = vmatprep.subr.mxu0 0.0
    %3908 = vmatpush1.msra.mxu0 0.0
    %3909 = vmatprep.subr.mxu0 0.0
    %3910 = vmatpush1.msra.mxu0 0.0
    %3911 = vmatprep.subr.mxu0 0.0
    %3912 = vmatpush1.msra.mxu0 0.0
    %3913 = vmatprep.mubr.f32.mxu0 0.0
    %3914 = vmatmul.mubr.f32.gmra.mrb[0].mxu0 %v3776
    %v3915 = vpop.f32.mrb[0].mxu0
    %v3916 = vadd.f32 0.0, %v3915
    %v3917 = vpop.f32.mrb[0].mxu0
    %v3918 = vadd.f32 0.0, %v3917
    %3919 = vdwg.mxu0
    %v3920 = vadd.f32 %v3771, %v3845
    %v3921 = vadd.f32 %v3772, %v3847
    %v3922 = vadd.f32 %v3773, %v3916
    %v3923 = vadd.f32 %v3774, %v3918
    %v3924 = vxor.u32 %v3920, 2147483648
    %v3925 = vmul.f32 %v3924, 1.442695
    %v3926 = vpow.pop %v3925
    %v3927 = vadd.f32 %v3926, 1.0
    %v3928 = vrcp.pop %v3927
    %v3929 = vmul.f32 1.0, %v3928
    %v3930 = vxor.u32 %v3921, 2147483648
    %v3931 = vmul.f32 %v3930, 1.442695
    %v3932 = vpow.pop %v3931
    %v3933 = vadd.f32 %v3932, 1.0
    %v3934 = vrcp.pop %v3933
    %v3935 = vmul.f32 1.0, %v3934
    %v3936 = vtanh.pop %v3922
    %v3937 = vxor.u32 %v3923, 2147483648
    %v3938 = vmul.f32 %v3937, 1.442695
    %v3939 = vpow.pop %v3938
    %v3940 = vadd.f32 %v3939, 1.0
    %v3941 = vrcp.pop %v3940
    %v3942 = vmul.f32 1.0, %v3941
    %v3944 = vrot.slane %v3768, 4
    %v3946 = vmul.f32 %v3935, %v3944
    %v3947 = vmul.f32 %v3929, %v3936
    %v3948 = vadd.f32 %v3946, %v3947
    %v3949 = vtanh.pop %v3948
    %v3950 = vmul.f32 %v3942, %v3949
    %v3951 = vld [vmem:[#allocation2 + $0x60] sm:$0xf0]
    %v3952 = vld [vmem:[#allocation2 + $0x68] sm:$0xf0]
    %v3953 = vld [vmem:[#allocation2 + $0x70] sm:$0xf0]
    %v3954 = vld [vmem:[#allocation2 + $0x78] sm:$0xf0]
    %3955 = vmatprep.subr.mxu0 %v2611
    %3956 = vmatpush1.msra.mxu0 %v2610
    %3957 = vmatprep.subr.mxu0 %v2615
    %3958 = vmatpush1.msra.mxu0 %v2614
    %3959 = vmatprep.subr.mxu0 %v2619
    %3960 = vmatpush1.msra.mxu0 %v2618
    %3961 = vmatprep.subr.mxu0 %v2623
    %3962 = vmatpush1.msra.mxu0 %v2622
    %3963 = vmatprep.subr.mxu0 %v2627
    %3964 = vmatpush1.msra.mxu0 %v2626
    %3965 = vmatprep.subr.mxu0 %v2631
    %3966 = vmatpush1.msra.mxu0 %v2630
    %3967 = vmatprep.subr.mxu0 %v2635
    %3968 = vmatpush1.msra.mxu0 %v2634
    %3969 = vmatprep.subr.mxu0 %v2639
    %3970 = vmatpush1.msra.mxu0 %v2638
    %3971 = vmatprep.subr.mxu0 %v2643
    %3972 = vmatpush1.msra.mxu0 %v2642
    %3973 = vmatprep.subr.mxu0 %v2647
    %3974 = vmatpush1.msra.mxu0 %v2646
    %3975 = vmatprep.subr.mxu0 %v2651
    %3976 = vmatpush1.msra.mxu0 %v2650
    %3977 = vmatprep.subr.mxu0 %v2655
    %3978 = vmatpush1.msra.mxu0 %v2654
    %3979 = vmatprep.subr.mxu0 %v2659
    %3980 = vmatpush1.msra.mxu0 %v2658
    %3981 = vmatprep.subr.mxu0 %v2663
    %3982 = vmatpush1.msra.mxu0 %v2662
    %3983 = vmatprep.subr.mxu0 %v2667
    %3984 = vmatpush1.msra.mxu0 %v2666
    %3985 = vmatprep.subr.mxu0 %v2671
    %3986 = vmatpush1.msra.mxu0 %v2670
    %3987 = vmatprep.subr.mxu0 0.0
    %3988 = vmatpush1.msra.mxu0 0.0
    %3989 = vmatprep.subr.mxu0 0.0
    %3990 = vmatpush1.msra.mxu0 0.0
    %3991 = vmatprep.subr.mxu0 0.0
    %3992 = vmatpush1.msra.mxu0 0.0
    %3993 = vmatprep.subr.mxu0 0.0
    %3994 = vmatpush1.msra.mxu0 0.0
    %3995 = vmatprep.subr.mxu0 0.0
    %3996 = vmatpush1.msra.mxu0 0.0
    %3997 = vmatprep.subr.mxu0 0.0
    %3998 = vmatpush1.msra.mxu0 0.0
    %3999 = vmatprep.subr.mxu0 0.0
    %4000 = vmatpush1.msra.mxu0 0.0
    %4001 = vmatprep.subr.mxu0 0.0
    %4002 = vmatpush1.msra.mxu0 0.0
    %4003 = vmatprep.subr.mxu0 0.0
    %4004 = vmatpush1.msra.mxu0 0.0
    %4005 = vmatprep.subr.mxu0 0.0
    %4006 = vmatpush1.msra.mxu0 0.0
    %4007 = vmatprep.subr.mxu0 0.0
    %4008 = vmatpush1.msra.mxu0 0.0
    %4009 = vmatprep.subr.mxu0 0.0
    %4010 = vmatpush1.msra.mxu0 0.0
    %4011 = vmatprep.subr.mxu0 0.0
    %4012 = vmatpush1.msra.mxu0 0.0
    %4013 = vmatprep.subr.mxu0 0.0
    %4014 = vmatpush1.msra.mxu0 0.0
    %4015 = vmatprep.subr.mxu0 0.0
    %4016 = vmatpush1.msra.mxu0 0.0
    %4017 = vmatprep.subr.mxu0 0.0
    %4018 = vmatpush1.msra.mxu0 0.0
    %4019 = vmatprep.mubr.f32.mxu0 0.0
    %4020 = vmatmul.mubr.f32.gmra.mrb[0].mxu0 %v3950
    %v4021 = vpop.f32.mrb[0].mxu0
    %v4022 = vadd.f32 0.0, %v4021
    %v4023 = vpop.f32.mrb[0].mxu0
    %v4024 = vadd.f32 0.0, %v4023
    %4025 = vdwg.mxu0
    %4026 = vmatprep.subr.mxu0 %v2613
    %4027 = vmatpush1.msra.mxu0 %v2612
    %4028 = vmatprep.subr.mxu0 %v2617
    %4029 = vmatpush1.msra.mxu0 %v2616
    %4030 = vmatprep.subr.mxu0 %v2621
    %4031 = vmatpush1.msra.mxu0 %v2620
    %4032 = vmatprep.subr.mxu0 %v2625
    %4033 = vmatpush1.msra.mxu0 %v2624
    %4034 = vmatprep.subr.mxu0 %v2629
    %4035 = vmatpush1.msra.mxu0 %v2628
    %4036 = vmatprep.subr.mxu0 %v2633
    %4037 = vmatpush1.msra.mxu0 %v2632
    %4038 = vmatprep.subr.mxu0 %v2637
    %4039 = vmatpush1.msra.mxu0 %v2636
    %4040 = vmatprep.subr.mxu0 %v2641
    %4041 = vmatpush1.msra.mxu0 %v2640
    %4042 = vmatprep.subr.mxu0 %v2645
    %4043 = vmatpush1.msra.mxu0 %v2644
    %4044 = vmatprep.subr.mxu0 %v2649
    %4045 = vmatpush1.msra.mxu0 %v2648
    %4046 = vmatprep.subr.mxu0 %v2653
    %4047 = vmatpush1.msra.mxu0 %v2652
    %4048 = vmatprep.subr.mxu0 %v2657
    %4049 = vmatpush1.msra.mxu0 %v2656
    %4050 = vmatprep.subr.mxu0 %v2661
    %4051 = vmatpush1.msra.mxu0 %v2660
    %4052 = vmatprep.subr.mxu0 %v2665
    %4053 = vmatpush1.msra.mxu0 %v2664
    %4054 = vmatprep.subr.mxu0 %v2669
    %4055 = vmatpush1.msra.mxu0 %v2668
    %4056 = vmatprep.subr.mxu0 %v2673
    %4057 = vmatpush1.msra.mxu0 %v2672
    %4058 = vmatprep.subr.mxu0 0.0
    %4059 = vmatpush1.msra.mxu0 0.0
    %4060 = vmatprep.subr.mxu0 0.0
    %4061 = vmatpush1.msra.mxu0 0.0
    %4062 = vmatprep.subr.mxu0 0.0
    %4063 = vmatpush1.msra.mxu0 0.0
    %4064 = vmatprep.subr.mxu0 0.0
    %4065 = vmatpush1.msra.mxu0 0.0
    %4066 = vmatprep.subr.mxu0 0.0
    %4067 = vmatpush1.msra.mxu0 0.0
    %4068 = vmatprep.subr.mxu0 0.0
    %4069 = vmatpush1.msra.mxu0 0.0
    %4070 = vmatprep.subr.mxu0 0.0
    %4071 = vmatpush1.msra.mxu0 0.0
    %4072 = vmatprep.subr.mxu0 0.0
    %4073 = vmatpush1.msra.mxu0 0.0
    %4074 = vmatprep.subr.mxu0 0.0
    %4075 = vmatpush1.msra.mxu0 0.0
    %4076 = vmatprep.subr.mxu0 0.0
    %4077 = vmatpush1.msra.mxu0 0.0
    %4078 = vmatprep.subr.mxu0 0.0
    %4079 = vmatpush1.msra.mxu0 0.0
    %4080 = vmatprep.subr.mxu0 0.0
    %4081 = vmatpush1.msra.mxu0 0.0
    %4082 = vmatprep.subr.mxu0 0.0
    %4083 = vmatpush1.msra.mxu0 0.0
    %4084 = vmatprep.subr.mxu0 0.0
    %4085 = vmatpush1.msra.mxu0 0.0
    %4086 = vmatprep.subr.mxu0 0.0
    %4087 = vmatpush1.msra.mxu0 0.0
    %4088 = vmatprep.subr.mxu0 0.0
    %4089 = vmatpush1.msra.mxu0 0.0
    %4090 = vmatprep.mubr.f32.mxu0 0.0
    %4091 = vmatmul.mubr.f32.gmra.mrb[0].mxu0 %v3950
    %v4092 = vpop.f32.mrb[0].mxu0
    %v4093 = vadd.f32 0.0, %v4092
    %v4094 = vpop.f32.mrb[0].mxu0
    %v4095 = vadd.f32 0.0, %v4094
    %4096 = vdwg.mxu0
    %v4101 = vrot.slane %v4022, 4
    %v4102 = vrot.slane %v4024, 4
    %v4103 = vrot.slane %v4093, 4
    %v4104 = vrot.slane %v4095, 4
    %v4109 = vadd.f32 %v3951, %v4101
    %v4110 = vadd.f32 %v3952, %v4102
    %v4111 = vadd.f32 %v3953, %v4103
    %v4112 = vadd.f32 %v3954, %v4104
    %v4113 = vxor.u32 %v4109, 2147483648
    %v4114 = vmul.f32 %v4113, 1.442695
    %v4115 = vpow.pop %v4114
    %v4116 = vadd.f32 %v4115, 1.0
    %v4117 = vrcp.pop %v4116
    %v4118 = vmul.f32 1.0, %v4117
    %v4119 = vxor.u32 %v4110, 2147483648
    %v4120 = vmul.f32 %v4119, 1.442695
    %v4121 = vpow.pop %v4120
    %v4122 = vadd.f32 %v4121, 1.0
    %v4123 = vrcp.pop %v4122
    %v4124 = vmul.f32 1.0, %v4123
    %v4125 = vtanh.pop %v4111
    %v4126 = vxor.u32 %v4112, 2147483648
    %v4127 = vmul.f32 %v4126, 1.442695
    %v4128 = vpow.pop %v4127
    %v4129 = vadd.f32 %v4128, 1.0
    %v4130 = vrcp.pop %v4129
    %v4131 = vmul.f32 1.0, %v4130
    %v4133 = vrot.slane %v3948, 4
    %v4135 = vmul.f32 %v4124, %v4133
    %v4136 = vmul.f32 %v4118, %v4125
    %v4137 = vadd.f32 %v4135, %v4136
    %v4138 = vtanh.pop %v4137
    %v4139 = vmul.f32 %v4131, %v4138
    %4140 = vst [vmem:[%s7 - $0x4] sm:$0xf0] %v4139
    // Predicated region
    $region42: #{_lambda_.6} parent=1 // pred_check
      _
    $region43: #{_lambda_.6} parent=1 // pred_check_branch
      %4142 = sbr.rel (0) target = $region45
    $region44: #{_lambda_.6} parent=1 // pred_region
      _
    $region45: #{_lambda_.6} parent=1 // pred_fallthru
      _
    // Predicated region
    $region46: #{_lambda_.6} parent=1 // pred_check
      _
    $region47: #{_lambda_.6} parent=1 // pred_check_branch
      %4144 = sbr.rel (0) target = $region49
    $region48: #{_lambda_.6} parent=1 // pred_region
      _
    $region49: #{_lambda_.6} parent=1 // pred_fallthru
      _
    %4145 = vsyncpa [#allocation5], 1
    %4146 = vsyncpa [#allocation7], 1

</llo_original>
